<compile_context>
chip_gen: v7x
topology: tpu7x:2x2x1
jax: 0.10.0
libtpu: 0.0.40
codegen_flags: <defaults>
</compile_context>

<pallas_src>
import jax
import jax.numpy as jnp
import numpy as np
from jax.experimental import pallas as pl
from jax.experimental.pallas import tpu as pltpu


B_TILE = 16   # images per grid step; multiple of 8 => tile-aligned row merges


# ----------------------------------------------------------------------------
# Single fused kernel: whole encoder forward for B_TILE batch elements.
# ----------------------------------------------------------------------------
def _encoder_kernel(x_ref, m1_ref, m2_ref, m3_ref, m4_ref, m5_ref,
                    w1_ref, w2_ref, post_ref, o_ref):
    f32 = jnp.float32
    b = x_ref.shape[1]                       # batch tile (multiple of 8)

    def conv3x3(y3, m_ref, h_out, stride, pad):
        """3x3 conv.  y3: (H_in, B, W_in*C_in), lane index = w*C_in + c.

        m_ref[kh]: (W_in*C_in, W_out*C_out) folds the three kw taps, the
        horizontal stride/padding selection and the C_in->C_out mixing.
        Vertical tap selection uses static leading-dim slices only (no
        selection matmuls).  Returns (h_out*B, W_out*C_out) with row = ho*B+b.
        """
        h_in, bb, l_in = y3.shape
        l_out = m_ref.shape[2]
        if pad:
            zrow = jnp.zeros((pad, bb, l_in), f32)
            y3 = jnp.concatenate([zrow, y3, zrow], axis=0)
        acc = jnp.zeros((h_out * bb, l_out), f32)
        for kh in range(3):
            if stride == 1:
                rows = y3[kh:kh + h_out]                       # (h_out, B, L)
            else:  # stride == 2: contiguous window, keep even slabs
                win = y3[kh:kh + 2 * h_out]                    # (2*h_out, B, L)
                rows = win.reshape(h_out, 2, bb, l_in)[:, 0, :, :]
            acc = acc + jnp.dot(rows.reshape(h_out * bb, l_in), m_ref[kh],
                                preferred_element_type=f32)
        return acc

    x = x_ref[...]                                             # (48, B, 48)

    # conv1 (1->4, s1 p1) + tanh
    y = conv3x3(x, m1_ref, 48, 1, 1)                           # (48B, 192)
    y = jnp.tanh(y + post_ref[0:1, 0:192])
    # conv2 (4->8, s2 p1); BatchNorm folded into weights/bias
    y = conv3x3(y.reshape(48, b, 192), m2_ref, 24, 2, 1)       # (24B, 192)
    y = y + post_ref[1:2, 0:192]
    # conv3 (8->16, s2 p1) + tanh + BatchNorm
    y = conv3x3(y.reshape(24, b, 192), m3_ref, 12, 2, 1)       # (12B, 192)
    y = (jnp.tanh(y + post_ref[2:3, 0:192]) * post_ref[3:4, 0:192]
         + post_ref[4:5, 0:192])
    # conv4 (16->32, s2 p0) + tanh
    y = conv3x3(y.reshape(12, b, 192), m4_ref, 5, 2, 0)        # (5B, 160)
    y = jnp.tanh(y + post_ref[5:6, 0:160])
    # conv5 (32->48, s1 p0) + tanh + BatchNorm
    y = conv3x3(y.reshape(5, b, 160), m5_ref, 3, 1, 0)         # (3B, 144)
    y = (jnp.tanh(y + post_ref[6:7, 0:144]) * post_ref[7:8, 0:144]
         + post_ref[8:9, 0:144])

    # fc1 (432 -> 128) + Hardtanh.  Row block h*B:(h+1)*B of y is spatial row
    # h with lane = w*48 + c; w1_ref was pre-permuted to (h, w*48 + c, out).
    z = jnp.zeros((b, 128), f32)
    for h in range(3):
        z = z + jnp.dot(y[h * b:(h + 1) * b, :], w1_ref[h],
                        preferred_element_type=f32)
    z = jnp.clip(z + post_ref[9:10, 0:128], -1.0, 1.0)

    # fc2 (128 -> encoded_space_dim), dense (B, enc) output block
    enc = o_ref.shape[-1]
    o_ref[...] = (jnp.dot(z, w2_ref[...], preferred_element_type=f32)
                  + post_ref[10:11, 0:enc])


# ----------------------------------------------------------------------------
# One-time host-side weight preprocessing (numpy; NOT in the jitted path)
# ----------------------------------------------------------------------------
def _conv_mix_matrices(w_oihw, stride, pad, w_in, w_out, out_scale=None):
    """Per-kh mixing matrices (3, W_in*C_in, W_out*C_out).

    M_kh[w*C_in + ci, wo*C_out + co] = sum_kw [w == stride*wo + kw - pad]
                                              * W[co, ci, kh, kw]   (* scale)
    """
    w = np.asarray(w_oihw, np.float32)
    if out_scale is not None:
        w = w * np.asarray(out_scale, np.float32)[:, None, None, None]
    c_out, c_in = w.shape[0], w.shape[1]
    wt = np.transpose(w, (2, 3, 1, 0))                    # (kh, kw, Cin, Cout)
    sel = np.zeros((3, w_in, w_out), np.float32)          # [kw, w, wo]
    for kw in range(3):
        for wo in range(w_out):
            wi = stride * wo + kw - pad
            if 0 <= wi < w_in:
                sel[kw, wi, wo] = 1.0
    m = np.einsum('xwo,hxcd->hwcod', sel, wt)
    return m.reshape(3, w_in * c_in, w_out * c_out)


def prepare_encoder_params(params):
    """Fold/pack weights once.  Returns device-ready arrays for the kernel."""
    w1c, b1 = params["c1"]
    w2c, b2 = params["c2"]; s2, t2 = params["bn2"]
    w3c, b3 = params["c3"]; s3, t3 = params["bn3"]
    w4c, b4 = params["c4"]
    w5c, b5 = params["c5"]; s5, t5 = params["bn5"]
    wf1, bf1 = params["fc1"]
    wf2, bf2 = params["fc2"]
    enc = np.asarray(wf2).shape[0]

    m1 = _conv_mix_matrices(w1c, 1, 1, 48, 48)                  # (3,  48, 192)
    m2 = _conv_mix_matrices(w2c, 2, 1, 48, 24, out_scale=s2)    # (3, 192, 192)
    m3 = _conv_mix_matrices(w3c, 2, 1, 24, 12)                  # (3, 192, 192)
    m4 = _conv_mix_matrices(w4c, 2, 0, 12, 5)                   # (3, 192, 160)
    m5 = _conv_mix_matrices(w5c, 1, 0, 5, 3)                    # (3, 160, 144)

    # fc1 columns re-ordered from torch NCHW-flatten (c*9 + h*3 + w) to this
    # kernel's (h, w*48 + c) activation layout.
    w1r = np.transpose(np.asarray(wf1, np.float32).reshape(128, 48, 3, 3),
                       (2, 3, 1, 0)).reshape(3, 3 * 48, 128)
    w2t = np.ascontiguousarray(np.asarray(wf2, np.float32).T)   # (128, enc)

    # Pack every bias / BN vector (tiled to the (w*C + c) lane layout) into
    # one small resident array.
    post_w = max(192, enc)

    def row(vec, reps=1):
        r = np.tile(np.asarray(vec, np.float32), reps)
        return np.pad(r, (0, post_w - r.shape[0]))

    post = np.stack([
        row(b1, 48),
        row(np.asarray(b2) * np.asarray(s2) + np.asarray(t2), 24),  # conv2 + BN
        row(b3, 12), row(s3, 12), row(t3, 12),
        row(b4, 5),
        row(b5, 3), row(s5, 3), row(t5, 3),
        row(bf1), row(bf2),
    ]).astype(np.float32)                                       # (11, post_w)

    return {
        "m1": jnp.asarray(m1), "m2": jnp.asarray(m2), "m3": jnp.asarray(m3),
        "m4": jnp.asarray(m4), "m5": jnp.asarray(m5),
        "w1r": jnp.asarray(w1r), "w2t": jnp.asarray(w2t),
        "post": jnp.asarray(post),
    }


# ----------------------------------------------------------------------------
# Forward (jitted): pad batch, transpose to (H, N, W), one fused pallas_call.
# ----------------------------------------------------------------------------
def _encoder_forward_impl(prep, x_nchw):
    f32 = jnp.float32
    n = x_nchw.shape[0]
    assert x_nchw.shape[1:] == (1, 48, 48), x_nchw.shape
    enc = prep["w2t"].shape[1]

    n_pad = ((n + B_TILE - 1) // B_TILE) * B_TILE
    x = x_nchw.astype(f32).reshape(n, 48, 48)
    if n_pad != n:
        x = jnp.concatenate([x, jnp.zeros((n_pad - n, 48, 48), f32)], axis=0)
    x_t = jnp.transpose(x, (1, 0, 2))                            # (48, n_pad, 48)

    out = pl.pallas_call(
        _encoder_kernel,
        out_shape=jax.ShapeDtypeStruct((n_pad, enc), f32),
        grid_spec=pltpu.PrefetchScalarGridSpec(
            num_scalar_prefetch=0,
            grid=(n_pad // B_TILE,),
            in_specs=[
                pl.BlockSpec((48, B_TILE, 48), lambda i: (0, i, 0)),  # images
                pl.BlockSpec(prep["m1"].shape, lambda i: (0, 0, 0)),  # weights,
                pl.BlockSpec(prep["m2"].shape, lambda i: (0, 0, 0)),  # resident
                pl.BlockSpec(prep["m3"].shape, lambda i: (0, 0, 0)),
                pl.BlockSpec(prep["m4"].shape, lambda i: (0, 0, 0)),
                pl.BlockSpec(prep["m5"].shape, lambda i: (0, 0, 0)),
                pl.BlockSpec(prep["w1r"].shape, lambda i: (0, 0, 0)),
                pl.BlockSpec(prep["w2t"].shape, lambda i: (0, 0)),
                pl.BlockSpec(prep["post"].shape, lambda i: (0, 0)),
            ],
            out_specs=pl.BlockSpec((B_TILE, enc), lambda i: (i, 0)),
        ),
        compiler_params=pltpu.CompilerParams(
            dimension_semantics=("parallel",)),                   # v7x: 2 TCs
    )(x_t, prep["m1"], prep["m2"], prep["m3"], prep["m4"], prep["m5"],
      prep["w1r"], prep["w2t"], prep["post"])
    return out[:n]


encoder_forward = jax.jit(_encoder_forward_impl)


# ----------------------------------------------------------------------------
# Deterministic parameter init (PyTorch-default-like uniform fan_in bounds)
# ----------------------------------------------------------------------------
def init_params(key, encoded_space_dim):
    def conv_p(k, cout, cin, ks):
        k1, k2 = jax.random.split(k)
        bound = 1.0 / np.sqrt(cin * ks * ks)
        w = jax.random.uniform(k1, (cout, cin, ks, ks), jnp.float32, -bound, bound)
        b = jax.random.uniform(k2, (cout,), jnp.float32, -bound, bound)
        return w, b

    def lin_p(k, cout, cin):
        k1, k2 = jax.random.split(k)
        bound = 1.0 / np.sqrt(cin)
        w = jax.random.uniform(k1, (cout, cin), jnp.float32, -bound, bound)
        b = jax.random.uniform(k2, (cout,), jnp.float32, -bound, bound)
        return w, b

    def bn_p(k, c):
        k1, k2, k3, k4 = jax.random.split(k, 4)
        gamma = jax.random.uniform(k1, (c,), jnp.float32, 0.8, 1.2)
        beta = jax.random.uniform(k2, (c,), jnp.float32, -0.1, 0.1)
        rmean = jax.random.uniform(k3, (c,), jnp.float32, -0.1, 0.1)
        rvar = jax.random.uniform(k4, (c,), jnp.float32, 0.5, 1.5)
        eps = 1e-5
        scale = gamma / jnp.sqrt(rvar + eps)
        shift = beta - rmean * scale
        return scale, shift

    ks = jax.random.split(key, 10)
    return {
        "c1": conv_p(ks[0], 4, 1, 3),
        "c2": conv_p(ks[1], 8, 4, 3),
        "bn2": bn_p(ks[2], 8),
        "c3": conv_p(ks[3], 16, 8, 3),
        "bn3": bn_p(ks[4], 16),
        "c4": conv_p(ks[5], 32, 16, 3),
        "c5": conv_p(ks[6], 48, 32, 3),
        "bn5": bn_p(ks[7], 48),
        "fc1": lin_p(ks[8], 128, 432),
        "fc2": lin_p(ks[9], encoded_space_dim, 128),
    }


# ----------------------------------------------------------------------------
# Pure-JAX reference (lax.conv, NCHW) for the correctness check
# ----------------------------------------------------------------------------
def reference_forward(params, x):
    def conv(x, w, b, stride, pad):
        y = jax.lax.conv_general_dilated(
            x, w, window_strides=(stride, stride),
            padding=[(pad, pad), (pad, pad)],
            dimension_numbers=("NCHW", "OIHW", "NCHW"))
        return y + b[None, :, None, None]

    def affine(x, s, t):
        return x * s[None, :, None, None] + t[None, :, None, None]

    w, b = params["c1"]; x = jnp.tanh(conv(x, w, b, 1, 1))
    w, b = params["c2"]; s, t = params["bn2"]; x = affine(conv(x, w, b, 2, 1), s, t)
    w, b = params["c3"]; s, t = params["bn3"]; x = affine(jnp.tanh(conv(x, w, b, 2, 1)), s, t)
    w, b = params["c4"]; x = jnp.tanh(conv(x, w, b, 2, 0))
    w, b = params["c5"]; s, t = params["bn5"]; x = affine(jnp.tanh(conv(x, w, b, 1, 0)), s, t)
    x = x.reshape(x.shape[0], -1)
    w, b = params["fc1"]; x = jnp.clip(x @ w.T + b, -1.0, 1.0)
    w, b = params["fc2"]; x = x @ w.T + b
    return x


if __name__ == "__main__":
    encoded_space_dim = 48
    key = jax.random.PRNGKey(0)
    pkey, xkey = jax.random.split(key)

    params = init_params(pkey, encoded_space_dim)
    prep = prepare_encoder_params(params)      # one-time host-side weight prep

    # Input must be (N, 1, 48, 48) so that Flatten produces 432 features.
    # N = 20 exercises the batch-padding path (grid = 2 steps of 16 images).
    n = 20
    x = jax.random.normal(xkey, (n, 1, 48, 48), dtype=jnp.float32)

    out = encoder_forward(prep, x)
    out = jax.block_until_ready(out)
    assert out.shape == (n, encoded_space_dim), out.shape

    ref = reference_forward(params, x)
    np.testing.assert_allclose(np.asarray(out), np.asarray(ref),
                               rtol=2e-2, atol=2e-2)
    print("KERNEL_OK")
</pallas_src>

<mosaic_0001>
module attributes {stable_mosaic.version = 11 : i64} {
  func.func @_encoder_kernel(%arg0: i32, %arg1: memref<48x16x48xf32, #tpu.memory_space<vmem>>, %arg2: memref<3x48x192xf32, #tpu.memory_space<vmem>>, %arg3: memref<3x192x192xf32, #tpu.memory_space<vmem>>, %arg4: memref<3x192x192xf32, #tpu.memory_space<vmem>>, %arg5: memref<3x192x160xf32, #tpu.memory_space<vmem>>, %arg6: memref<3x160x144xf32, #tpu.memory_space<vmem>>, %arg7: memref<3x144x128xf32, #tpu.memory_space<vmem>>, %arg8: memref<128x48xf32, #tpu.memory_space<vmem>>, %arg9: memref<11x192xf32, #tpu.memory_space<vmem>>, %arg10: memref<16x48xf32, #tpu.memory_space<vmem>>) attributes {dimension_semantics = [#tpu.dimension_semantics<parallel>], iteration_bounds = array<i64: 2>, scalar_prefetch = 0 : i64, scratch_operands = 0 : i64, tpu.core_type = #tpu.core_type<tc>, window_params = [{transform_indices = @transform_0, window_bounds = array<i64: 48, 16, 48>}, {pipeline_mode = #tpu.pipeline_mode<synchronous>, transform_indices = @transform_1, window_bounds = array<i64: 3, 48, 192>}, {pipeline_mode = #tpu.pipeline_mode<synchronous>, transform_indices = @transform_2, window_bounds = array<i64: 3, 192, 192>}, {pipeline_mode = #tpu.pipeline_mode<synchronous>, transform_indices = @transform_3, window_bounds = array<i64: 3, 192, 192>}, {pipeline_mode = #tpu.pipeline_mode<synchronous>, transform_indices = @transform_4, window_bounds = array<i64: 3, 192, 160>}, {pipeline_mode = #tpu.pipeline_mode<synchronous>, transform_indices = @transform_5, window_bounds = array<i64: 3, 160, 144>}, {pipeline_mode = #tpu.pipeline_mode<synchronous>, transform_indices = @transform_6, window_bounds = array<i64: 3, 144, 128>}, {pipeline_mode = #tpu.pipeline_mode<synchronous>, transform_indices = @transform_7, window_bounds = array<i64: 128, 48>}, {pipeline_mode = #tpu.pipeline_mode<synchronous>, transform_indices = @transform_8, window_bounds = array<i64: 11, 192>}, {transform_indices = @transform_9, window_bounds = array<i64: 16, 48>}]} {
    %c0 = arith.constant 0 : index
    %c0_0 = arith.constant 0 : index
    %c0_1 = arith.constant 0 : index
    %0 = vector.load %arg1[%c0, %c0_0, %c0_1] : memref<48x16x48xf32, #tpu.memory_space<vmem>>, vector<48x16x48xf32>
    %cst = arith.constant 0.000000e+00 : f32
    %1 = vector.broadcast %cst : f32 to vector<1x16x48xf32>
    %2 = tpu.concatenate %1, %0, %1 in 0 : vector<1x16x48xf32>, vector<48x16x48xf32>, vector<1x16x48xf32> -> vector<50x16x48xf32>
    %cst_2 = arith.constant 0.000000e+00 : f32
    %3 = vector.broadcast %cst_2 : f32 to vector<768x192xf32>
    %4 = vector.extract_strided_slice %2 {offsets = [0, 0, 0], sizes = [48, 16, 48], strides = [1, 1, 1]} : vector<50x16x48xf32> to vector<48x16x48xf32>
    %5 = vector.shape_cast %4 : vector<48x16x48xf32> to vector<768x48xf32>
    %c0_3 = arith.constant 0 : index
    %c0_4 = arith.constant 0 : index
    %c0_5 = arith.constant 0 : index
    %6 = vector.load %arg2[%c0_3, %c0_4, %c0_5] : memref<3x48x192xf32, #tpu.memory_space<vmem>>, vector<1x48x192xf32>
    %7 = vector.shape_cast %6 : vector<1x48x192xf32> to vector<48x192xf32>
    %cst_6 = arith.constant dense<0.000000e+00> : vector<768x192xf32>
    %8 = tpu.matmul %5, %7, %cst_6 {dimension_numbers = #tpu.dot_dimension_numbers<[1], [0], [0], [1], [0, 0, 1, 1], [], []>} : vector<768x48xf32>, vector<48x192xf32>, vector<768x192xf32> -> vector<768x192xf32>
    %9 = arith.addf %3, %8 : vector<768x192xf32>
    %10 = vector.extract_strided_slice %2 {offsets = [1, 0, 0], sizes = [48, 16, 48], strides = [1, 1, 1]} : vector<50x16x48xf32> to vector<48x16x48xf32>
    %11 = vector.shape_cast %10 : vector<48x16x48xf32> to vector<768x48xf32>
    %c1 = arith.constant 1 : index
    %c0_7 = arith.constant 0 : index
    %c0_8 = arith.constant 0 : index
    %12 = vector.load %arg2[%c1, %c0_7, %c0_8] : memref<3x48x192xf32, #tpu.memory_space<vmem>>, vector<1x48x192xf32>
    %13 = vector.shape_cast %12 : vector<1x48x192xf32> to vector<48x192xf32>
    %cst_9 = arith.constant dense<0.000000e+00> : vector<768x192xf32>
    %14 = tpu.matmul %11, %13, %cst_9 {dimension_numbers = #tpu.dot_dimension_numbers<[1], [0], [0], [1], [0, 0, 1, 1], [], []>} : vector<768x48xf32>, vector<48x192xf32>, vector<768x192xf32> -> vector<768x192xf32>
    %15 = arith.addf %9, %14 : vector<768x192xf32>
    %16 = vector.extract_strided_slice %2 {offsets = [2, 0, 0], sizes = [48, 16, 48], strides = [1, 1, 1]} : vector<50x16x48xf32> to vector<48x16x48xf32>
    %17 = vector.shape_cast %16 : vector<48x16x48xf32> to vector<768x48xf32>
    %c2 = arith.constant 2 : index
    %c0_10 = arith.constant 0 : index
    %c0_11 = arith.constant 0 : index
    %18 = vector.load %arg2[%c2, %c0_10, %c0_11] : memref<3x48x192xf32, #tpu.memory_space<vmem>>, vector<1x48x192xf32>
    %19 = vector.shape_cast %18 : vector<1x48x192xf32> to vector<48x192xf32>
    %cst_12 = arith.constant dense<0.000000e+00> : vector<768x192xf32>
    %20 = tpu.matmul %17, %19, %cst_12 {dimension_numbers = #tpu.dot_dimension_numbers<[1], [0], [0], [1], [0, 0, 1, 1], [], []>} : vector<768x48xf32>, vector<48x192xf32>, vector<768x192xf32> -> vector<768x192xf32>
    %21 = arith.addf %15, %20 : vector<768x192xf32>
    %c0_13 = arith.constant 0 : index
    %c0_14 = arith.constant 0 : index
    %22 = vector.load %arg9[%c0_13, %c0_14] : memref<11x192xf32, #tpu.memory_space<vmem>>, vector<1x192xf32>
    %23 = vector.broadcast %22 : vector<1x192xf32> to vector<768x192xf32>
    %24 = arith.addf %21, %23 : vector<768x192xf32>
    %25 = math.tanh %24 : vector<768x192xf32>
    %26 = vector.shape_cast %25 : vector<768x192xf32> to vector<48x16x192xf32>
    %cst_15 = arith.constant 0.000000e+00 : f32
    %27 = vector.broadcast %cst_15 : f32 to vector<1x16x192xf32>
    %28 = tpu.concatenate %27, %26, %27 in 0 : vector<1x16x192xf32>, vector<48x16x192xf32>, vector<1x16x192xf32> -> vector<50x16x192xf32>
    %cst_16 = arith.constant 0.000000e+00 : f32
    %29 = vector.broadcast %cst_16 : f32 to vector<384x192xf32>
    %30 = vector.extract_strided_slice %28 {offsets = [0, 0, 0], sizes = [48, 16, 192], strides = [1, 1, 1]} : vector<50x16x192xf32> to vector<48x16x192xf32>
    %31 = vector.shape_cast %30 : vector<48x16x192xf32> to vector<24x2x16x192xf32>
    %32 = vector.extract_strided_slice %31 {offsets = [0, 0, 0, 0], sizes = [24, 1, 16, 192], strides = [1, 1, 1, 1]} : vector<24x2x16x192xf32> to vector<24x1x16x192xf32>
    %33 = vector.shape_cast %32 : vector<24x1x16x192xf32> to vector<24x16x192xf32>
    %34 = vector.shape_cast %33 : vector<24x16x192xf32> to vector<384x192xf32>
    %c0_17 = arith.constant 0 : index
    %c0_18 = arith.constant 0 : index
    %c0_19 = arith.constant 0 : index
    %35 = vector.load %arg3[%c0_17, %c0_18, %c0_19] : memref<3x192x192xf32, #tpu.memory_space<vmem>>, vector<1x192x192xf32>
    %36 = vector.shape_cast %35 : vector<1x192x192xf32> to vector<192x192xf32>
    %cst_20 = arith.constant dense<0.000000e+00> : vector<384x192xf32>
    %37 = tpu.matmul %34, %36, %cst_20 {dimension_numbers = #tpu.dot_dimension_numbers<[1], [0], [0], [1], [0, 0, 1, 1], [], []>} : vector<384x192xf32>, vector<192x192xf32>, vector<384x192xf32> -> vector<384x192xf32>
    %38 = arith.addf %29, %37 : vector<384x192xf32>
    %39 = vector.extract_strided_slice %28 {offsets = [1, 0, 0], sizes = [48, 16, 192], strides = [1, 1, 1]} : vector<50x16x192xf32> to vector<48x16x192xf32>
    %40 = vector.shape_cast %39 : vector<48x16x192xf32> to vector<24x2x16x192xf32>
    %41 = vector.extract_strided_slice %40 {offsets = [0, 0, 0, 0], sizes = [24, 1, 16, 192], strides = [1, 1, 1, 1]} : vector<24x2x16x192xf32> to vector<24x1x16x192xf32>
    %42 = vector.shape_cast %41 : vector<24x1x16x192xf32> to vector<24x16x192xf32>
    %43 = vector.shape_cast %42 : vector<24x16x192xf32> to vector<384x192xf32>
    %c1_21 = arith.constant 1 : index
    %c0_22 = arith.constant 0 : index
    %c0_23 = arith.constant 0 : index
    %44 = vector.load %arg3[%c1_21, %c0_22, %c0_23] : memref<3x192x192xf32, #tpu.memory_space<vmem>>, vector<1x192x192xf32>
    %45 = vector.shape_cast %44 : vector<1x192x192xf32> to vector<192x192xf32>
    %cst_24 = arith.constant dense<0.000000e+00> : vector<384x192xf32>
    %46 = tpu.matmul %43, %45, %cst_24 {dimension_numbers = #tpu.dot_dimension_numbers<[1], [0], [0], [1], [0, 0, 1, 1], [], []>} : vector<384x192xf32>, vector<192x192xf32>, vector<384x192xf32> -> vector<384x192xf32>
    %47 = arith.addf %38, %46 : vector<384x192xf32>
    %48 = vector.extract_strided_slice %28 {offsets = [2, 0, 0], sizes = [48, 16, 192], strides = [1, 1, 1]} : vector<50x16x192xf32> to vector<48x16x192xf32>
    %49 = vector.shape_cast %48 : vector<48x16x192xf32> to vector<24x2x16x192xf32>
    %50 = vector.extract_strided_slice %49 {offsets = [0, 0, 0, 0], sizes = [24, 1, 16, 192], strides = [1, 1, 1, 1]} : vector<24x2x16x192xf32> to vector<24x1x16x192xf32>
    %51 = vector.shape_cast %50 : vector<24x1x16x192xf32> to vector<24x16x192xf32>
    %52 = vector.shape_cast %51 : vector<24x16x192xf32> to vector<384x192xf32>
    %c2_25 = arith.constant 2 : index
    %c0_26 = arith.constant 0 : index
    %c0_27 = arith.constant 0 : index
    %53 = vector.load %arg3[%c2_25, %c0_26, %c0_27] : memref<3x192x192xf32, #tpu.memory_space<vmem>>, vector<1x192x192xf32>
    %54 = vector.shape_cast %53 : vector<1x192x192xf32> to vector<192x192xf32>
    %cst_28 = arith.constant dense<0.000000e+00> : vector<384x192xf32>
    %55 = tpu.matmul %52, %54, %cst_28 {dimension_numbers = #tpu.dot_dimension_numbers<[1], [0], [0], [1], [0, 0, 1, 1], [], []>} : vector<384x192xf32>, vector<192x192xf32>, vector<384x192xf32> -> vector<384x192xf32>
    %56 = arith.addf %47, %55 : vector<384x192xf32>
    %c1_29 = arith.constant 1 : index
    %c0_30 = arith.constant 0 : index
    %57 = vector.load %arg9[%c1_29, %c0_30] : memref<11x192xf32, #tpu.memory_space<vmem>>, vector<1x192xf32>
    %58 = vector.broadcast %57 : vector<1x192xf32> to vector<384x192xf32>
    %59 = arith.addf %56, %58 : vector<384x192xf32>
    %60 = vector.shape_cast %59 : vector<384x192xf32> to vector<24x16x192xf32>
    %cst_31 = arith.constant 0.000000e+00 : f32
    %61 = vector.broadcast %cst_31 : f32 to vector<1x16x192xf32>
    %62 = tpu.concatenate %61, %60, %61 in 0 : vector<1x16x192xf32>, vector<24x16x192xf32>, vector<1x16x192xf32> -> vector<26x16x192xf32>
    %cst_32 = arith.constant 0.000000e+00 : f32
    %63 = vector.broadcast %cst_32 : f32 to vector<192x192xf32>
    %64 = vector.extract_strided_slice %62 {offsets = [0, 0, 0], sizes = [24, 16, 192], strides = [1, 1, 1]} : vector<26x16x192xf32> to vector<24x16x192xf32>
    %65 = vector.shape_cast %64 : vector<24x16x192xf32> to vector<12x2x16x192xf32>
    %66 = vector.extract_strided_slice %65 {offsets = [0, 0, 0, 0], sizes = [12, 1, 16, 192], strides = [1, 1, 1, 1]} : vector<12x2x16x192xf32> to vector<12x1x16x192xf32>
    %67 = vector.shape_cast %66 : vector<12x1x16x192xf32> to vector<12x16x192xf32>
    %68 = vector.shape_cast %67 : vector<12x16x192xf32> to vector<192x192xf32>
    %c0_33 = arith.constant 0 : index
    %c0_34 = arith.constant 0 : index
    %c0_35 = arith.constant 0 : index
    %69 = vector.load %arg4[%c0_33, %c0_34, %c0_35] : memref<3x192x192xf32, #tpu.memory_space<vmem>>, vector<1x192x192xf32>
    %70 = vector.shape_cast %69 : vector<1x192x192xf32> to vector<192x192xf32>
    %cst_36 = arith.constant dense<0.000000e+00> : vector<192x192xf32>
    %71 = tpu.matmul %68, %70, %cst_36 {dimension_numbers = #tpu.dot_dimension_numbers<[1], [0], [0], [1], [0, 0, 1, 1], [], []>} : vector<192x192xf32>, vector<192x192xf32>, vector<192x192xf32> -> vector<192x192xf32>
    %72 = arith.addf %63, %71 : vector<192x192xf32>
    %73 = vector.extract_strided_slice %62 {offsets = [1, 0, 0], sizes = [24, 16, 192], strides = [1, 1, 1]} : vector<26x16x192xf32> to vector<24x16x192xf32>
    %74 = vector.shape_cast %73 : vector<24x16x192xf32> to vector<12x2x16x192xf32>
    %75 = vector.extract_strided_slice %74 {offsets = [0, 0, 0, 0], sizes = [12, 1, 16, 192], strides = [1, 1, 1, 1]} : vector<12x2x16x192xf32> to vector<12x1x16x192xf32>
    %76 = vector.shape_cast %75 : vector<12x1x16x192xf32> to vector<12x16x192xf32>
    %77 = vector.shape_cast %76 : vector<12x16x192xf32> to vector<192x192xf32>
    %c1_37 = arith.constant 1 : index
    %c0_38 = arith.constant 0 : index
    %c0_39 = arith.constant 0 : index
    %78 = vector.load %arg4[%c1_37, %c0_38, %c0_39] : memref<3x192x192xf32, #tpu.memory_space<vmem>>, vector<1x192x192xf32>
    %79 = vector.shape_cast %78 : vector<1x192x192xf32> to vector<192x192xf32>
    %cst_40 = arith.constant dense<0.000000e+00> : vector<192x192xf32>
    %80 = tpu.matmul %77, %79, %cst_40 {dimension_numbers = #tpu.dot_dimension_numbers<[1], [0], [0], [1], [0, 0, 1, 1], [], []>} : vector<192x192xf32>, vector<192x192xf32>, vector<192x192xf32> -> vector<192x192xf32>
    %81 = arith.addf %72, %80 : vector<192x192xf32>
    %82 = vector.extract_strided_slice %62 {offsets = [2, 0, 0], sizes = [24, 16, 192], strides = [1, 1, 1]} : vector<26x16x192xf32> to vector<24x16x192xf32>
    %83 = vector.shape_cast %82 : vector<24x16x192xf32> to vector<12x2x16x192xf32>
    %84 = vector.extract_strided_slice %83 {offsets = [0, 0, 0, 0], sizes = [12, 1, 16, 192], strides = [1, 1, 1, 1]} : vector<12x2x16x192xf32> to vector<12x1x16x192xf32>
    %85 = vector.shape_cast %84 : vector<12x1x16x192xf32> to vector<12x16x192xf32>
    %86 = vector.shape_cast %85 : vector<12x16x192xf32> to vector<192x192xf32>
    %c2_41 = arith.constant 2 : index
    %c0_42 = arith.constant 0 : index
    %c0_43 = arith.constant 0 : index
    %87 = vector.load %arg4[%c2_41, %c0_42, %c0_43] : memref<3x192x192xf32, #tpu.memory_space<vmem>>, vector<1x192x192xf32>
    %88 = vector.shape_cast %87 : vector<1x192x192xf32> to vector<192x192xf32>
    %cst_44 = arith.constant dense<0.000000e+00> : vector<192x192xf32>
    %89 = tpu.matmul %86, %88, %cst_44 {dimension_numbers = #tpu.dot_dimension_numbers<[1], [0], [0], [1], [0, 0, 1, 1], [], []>} : vector<192x192xf32>, vector<192x192xf32>, vector<192x192xf32> -> vector<192x192xf32>
    %90 = arith.addf %81, %89 : vector<192x192xf32>
    %c2_45 = arith.constant 2 : index
    %c0_46 = arith.constant 0 : index
    %91 = vector.load %arg9[%c2_45, %c0_46] : memref<11x192xf32, #tpu.memory_space<vmem>>, vector<1x192xf32>
    %92 = vector.broadcast %91 : vector<1x192xf32> to vector<192x192xf32>
    %93 = arith.addf %90, %92 : vector<192x192xf32>
    %94 = math.tanh %93 : vector<192x192xf32>
    %c3 = arith.constant 3 : index
    %c0_47 = arith.constant 0 : index
    %95 = vector.load %arg9[%c3, %c0_47] : memref<11x192xf32, #tpu.memory_space<vmem>>, vector<1x192xf32>
    %96 = vector.broadcast %95 : vector<1x192xf32> to vector<192x192xf32>
    %97 = arith.mulf %94, %96 : vector<192x192xf32>
    %c4 = arith.constant 4 : index
    %c0_48 = arith.constant 0 : index
    %98 = vector.load %arg9[%c4, %c0_48] : memref<11x192xf32, #tpu.memory_space<vmem>>, vector<1x192xf32>
    %99 = vector.broadcast %98 : vector<1x192xf32> to vector<192x192xf32>
    %100 = arith.addf %97, %99 : vector<192x192xf32>
    %101 = vector.shape_cast %100 : vector<192x192xf32> to vector<12x16x192xf32>
    %cst_49 = arith.constant 0.000000e+00 : f32
    %102 = vector.broadcast %cst_49 : f32 to vector<80x160xf32>
    %103 = vector.extract_strided_slice %101 {offsets = [0, 0, 0], sizes = [10, 16, 192], strides = [1, 1, 1]} : vector<12x16x192xf32> to vector<10x16x192xf32>
    %104 = vector.shape_cast %103 : vector<10x16x192xf32> to vector<5x2x16x192xf32>
    %105 = vector.extract_strided_slice %104 {offsets = [0, 0, 0, 0], sizes = [5, 1, 16, 192], strides = [1, 1, 1, 1]} : vector<5x2x16x192xf32> to vector<5x1x16x192xf32>
    %106 = vector.shape_cast %105 : vector<5x1x16x192xf32> to vector<5x16x192xf32>
    %107 = vector.shape_cast %106 : vector<5x16x192xf32> to vector<80x192xf32>
    %c0_50 = arith.constant 0 : index
    %c0_51 = arith.constant 0 : index
    %c0_52 = arith.constant 0 : index
    %108 = vector.load %arg5[%c0_50, %c0_51, %c0_52] : memref<3x192x160xf32, #tpu.memory_space<vmem>>, vector<1x192x160xf32>
    %109 = vector.shape_cast %108 : vector<1x192x160xf32> to vector<192x160xf32>
    %cst_53 = arith.constant dense<0.000000e+00> : vector<80x160xf32>
    %110 = tpu.matmul %107, %109, %cst_53 {dimension_numbers = #tpu.dot_dimension_numbers<[1], [0], [0], [1], [0, 0, 1, 1], [], []>} : vector<80x192xf32>, vector<192x160xf32>, vector<80x160xf32> -> vector<80x160xf32>
    %111 = arith.addf %102, %110 : vector<80x160xf32>
    %112 = vector.extract_strided_slice %101 {offsets = [1, 0, 0], sizes = [10, 16, 192], strides = [1, 1, 1]} : vector<12x16x192xf32> to vector<10x16x192xf32>
    %113 = vector.shape_cast %112 : vector<10x16x192xf32> to vector<5x2x16x192xf32>
    %114 = vector.extract_strided_slice %113 {offsets = [0, 0, 0, 0], sizes = [5, 1, 16, 192], strides = [1, 1, 1, 1]} : vector<5x2x16x192xf32> to vector<5x1x16x192xf32>
    %115 = vector.shape_cast %114 : vector<5x1x16x192xf32> to vector<5x16x192xf32>
    %116 = vector.shape_cast %115 : vector<5x16x192xf32> to vector<80x192xf32>
    %c1_54 = arith.constant 1 : index
    %c0_55 = arith.constant 0 : index
    %c0_56 = arith.constant 0 : index
    %117 = vector.load %arg5[%c1_54, %c0_55, %c0_56] : memref<3x192x160xf32, #tpu.memory_space<vmem>>, vector<1x192x160xf32>
    %118 = vector.shape_cast %117 : vector<1x192x160xf32> to vector<192x160xf32>
    %cst_57 = arith.constant dense<0.000000e+00> : vector<80x160xf32>
    %119 = tpu.matmul %116, %118, %cst_57 {dimension_numbers = #tpu.dot_dimension_numbers<[1], [0], [0], [1], [0, 0, 1, 1], [], []>} : vector<80x192xf32>, vector<192x160xf32>, vector<80x160xf32> -> vector<80x160xf32>
    %120 = arith.addf %111, %119 : vector<80x160xf32>
    %121 = vector.extract_strided_slice %101 {offsets = [2, 0, 0], sizes = [10, 16, 192], strides = [1, 1, 1]} : vector<12x16x192xf32> to vector<10x16x192xf32>
    %122 = vector.shape_cast %121 : vector<10x16x192xf32> to vector<5x2x16x192xf32>
    %123 = vector.extract_strided_slice %122 {offsets = [0, 0, 0, 0], sizes = [5, 1, 16, 192], strides = [1, 1, 1, 1]} : vector<5x2x16x192xf32> to vector<5x1x16x192xf32>
    %124 = vector.shape_cast %123 : vector<5x1x16x192xf32> to vector<5x16x192xf32>
    %125 = vector.shape_cast %124 : vector<5x16x192xf32> to vector<80x192xf32>
    %c2_58 = arith.constant 2 : index
    %c0_59 = arith.constant 0 : index
    %c0_60 = arith.constant 0 : index
    %126 = vector.load %arg5[%c2_58, %c0_59, %c0_60] : memref<3x192x160xf32, #tpu.memory_space<vmem>>, vector<1x192x160xf32>
    %127 = vector.shape_cast %126 : vector<1x192x160xf32> to vector<192x160xf32>
    %cst_61 = arith.constant dense<0.000000e+00> : vector<80x160xf32>
    %128 = tpu.matmul %125, %127, %cst_61 {dimension_numbers = #tpu.dot_dimension_numbers<[1], [0], [0], [1], [0, 0, 1, 1], [], []>} : vector<80x192xf32>, vector<192x160xf32>, vector<80x160xf32> -> vector<80x160xf32>
    %129 = arith.addf %120, %128 : vector<80x160xf32>
    %c5 = arith.constant 5 : index
    %c0_62 = arith.constant 0 : index
    %130 = vector.load %arg9[%c5, %c0_62] : memref<11x192xf32, #tpu.memory_space<vmem>>, vector<1x160xf32>
    %131 = vector.broadcast %130 : vector<1x160xf32> to vector<80x160xf32>
    %132 = arith.addf %129, %131 : vector<80x160xf32>
    %133 = math.tanh %132 : vector<80x160xf32>
    %134 = vector.shape_cast %133 : vector<80x160xf32> to vector<5x16x160xf32>
    %cst_63 = arith.constant 0.000000e+00 : f32
    %135 = vector.broadcast %cst_63 : f32 to vector<48x144xf32>
    %136 = vector.extract_strided_slice %134 {offsets = [0, 0, 0], sizes = [3, 16, 160], strides = [1, 1, 1]} : vector<5x16x160xf32> to vector<3x16x160xf32>
    %137 = vector.shape_cast %136 : vector<3x16x160xf32> to vector<48x160xf32>
    %c0_64 = arith.constant 0 : index
    %c0_65 = arith.constant 0 : index
    %c0_66 = arith.constant 0 : index
    %138 = vector.load %arg6[%c0_64, %c0_65, %c0_66] : memref<3x160x144xf32, #tpu.memory_space<vmem>>, vector<1x160x144xf32>
    %139 = vector.shape_cast %138 : vector<1x160x144xf32> to vector<160x144xf32>
    %cst_67 = arith.constant dense<0.000000e+00> : vector<48x144xf32>
    %140 = tpu.matmul %137, %139, %cst_67 {dimension_numbers = #tpu.dot_dimension_numbers<[1], [0], [0], [1], [0, 0, 1, 1], [], []>} : vector<48x160xf32>, vector<160x144xf32>, vector<48x144xf32> -> vector<48x144xf32>
    %141 = arith.addf %135, %140 : vector<48x144xf32>
    %142 = vector.extract_strided_slice %134 {offsets = [1, 0, 0], sizes = [3, 16, 160], strides = [1, 1, 1]} : vector<5x16x160xf32> to vector<3x16x160xf32>
    %143 = vector.shape_cast %142 : vector<3x16x160xf32> to vector<48x160xf32>
    %c1_68 = arith.constant 1 : index
    %c0_69 = arith.constant 0 : index
    %c0_70 = arith.constant 0 : index
    %144 = vector.load %arg6[%c1_68, %c0_69, %c0_70] : memref<3x160x144xf32, #tpu.memory_space<vmem>>, vector<1x160x144xf32>
    %145 = vector.shape_cast %144 : vector<1x160x144xf32> to vector<160x144xf32>
    %cst_71 = arith.constant dense<0.000000e+00> : vector<48x144xf32>
    %146 = tpu.matmul %143, %145, %cst_71 {dimension_numbers = #tpu.dot_dimension_numbers<[1], [0], [0], [1], [0, 0, 1, 1], [], []>} : vector<48x160xf32>, vector<160x144xf32>, vector<48x144xf32> -> vector<48x144xf32>
    %147 = arith.addf %141, %146 : vector<48x144xf32>
    %148 = vector.extract_strided_slice %134 {offsets = [2, 0, 0], sizes = [3, 16, 160], strides = [1, 1, 1]} : vector<5x16x160xf32> to vector<3x16x160xf32>
    %149 = vector.shape_cast %148 : vector<3x16x160xf32> to vector<48x160xf32>
    %c2_72 = arith.constant 2 : index
    %c0_73 = arith.constant 0 : index
    %c0_74 = arith.constant 0 : index
    %150 = vector.load %arg6[%c2_72, %c0_73, %c0_74] : memref<3x160x144xf32, #tpu.memory_space<vmem>>, vector<1x160x144xf32>
    %151 = vector.shape_cast %150 : vector<1x160x144xf32> to vector<160x144xf32>
    %cst_75 = arith.constant dense<0.000000e+00> : vector<48x144xf32>
    %152 = tpu.matmul %149, %151, %cst_75 {dimension_numbers = #tpu.dot_dimension_numbers<[1], [0], [0], [1], [0, 0, 1, 1], [], []>} : vector<48x160xf32>, vector<160x144xf32>, vector<48x144xf32> -> vector<48x144xf32>
    %153 = arith.addf %147, %152 : vector<48x144xf32>
    %c6 = arith.constant 6 : index
    %c0_76 = arith.constant 0 : index
    %154 = vector.load %arg9[%c6, %c0_76] : memref<11x192xf32, #tpu.memory_space<vmem>>, vector<1x144xf32>
    %155 = vector.broadcast %154 : vector<1x144xf32> to vector<48x144xf32>
    %156 = arith.addf %153, %155 : vector<48x144xf32>
    %157 = math.tanh %156 : vector<48x144xf32>
    %c7 = arith.constant 7 : index
    %c0_77 = arith.constant 0 : index
    %158 = vector.load %arg9[%c7, %c0_77] : memref<11x192xf32, #tpu.memory_space<vmem>>, vector<1x144xf32>
    %159 = vector.broadcast %158 : vector<1x144xf32> to vector<48x144xf32>
    %160 = arith.mulf %157, %159 : vector<48x144xf32>
    %c8 = arith.constant 8 : index
    %c0_78 = arith.constant 0 : index
    %161 = vector.load %arg9[%c8, %c0_78] : memref<11x192xf32, #tpu.memory_space<vmem>>, vector<1x144xf32>
    %162 = vector.broadcast %161 : vector<1x144xf32> to vector<48x144xf32>
    %163 = arith.addf %160, %162 : vector<48x144xf32>
    %cst_79 = arith.constant 0.000000e+00 : f32
    %164 = vector.broadcast %cst_79 : f32 to vector<16x128xf32>
    %165 = vector.extract_strided_slice %163 {offsets = [0, 0], sizes = [16, 144], strides = [1, 1]} : vector<48x144xf32> to vector<16x144xf32>
    %c0_80 = arith.constant 0 : index
    %c0_81 = arith.constant 0 : index
    %c0_82 = arith.constant 0 : index
    %166 = vector.load %arg7[%c0_80, %c0_81, %c0_82] : memref<3x144x128xf32, #tpu.memory_space<vmem>>, vector<1x144x128xf32>
    %167 = vector.shape_cast %166 : vector<1x144x128xf32> to vector<144x128xf32>
    %cst_83 = arith.constant dense<0.000000e+00> : vector<16x128xf32>
    %168 = tpu.matmul %165, %167, %cst_83 {dimension_numbers = #tpu.dot_dimension_numbers<[1], [0], [0], [1], [0, 0, 1, 1], [], []>} : vector<16x144xf32>, vector<144x128xf32>, vector<16x128xf32> -> vector<16x128xf32>
    %169 = arith.addf %164, %168 : vector<16x128xf32>
    %170 = vector.extract_strided_slice %163 {offsets = [16, 0], sizes = [16, 144], strides = [1, 1]} : vector<48x144xf32> to vector<16x144xf32>
    %c1_84 = arith.constant 1 : index
    %c0_85 = arith.constant 0 : index
    %c0_86 = arith.constant 0 : index
    %171 = vector.load %arg7[%c1_84, %c0_85, %c0_86] : memref<3x144x128xf32, #tpu.memory_space<vmem>>, vector<1x144x128xf32>
    %172 = vector.shape_cast %171 : vector<1x144x128xf32> to vector<144x128xf32>
    %cst_87 = arith.constant dense<0.000000e+00> : vector<16x128xf32>
    %173 = tpu.matmul %170, %172, %cst_87 {dimension_numbers = #tpu.dot_dimension_numbers<[1], [0], [0], [1], [0, 0, 1, 1], [], []>} : vector<16x144xf32>, vector<144x128xf32>, vector<16x128xf32> -> vector<16x128xf32>
    %174 = arith.addf %169, %173 : vector<16x128xf32>
    %175 = vector.extract_strided_slice %163 {offsets = [32, 0], sizes = [16, 144], strides = [1, 1]} : vector<48x144xf32> to vector<16x144xf32>
    %c2_88 = arith.constant 2 : index
    %c0_89 = arith.constant 0 : index
    %c0_90 = arith.constant 0 : index
    %176 = vector.load %arg7[%c2_88, %c0_89, %c0_90] : memref<3x144x128xf32, #tpu.memory_space<vmem>>, vector<1x144x128xf32>
    %177 = vector.shape_cast %176 : vector<1x144x128xf32> to vector<144x128xf32>
    %cst_91 = arith.constant dense<0.000000e+00> : vector<16x128xf32>
    %178 = tpu.matmul %175, %177, %cst_91 {dimension_numbers = #tpu.dot_dimension_numbers<[1], [0], [0], [1], [0, 0, 1, 1], [], []>} : vector<16x144xf32>, vector<144x128xf32>, vector<16x128xf32> -> vector<16x128xf32>
    %179 = arith.addf %174, %178 : vector<16x128xf32>
    %c9 = arith.constant 9 : index
    %c0_92 = arith.constant 0 : index
    %180 = vector.load %arg9[%c9, %c0_92] : memref<11x192xf32, #tpu.memory_space<vmem>>, vector<1x128xf32>
    %181 = vector.broadcast %180 : vector<1x128xf32> to vector<16x128xf32>
    %182 = arith.addf %179, %181 : vector<16x128xf32>
    %cst_93 = arith.constant -1.000000e+00 : f32
    %cst_94 = arith.constant 1.000000e+00 : f32
    %183 = vector.broadcast %cst_93 : f32 to vector<16x128xf32>
    %184 = arith.maximumf %183, %182 : vector<16x128xf32>
    %185 = vector.broadcast %cst_94 : f32 to vector<16x128xf32>
    %186 = arith.minimumf %185, %184 : vector<16x128xf32>
    %c0_95 = arith.constant 0 : index
    %c0_96 = arith.constant 0 : index
    %187 = vector.load %arg8[%c0_95, %c0_96] : memref<128x48xf32, #tpu.memory_space<vmem>>, vector<128x48xf32>
    %cst_97 = arith.constant dense<0.000000e+00> : vector<16x48xf32>
    %188 = tpu.matmul %186, %187, %cst_97 {dimension_numbers = #tpu.dot_dimension_numbers<[1], [0], [0], [1], [0, 0, 1, 1], [], []>} : vector<16x128xf32>, vector<128x48xf32>, vector<16x48xf32> -> vector<16x48xf32>
    %c10 = arith.constant 10 : index
    %c0_98 = arith.constant 0 : index
    %189 = vector.load %arg9[%c10, %c0_98] : memref<11x192xf32, #tpu.memory_space<vmem>>, vector<1x48xf32>
    %190 = vector.broadcast %189 : vector<1x48xf32> to vector<16x48xf32>
    %191 = arith.addf %188, %190 : vector<16x48xf32>
    %c0_99 = arith.constant 0 : index
    %c0_100 = arith.constant 0 : index
    %192 = vector.load %arg10[%c0_99, %c0_100] : memref<16x48xf32, #tpu.memory_space<vmem>>, vector<16x48xf32>
    tpu.vector_store %arg10[%c0_99, %c0_100], %191 {strides = array<i32>} : memref<16x48xf32, #tpu.memory_space<vmem>>, vector<16x48xf32>,
    return
  }
  func.func @transform_0(%arg0: i32) -> (i32, i32, i32) {
    %c0_i32 = arith.constant 0 : i32
    %c0_i32_0 = arith.constant 0 : i32
    %c0_i32_1 = arith.constant 0 : i32
    return %c0_i32, %arg0, %c0_i32_0 : i32, i32, i32
  }
  func.func @transform_1(%arg0: i32) -> (i32, i32, i32) {
    %c0_i32 = arith.constant 0 : i32
    %c0_i32_0 = arith.constant 0 : i32
    %c0_i32_1 = arith.constant 0 : i32
    %c0_i32_2 = arith.constant 0 : i32
    return %c0_i32, %c0_i32_0, %c0_i32_1 : i32, i32, i32
  }
  func.func @transform_2(%arg0: i32) -> (i32, i32, i32) {
    %c0_i32 = arith.constant 0 : i32
    %c0_i32_0 = arith.constant 0 : i32
    %c0_i32_1 = arith.constant 0 : i32
    %c0_i32_2 = arith.constant 0 : i32
    return %c0_i32, %c0_i32_0, %c0_i32_1 : i32, i32, i32
  }
  func.func @transform_3(%arg0: i32) -> (i32, i32, i32) {
    %c0_i32 = arith.constant 0 : i32
    %c0_i32_0 = arith.constant 0 : i32
    %c0_i32_1 = arith.constant 0 : i32
    %c0_i32_2 = arith.constant 0 : i32
    return %c0_i32, %c0_i32_0, %c0_i32_1 : i32, i32, i32
  }
  func.func @transform_4(%arg0: i32) -> (i32, i32, i32) {
    %c0_i32 = arith.constant 0 : i32
    %c0_i32_0 = arith.constant 0 : i32
    %c0_i32_1 = arith.constant 0 : i32
    %c0_i32_2 = arith.constant 0 : i32
    return %c0_i32, %c0_i32_0, %c0_i32_1 : i32, i32, i32
  }
  func.func @transform_5(%arg0: i32) -> (i32, i32, i32) {
    %c0_i32 = arith.constant 0 : i32
    %c0_i32_0 = arith.constant 0 : i32
    %c0_i32_1 = arith.constant 0 : i32
    %c0_i32_2 = arith.constant 0 : i32
    return %c0_i32, %c0_i32_0, %c0_i32_1 : i32, i32, i32
  }
  func.func @transform_6(%arg0: i32) -> (i32, i32, i32) {
    %c0_i32 = arith.constant 0 : i32
    %c0_i32_0 = arith.constant 0 : i32
    %c0_i32_1 = arith.constant 0 : i32
    %c0_i32_2 = arith.constant 0 : i32
    return %c0_i32, %c0_i32_0, %c0_i32_1 : i32, i32, i32
  }
  func.func @transform_7(%arg0: i32) -> (i32, i32) {
    %c0_i32 = arith.constant 0 : i32
    %c0_i32_0 = arith.constant 0 : i32
    %c0_i32_1 = arith.constant 0 : i32
    return %c0_i32, %c0_i32_0 : i32, i32
  }
  func.func @transform_8(%arg0: i32) -> (i32, i32) {
    %c0_i32 = arith.constant 0 : i32
    %c0_i32_0 = arith.constant 0 : i32
    %c0_i32_1 = arith.constant 0 : i32
    return %c0_i32, %c0_i32_0 : i32, i32
  }
  func.func @transform_9(%arg0: i32) -> (i32, i32) {
    %c0_i32 = arith.constant 0 : i32
    %c0_i32_0 = arith.constant 0 : i32
    return %arg0, %c0_i32 : i32, i32
  }
}

</mosaic_0001>

<llo_original>
// kernel: _encoder_forward_impl.1
$region0: #{_encoder_forward_impl.1}
  #allocation0 [shape = 'u32[]', space=smem, size = 0x4, offset = 0x4, fixed_abs, tag = 'smem constant byte address 0x4 - core index']
  #allocation1 [shape = 'u32[144,128]{1,0:T(1,128)}', space=vmem, size = 0x12000, scoped, tag = 'internal scratch']
  %s0 = inlined_call_operand.vmem [shape: f32[48,32,48], index: 0, kind: input, shape index: {}]
  %s1 = inlined_call_operand.vmem [shape: f32[3,48,192], index: 1, kind: input, shape index: {}]
  %s2 = inlined_call_operand.vmem [shape: f32[3,192,192], index: 2, kind: input, shape index: {}]
  %s3 = inlined_call_operand.vmem [shape: f32[3,192,192], index: 3, kind: input, shape index: {}]
  %s4 = inlined_call_operand.vmem [shape: f32[3,192,160], index: 4, kind: input, shape index: {}]
  %s5 = inlined_call_operand.vmem [shape: f32[3,160,144], index: 5, kind: input, shape index: {}]
  %s6 = inlined_call_operand.vmem [shape: f32[3,144,128], index: 6, kind: input, shape index: {}]
  %s7 = inlined_call_operand.vmem [shape: f32[128,48], index: 7, kind: input, shape index: {}]
  %s8 = inlined_call_operand.vmem [shape: f32[11,192], index: 8, kind: input, shape index: {}]
  %s9 = inlined_call_operand.vmem [shape: f32[32,48], index: 9, kind: output, shape index: {}]
  %s10 = sld [smem:[#allocation0]]
  $region107: #{_encoder_forward_impl.1} parent=0
    _
  %s12 = ssub.s32 1, %s10
  %s13 = scalar_select 0, %s12, %s10
  $region1: #{_encoder_forward_impl.1} parent=0
    #allocation2 [shape = 'u8[786432]{0}', space=vmem, size = 0xc0000, scoped, tag = 'input window, operand 0']
    loop: start=0, step=1, limit=4
    $region2: #{_encoder_forward_impl.1} parent=1 // loop_pre_header
      _
    $region3: #{_encoder_forward_impl.1} parent=1 // loop_header
      %s15 = sphi 0, %s19
      %p16 = scmp.ge.s32.totalorder %s15, 4
      %s25 = sphi 0, %s27
      %s28 = sphi 0, %s25
      %s29 = sphi 0, %s28
      %s45 = sphi 0, %s29
      %s49 = sphi 0, %s49
      %s51 = sphi 0, %s49
      %s52 = sphi 0, %s51
      %s66 = sphi 0, %s52
      %s70 = sphi 0, %s70
      %s72 = sphi 0, %s70
      %s73 = sphi 0, %s72
      %s87 = sphi 0, %s73
      %s91 = sphi 0, %s91
      %s93 = sphi 0, %s91
      %s94 = sphi 0, %s93
      %s108 = sphi 0, %s94
      %s112 = sphi 0, %s112
      %s114 = sphi 0, %s112
      %s115 = sphi 0, %s114
      %s129 = sphi 0, %s115
      %s133 = sphi 0, %s133
      %s135 = sphi 0, %s133
      %s136 = sphi 0, %s135
      %s150 = sphi 0, %s136
      %s154 = sphi 0, %s154
      %s156 = sphi 0, %s154
      %s157 = sphi 0, %s156
      %s171 = sphi 0, %s157
      %s175 = sphi 0, %s175
      %s177 = sphi 0, %s175
      %s178 = sphi 0, %s177
      %s192 = sphi 0, %s178
      %s196 = sphi 0, %s196
      %s198 = sphi 0, %s196
      %s199 = sphi 0, %s198
      %s213 = sphi 0, %s199
      %s219 = sphi 0, %s221
      %s222 = sphi 0, %s219
      %s223 = sphi 0, %s222
      %s239 = sphi 0, %s223
    $region4: #{_encoder_forward_impl.1} parent=1 // loop_header_branch
      %18 = sbr.rel (%p16) target = $region8
    $region5: #{_encoder_forward_impl.1} parent=1 // loop_body
      %s20 = ssub.s32 %s15, 1
      %s21 = ssub.s32 %s15, 2
      %s22 = sadd.s32 %s15, 1
      %s23 = ssub.s32 %s15, %s22
      %p24 = scmp.eq.s32.totalorder %s23, 0
      %s26 = sadd.s32 %s25, 1
      %s27 = scalar_select %p24, %s25, %s26
      %p30 = pneg %p24
      %p31 = scmp.eq.s32.totalorder %s15, 1
      %p32 = por %p30, %p31
      %p33 = scmp.ne.s32.totalorder %s25, %s28
      %p34 = scmp.eq.s32.totalorder %s15, 0
      %p35 = por %p33, %p34
      %p36 = scmp.ne.s32.totalorder %s25, %s28
      %p37 = scmp.eq.s32.totalorder %s20, 1
      %p38 = por %p36, %p37
      %p39 = scmp.ne.s32.totalorder %s28, %s29
      %p40 = scmp.eq.s32.totalorder %s20, 0
      %p41 = por %p39, %p40
      %p42 = scmp.ne.s32.totalorder %s28, %s29
      %p43 = scmp.eq.s32.totalorder %s21, 1
      %p44 = por %p42, %p43
      %p46 = scmp.ne.s32.totalorder %s29, %s45
      %p47 = scmp.eq.s32.totalorder %s21, 0
      %p48 = por %p46, %p47
      %s50 = sadd.s32 %s49, 1
      %p53 = scmp.eq.s32.totalorder %s15, 1
      %p54 = scmp.ne.s32.totalorder %s49, %s51
      %p55 = scmp.eq.s32.totalorder %s15, 0
      %p56 = por %p54, %p55
      %p57 = scmp.ne.s32.totalorder %s49, %s51
      %p58 = scmp.eq.s32.totalorder %s20, 1
      %p59 = por %p57, %p58
      %p60 = scmp.ne.s32.totalorder %s51, %s52
      %p61 = scmp.eq.s32.totalorder %s20, 0
      %p62 = por %p60, %p61
      %p63 = scmp.ne.s32.totalorder %s51, %s52
      %p64 = scmp.eq.s32.totalorder %s21, 1
      %p65 = por %p63, %p64
      %p67 = scmp.ne.s32.totalorder %s52, %s66
      %p68 = scmp.eq.s32.totalorder %s21, 0
      %p69 = por %p67, %p68
      %s71 = sadd.s32 %s70, 1
      %p74 = scmp.eq.s32.totalorder %s15, 1
      %p75 = scmp.ne.s32.totalorder %s70, %s72
      %p76 = scmp.eq.s32.totalorder %s15, 0
      %p77 = por %p75, %p76
      %p78 = scmp.ne.s32.totalorder %s70, %s72
      %p79 = scmp.eq.s32.totalorder %s20, 1
      %p80 = por %p78, %p79
      %p81 = scmp.ne.s32.totalorder %s72, %s73
      %p82 = scmp.eq.s32.totalorder %s20, 0
      %p83 = por %p81, %p82
      %p84 = scmp.ne.s32.totalorder %s72, %s73
      %p85 = scmp.eq.s32.totalorder %s21, 1
      %p86 = por %p84, %p85
      %p88 = scmp.ne.s32.totalorder %s73, %s87
      %p89 = scmp.eq.s32.totalorder %s21, 0
      %p90 = por %p88, %p89
      %s92 = sadd.s32 %s91, 1
      %p95 = scmp.eq.s32.totalorder %s15, 1
      %p96 = scmp.ne.s32.totalorder %s91, %s93
      %p97 = scmp.eq.s32.totalorder %s15, 0
      %p98 = por %p96, %p97
      %p99 = scmp.ne.s32.totalorder %s91, %s93
      %p100 = scmp.eq.s32.totalorder %s20, 1
      %p101 = por %p99, %p100
      %p102 = scmp.ne.s32.totalorder %s93, %s94
      %p103 = scmp.eq.s32.totalorder %s20, 0
      %p104 = por %p102, %p103
      %p105 = scmp.ne.s32.totalorder %s93, %s94
      %p106 = scmp.eq.s32.totalorder %s21, 1
      %p107 = por %p105, %p106
      %p109 = scmp.ne.s32.totalorder %s94, %s108
      %p110 = scmp.eq.s32.totalorder %s21, 0
      %p111 = por %p109, %p110
      %s113 = sadd.s32 %s112, 1
      %p116 = scmp.eq.s32.totalorder %s15, 1
      %p117 = scmp.ne.s32.totalorder %s112, %s114
      %p118 = scmp.eq.s32.totalorder %s15, 0
      %p119 = por %p117, %p118
      %p120 = scmp.ne.s32.totalorder %s112, %s114
      %p121 = scmp.eq.s32.totalorder %s20, 1
      %p122 = por %p120, %p121
      %p123 = scmp.ne.s32.totalorder %s114, %s115
      %p124 = scmp.eq.s32.totalorder %s20, 0
      %p125 = por %p123, %p124
      %p126 = scmp.ne.s32.totalorder %s114, %s115
      %p127 = scmp.eq.s32.totalorder %s21, 1
      %p128 = por %p126, %p127
      %p130 = scmp.ne.s32.totalorder %s115, %s129
      %p131 = scmp.eq.s32.totalorder %s21, 0
      %p132 = por %p130, %p131
      %s134 = sadd.s32 %s133, 1
      %p137 = scmp.eq.s32.totalorder %s15, 1
      %p138 = scmp.ne.s32.totalorder %s133, %s135
      %p139 = scmp.eq.s32.totalorder %s15, 0
      %p140 = por %p138, %p139
      %p141 = scmp.ne.s32.totalorder %s133, %s135
      %p142 = scmp.eq.s32.totalorder %s20, 1
      %p143 = por %p141, %p142
      %p144 = scmp.ne.s32.totalorder %s135, %s136
      %p145 = scmp.eq.s32.totalorder %s20, 0
      %p146 = por %p144, %p145
      %p147 = scmp.ne.s32.totalorder %s135, %s136
      %p148 = scmp.eq.s32.totalorder %s21, 1
      %p149 = por %p147, %p148
      %p151 = scmp.ne.s32.totalorder %s136, %s150
      %p152 = scmp.eq.s32.totalorder %s21, 0
      %p153 = por %p151, %p152
      %s155 = sadd.s32 %s154, 1
      %p158 = scmp.eq.s32.totalorder %s15, 1
      %p159 = scmp.ne.s32.totalorder %s154, %s156
      %p160 = scmp.eq.s32.totalorder %s15, 0
      %p161 = por %p159, %p160
      %p162 = scmp.ne.s32.totalorder %s154, %s156
      %p163 = scmp.eq.s32.totalorder %s20, 1
      %p164 = por %p162, %p163
      %p165 = scmp.ne.s32.totalorder %s156, %s157
      %p166 = scmp.eq.s32.totalorder %s20, 0
      %p167 = por %p165, %p166
      %p168 = scmp.ne.s32.totalorder %s156, %s157
      %p169 = scmp.eq.s32.totalorder %s21, 1
      %p170 = por %p168, %p169
      %p172 = scmp.ne.s32.totalorder %s157, %s171
      %p173 = scmp.eq.s32.totalorder %s21, 0
      %p174 = por %p172, %p173
      %s176 = sadd.s32 %s175, 1
      %p179 = scmp.eq.s32.totalorder %s15, 1
      %p180 = scmp.ne.s32.totalorder %s175, %s177
      %p181 = scmp.eq.s32.totalorder %s15, 0
      %p182 = por %p180, %p181
      %p183 = scmp.ne.s32.totalorder %s175, %s177
      %p184 = scmp.eq.s32.totalorder %s20, 1
      %p185 = por %p183, %p184
      %p186 = scmp.ne.s32.totalorder %s177, %s178
      %p187 = scmp.eq.s32.totalorder %s20, 0
      %p188 = por %p186, %p187
      %p189 = scmp.ne.s32.totalorder %s177, %s178
      %p190 = scmp.eq.s32.totalorder %s21, 1
      %p191 = por %p189, %p190
      %p193 = scmp.ne.s32.totalorder %s178, %s192
      %p194 = scmp.eq.s32.totalorder %s21, 0
      %p195 = por %p193, %p194
      %s197 = sadd.s32 %s196, 1
      %p200 = scmp.eq.s32.totalorder %s15, 1
      %p201 = scmp.ne.s32.totalorder %s196, %s198
      %p202 = scmp.eq.s32.totalorder %s15, 0
      %p203 = por %p201, %p202
      %p204 = scmp.ne.s32.totalorder %s196, %s198
      %p205 = scmp.eq.s32.totalorder %s20, 1
      %p206 = por %p204, %p205
      %p207 = scmp.ne.s32.totalorder %s198, %s199
      %p208 = scmp.eq.s32.totalorder %s20, 0
      %p209 = por %p207, %p208
      %p210 = scmp.ne.s32.totalorder %s198, %s199
      %p211 = scmp.eq.s32.totalorder %s21, 1
      %p212 = por %p210, %p211
      %p214 = scmp.ne.s32.totalorder %s199, %s213
      %p215 = scmp.eq.s32.totalorder %s21, 0
      %p216 = por %p214, %p215
      %s217 = ssub.s32 %s15, %s22
      %p218 = scmp.eq.s32.totalorder %s217, 0
      %s220 = sadd.s32 %s219, 1
      %s221 = scalar_select %p218, %s219, %s220
      %p224 = pneg %p218
      %p225 = scmp.eq.s32.totalorder %s15, 1
      %p226 = por %p224, %p225
      %p227 = scmp.ne.s32.totalorder %s219, %s222
      %p228 = scmp.eq.s32.totalorder %s15, 0
      %p229 = por %p227, %p228
      %p230 = scmp.ne.s32.totalorder %s219, %s222
      %p231 = scmp.eq.s32.totalorder %s20, 1
      %p232 = por %p230, %p231
      %p233 = scmp.ne.s32.totalorder %s222, %s223
      %p234 = scmp.eq.s32.totalorder %s20, 0
      %p235 = por %p233, %p234
      %p236 = scmp.ne.s32.totalorder %s222, %s223
      %p237 = scmp.eq.s32.totalorder %s21, 1
      %p238 = por %p236, %p237
      %p240 = scmp.ne.s32.totalorder %s223, %s239
      %p241 = scmp.eq.s32.totalorder %s21, 0
      %p242 = por %p240, %p241
      %p243 = scmp.le.s32.totalorder 1, %s15
      %p244 = scmp.lt.s32.totalorder %s15, 3
      %p245 = pnand %p243, %p244
      %p246 = pneg %p245
      // Predicated region
      $region9: #{_encoder_forward_impl.1} parent=5 // pred_check
        _
      $region10: #{_encoder_forward_impl.1} parent=5 // pred_check_branch
        %248 = sbr.rel (%p245) target = $region12
      $region11: #{_encoder_forward_impl.1} parent=5 // pred_region
        %s249 = ssub.s32 %s15, 1
        // Predicated region
        $region13: #{_encoder_forward_impl.1} parent=11 // pred_check
          %p250 = pneg %p62
        $region14: #{_encoder_forward_impl.1} parent=11 // pred_check_branch
          %252 = sbr.rel (%p250) target = $region16
        $region15: #{_encoder_forward_impl.1} parent=11 // pred_region
          _
        $region16: #{_encoder_forward_impl.1} parent=11 // pred_fallthru
          _
        // Predicated region
        $region17: #{_encoder_forward_impl.1} parent=11 // pred_check
          %p253 = pneg %p83
        $region18: #{_encoder_forward_impl.1} parent=11 // pred_check_branch
          %255 = sbr.rel (%p253) target = $region20
        $region19: #{_encoder_forward_impl.1} parent=11 // pred_region
          _
        $region20: #{_encoder_forward_impl.1} parent=11 // pred_fallthru
          _
        // Predicated region
        $region21: #{_encoder_forward_impl.1} parent=11 // pred_check
          %p256 = pneg %p104
        $region22: #{_encoder_forward_impl.1} parent=11 // pred_check_branch
          %258 = sbr.rel (%p256) target = $region24
        $region23: #{_encoder_forward_impl.1} parent=11 // pred_region
          _
        $region24: #{_encoder_forward_impl.1} parent=11 // pred_fallthru
          _
        // Predicated region
        $region25: #{_encoder_forward_impl.1} parent=11 // pred_check
          %p259 = pneg %p125
        $region26: #{_encoder_forward_impl.1} parent=11 // pred_check_branch
          %261 = sbr.rel (%p259) target = $region28
        $region27: #{_encoder_forward_impl.1} parent=11 // pred_region
          _
        $region28: #{_encoder_forward_impl.1} parent=11 // pred_fallthru
          _
        // Predicated region
        $region29: #{_encoder_forward_impl.1} parent=11 // pred_check
          %p262 = pneg %p146
        $region30: #{_encoder_forward_impl.1} parent=11 // pred_check_branch
          %264 = sbr.rel (%p262) target = $region32
        $region31: #{_encoder_forward_impl.1} parent=11 // pred_region
          _
        $region32: #{_encoder_forward_impl.1} parent=11 // pred_fallthru
          _
        // Predicated region
        $region33: #{_encoder_forward_impl.1} parent=11 // pred_check
          %p265 = pneg %p167
        $region34: #{_encoder_forward_impl.1} parent=11 // pred_check_branch
          %267 = sbr.rel (%p265) target = $region36
        $region35: #{_encoder_forward_impl.1} parent=11 // pred_region
          _
        $region36: #{_encoder_forward_impl.1} parent=11 // pred_fallthru
          _
        // Predicated region
        $region37: #{_encoder_forward_impl.1} parent=11 // pred_check
          %p268 = pneg %p188
        $region38: #{_encoder_forward_impl.1} parent=11 // pred_check_branch
          %270 = sbr.rel (%p268) target = $region40
        $region39: #{_encoder_forward_impl.1} parent=11 // pred_region
          _
        $region40: #{_encoder_forward_impl.1} parent=11 // pred_fallthru
          _
        // Predicated region
        $region41: #{_encoder_forward_impl.1} parent=11 // pred_check
          %p271 = pneg %p209
        $region42: #{_encoder_forward_impl.1} parent=11 // pred_check_branch
          %273 = sbr.rel (%p271) target = $region44
        $region43: #{_encoder_forward_impl.1} parent=11 // pred_region
          _
        $region44: #{_encoder_forward_impl.1} parent=11 // pred_fallthru
          _
      $region12: #{_encoder_forward_impl.1} parent=5 // pred_fallthru
        _
      %p274 = scmp.lt.s32.totalorder %s15, 2
      // Predicated region
      $region45: #{_encoder_forward_impl.1} parent=5 // pred_check
        %p275 = pneg %p274
      $region46: #{_encoder_forward_impl.1} parent=5 // pred_check_branch
        %277 = sbr.rel (%p275) target = $region48
      $region47: #{_encoder_forward_impl.1} parent=5 // pred_region
        // Predicated region
        $region49: #{_encoder_forward_impl.1} parent=47 // pred_check
          %p278 = pneg %p35
        $region50: #{_encoder_forward_impl.1} parent=47 // pred_check_branch
          %280 = sbr.rel (%p278) target = $region52
        $region51: #{_encoder_forward_impl.1} parent=47 // pred_region
          %s281 = sand.u32 %s25, 1
          %s282 = sand.u32 %s25, 1
          %s283 = smul.addr %s282, 768
          %s284 = scalar_lea.vmem [#allocation2], %s283
          %s285 = smul.u32 2, %s15
          %s286 = smul.addr %s285, 8
          %s287 = scalar_lea.vmem %s0, %s286
          // Predicated region
          $region53: #{_encoder_forward_impl.1} parent=51 // pred_check
            _
          $region54: #{_encoder_forward_impl.1} parent=51 // pred_check_branch
            %289 = sbr.rel (0) target = $region56
          $region55: #{_encoder_forward_impl.1} parent=51 // pred_region
            // Predicated region
            $region57: #{_encoder_forward_impl.1} parent=55 // pred_check
              _
            $region58: #{_encoder_forward_impl.1} parent=55 // pred_check_branch
              %291 = sbr.rel (0) target = $region60
            $region59: #{_encoder_forward_impl.1} parent=55 // pred_region
              // Predicated region
              $region72: #{_encoder_forward_impl.1} parent=59 // pred_check
                _
              $region73: #{_encoder_forward_impl.1} parent=59 // pred_check_branch
                %496 = sbr.rel (0) target = $region75
              $region74: #{_encoder_forward_impl.1} parent=59 // pred_region
                loop: start=0, step=1, limit=1
                $region76: #{_encoder_forward_impl.1} parent=74 // loop_pre_header
                  _
                $region77: #{_encoder_forward_impl.1} parent=74 // loop_header
                  %s498 = sphi 0, %s502
                  %p499 = scmp.ge.s32.totalorder %s498, 1
                  %s503 = sphi %s287, %s287
                  %s504 = sphi %s284, %s284
                $region78: #{_encoder_forward_impl.1} parent=74 // loop_header_branch
                  %501 = sbr.rel (%p499) target = $region82
                $region79: #{_encoder_forward_impl.1} parent=74 // loop_body
                  %v505 = vld [vmem:[%s503] sm:$0xff]
                  %506 = vst [vmem:[%s504] sm:$0xff] %v505
                  %v507 = vld [vmem:[%s503 + $0x8] sm:$0xff]
                  %508 = vst [vmem:[%s504 + $0x8] sm:$0xff] %v507
                  %v509 = vld [vmem:[%s503 + $0x20] sm:$0xff]
                  %510 = vst [vmem:[%s504 + $0x10] sm:$0xff] %v509
                  %v511 = vld [vmem:[%s503 + $0x28] sm:$0xff]
                  %512 = vst [vmem:[%s504 + $0x18] sm:$0xff] %v511
                  %v513 = vld [vmem:[%s503 + $0x40] sm:$0xff]
                  %514 = vst [vmem:[%s504 + $0x20] sm:$0xff] %v513
                  %v515 = vld [vmem:[%s503 + $0x48] sm:$0xff]
                  %516 = vst [vmem:[%s504 + $0x28] sm:$0xff] %v515
                  %v517 = vld [vmem:[%s503 + $0x60] sm:$0xff]
                  %518 = vst [vmem:[%s504 + $0x30] sm:$0xff] %v517
                  %v519 = vld [vmem:[%s503 + $0x68] sm:$0xff]
                  %520 = vst [vmem:[%s504 + $0x38] sm:$0xff] %v519
                  %v521 = vld [vmem:[%s503 + $0x80] sm:$0xff]
                  %522 = vst [vmem:[%s504 + $0x40] sm:$0xff] %v521
                  %v523 = vld [vmem:[%s503 + $0x88] sm:$0xff]
                  %524 = vst [vmem:[%s504 + $0x48] sm:$0xff] %v523
                  %v525 = vld [vmem:[%s503 + $0xa0] sm:$0xff]
                  %526 = vst [vmem:[%s504 + $0x50] sm:$0xff] %v525
                  %v527 = vld [vmem:[%s503 + $0xa8] sm:$0xff]
                  %528 = vst [vmem:[%s504 + $0x58] sm:$0xff] %v527
                  %v529 = vld [vmem:[%s503 + $0xc0] sm:$0xff]
                  %530 = vst [vmem:[%s504 + $0x60] sm:$0xff] %v529
                  %v531 = vld [vmem:[%s503 + $0xc8] sm:$0xff]
                  %532 = vst [vmem:[%s504 + $0x68] sm:$0xff] %v531
                  %v533 = vld [vmem:[%s503 + $0xe0] sm:$0xff]
                  %534 = vst [vmem:[%s504 + $0x70] sm:$0xff] %v533
                  %v535 = vld [vmem:[%s503 + $0xe8] sm:$0xff]
                  %536 = vst [vmem:[%s504 + $0x78] sm:$0xff] %v535
                  %v537 = vld [vmem:[%s503 + $0x100] sm:$0xff]
                  %538 = vst [vmem:[%s504 + $0x80] sm:$0xff] %v537
                  %v539 = vld [vmem:[%s503 + $0x108] sm:$0xff]
                  %540 = vst [vmem:[%s504 + $0x88] sm:$0xff] %v539
                  %v541 = vld [vmem:[%s503 + $0x120] sm:$0xff]
                  %542 = vst [vmem:[%s504 + $0x90] sm:$0xff] %v541
                  %v543 = vld [vmem:[%s503 + $0x128] sm:$0xff]
                  %544 = vst [vmem:[%s504 + $0x98] sm:$0xff] %v543
                  %v545 = vld [vmem:[%s503 + $0x140] sm:$0xff]
                  %546 = vst [vmem:[%s504 + $0xa0] sm:$0xff] %v545
                  %v547 = vld [vmem:[%s503 + $0x148] sm:$0xff]
                  %548 = vst [vmem:[%s504 + $0xa8] sm:$0xff] %v547
                  %v549 = vld [vmem:[%s503 + $0x160] sm:$0xff]
                  %550 = vst [vmem:[%s504 + $0xb0] sm:$0xff] %v549
                  %v551 = vld [vmem:[%s503 + $0x168] sm:$0xff]
                  %552 = vst [vmem:[%s504 + $0xb8] sm:$0xff] %v551
                  %v553 = vld [vmem:[%s503 + $0x180] sm:$0xff]
                  %554 = vst [vmem:[%s504 + $0xc0] sm:$0xff] %v553
                  %v555 = vld [vmem:[%s503 + $0x188] sm:$0xff]
                  %556 = vst [vmem:[%s504 + $0xc8] sm:$0xff] %v555
                  %v557 = vld [vmem:[%s503 + $0x1a0] sm:$0xff]
                  %558 = vst [vmem:[%s504 + $0xd0] sm:$0xff] %v557
                  %v559 = vld [vmem:[%s503 + $0x1a8] sm:$0xff]
                  %560 = vst [vmem:[%s504 + $0xd8] sm:$0xff] %v559
                  %v561 = vld [vmem:[%s503 + $0x1c0] sm:$0xff]
                  %562 = vst [vmem:[%s504 + $0xe0] sm:$0xff] %v561
                  %v563 = vld [vmem:[%s503 + $0x1c8] sm:$0xff]
                  %564 = vst [vmem:[%s504 + $0xe8] sm:$0xff] %v563
                  %v565 = vld [vmem:[%s503 + $0x1e0] sm:$0xff]
                  %566 = vst [vmem:[%s504 + $0xf0] sm:$0xff] %v565
                  %v567 = vld [vmem:[%s503 + $0x1e8] sm:$0xff]
                  %568 = vst [vmem:[%s504 + $0xf8] sm:$0xff] %v567
                  %v569 = vld [vmem:[%s503 + $0x200] sm:$0xff]
                  %570 = vst [vmem:[%s504 + $0x100] sm:$0xff] %v569
                  %v571 = vld [vmem:[%s503 + $0x208] sm:$0xff]
                  %572 = vst [vmem:[%s504 + $0x108] sm:$0xff] %v571
                  %v573 = vld [vmem:[%s503 + $0x220] sm:$0xff]
                  %574 = vst [vmem:[%s504 + $0x110] sm:$0xff] %v573
                  %v575 = vld [vmem:[%s503 + $0x228] sm:$0xff]
                  %576 = vst [vmem:[%s504 + $0x118] sm:$0xff] %v575
                  %v577 = vld [vmem:[%s503 + $0x240] sm:$0xff]
                  %578 = vst [vmem:[%s504 + $0x120] sm:$0xff] %v577
                  %v579 = vld [vmem:[%s503 + $0x248] sm:$0xff]
                  %580 = vst [vmem:[%s504 + $0x128] sm:$0xff] %v579
                  %v581 = vld [vmem:[%s503 + $0x260] sm:$0xff]
                  %582 = vst [vmem:[%s504 + $0x130] sm:$0xff] %v581
                  %v583 = vld [vmem:[%s503 + $0x268] sm:$0xff]
                  %584 = vst [vmem:[%s504 + $0x138] sm:$0xff] %v583
                  %v585 = vld [vmem:[%s503 + $0x280] sm:$0xff]
                  %586 = vst [vmem:[%s504 + $0x140] sm:$0xff] %v585
                  %v587 = vld [vmem:[%s503 + $0x288] sm:$0xff]
                  %588 = vst [vmem:[%s504 + $0x148] sm:$0xff] %v587
                  %v589 = vld [vmem:[%s503 + $0x2a0] sm:$0xff]
                  %590 = vst [vmem:[%s504 + $0x150] sm:$0xff] %v589
                  %v591 = vld [vmem:[%s503 + $0x2a8] sm:$0xff]
                  %592 = vst [vmem:[%s504 + $0x158] sm:$0xff] %v591
                  %v593 = vld [vmem:[%s503 + $0x2c0] sm:$0xff]
                  %594 = vst [vmem:[%s504 + $0x160] sm:$0xff] %v593
                  %v595 = vld [vmem:[%s503 + $0x2c8] sm:$0xff]
                  %596 = vst [vmem:[%s504 + $0x168] sm:$0xff] %v595
                  %v597 = vld [vmem:[%s503 + $0x2e0] sm:$0xff]
                  %598 = vst [vmem:[%s504 + $0x170] sm:$0xff] %v597
                  %v599 = vld [vmem:[%s503 + $0x2e8] sm:$0xff]
                  %600 = vst [vmem:[%s504 + $0x178] sm:$0xff] %v599
                  %v601 = vld [vmem:[%s503 + $0x300] sm:$0xff]
                  %602 = vst [vmem:[%s504 + $0x180] sm:$0xff] %v601
                  %v603 = vld [vmem:[%s503 + $0x308] sm:$0xff]
                  %604 = vst [vmem:[%s504 + $0x188] sm:$0xff] %v603
                  %v605 = vld [vmem:[%s503 + $0x320] sm:$0xff]
                  %606 = vst [vmem:[%s504 + $0x190] sm:$0xff] %v605
                  %v607 = vld [vmem:[%s503 + $0x328] sm:$0xff]
                  %608 = vst [vmem:[%s504 + $0x198] sm:$0xff] %v607
                  %v609 = vld [vmem:[%s503 + $0x340] sm:$0xff]
                  %610 = vst [vmem:[%s504 + $0x1a0] sm:$0xff] %v609
                  %v611 = vld [vmem:[%s503 + $0x348] sm:$0xff]
                  %612 = vst [vmem:[%s504 + $0x1a8] sm:$0xff] %v611
                  %v613 = vld [vmem:[%s503 + $0x360] sm:$0xff]
                  %614 = vst [vmem:[%s504 + $0x1b0] sm:$0xff] %v613
                  %v615 = vld [vmem:[%s503 + $0x368] sm:$0xff]
                  %616 = vst [vmem:[%s504 + $0x1b8] sm:$0xff] %v615
                  %v617 = vld [vmem:[%s503 + $0x380] sm:$0xff]
                  %618 = vst [vmem:[%s504 + $0x1c0] sm:$0xff] %v617
                  %v619 = vld [vmem:[%s503 + $0x388] sm:$0xff]
                  %620 = vst [vmem:[%s504 + $0x1c8] sm:$0xff] %v619
                  %v621 = vld [vmem:[%s503 + $0x3a0] sm:$0xff]
                  %622 = vst [vmem:[%s504 + $0x1d0] sm:$0xff] %v621
                  %v623 = vld [vmem:[%s503 + $0x3a8] sm:$0xff]
                  %624 = vst [vmem:[%s504 + $0x1d8] sm:$0xff] %v623
                  %v625 = vld [vmem:[%s503 + $0x3c0] sm:$0xff]
                  %626 = vst [vmem:[%s504 + $0x1e0] sm:$0xff] %v625
                  %v627 = vld [vmem:[%s503 + $0x3c8] sm:$0xff]
                  %628 = vst [vmem:[%s504 + $0x1e8] sm:$0xff] %v627
                  %v629 = vld [vmem:[%s503 + $0x3e0] sm:$0xff]
                  %630 = vst [vmem:[%s504 + $0x1f0] sm:$0xff] %v629
                  %v631 = vld [vmem:[%s503 + $0x3e8] sm:$0xff]
                  %632 = vst [vmem:[%s504 + $0x1f8] sm:$0xff] %v631
                  %v633 = vld [vmem:[%s503 + $0x400] sm:$0xff]
                  %634 = vst [vmem:[%s504 + $0x200] sm:$0xff] %v633
                  %v635 = vld [vmem:[%s503 + $0x408] sm:$0xff]
                  %636 = vst [vmem:[%s504 + $0x208] sm:$0xff] %v635
                  %v637 = vld [vmem:[%s503 + $0x420] sm:$0xff]
                  %638 = vst [vmem:[%s504 + $0x210] sm:$0xff] %v637
                  %v639 = vld [vmem:[%s503 + $0x428] sm:$0xff]
                  %640 = vst [vmem:[%s504 + $0x218] sm:$0xff] %v639
                  %v641 = vld [vmem:[%s503 + $0x440] sm:$0xff]
                  %642 = vst [vmem:[%s504 + $0x220] sm:$0xff] %v641
                  %v643 = vld [vmem:[%s503 + $0x448] sm:$0xff]
                  %644 = vst [vmem:[%s504 + $0x228] sm:$0xff] %v643
                  %v645 = vld [vmem:[%s503 + $0x460] sm:$0xff]
                  %646 = vst [vmem:[%s504 + $0x230] sm:$0xff] %v645
                  %v647 = vld [vmem:[%s503 + $0x468] sm:$0xff]
                  %648 = vst [vmem:[%s504 + $0x238] sm:$0xff] %v647
                  %v649 = vld [vmem:[%s503 + $0x480] sm:$0xff]
                  %650 = vst [vmem:[%s504 + $0x240] sm:$0xff] %v649
                  %v651 = vld [vmem:[%s503 + $0x488] sm:$0xff]
                  %652 = vst [vmem:[%s504 + $0x248] sm:$0xff] %v651
                  %v653 = vld [vmem:[%s503 + $0x4a0] sm:$0xff]
                  %654 = vst [vmem:[%s504 + $0x250] sm:$0xff] %v653
                  %v655 = vld [vmem:[%s503 + $0x4a8] sm:$0xff]
                  %656 = vst [vmem:[%s504 + $0x258] sm:$0xff] %v655
                  %v657 = vld [vmem:[%s503 + $0x4c0] sm:$0xff]
                  %658 = vst [vmem:[%s504 + $0x260] sm:$0xff] %v657
                  %v659 = vld [vmem:[%s503 + $0x4c8] sm:$0xff]
                  %660 = vst [vmem:[%s504 + $0x268] sm:$0xff] %v659
                  %v661 = vld [vmem:[%s503 + $0x4e0] sm:$0xff]
                  %662 = vst [vmem:[%s504 + $0x270] sm:$0xff] %v661
                  %v663 = vld [vmem:[%s503 + $0x4e8] sm:$0xff]
                  %664 = vst [vmem:[%s504 + $0x278] sm:$0xff] %v663
                  %v665 = vld [vmem:[%s503 + $0x500] sm:$0xff]
                  %666 = vst [vmem:[%s504 + $0x280] sm:$0xff] %v665
                  %v667 = vld [vmem:[%s503 + $0x508] sm:$0xff]
                  %668 = vst [vmem:[%s504 + $0x288] sm:$0xff] %v667
                  %v669 = vld [vmem:[%s503 + $0x520] sm:$0xff]
                  %670 = vst [vmem:[%s504 + $0x290] sm:$0xff] %v669
                  %v671 = vld [vmem:[%s503 + $0x528] sm:$0xff]
                  %672 = vst [vmem:[%s504 + $0x298] sm:$0xff] %v671
                  %v673 = vld [vmem:[%s503 + $0x540] sm:$0xff]
                  %674 = vst [vmem:[%s504 + $0x2a0] sm:$0xff] %v673
                  %v675 = vld [vmem:[%s503 + $0x548] sm:$0xff]
                  %676 = vst [vmem:[%s504 + $0x2a8] sm:$0xff] %v675
                  %v677 = vld [vmem:[%s503 + $0x560] sm:$0xff]
                  %678 = vst [vmem:[%s504 + $0x2b0] sm:$0xff] %v677
                  %v679 = vld [vmem:[%s503 + $0x568] sm:$0xff]
                  %680 = vst [vmem:[%s504 + $0x2b8] sm:$0xff] %v679
                  %v681 = vld [vmem:[%s503 + $0x580] sm:$0xff]
                  %682 = vst [vmem:[%s504 + $0x2c0] sm:$0xff] %v681
                  %v683 = vld [vmem:[%s503 + $0x588] sm:$0xff]
                  %684 = vst [vmem:[%s504 + $0x2c8] sm:$0xff] %v683
                  %v685 = vld [vmem:[%s503 + $0x5a0] sm:$0xff]
                  %686 = vst [vmem:[%s504 + $0x2d0] sm:$0xff] %v685
                  %v687 = vld [vmem:[%s503 + $0x5a8] sm:$0xff]
                  %688 = vst [vmem:[%s504 + $0x2d8] sm:$0xff] %v687
                  %v689 = vld [vmem:[%s503 + $0x5c0] sm:$0xff]
                  %690 = vst [vmem:[%s504 + $0x2e0] sm:$0xff] %v689
                  %v691 = vld [vmem:[%s503 + $0x5c8] sm:$0xff]
                  %692 = vst [vmem:[%s504 + $0x2e8] sm:$0xff] %v691
                  %v693 = vld [vmem:[%s503 + $0x5e0] sm:$0xff]
                  %694 = vst [vmem:[%s504 + $0x2f0] sm:$0xff] %v693
                  %v695 = vld [vmem:[%s503 + $0x5e8] sm:$0xff]
                  %696 = vst [vmem:[%s504 + $0x2f8] sm:$0xff] %v695
                $region80: #{_encoder_forward_impl.1} parent=74 // loop_footer
                  %s502 = sadd.s32 1, %s498
                $region81: #{_encoder_forward_impl.1} parent=74 // loop_footer_branch
                  %497 = sbr.rel target = $region77
                $region82: #{_encoder_forward_impl.1} parent=74 // loop_exit
                  _
              $region75: #{_encoder_forward_impl.1} parent=59 // pred_fallthru
                _
              // Predicated region
              $region83: #{_encoder_forward_impl.1} parent=59 // pred_check
                _
              $region84: #{_encoder_forward_impl.1} parent=59 // pred_check_branch
                %698 = sbr.rel target = $region86
              $region85: #{_encoder_forward_impl.1} parent=59 // pred_region
                _
              $region86: #{_encoder_forward_impl.1} parent=59 // pred_fallthru
                _
            $region60: #{_encoder_forward_impl.1} parent=55 // pred_fallthru
              _
            // Predicated region
            $region61: #{_encoder_forward_impl.1} parent=55 // pred_check
              _
            $region62: #{_encoder_forward_impl.1} parent=55 // pred_check_branch
              %293 = sbr.rel target = $region64
            $region63: #{_encoder_forward_impl.1} parent=55 // pred_region
              loop: start=0, step=1, limit=1
              $region65: #{_encoder_forward_impl.1} parent=63 // loop_pre_header
                _
              $region66: #{_encoder_forward_impl.1} parent=63 // loop_header
                %s296 = sphi 0, %s300
                %p297 = scmp.ge.s32.totalorder %s296, 1
                %s301 = sphi %s287, %s287
                %s302 = sphi %s284, %s284
              $region67: #{_encoder_forward_impl.1} parent=63 // loop_header_branch
                %299 = sbr.rel (%p297) target = $region71
              $region68: #{_encoder_forward_impl.1} parent=63 // loop_body
                %v303 = vld [vmem:[%s301] sm:$0xff]
                %304 = vst [vmem:[%s302] sm:$0xff] %v303
                %v305 = vld [vmem:[%s301 + $0x8] sm:$0xff]
                %306 = vst [vmem:[%s302 + $0x8] sm:$0xff] %v305
                %v307 = vld [vmem:[%s301 + $0x20] sm:$0xff]
                %308 = vst [vmem:[%s302 + $0x10] sm:$0xff] %v307
                %v309 = vld [vmem:[%s301 + $0x28] sm:$0xff]
                %310 = vst [vmem:[%s302 + $0x18] sm:$0xff] %v309
                %v311 = vld [vmem:[%s301 + $0x40] sm:$0xff]
                %312 = vst [vmem:[%s302 + $0x20] sm:$0xff] %v311
                %v313 = vld [vmem:[%s301 + $0x48] sm:$0xff]
                %314 = vst [vmem:[%s302 + $0x28] sm:$0xff] %v313
                %v315 = vld [vmem:[%s301 + $0x60] sm:$0xff]
                %316 = vst [vmem:[%s302 + $0x30] sm:$0xff] %v315
                %v317 = vld [vmem:[%s301 + $0x68] sm:$0xff]
                %318 = vst [vmem:[%s302 + $0x38] sm:$0xff] %v317
                %v319 = vld [vmem:[%s301 + $0x80] sm:$0xff]
                %320 = vst [vmem:[%s302 + $0x40] sm:$0xff] %v319
                %v321 = vld [vmem:[%s301 + $0x88] sm:$0xff]
                %322 = vst [vmem:[%s302 + $0x48] sm:$0xff] %v321
                %v323 = vld [vmem:[%s301 + $0xa0] sm:$0xff]
                %324 = vst [vmem:[%s302 + $0x50] sm:$0xff] %v323
                %v325 = vld [vmem:[%s301 + $0xa8] sm:$0xff]
                %326 = vst [vmem:[%s302 + $0x58] sm:$0xff] %v325
                %v327 = vld [vmem:[%s301 + $0xc0] sm:$0xff]
                %328 = vst [vmem:[%s302 + $0x60] sm:$0xff] %v327
                %v329 = vld [vmem:[%s301 + $0xc8] sm:$0xff]
                %330 = vst [vmem:[%s302 + $0x68] sm:$0xff] %v329
                %v331 = vld [vmem:[%s301 + $0xe0] sm:$0xff]
                %332 = vst [vmem:[%s302 + $0x70] sm:$0xff] %v331
                %v333 = vld [vmem:[%s301 + $0xe8] sm:$0xff]
                %334 = vst [vmem:[%s302 + $0x78] sm:$0xff] %v333
                %v335 = vld [vmem:[%s301 + $0x100] sm:$0xff]
                %336 = vst [vmem:[%s302 + $0x80] sm:$0xff] %v335
                %v337 = vld [vmem:[%s301 + $0x108] sm:$0xff]
                %338 = vst [vmem:[%s302 + $0x88] sm:$0xff] %v337
                %v339 = vld [vmem:[%s301 + $0x120] sm:$0xff]
                %340 = vst [vmem:[%s302 + $0x90] sm:$0xff] %v339
                %v341 = vld [vmem:[%s301 + $0x128] sm:$0xff]
                %342 = vst [vmem:[%s302 + $0x98] sm:$0xff] %v341
                %v343 = vld [vmem:[%s301 + $0x140] sm:$0xff]
                %344 = vst [vmem:[%s302 + $0xa0] sm:$0xff] %v343
                %v345 = vld [vmem:[%s301 + $0x148] sm:$0xff]
                %346 = vst [vmem:[%s302 + $0xa8] sm:$0xff] %v345
                %v347 = vld [vmem:[%s301 + $0x160] sm:$0xff]
                %348 = vst [vmem:[%s302 + $0xb0] sm:$0xff] %v347
                %v349 = vld [vmem:[%s301 + $0x168] sm:$0xff]
                %350 = vst [vmem:[%s302 + $0xb8] sm:$0xff] %v349
                %v351 = vld [vmem:[%s301 + $0x180] sm:$0xff]
                %352 = vst [vmem:[%s302 + $0xc0] sm:$0xff] %v351
                %v353 = vld [vmem:[%s301 + $0x188] sm:$0xff]
                %354 = vst [vmem:[%s302 + $0xc8] sm:$0xff] %v353
                %v355 = vld [vmem:[%s301 + $0x1a0] sm:$0xff]
                %356 = vst [vmem:[%s302 + $0xd0] sm:$0xff] %v355
                %v357 = vld [vmem:[%s301 + $0x1a8] sm:$0xff]
                %358 = vst [vmem:[%s302 + $0xd8] sm:$0xff] %v357
                %v359 = vld [vmem:[%s301 + $0x1c0] sm:$0xff]
                %360 = vst [vmem:[%s302 + $0xe0] sm:$0xff] %v359
                %v361 = vld [vmem:[%s301 + $0x1c8] sm:$0xff]
                %362 = vst [vmem:[%s302 + $0xe8] sm:$0xff] %v361
                %v363 = vld [vmem:[%s301 + $0x1e0] sm:$0xff]
                %364 = vst [vmem:[%s302 + $0xf0] sm:$0xff] %v363
                %v365 = vld [vmem:[%s301 + $0x1e8] sm:$0xff]
                %366 = vst [vmem:[%s302 + $0xf8] sm:$0xff] %v365
                %v367 = vld [vmem:[%s301 + $0x200] sm:$0xff]
                %368 = vst [vmem:[%s302 + $0x100] sm:$0xff] %v367
                %v369 = vld [vmem:[%s301 + $0x208] sm:$0xff]
                %370 = vst [vmem:[%s302 + $0x108] sm:$0xff] %v369
                %v371 = vld [vmem:[%s301 + $0x220] sm:$0xff]
                %372 = vst [vmem:[%s302 + $0x110] sm:$0xff] %v371
                %v373 = vld [vmem:[%s301 + $0x228] sm:$0xff]
                %374 = vst [vmem:[%s302 + $0x118] sm:$0xff] %v373
                %v375 = vld [vmem:[%s301 + $0x240] sm:$0xff]
                %376 = vst [vmem:[%s302 + $0x120] sm:$0xff] %v375
                %v377 = vld [vmem:[%s301 + $0x248] sm:$0xff]
                %378 = vst [vmem:[%s302 + $0x128] sm:$0xff] %v377
                %v379 = vld [vmem:[%s301 + $0x260] sm:$0xff]
                %380 = vst [vmem:[%s302 + $0x130] sm:$0xff] %v379
                %v381 = vld [vmem:[%s301 + $0x268] sm:$0xff]
                %382 = vst [vmem:[%s302 + $0x138] sm:$0xff] %v381
                %v383 = vld [vmem:[%s301 + $0x280] sm:$0xff]
                %384 = vst [vmem:[%s302 + $0x140] sm:$0xff] %v383
                %v385 = vld [vmem:[%s301 + $0x288] sm:$0xff]
                %386 = vst [vmem:[%s302 + $0x148] sm:$0xff] %v385
                %v387 = vld [vmem:[%s301 + $0x2a0] sm:$0xff]
                %388 = vst [vmem:[%s302 + $0x150] sm:$0xff] %v387
                %v389 = vld [vmem:[%s301 + $0x2a8] sm:$0xff]
                %390 = vst [vmem:[%s302 + $0x158] sm:$0xff] %v389
                %v391 = vld [vmem:[%s301 + $0x2c0] sm:$0xff]
                %392 = vst [vmem:[%s302 + $0x160] sm:$0xff] %v391
                %v393 = vld [vmem:[%s301 + $0x2c8] sm:$0xff]
                %394 = vst [vmem:[%s302 + $0x168] sm:$0xff] %v393
                %v395 = vld [vmem:[%s301 + $0x2e0] sm:$0xff]
                %396 = vst [vmem:[%s302 + $0x170] sm:$0xff] %v395
                %v397 = vld [vmem:[%s301 + $0x2e8] sm:$0xff]
                %398 = vst [vmem:[%s302 + $0x178] sm:$0xff] %v397
                %v399 = vld [vmem:[%s301 + $0x300] sm:$0xff]
                %400 = vst [vmem:[%s302 + $0x180] sm:$0xff] %v399
                %v401 = vld [vmem:[%s301 + $0x308] sm:$0xff]
                %402 = vst [vmem:[%s302 + $0x188] sm:$0xff] %v401
                %v403 = vld [vmem:[%s301 + $0x320] sm:$0xff]
                %404 = vst [vmem:[%s302 + $0x190] sm:$0xff] %v403
                %v405 = vld [vmem:[%s301 + $0x328] sm:$0xff]
                %406 = vst [vmem:[%s302 + $0x198] sm:$0xff] %v405
                %v407 = vld [vmem:[%s301 + $0x340] sm:$0xff]
                %408 = vst [vmem:[%s302 + $0x1a0] sm:$0xff] %v407
                %v409 = vld [vmem:[%s301 + $0x348] sm:$0xff]
                %410 = vst [vmem:[%s302 + $0x1a8] sm:$0xff] %v409
                %v411 = vld [vmem:[%s301 + $0x360] sm:$0xff]
                %412 = vst [vmem:[%s302 + $0x1b0] sm:$0xff] %v411
                %v413 = vld [vmem:[%s301 + $0x368] sm:$0xff]
                %414 = vst [vmem:[%s302 + $0x1b8] sm:$0xff] %v413
                %v415 = vld [vmem:[%s301 + $0x380] sm:$0xff]
                %416 = vst [vmem:[%s302 + $0x1c0] sm:$0xff] %v415
                %v417 = vld [vmem:[%s301 + $0x388] sm:$0xff]
                %418 = vst [vmem:[%s302 + $0x1c8] sm:$0xff] %v417
                %v419 = vld [vmem:[%s301 + $0x3a0] sm:$0xff]
                %420 = vst [vmem:[%s302 + $0x1d0] sm:$0xff] %v419
                %v421 = vld [vmem:[%s301 + $0x3a8] sm:$0xff]
                %422 = vst [vmem:[%s302 + $0x1d8] sm:$0xff] %v421
                %v423 = vld [vmem:[%s301 + $0x3c0] sm:$0xff]
                %424 = vst [vmem:[%s302 + $0x1e0] sm:$0xff] %v423
                %v425 = vld [vmem:[%s301 + $0x3c8] sm:$0xff]
                %426 = vst [vmem:[%s302 + $0x1e8] sm:$0xff] %v425
                %v427 = vld [vmem:[%s301 + $0x3e0] sm:$0xff]
                %428 = vst [vmem:[%s302 + $0x1f0] sm:$0xff] %v427
                %v429 = vld [vmem:[%s301 + $0x3e8] sm:$0xff]
                %430 = vst [vmem:[%s302 + $0x1f8] sm:$0xff] %v429
                %v431 = vld [vmem:[%s301 + $0x400] sm:$0xff]
                %432 = vst [vmem:[%s302 + $0x200] sm:$0xff] %v431
                %v433 = vld [vmem:[%s301 + $0x408] sm:$0xff]
                %434 = vst [vmem:[%s302 + $0x208] sm:$0xff] %v433
                %v435 = vld [vmem:[%s301 + $0x420] sm:$0xff]
                %436 = vst [vmem:[%s302 + $0x210] sm:$0xff] %v435
                %v437 = vld [vmem:[%s301 + $0x428] sm:$0xff]
                %438 = vst [vmem:[%s302 + $0x218] sm:$0xff] %v437
                %v439 = vld [vmem:[%s301 + $0x440] sm:$0xff]
                %440 = vst [vmem:[%s302 + $0x220] sm:$0xff] %v439
                %v441 = vld [vmem:[%s301 + $0x448] sm:$0xff]
                %442 = vst [vmem:[%s302 + $0x228] sm:$0xff] %v441
                %v443 = vld [vmem:[%s301 + $0x460] sm:$0xff]
                %444 = vst [vmem:[%s302 + $0x230] sm:$0xff] %v443
                %v445 = vld [vmem:[%s301 + $0x468] sm:$0xff]
                %446 = vst [vmem:[%s302 + $0x238] sm:$0xff] %v445
                %v447 = vld [vmem:[%s301 + $0x480] sm:$0xff]
                %448 = vst [vmem:[%s302 + $0x240] sm:$0xff] %v447
                %v449 = vld [vmem:[%s301 + $0x488] sm:$0xff]
                %450 = vst [vmem:[%s302 + $0x248] sm:$0xff] %v449
                %v451 = vld [vmem:[%s301 + $0x4a0] sm:$0xff]
                %452 = vst [vmem:[%s302 + $0x250] sm:$0xff] %v451
                %v453 = vld [vmem:[%s301 + $0x4a8] sm:$0xff]
                %454 = vst [vmem:[%s302 + $0x258] sm:$0xff] %v453
                %v455 = vld [vmem:[%s301 + $0x4c0] sm:$0xff]
                %456 = vst [vmem:[%s302 + $0x260] sm:$0xff] %v455
                %v457 = vld [vmem:[%s301 + $0x4c8] sm:$0xff]
                %458 = vst [vmem:[%s302 + $0x268] sm:$0xff] %v457
                %v459 = vld [vmem:[%s301 + $0x4e0] sm:$0xff]
                %460 = vst [vmem:[%s302 + $0x270] sm:$0xff] %v459
                %v461 = vld [vmem:[%s301 + $0x4e8] sm:$0xff]
                %462 = vst [vmem:[%s302 + $0x278] sm:$0xff] %v461
                %v463 = vld [vmem:[%s301 + $0x500] sm:$0xff]
                %464 = vst [vmem:[%s302 + $0x280] sm:$0xff] %v463
                %v465 = vld [vmem:[%s301 + $0x508] sm:$0xff]
                %466 = vst [vmem:[%s302 + $0x288] sm:$0xff] %v465
                %v467 = vld [vmem:[%s301 + $0x520] sm:$0xff]
                %468 = vst [vmem:[%s302 + $0x290] sm:$0xff] %v467
                %v469 = vld [vmem:[%s301 + $0x528] sm:$0xff]
                %470 = vst [vmem:[%s302 + $0x298] sm:$0xff] %v469
                %v471 = vld [vmem:[%s301 + $0x540] sm:$0xff]
                %472 = vst [vmem:[%s302 + $0x2a0] sm:$0xff] %v471
                %v473 = vld [vmem:[%s301 + $0x548] sm:$0xff]
                %474 = vst [vmem:[%s302 + $0x2a8] sm:$0xff] %v473
                %v475 = vld [vmem:[%s301 + $0x560] sm:$0xff]
                %476 = vst [vmem:[%s302 + $0x2b0] sm:$0xff] %v475
                %v477 = vld [vmem:[%s301 + $0x568] sm:$0xff]
                %478 = vst [vmem:[%s302 + $0x2b8] sm:$0xff] %v477
                %v479 = vld [vmem:[%s301 + $0x580] sm:$0xff]
                %480 = vst [vmem:[%s302 + $0x2c0] sm:$0xff] %v479
                %v481 = vld [vmem:[%s301 + $0x588] sm:$0xff]
                %482 = vst [vmem:[%s302 + $0x2c8] sm:$0xff] %v481
                %v483 = vld [vmem:[%s301 + $0x5a0] sm:$0xff]
                %484 = vst [vmem:[%s302 + $0x2d0] sm:$0xff] %v483
                %v485 = vld [vmem:[%s301 + $0x5a8] sm:$0xff]
                %486 = vst [vmem:[%s302 + $0x2d8] sm:$0xff] %v485
                %v487 = vld [vmem:[%s301 + $0x5c0] sm:$0xff]
                %488 = vst [vmem:[%s302 + $0x2e0] sm:$0xff] %v487
                %v489 = vld [vmem:[%s301 + $0x5c8] sm:$0xff]
                %490 = vst [vmem:[%s302 + $0x2e8] sm:$0xff] %v489
                %v491 = vld [vmem:[%s301 + $0x5e0] sm:$0xff]
                %492 = vst [vmem:[%s302 + $0x2f0] sm:$0xff] %v491
                %v493 = vld [vmem:[%s301 + $0x5e8] sm:$0xff]
                %494 = vst [vmem:[%s302 + $0x2f8] sm:$0xff] %v493
              $region69: #{_encoder_forward_impl.1} parent=63 // loop_footer
                %s300 = sadd.s32 1, %s296
              $region70: #{_encoder_forward_impl.1} parent=63 // loop_footer_branch
                %295 = sbr.rel target = $region66
              $region71: #{_encoder_forward_impl.1} parent=63 // loop_exit
                _
            $region64: #{_encoder_forward_impl.1} parent=55 // pred_fallthru
              _
          $region56: #{_encoder_forward_impl.1} parent=51 // pred_fallthru
            _
          %699 = vnop
        $region52: #{_encoder_forward_impl.1} parent=47 // pred_fallthru
          _
      $region48: #{_encoder_forward_impl.1} parent=5 // pred_fallthru
        _
      %p700 = scmp.le.s32.totalorder 1, %s15
      %p701 = scmp.lt.s32.totalorder %s15, 3
      %p702 = pnand %p700, %p701
      %p703 = pneg %p702
      // Predicated region
      $region87: #{_encoder_forward_impl.1} parent=5 // pred_check
        _
      $region88: #{_encoder_forward_impl.1} parent=5 // pred_check_branch
        %705 = sbr.rel (%p702) target = $region90
      $region89: #{_encoder_forward_impl.1} parent=5 // pred_region
        %s706 = ssub.s32 %s15, 1
        %s707 = sand.u32 %s28, 1
        %s708 = sand.u32 %s28, 1
        %s709 = smul.addr %s708, 768
        %s710 = scalar_lea.vmem [#allocation2], %s709
        // Predicated region
        $region91: #{_encoder_forward_impl.1} parent=89 // pred_check
          %p711 = pneg %p41
        $region92: #{_encoder_forward_impl.1} parent=89 // pred_check_branch
          %713 = sbr.rel (%p711) target = $region94
        $region93: #{_encoder_forward_impl.1} parent=89 // pred_region
          _
        $region94: #{_encoder_forward_impl.1} parent=89 // pred_fallthru
          _
        %s714 = sand.u32 %s28, 1
        %s715 = sand.u32 %s28, 1
        %s716 = smul.addr %s715, 768
        %s717 = scalar_lea.vmem [#allocation2], %s716
        %p718 = pneg %p41
        %p719 = pneg %p38
        %p720 = pneg %p62
        %p721 = pneg %p59
        %p722 = pneg %p83
        %p723 = pneg %p80
        %p724 = pneg %p104
        %p725 = pneg %p101
        %p726 = pneg %p125
        %p727 = pneg %p122
        %p728 = pneg %p146
        %p729 = pneg %p143
        %p730 = pneg %p167
        %p731 = pneg %p164
        %p732 = pneg %p188
        %p733 = pneg %p185
        %p734 = pneg %p209
        %p735 = pneg %p206
        %p736 = pneg %p235
        %p737 = pneg %p232
        %s738 = smul.u32 2, %s20
        %p739 = scmp.lt.s32.totalorder %s738, 3
        %s740 = scalar_select %p739, %s738, 3
        %s741 = smul.addr %s740, 8
        %s742 = scalar_lea.vmem %s9, %s741
        %s743 = smul.u32 2, %s20
        %s744 = smul.u32 2, %s20
        %p745 = scmp.lt.s32.totalorder %s744, 3
        %s746 = scalar_select %p745, %s744, 3
        %s747 = smul.addr %s746, 8
        %s748 = scalar_lea.vmem %s9, %s747
        %s749 = smul.u32 2, %s20
        %v750 = vld [vmem:[%s710] sm:$0xff]
        %v751 = vld [vmem:[%s710 + $0x8] sm:$0xff]
        %v752 = vld [vmem:[%s710 + $0x10] sm:$0xff]
        %v753 = vld [vmem:[%s710 + $0x18] sm:$0xff]
        %v754 = vld [vmem:[%s710 + $0x20] sm:$0xff]
        %v755 = vld [vmem:[%s710 + $0x28] sm:$0xff]
        %v756 = vld [vmem:[%s710 + $0x30] sm:$0xff]
        %v757 = vld [vmem:[%s710 + $0x38] sm:$0xff]
        %v758 = vld [vmem:[%s710 + $0x40] sm:$0xff]
        %v759 = vld [vmem:[%s710 + $0x48] sm:$0xff]
        %v760 = vld [vmem:[%s710 + $0x50] sm:$0xff]
        %v761 = vld [vmem:[%s710 + $0x58] sm:$0xff]
        %v762 = vld [vmem:[%s710 + $0x60] sm:$0xff]
        %v763 = vld [vmem:[%s710 + $0x68] sm:$0xff]
        %v764 = vld [vmem:[%s710 + $0x70] sm:$0xff]
        %v765 = vld [vmem:[%s710 + $0x78] sm:$0xff]
        %v766 = vld [vmem:[%s710 + $0x80] sm:$0xff]
        %v767 = vld [vmem:[%s710 + $0x88] sm:$0xff]
        %v768 = vld [vmem:[%s710 + $0x90] sm:$0xff]
        %v769 = vld [vmem:[%s710 + $0x98] sm:$0xff]
        %v770 = vld [vmem:[%s710 + $0xa0] sm:$0xff]
        %v771 = vld [vmem:[%s710 + $0xa8] sm:$0xff]
        %v772 = vld [vmem:[%s710 + $0xb0] sm:$0xff]
        %v773 = vld [vmem:[%s710 + $0xb8] sm:$0xff]
        %v774 = vld [vmem:[%s710 + $0xc0] sm:$0xff]
        %v775 = vld [vmem:[%s710 + $0xc8] sm:$0xff]
        %v776 = vld [vmem:[%s710 + $0xd0] sm:$0xff]
        %v777 = vld [vmem:[%s710 + $0xd8] sm:$0xff]
        %v778 = vld [vmem:[%s710 + $0xe0] sm:$0xff]
        %v779 = vld [vmem:[%s710 + $0xe8] sm:$0xff]
        %v780 = vld [vmem:[%s710 + $0xf0] sm:$0xff]
        %v781 = vld [vmem:[%s710 + $0xf8] sm:$0xff]
        %v782 = vld [vmem:[%s710 + $0x100] sm:$0xff]
        %v783 = vld [vmem:[%s710 + $0x108] sm:$0xff]
        %v784 = vld [vmem:[%s710 + $0x110] sm:$0xff]
        %v785 = vld [vmem:[%s710 + $0x118] sm:$0xff]
        %v786 = vld [vmem:[%s710 + $0x120] sm:$0xff]
        %v787 = vld [vmem:[%s710 + $0x128] sm:$0xff]
        %v788 = vld [vmem:[%s710 + $0x130] sm:$0xff]
        %v789 = vld [vmem:[%s710 + $0x138] sm:$0xff]
        %v790 = vld [vmem:[%s710 + $0x140] sm:$0xff]
        %v791 = vld [vmem:[%s710 + $0x148] sm:$0xff]
        %v792 = vld [vmem:[%s710 + $0x150] sm:$0xff]
        %v793 = vld [vmem:[%s710 + $0x158] sm:$0xff]
        %v794 = vld [vmem:[%s710 + $0x160] sm:$0xff]
        %v795 = vld [vmem:[%s710 + $0x168] sm:$0xff]
        %v796 = vld [vmem:[%s710 + $0x170] sm:$0xff]
        %v797 = vld [vmem:[%s710 + $0x178] sm:$0xff]
        %v798 = vld [vmem:[%s710 + $0x180] sm:$0xff]
        %v799 = vld [vmem:[%s710 + $0x188] sm:$0xff]
        %v800 = vld [vmem:[%s710 + $0x190] sm:$0xff]
        %v801 = vld [vmem:[%s710 + $0x198] sm:$0xff]
        %v802 = vld [vmem:[%s710 + $0x1a0] sm:$0xff]
        %v803 = vld [vmem:[%s710 + $0x1a8] sm:$0xff]
        %v804 = vld [vmem:[%s710 + $0x1b0] sm:$0xff]
        %v805 = vld [vmem:[%s710 + $0x1b8] sm:$0xff]
        %v806 = vld [vmem:[%s710 + $0x1c0] sm:$0xff]
        %v807 = vld [vmem:[%s710 + $0x1c8] sm:$0xff]
        %v808 = vld [vmem:[%s710 + $0x1d0] sm:$0xff]
        %v809 = vld [vmem:[%s710 + $0x1d8] sm:$0xff]
        %v810 = vld [vmem:[%s710 + $0x1e0] sm:$0xff]
        %v811 = vld [vmem:[%s710 + $0x1e8] sm:$0xff]
        %v812 = vld [vmem:[%s710 + $0x1f0] sm:$0xff]
        %v813 = vld [vmem:[%s710 + $0x1f8] sm:$0xff]
        %v814 = vld [vmem:[%s710 + $0x200] sm:$0xff]
        %v815 = vld [vmem:[%s710 + $0x208] sm:$0xff]
        %v816 = vld [vmem:[%s710 + $0x210] sm:$0xff]
        %v817 = vld [vmem:[%s710 + $0x218] sm:$0xff]
        %v818 = vld [vmem:[%s710 + $0x220] sm:$0xff]
        %v819 = vld [vmem:[%s710 + $0x228] sm:$0xff]
        %v820 = vld [vmem:[%s710 + $0x230] sm:$0xff]
        %v821 = vld [vmem:[%s710 + $0x238] sm:$0xff]
        %v822 = vld [vmem:[%s710 + $0x240] sm:$0xff]
        %v823 = vld [vmem:[%s710 + $0x248] sm:$0xff]
        %v824 = vld [vmem:[%s710 + $0x250] sm:$0xff]
        %v825 = vld [vmem:[%s710 + $0x258] sm:$0xff]
        %v826 = vld [vmem:[%s710 + $0x260] sm:$0xff]
        %v827 = vld [vmem:[%s710 + $0x268] sm:$0xff]
        %v828 = vld [vmem:[%s710 + $0x270] sm:$0xff]
        %v829 = vld [vmem:[%s710 + $0x278] sm:$0xff]
        %v830 = vld [vmem:[%s710 + $0x280] sm:$0xff]
        %v831 = vld [vmem:[%s710 + $0x288] sm:$0xff]
        %v832 = vld [vmem:[%s710 + $0x290] sm:$0xff]
        %v833 = vld [vmem:[%s710 + $0x298] sm:$0xff]
        %v834 = vld [vmem:[%s710 + $0x2a0] sm:$0xff]
        %v835 = vld [vmem:[%s710 + $0x2a8] sm:$0xff]
        %v836 = vld [vmem:[%s710 + $0x2b0] sm:$0xff]
        %v837 = vld [vmem:[%s710 + $0x2b8] sm:$0xff]
        %v838 = vld [vmem:[%s710 + $0x2c0] sm:$0xff]
        %v839 = vld [vmem:[%s710 + $0x2c8] sm:$0xff]
        %v840 = vld [vmem:[%s710 + $0x2d0] sm:$0xff]
        %v841 = vld [vmem:[%s710 + $0x2d8] sm:$0xff]
        %v842 = vld [vmem:[%s710 + $0x2e0] sm:$0xff]
        %v843 = vld [vmem:[%s710 + $0x2e8] sm:$0xff]
        %v844 = vld [vmem:[%s710 + $0x2f0] sm:$0xff]
        %v845 = vld [vmem:[%s710 + $0x2f8] sm:$0xff]
        %v846 = vld [vmem:[%s1] sm:$0xff]
        %v847 = vld [vmem:[%s1 + $0x8] sm:$0xff]
        %v848 = vld [vmem:[%s1 + $0x10] sm:$0xff]
        %v849 = vld [vmem:[%s1 + $0x18] sm:$0xff]
        %v850 = vld [vmem:[%s1 + $0x20] sm:$0xff]
        %v851 = vld [vmem:[%s1 + $0x28] sm:$0xff]
        %v852 = vld [vmem:[%s1 + $0x30] sm:$0xff]
        %v853 = vld [vmem:[%s1 + $0x38] sm:$0xff]
        %v854 = vld [vmem:[%s1 + $0x40] sm:$0xff]
        %v855 = vld [vmem:[%s1 + $0x48] sm:$0xff]
        %v856 = vld [vmem:[%s1 + $0x50] sm:$0xff]
        %v857 = vld [vmem:[%s1 + $0x58] sm:$0xff]
        %s858 = scalar_lea.vmem %s1, 96
        %v859 = vld [vmem:[%s858] sm:$0xff]
        %v860 = vld [vmem:[%s858 + $0x8] sm:$0xff]
        %v861 = vld [vmem:[%s858 + $0x10] sm:$0xff]
        %v862 = vld [vmem:[%s858 + $0x18] sm:$0xff]
        %v863 = vld [vmem:[%s858 + $0x20] sm:$0xff]
        %v864 = vld [vmem:[%s858 + $0x28] sm:$0xff]
        %v865 = vld [vmem:[%s858 + $0x30] sm:$0xff]
        %v866 = vld [vmem:[%s858 + $0x38] sm:$0xff]
        %v867 = vld [vmem:[%s858 + $0x40] sm:$0xff]
        %v868 = vld [vmem:[%s858 + $0x48] sm:$0xff]
        %v869 = vld [vmem:[%s858 + $0x50] sm:$0xff]
        %v870 = vld [vmem:[%s858 + $0x58] sm:$0xff]
        %vm871 = vcmask 392192
        %v873 = vsel %vm871, %v750, 0
        %v876 = vsel %vm871, %v751, 0
        %v879 = vsel %vm871, %v752, 0
        %v882 = vsel %vm871, %v753, 0
        %v885 = vsel %vm871, %v754, 0
        %v888 = vsel %vm871, %v755, 0
        %v891 = vsel %vm871, %v756, 0
        %v894 = vsel %vm871, %v757, 0
        %v897 = vsel %vm871, %v758, 0
        %v900 = vsel %vm871, %v759, 0
        %v903 = vsel %vm871, %v760, 0
        %v906 = vsel %vm871, %v761, 0
        %v909 = vsel %vm871, %v762, 0
        %v912 = vsel %vm871, %v763, 0
        %v915 = vsel %vm871, %v764, 0
        %v918 = vsel %vm871, %v765, 0
        %v921 = vsel %vm871, %v766, 0
        %v924 = vsel %vm871, %v767, 0
        %v927 = vsel %vm871, %v768, 0
        %v930 = vsel %vm871, %v769, 0
        %v933 = vsel %vm871, %v770, 0
        %v936 = vsel %vm871, %v771, 0
        %v939 = vsel %vm871, %v772, 0
        %v942 = vsel %vm871, %v773, 0
        %v945 = vsel %vm871, %v774, 0
        %v948 = vsel %vm871, %v775, 0
        %v951 = vsel %vm871, %v776, 0
        %v954 = vsel %vm871, %v777, 0
        %v957 = vsel %vm871, %v778, 0
        %v960 = vsel %vm871, %v779, 0
        %v963 = vsel %vm871, %v780, 0
        %v966 = vsel %vm871, %v781, 0
        %v969 = vsel %vm871, %v782, 0
        %v972 = vsel %vm871, %v783, 0
        %v975 = vsel %vm871, %v784, 0
        %v978 = vsel %vm871, %v785, 0
        %v981 = vsel %vm871, %v786, 0
        %v984 = vsel %vm871, %v787, 0
        %v987 = vsel %vm871, %v788, 0
        %v990 = vsel %vm871, %v789, 0
        %v993 = vsel %vm871, %v790, 0
        %v996 = vsel %vm871, %v791, 0
        %v999 = vsel %vm871, %v792, 0
        %v1002 = vsel %vm871, %v793, 0
        %v1005 = vsel %vm871, %v794, 0
        %v1008 = vsel %vm871, %v795, 0
        %v1011 = vsel %vm871, %v796, 0
        %v1014 = vsel %vm871, %v797, 0
        %v1017 = vsel %vm871, %v798, 0
        %v1020 = vsel %vm871, %v799, 0
        %v1023 = vsel %vm871, %v800, 0
        %v1026 = vsel %vm871, %v801, 0
        %v1029 = vsel %vm871, %v802, 0
        %v1032 = vsel %vm871, %v803, 0
        %v1035 = vsel %vm871, %v804, 0
        %v1038 = vsel %vm871, %v805, 0
        %v1041 = vsel %vm871, %v806, 0
        %v1044 = vsel %vm871, %v807, 0
        %v1047 = vsel %vm871, %v808, 0
        %v1050 = vsel %vm871, %v809, 0
        %v1053 = vsel %vm871, %v810, 0
        %v1056 = vsel %vm871, %v811, 0
        %v1059 = vsel %vm871, %v812, 0
        %v1062 = vsel %vm871, %v813, 0
        %v1065 = vsel %vm871, %v814, 0
        %v1068 = vsel %vm871, %v815, 0
        %v1071 = vsel %vm871, %v816, 0
        %v1074 = vsel %vm871, %v817, 0
        %v1077 = vsel %vm871, %v818, 0
        %v1080 = vsel %vm871, %v819, 0
        %v1083 = vsel %vm871, %v820, 0
        %v1086 = vsel %vm871, %v821, 0
        %v1089 = vsel %vm871, %v822, 0
        %v1092 = vsel %vm871, %v823, 0
        %v1095 = vsel %vm871, %v824, 0
        %v1098 = vsel %vm871, %v825, 0
        %v1101 = vsel %vm871, %v826, 0
        %v1104 = vsel %vm871, %v827, 0
        %v1107 = vsel %vm871, %v828, 0
        %v1110 = vsel %vm871, %v829, 0
        %v1113 = vsel %vm871, %v830, 0
        %v1116 = vsel %vm871, %v831, 0
        %v1119 = vsel %vm871, %v832, 0
        %v1122 = vsel %vm871, %v833, 0
        %v1125 = vsel %vm871, %v834, 0
        %v1128 = vsel %vm871, %v835, 0
        %v1131 = vsel %vm871, %v836, 0
        %v1134 = vsel %vm871, %v837, 0
        %v1137 = vsel %vm871, %v838, 0
        %v1140 = vsel %vm871, %v839, 0
        %v1143 = vsel %vm871, %v840, 0
        %v1146 = vsel %vm871, %v841, 0
        %v1149 = vsel %vm871, %v842, 0
        %v1152 = vsel %vm871, %v843, 0
        %v1155 = vsel %vm871, %v844, 0
        %v1158 = vsel %vm871, %v845, 0
        %1160 = vmatprep.subr.mxu0 %v860
        %1161 = vmatpush1.msra.mxu0 %v859
        %1162 = vmatprep.subr.mxu0 %v862
        %1163 = vmatpush1.msra.mxu0 %v861
        %1164 = vmatprep.subr.mxu0 %v864
        %1165 = vmatpush1.msra.mxu0 %v863
        %1166 = vmatprep.subr.mxu0 %v866
        %1167 = vmatpush1.msra.mxu0 %v865
        %1168 = vmatprep.subr.mxu0 %v868
        %1169 = vmatpush1.msra.mxu0 %v867
        %1170 = vmatprep.subr.mxu0 %v870
        %1171 = vmatpush1.msra.mxu0 %v869
        %1172 = vmatprep.subr.mxu0 0.0
        %1173 = vmatpush1.msra.mxu0 0.0
        %1174 = vmatprep.subr.mxu0 0.0
        %1175 = vmatpush1.msra.mxu0 0.0
        %1176 = vmatprep.subr.mxu0 0.0
        %1177 = vmatpush1.msra.mxu0 0.0
        %1178 = vmatprep.subr.mxu0 0.0
        %1179 = vmatpush1.msra.mxu0 0.0
        %1180 = vmatprep.subr.mxu0 0.0
        %1181 = vmatpush1.msra.mxu0 0.0
        %1182 = vmatprep.subr.mxu0 0.0
        %1183 = vmatpush1.msra.mxu0 0.0
        %1184 = vmatprep.subr.mxu0 0.0
        %1185 = vmatpush1.msra.mxu0 0.0
        %1186 = vmatprep.subr.mxu0 0.0
        %1187 = vmatpush1.msra.mxu0 0.0
        %1188 = vmatprep.subr.mxu0 0.0
        %1189 = vmatpush1.msra.mxu0 0.0
        %1190 = vmatprep.subr.mxu0 0.0
        %1191 = vmatpush1.msra.mxu0 0.0
        %1192 = vmatprep.subr.mxu0 0.0
        %1193 = vmatpush1.msra.mxu0 0.0
        %1194 = vmatprep.subr.mxu0 0.0
        %1195 = vmatpush1.msra.mxu0 0.0
        %1196 = vmatprep.subr.mxu0 0.0
        %1197 = vmatpush1.msra.mxu0 0.0
        %1198 = vmatprep.subr.mxu0 0.0
        %1199 = vmatpush1.msra.mxu0 0.0
        %1200 = vmatprep.subr.mxu0 0.0
        %1201 = vmatpush1.msra.mxu0 0.0
        %1202 = vmatprep.subr.mxu0 0.0
        %1203 = vmatpush1.msra.mxu0 0.0
        %1204 = vmatprep.subr.mxu0 0.0
        %1205 = vmatpush1.msra.mxu0 0.0
        %1206 = vmatprep.subr.mxu0 0.0
        %1207 = vmatpush1.msra.mxu0 0.0
        %1208 = vmatprep.subr.mxu0 0.0
        %1209 = vmatpush1.msra.mxu0 0.0
        %1210 = vmatprep.subr.mxu0 0.0
        %1211 = vmatpush1.msra.mxu0 0.0
        %1212 = vmatprep.subr.mxu0 0.0
        %1213 = vmatpush1.msra.mxu0 0.0
        %1214 = vmatprep.subr.mxu0 0.0
        %1215 = vmatpush1.msra.mxu0 0.0
        %1216 = vmatprep.subr.mxu0 0.0
        %1217 = vmatpush1.msra.mxu0 0.0
        %1218 = vmatprep.subr.mxu0 0.0
        %1219 = vmatpush1.msra.mxu0 0.0
        %1220 = vmatprep.subr.mxu0 0.0
        %1221 = vmatpush1.msra.mxu0 0.0
        %1222 = vmatprep.subr.mxu0 0.0
        %1223 = vmatpush1.msra.mxu0 0.0
        %1224 = vmatprep.mubr.f32.mxu0 0.0
        %1225 = vmatmul.mubr.f32.gmra.mrb[0].mxu0 %v873
        %v1226 = vpop.f32.mrb[0].mxu0
        %v1227 = vadd.f32 0.0, %v1226
        %v1228 = vpop.f32.mrb[0].mxu0
        %v1229 = vadd.f32 0.0, %v1228
        %1230 = vmatprep.mubr.f32.mxu0 0.0
        %1231 = vmatmul.mubr.f32.gmra.mrb[0].mxu0 %v876
        %v1232 = vpop.f32.mrb[0].mxu0
        %v1233 = vadd.f32 0.0, %v1232
        %v1234 = vpop.f32.mrb[0].mxu0
        %v1235 = vadd.f32 0.0, %v1234
        %1236 = vmatprep.mubr.f32.mxu0 0.0
        %1237 = vmatmul.mubr.f32.gmra.mrb[0].mxu0 %v879
        %v1238 = vpop.f32.mrb[0].mxu0
        %v1239 = vadd.f32 0.0, %v1238
        %v1240 = vpop.f32.mrb[0].mxu0
        %v1241 = vadd.f32 0.0, %v1240
        %1242 = vmatprep.mubr.f32.mxu0 0.0
        %1243 = vmatmul.mubr.f32.gmra.mrb[0].mxu0 %v882
        %v1244 = vpop.f32.mrb[0].mxu0
        %v1245 = vadd.f32 0.0, %v1244
        %v1246 = vpop.f32.mrb[0].mxu0
        %v1247 = vadd.f32 0.0, %v1246
        %1248 = vmatprep.mubr.f32.mxu0 0.0
        %1249 = vmatmul.mubr.f32.gmra.mrb[0].mxu0 %v885
        %v1250 = vpop.f32.mrb[0].mxu0
        %v1251 = vadd.f32 0.0, %v1250
        %v1252 = vpop.f32.mrb[0].mxu0
        %v1253 = vadd.f32 0.0, %v1252
        %1254 = vmatprep.mubr.f32.mxu0 0.0
        %1255 = vmatmul.mubr.f32.gmra.mrb[0].mxu0 %v888
        %v1256 = vpop.f32.mrb[0].mxu0
        %v1257 = vadd.f32 0.0, %v1256
        %v1258 = vpop.f32.mrb[0].mxu0
        %v1259 = vadd.f32 0.0, %v1258
        %1260 = vmatprep.mubr.f32.mxu0 0.0
        %1261 = vmatmul.mubr.f32.gmra.mrb[0].mxu0 %v891
        %v1262 = vpop.f32.mrb[0].mxu0
        %v1263 = vadd.f32 0.0, %v1262
        %v1264 = vpop.f32.mrb[0].mxu0
        %v1265 = vadd.f32 0.0, %v1264
        %1266 = vmatprep.mubr.f32.mxu0 0.0
        %1267 = vmatmul.mubr.f32.gmra.mrb[0].mxu0 %v894
        %v1268 = vpop.f32.mrb[0].mxu0
        %v1269 = vadd.f32 0.0, %v1268
        %v1270 = vpop.f32.mrb[0].mxu0
        %v1271 = vadd.f32 0.0, %v1270
        %1272 = vmatprep.mubr.f32.mxu0 0.0
        %1273 = vmatmul.mubr.f32.gmra.mrb[0].mxu0 %v897
        %v1274 = vpop.f32.mrb[0].mxu0
        %v1275 = vadd.f32 0.0, %v1274
        %v1276 = vpop.f32.mrb[0].mxu0
        %v1277 = vadd.f32 0.0, %v1276
        %1278 = vmatprep.mubr.f32.mxu0 0.0
        %1279 = vmatmul.mubr.f32.gmra.mrb[0].mxu0 %v900
        %v1280 = vpop.f32.mrb[0].mxu0
        %v1281 = vadd.f32 0.0, %v1280
        %v1282 = vpop.f32.mrb[0].mxu0
        %v1283 = vadd.f32 0.0, %v1282
        %1284 = vmatprep.mubr.f32.mxu0 0.0
        %1285 = vmatmul.mubr.f32.gmra.mrb[0].mxu0 %v903
        %v1286 = vpop.f32.mrb[0].mxu0
        %v1287 = vadd.f32 0.0, %v1286
        %v1288 = vpop.f32.mrb[0].mxu0
        %v1289 = vadd.f32 0.0, %v1288
        %1290 = vmatprep.mubr.f32.mxu0 0.0
        %1291 = vmatmul.mubr.f32.gmra.mrb[0].mxu0 %v906
        %v1292 = vpop.f32.mrb[0].mxu0
        %v1293 = vadd.f32 0.0, %v1292
        %v1294 = vpop.f32.mrb[0].mxu0
        %v1295 = vadd.f32 0.0, %v1294
        %1296 = vmatprep.mubr.f32.mxu0 0.0
        %1297 = vmatmul.mubr.f32.gmra.mrb[0].mxu0 %v909
        %v1298 = vpop.f32.mrb[0].mxu0
        %v1299 = vadd.f32 0.0, %v1298
        %v1300 = vpop.f32.mrb[0].mxu0
        %v1301 = vadd.f32 0.0, %v1300
        %1302 = vmatprep.mubr.f32.mxu0 0.0
        %1303 = vmatmul.mubr.f32.gmra.mrb[0].mxu0 %v912
        %v1304 = vpop.f32.mrb[0].mxu0
        %v1305 = vadd.f32 0.0, %v1304
        %v1306 = vpop.f32.mrb[0].mxu0
        %v1307 = vadd.f32 0.0, %v1306
        %1308 = vmatprep.mubr.f32.mxu0 0.0
        %1309 = vmatmul.mubr.f32.gmra.mrb[0].mxu0 %v915
        %v1310 = vpop.f32.mrb[0].mxu0
        %v1311 = vadd.f32 0.0, %v1310
        %v1312 = vpop.f32.mrb[0].mxu0
        %v1313 = vadd.f32 0.0, %v1312
        %1314 = vmatprep.mubr.f32.mxu0 0.0
        %1315 = vmatmul.mubr.f32.gmra.mrb[0].mxu0 %v918
        %v1316 = vpop.f32.mrb[0].mxu0
        %v1317 = vadd.f32 0.0, %v1316
        %v1318 = vpop.f32.mrb[0].mxu0
        %v1319 = vadd.f32 0.0, %v1318
        %1320 = vmatprep.mubr.f32.mxu0 0.0
        %1321 = vmatmul.mubr.f32.gmra.mrb[0].mxu0 %v921
        %v1322 = vpop.f32.mrb[0].mxu0
        %v1323 = vadd.f32 0.0, %v1322
        %v1324 = vpop.f32.mrb[0].mxu0
        %v1325 = vadd.f32 0.0, %v1324
        %1326 = vmatprep.mubr.f32.mxu0 0.0
        %1327 = vmatmul.mubr.f32.gmra.mrb[0].mxu0 %v924
        %v1328 = vpop.f32.mrb[0].mxu0
        %v1329 = vadd.f32 0.0, %v1328
        %v1330 = vpop.f32.mrb[0].mxu0
        %v1331 = vadd.f32 0.0, %v1330
        %1332 = vmatprep.mubr.f32.mxu0 0.0
        %1333 = vmatmul.mubr.f32.gmra.mrb[0].mxu0 %v927
        %v1334 = vpop.f32.mrb[0].mxu0
        %v1335 = vadd.f32 0.0, %v1334
        %v1336 = vpop.f32.mrb[0].mxu0
        %v1337 = vadd.f32 0.0, %v1336
        %1338 = vmatprep.mubr.f32.mxu0 0.0
        %1339 = vmatmul.mubr.f32.gmra.mrb[0].mxu0 %v930
        %v1340 = vpop.f32.mrb[0].mxu0
        %v1341 = vadd.f32 0.0, %v1340
        %v1342 = vpop.f32.mrb[0].mxu0
        %v1343 = vadd.f32 0.0, %v1342
        %1344 = vmatprep.mubr.f32.mxu0 0.0
        %1345 = vmatmul.mubr.f32.gmra.mrb[0].mxu0 %v933
        %v1346 = vpop.f32.mrb[0].mxu0
        %v1347 = vadd.f32 0.0, %v1346
        %v1348 = vpop.f32.mrb[0].mxu0
        %v1349 = vadd.f32 0.0, %v1348
        %1350 = vmatprep.mubr.f32.mxu0 0.0
        %1351 = vmatmul.mubr.f32.gmra.mrb[0].mxu0 %v936
        %v1352 = vpop.f32.mrb[0].mxu0
        %v1353 = vadd.f32 0.0, %v1352
        %v1354 = vpop.f32.mrb[0].mxu0
        %v1355 = vadd.f32 0.0, %v1354
        %1356 = vmatprep.mubr.f32.mxu0 0.0
        %1357 = vmatmul.mubr.f32.gmra.mrb[0].mxu0 %v939
        %v1358 = vpop.f32.mrb[0].mxu0
        %v1359 = vadd.f32 0.0, %v1358
        %v1360 = vpop.f32.mrb[0].mxu0
        %v1361 = vadd.f32 0.0, %v1360
        %1362 = vmatprep.mubr.f32.mxu0 0.0
        %1363 = vmatmul.mubr.f32.gmra.mrb[0].mxu0 %v942
        %v1364 = vpop.f32.mrb[0].mxu0
        %v1365 = vadd.f32 0.0, %v1364
        %v1366 = vpop.f32.mrb[0].mxu0
        %v1367 = vadd.f32 0.0, %v1366
        %1368 = vmatprep.mubr.f32.mxu0 0.0
        %1369 = vmatmul.mubr.f32.gmra.mrb[0].mxu0 %v945
        %v1370 = vpop.f32.mrb[0].mxu0
        %v1371 = vadd.f32 0.0, %v1370
        %v1372 = vpop.f32.mrb[0].mxu0
        %v1373 = vadd.f32 0.0, %v1372
        %1374 = vmatprep.mubr.f32.mxu0 0.0
        %1375 = vmatmul.mubr.f32.gmra.mrb[0].mxu0 %v948
        %v1376 = vpop.f32.mrb[0].mxu0
        %v1377 = vadd.f32 0.0, %v1376
        %v1378 = vpop.f32.mrb[0].mxu0
        %v1379 = vadd.f32 0.0, %v1378
        %1380 = vmatprep.mubr.f32.mxu0 0.0
        %1381 = vmatmul.mubr.f32.gmra.mrb[0].mxu0 %v951
        %v1382 = vpop.f32.mrb[0].mxu0
        %v1383 = vadd.f32 0.0, %v1382
        %v1384 = vpop.f32.mrb[0].mxu0
        %v1385 = vadd.f32 0.0, %v1384
        %1386 = vmatprep.mubr.f32.mxu0 0.0
        %1387 = vmatmul.mubr.f32.gmra.mrb[0].mxu0 %v954
        %v1388 = vpop.f32.mrb[0].mxu0
        %v1389 = vadd.f32 0.0, %v1388
        %v1390 = vpop.f32.mrb[0].mxu0
        %v1391 = vadd.f32 0.0, %v1390
        %1392 = vmatprep.mubr.f32.mxu0 0.0
        %1393 = vmatmul.mubr.f32.gmra.mrb[0].mxu0 %v957
        %v1394 = vpop.f32.mrb[0].mxu0
        %v1395 = vadd.f32 0.0, %v1394
        %v1396 = vpop.f32.mrb[0].mxu0
        %v1397 = vadd.f32 0.0, %v1396
        %1398 = vmatprep.mubr.f32.mxu0 0.0
        %1399 = vmatmul.mubr.f32.gmra.mrb[0].mxu0 %v960
        %v1400 = vpop.f32.mrb[0].mxu0
        %v1401 = vadd.f32 0.0, %v1400
        %v1402 = vpop.f32.mrb[0].mxu0
        %v1403 = vadd.f32 0.0, %v1402
        %1404 = vmatprep.mubr.f32.mxu0 0.0
        %1405 = vmatmul.mubr.f32.gmra.mrb[0].mxu0 %v963
        %v1406 = vpop.f32.mrb[0].mxu0
        %v1407 = vadd.f32 0.0, %v1406
        %v1408 = vpop.f32.mrb[0].mxu0
        %v1409 = vadd.f32 0.0, %v1408
        %1410 = vmatprep.mubr.f32.mxu0 0.0
        %1411 = vmatmul.mubr.f32.gmra.mrb[0].mxu0 %v966
        %v1412 = vpop.f32.mrb[0].mxu0
        %v1413 = vadd.f32 0.0, %v1412
        %v1414 = vpop.f32.mrb[0].mxu0
        %v1415 = vadd.f32 0.0, %v1414
        %1416 = vmatprep.mubr.f32.mxu0 0.0
        %1417 = vmatmul.mubr.f32.gmra.mrb[0].mxu0 %v969
        %v1418 = vpop.f32.mrb[0].mxu0
        %v1419 = vadd.f32 0.0, %v1418
        %v1420 = vpop.f32.mrb[0].mxu0
        %v1421 = vadd.f32 0.0, %v1420
        %1422 = vmatprep.mubr.f32.mxu0 0.0
        %1423 = vmatmul.mubr.f32.gmra.mrb[0].mxu0 %v972
        %v1424 = vpop.f32.mrb[0].mxu0
        %v1425 = vadd.f32 0.0, %v1424
        %v1426 = vpop.f32.mrb[0].mxu0
        %v1427 = vadd.f32 0.0, %v1426
        %1428 = vmatprep.mubr.f32.mxu0 0.0
        %1429 = vmatmul.mubr.f32.gmra.mrb[0].mxu0 %v975
        %v1430 = vpop.f32.mrb[0].mxu0
        %v1431 = vadd.f32 0.0, %v1430
        %v1432 = vpop.f32.mrb[0].mxu0
        %v1433 = vadd.f32 0.0, %v1432
        %1434 = vmatprep.mubr.f32.mxu0 0.0
        %1435 = vmatmul.mubr.f32.gmra.mrb[0].mxu0 %v978
        %v1436 = vpop.f32.mrb[0].mxu0
        %v1437 = vadd.f32 0.0, %v1436
        %v1438 = vpop.f32.mrb[0].mxu0
        %v1439 = vadd.f32 0.0, %v1438
        %1440 = vmatprep.mubr.f32.mxu0 0.0
        %1441 = vmatmul.mubr.f32.gmra.mrb[0].mxu0 %v981
        %v1442 = vpop.f32.mrb[0].mxu0
        %v1443 = vadd.f32 0.0, %v1442
        %v1444 = vpop.f32.mrb[0].mxu0
        %v1445 = vadd.f32 0.0, %v1444
        %1446 = vmatprep.mubr.f32.mxu0 0.0
        %1447 = vmatmul.mubr.f32.gmra.mrb[0].mxu0 %v984
        %v1448 = vpop.f32.mrb[0].mxu0
        %v1449 = vadd.f32 0.0, %v1448
        %v1450 = vpop.f32.mrb[0].mxu0
        %v1451 = vadd.f32 0.0, %v1450
        %1452 = vmatprep.mubr.f32.mxu0 0.0
        %1453 = vmatmul.mubr.f32.gmra.mrb[0].mxu0 %v987
        %v1454 = vpop.f32.mrb[0].mxu0
        %v1455 = vadd.f32 0.0, %v1454
        %v1456 = vpop.f32.mrb[0].mxu0
        %v1457 = vadd.f32 0.0, %v1456
        %1458 = vmatprep.mubr.f32.mxu0 0.0
        %1459 = vmatmul.mubr.f32.gmra.mrb[0].mxu0 %v990
        %v1460 = vpop.f32.mrb[0].mxu0
        %v1461 = vadd.f32 0.0, %v1460
        %v1462 = vpop.f32.mrb[0].mxu0
        %v1463 = vadd.f32 0.0, %v1462
        %1464 = vmatprep.mubr.f32.mxu0 0.0
        %1465 = vmatmul.mubr.f32.gmra.mrb[0].mxu0 %v993
        %v1466 = vpop.f32.mrb[0].mxu0
        %v1467 = vadd.f32 0.0, %v1466
        %v1468 = vpop.f32.mrb[0].mxu0
        %v1469 = vadd.f32 0.0, %v1468
        %1470 = vmatprep.mubr.f32.mxu0 0.0
        %1471 = vmatmul.mubr.f32.gmra.mrb[0].mxu0 %v996
        %v1472 = vpop.f32.mrb[0].mxu0
        %v1473 = vadd.f32 0.0, %v1472
        %v1474 = vpop.f32.mrb[0].mxu0
        %v1475 = vadd.f32 0.0, %v1474
        %1476 = vmatprep.mubr.f32.mxu0 0.0
        %1477 = vmatmul.mubr.f32.gmra.mrb[0].mxu0 %v999
        %v1478 = vpop.f32.mrb[0].mxu0
        %v1479 = vadd.f32 0.0, %v1478
        %v1480 = vpop.f32.mrb[0].mxu0
        %v1481 = vadd.f32 0.0, %v1480
        %1482 = vmatprep.mubr.f32.mxu0 0.0
        %1483 = vmatmul.mubr.f32.gmra.mrb[0].mxu0 %v1002
        %v1484 = vpop.f32.mrb[0].mxu0
        %v1485 = vadd.f32 0.0, %v1484
        %v1486 = vpop.f32.mrb[0].mxu0
        %v1487 = vadd.f32 0.0, %v1486
        %1488 = vmatprep.mubr.f32.mxu0 0.0
        %1489 = vmatmul.mubr.f32.gmra.mrb[0].mxu0 %v1005
        %v1490 = vpop.f32.mrb[0].mxu0
        %v1491 = vadd.f32 0.0, %v1490
        %v1492 = vpop.f32.mrb[0].mxu0
        %v1493 = vadd.f32 0.0, %v1492
        %1494 = vmatprep.mubr.f32.mxu0 0.0
        %1495 = vmatmul.mubr.f32.gmra.mrb[0].mxu0 %v1008
        %v1496 = vpop.f32.mrb[0].mxu0
        %v1497 = vadd.f32 0.0, %v1496
        %v1498 = vpop.f32.mrb[0].mxu0
        %v1499 = vadd.f32 0.0, %v1498
        %1500 = vmatprep.mubr.f32.mxu0 0.0
        %1501 = vmatmul.mubr.f32.gmra.mrb[0].mxu0 %v1011
        %v1502 = vpop.f32.mrb[0].mxu0
        %v1503 = vadd.f32 0.0, %v1502
        %v1504 = vpop.f32.mrb[0].mxu0
        %v1505 = vadd.f32 0.0, %v1504
        %1506 = vmatprep.mubr.f32.mxu0 0.0
        %1507 = vmatmul.mubr.f32.gmra.mrb[0].mxu0 %v1014
        %v1508 = vpop.f32.mrb[0].mxu0
        %v1509 = vadd.f32 0.0, %v1508
        %v1510 = vpop.f32.mrb[0].mxu0
        %v1511 = vadd.f32 0.0, %v1510
        %1512 = vmatprep.mubr.f32.mxu0 0.0
        %1513 = vmatmul.mubr.f32.gmra.mrb[0].mxu0 %v1017
        %v1514 = vpop.f32.mrb[0].mxu0
        %v1515 = vadd.f32 0.0, %v1514
        %v1516 = vpop.f32.mrb[0].mxu0
        %v1517 = vadd.f32 0.0, %v1516
        %1518 = vmatprep.mubr.f32.mxu0 0.0
        %1519 = vmatmul.mubr.f32.gmra.mrb[0].mxu0 %v1020
        %v1520 = vpop.f32.mrb[0].mxu0
        %v1521 = vadd.f32 0.0, %v1520
        %v1522 = vpop.f32.mrb[0].mxu0
        %v1523 = vadd.f32 0.0, %v1522
        %1524 = vmatprep.mubr.f32.mxu0 0.0
        %1525 = vmatmul.mubr.f32.gmra.mrb[0].mxu0 %v1023
        %v1526 = vpop.f32.mrb[0].mxu0
        %v1527 = vadd.f32 0.0, %v1526
        %v1528 = vpop.f32.mrb[0].mxu0
        %v1529 = vadd.f32 0.0, %v1528
        %1530 = vmatprep.mubr.f32.mxu0 0.0
        %1531 = vmatmul.mubr.f32.gmra.mrb[0].mxu0 %v1026
        %v1532 = vpop.f32.mrb[0].mxu0
        %v1533 = vadd.f32 0.0, %v1532
        %v1534 = vpop.f32.mrb[0].mxu0
        %v1535 = vadd.f32 0.0, %v1534
        %1536 = vmatprep.mubr.f32.mxu0 0.0
        %1537 = vmatmul.mubr.f32.gmra.mrb[0].mxu0 %v1029
        %v1538 = vpop.f32.mrb[0].mxu0
        %v1539 = vadd.f32 0.0, %v1538
        %v1540 = vpop.f32.mrb[0].mxu0
        %v1541 = vadd.f32 0.0, %v1540
        %1542 = vmatprep.mubr.f32.mxu0 0.0
        %1543 = vmatmul.mubr.f32.gmra.mrb[0].mxu0 %v1032
        %v1544 = vpop.f32.mrb[0].mxu0
        %v1545 = vadd.f32 0.0, %v1544
        %v1546 = vpop.f32.mrb[0].mxu0
        %v1547 = vadd.f32 0.0, %v1546
        %1548 = vmatprep.mubr.f32.mxu0 0.0
        %1549 = vmatmul.mubr.f32.gmra.mrb[0].mxu0 %v1035
        %v1550 = vpop.f32.mrb[0].mxu0
        %v1551 = vadd.f32 0.0, %v1550
        %v1552 = vpop.f32.mrb[0].mxu0
        %v1553 = vadd.f32 0.0, %v1552
        %1554 = vmatprep.mubr.f32.mxu0 0.0
        %1555 = vmatmul.mubr.f32.gmra.mrb[0].mxu0 %v1038
        %v1556 = vpop.f32.mrb[0].mxu0
        %v1557 = vadd.f32 0.0, %v1556
        %v1558 = vpop.f32.mrb[0].mxu0
        %v1559 = vadd.f32 0.0, %v1558
        %1560 = vmatprep.mubr.f32.mxu0 0.0
        %1561 = vmatmul.mubr.f32.gmra.mrb[0].mxu0 %v1041
        %v1562 = vpop.f32.mrb[0].mxu0
        %v1563 = vadd.f32 0.0, %v1562
        %v1564 = vpop.f32.mrb[0].mxu0
        %v1565 = vadd.f32 0.0, %v1564
        %1566 = vmatprep.mubr.f32.mxu0 0.0
        %1567 = vmatmul.mubr.f32.gmra.mrb[0].mxu0 %v1044
        %v1568 = vpop.f32.mrb[0].mxu0
        %v1569 = vadd.f32 0.0, %v1568
        %v1570 = vpop.f32.mrb[0].mxu0
        %v1571 = vadd.f32 0.0, %v1570
        %1572 = vmatprep.mubr.f32.mxu0 0.0
        %1573 = vmatmul.mubr.f32.gmra.mrb[0].mxu0 %v1047
        %v1574 = vpop.f32.mrb[0].mxu0
        %v1575 = vadd.f32 0.0, %v1574
        %v1576 = vpop.f32.mrb[0].mxu0
        %v1577 = vadd.f32 0.0, %v1576
        %1578 = vmatprep.mubr.f32.mxu0 0.0
        %1579 = vmatmul.mubr.f32.gmra.mrb[0].mxu0 %v1050
        %v1580 = vpop.f32.mrb[0].mxu0
        %v1581 = vadd.f32 0.0, %v1580
        %v1582 = vpop.f32.mrb[0].mxu0
        %v1583 = vadd.f32 0.0, %v1582
        %1584 = vmatprep.mubr.f32.mxu0 0.0
        %1585 = vmatmul.mubr.f32.gmra.mrb[0].mxu0 %v1053
        %v1586 = vpop.f32.mrb[0].mxu0
        %v1587 = vadd.f32 0.0, %v1586
        %v1588 = vpop.f32.mrb[0].mxu0
        %v1589 = vadd.f32 0.0, %v1588
        %1590 = vmatprep.mubr.f32.mxu0 0.0
        %1591 = vmatmul.mubr.f32.gmra.mrb[0].mxu0 %v1056
        %v1592 = vpop.f32.mrb[0].mxu0
        %v1593 = vadd.f32 0.0, %v1592
        %v1594 = vpop.f32.mrb[0].mxu0
        %v1595 = vadd.f32 0.0, %v1594
        %1596 = vmatprep.mubr.f32.mxu0 0.0
        %1597 = vmatmul.mubr.f32.gmra.mrb[0].mxu0 %v1059
        %v1598 = vpop.f32.mrb[0].mxu0
        %v1599 = vadd.f32 0.0, %v1598
        %v1600 = vpop.f32.mrb[0].mxu0
        %v1601 = vadd.f32 0.0, %v1600
        %1602 = vmatprep.mubr.f32.mxu0 0.0
        %1603 = vmatmul.mubr.f32.gmra.mrb[0].mxu0 %v1062
        %v1604 = vpop.f32.mrb[0].mxu0
        %v1605 = vadd.f32 0.0, %v1604
        %v1606 = vpop.f32.mrb[0].mxu0
        %v1607 = vadd.f32 0.0, %v1606
        %1608 = vmatprep.mubr.f32.mxu0 0.0
        %1609 = vmatmul.mubr.f32.gmra.mrb[0].mxu0 %v1065
        %v1610 = vpop.f32.mrb[0].mxu0
        %v1611 = vadd.f32 0.0, %v1610
        %v1612 = vpop.f32.mrb[0].mxu0
        %v1613 = vadd.f32 0.0, %v1612
        %1614 = vmatprep.mubr.f32.mxu0 0.0
        %1615 = vmatmul.mubr.f32.gmra.mrb[0].mxu0 %v1068
        %v1616 = vpop.f32.mrb[0].mxu0
        %v1617 = vadd.f32 0.0, %v1616
        %v1618 = vpop.f32.mrb[0].mxu0
        %v1619 = vadd.f32 0.0, %v1618
        %1620 = vmatprep.mubr.f32.mxu0 0.0
        %1621 = vmatmul.mubr.f32.gmra.mrb[0].mxu0 %v1071
        %v1622 = vpop.f32.mrb[0].mxu0
        %v1623 = vadd.f32 0.0, %v1622
        %v1624 = vpop.f32.mrb[0].mxu0
        %v1625 = vadd.f32 0.0, %v1624
        %1626 = vmatprep.mubr.f32.mxu0 0.0
        %1627 = vmatmul.mubr.f32.gmra.mrb[0].mxu0 %v1074
        %v1628 = vpop.f32.mrb[0].mxu0
        %v1629 = vadd.f32 0.0, %v1628
        %v1630 = vpop.f32.mrb[0].mxu0
        %v1631 = vadd.f32 0.0, %v1630
        %1632 = vmatprep.mubr.f32.mxu0 0.0
        %1633 = vmatmul.mubr.f32.gmra.mrb[0].mxu0 %v1077
        %v1634 = vpop.f32.mrb[0].mxu0
        %v1635 = vadd.f32 0.0, %v1634
        %v1636 = vpop.f32.mrb[0].mxu0
        %v1637 = vadd.f32 0.0, %v1636
        %1638 = vmatprep.mubr.f32.mxu0 0.0
        %1639 = vmatmul.mubr.f32.gmra.mrb[0].mxu0 %v1080
        %v1640 = vpop.f32.mrb[0].mxu0
        %v1641 = vadd.f32 0.0, %v1640
        %v1642 = vpop.f32.mrb[0].mxu0
        %v1643 = vadd.f32 0.0, %v1642
        %1644 = vmatprep.mubr.f32.mxu0 0.0
        %1645 = vmatmul.mubr.f32.gmra.mrb[0].mxu0 %v1083
        %v1646 = vpop.f32.mrb[0].mxu0
        %v1647 = vadd.f32 0.0, %v1646
        %v1648 = vpop.f32.mrb[0].mxu0
        %v1649 = vadd.f32 0.0, %v1648
        %1650 = vmatprep.mubr.f32.mxu0 0.0
        %1651 = vmatmul.mubr.f32.gmra.mrb[0].mxu0 %v1086
        %v1652 = vpop.f32.mrb[0].mxu0
        %v1653 = vadd.f32 0.0, %v1652
        %v1654 = vpop.f32.mrb[0].mxu0
        %v1655 = vadd.f32 0.0, %v1654
        %1656 = vmatprep.mubr.f32.mxu0 0.0
        %1657 = vmatmul.mubr.f32.gmra.mrb[0].mxu0 %v1089
        %v1658 = vpop.f32.mrb[0].mxu0
        %v1659 = vadd.f32 0.0, %v1658
        %v1660 = vpop.f32.mrb[0].mxu0
        %v1661 = vadd.f32 0.0, %v1660
        %1662 = vmatprep.mubr.f32.mxu0 0.0
        %1663 = vmatmul.mubr.f32.gmra.mrb[0].mxu0 %v1092
        %v1664 = vpop.f32.mrb[0].mxu0
        %v1665 = vadd.f32 0.0, %v1664
        %v1666 = vpop.f32.mrb[0].mxu0
        %v1667 = vadd.f32 0.0, %v1666
        %1668 = vmatprep.mubr.f32.mxu0 0.0
        %1669 = vmatmul.mubr.f32.gmra.mrb[0].mxu0 %v1095
        %v1670 = vpop.f32.mrb[0].mxu0
        %v1671 = vadd.f32 0.0, %v1670
        %v1672 = vpop.f32.mrb[0].mxu0
        %v1673 = vadd.f32 0.0, %v1672
        %1674 = vmatprep.mubr.f32.mxu0 0.0
        %1675 = vmatmul.mubr.f32.gmra.mrb[0].mxu0 %v1098
        %v1676 = vpop.f32.mrb[0].mxu0
        %v1677 = vadd.f32 0.0, %v1676
        %v1678 = vpop.f32.mrb[0].mxu0
        %v1679 = vadd.f32 0.0, %v1678
        %1680 = vmatprep.mubr.f32.mxu0 0.0
        %1681 = vmatmul.mubr.f32.gmra.mrb[0].mxu0 %v1101
        %v1682 = vpop.f32.mrb[0].mxu0
        %v1683 = vadd.f32 0.0, %v1682
        %v1684 = vpop.f32.mrb[0].mxu0
        %v1685 = vadd.f32 0.0, %v1684
        %1686 = vmatprep.mubr.f32.mxu0 0.0
        %1687 = vmatmul.mubr.f32.gmra.mrb[0].mxu0 %v1104
        %v1688 = vpop.f32.mrb[0].mxu0
        %v1689 = vadd.f32 0.0, %v1688
        %v1690 = vpop.f32.mrb[0].mxu0
        %v1691 = vadd.f32 0.0, %v1690
        %1692 = vmatprep.mubr.f32.mxu0 0.0
        %1693 = vmatmul.mubr.f32.gmra.mrb[0].mxu0 %v1107
        %v1694 = vpop.f32.mrb[0].mxu0
        %v1695 = vadd.f32 0.0, %v1694
        %v1696 = vpop.f32.mrb[0].mxu0
        %v1697 = vadd.f32 0.0, %v1696
        %1698 = vmatprep.mubr.f32.mxu0 0.0
        %1699 = vmatmul.mubr.f32.gmra.mrb[0].mxu0 %v1110
        %v1700 = vpop.f32.mrb[0].mxu0
        %v1701 = vadd.f32 0.0, %v1700
        %v1702 = vpop.f32.mrb[0].mxu0
        %v1703 = vadd.f32 0.0, %v1702
        %1704 = vmatprep.mubr.f32.mxu0 0.0
        %1705 = vmatmul.mubr.f32.gmra.mrb[0].mxu0 %v1113
        %v1706 = vpop.f32.mrb[0].mxu0
        %v1707 = vadd.f32 0.0, %v1706
        %v1708 = vpop.f32.mrb[0].mxu0
        %v1709 = vadd.f32 0.0, %v1708
        %1710 = vmatprep.mubr.f32.mxu0 0.0
        %1711 = vmatmul.mubr.f32.gmra.mrb[0].mxu0 %v1116
        %v1712 = vpop.f32.mrb[0].mxu0
        %v1713 = vadd.f32 0.0, %v1712
        %v1714 = vpop.f32.mrb[0].mxu0
        %v1715 = vadd.f32 0.0, %v1714
        %1716 = vmatprep.mubr.f32.mxu0 0.0
        %1717 = vmatmul.mubr.f32.gmra.mrb[0].mxu0 %v1119
        %v1718 = vpop.f32.mrb[0].mxu0
        %v1719 = vadd.f32 0.0, %v1718
        %v1720 = vpop.f32.mrb[0].mxu0
        %v1721 = vadd.f32 0.0, %v1720
        %1722 = vmatprep.mubr.f32.mxu0 0.0
        %1723 = vmatmul.mubr.f32.gmra.mrb[0].mxu0 %v1122
        %v1724 = vpop.f32.mrb[0].mxu0
        %v1725 = vadd.f32 0.0, %v1724
        %v1726 = vpop.f32.mrb[0].mxu0
        %v1727 = vadd.f32 0.0, %v1726
        %1728 = vmatprep.mubr.f32.mxu0 0.0
        %1729 = vmatmul.mubr.f32.gmra.mrb[0].mxu0 %v1125
        %v1730 = vpop.f32.mrb[0].mxu0
        %v1731 = vadd.f32 0.0, %v1730
        %v1732 = vpop.f32.mrb[0].mxu0
        %v1733 = vadd.f32 0.0, %v1732
        %1734 = vmatprep.mubr.f32.mxu0 0.0
        %1735 = vmatmul.mubr.f32.gmra.mrb[0].mxu0 %v1128
        %v1736 = vpop.f32.mrb[0].mxu0
        %v1737 = vadd.f32 0.0, %v1736
        %v1738 = vpop.f32.mrb[0].mxu0
        %v1739 = vadd.f32 0.0, %v1738
        %1740 = vmatprep.mubr.f32.mxu0 0.0
        %1741 = vmatmul.mubr.f32.gmra.mrb[0].mxu0 %v1131
        %v1742 = vpop.f32.mrb[0].mxu0
        %v1743 = vadd.f32 0.0, %v1742
        %v1744 = vpop.f32.mrb[0].mxu0
        %v1745 = vadd.f32 0.0, %v1744
        %1746 = vmatprep.mubr.f32.mxu0 0.0
        %1747 = vmatmul.mubr.f32.gmra.mrb[0].mxu0 %v1134
        %v1748 = vpop.f32.mrb[0].mxu0
        %v1749 = vadd.f32 0.0, %v1748
        %v1750 = vpop.f32.mrb[0].mxu0
        %v1751 = vadd.f32 0.0, %v1750
        %1752 = vmatprep.mubr.f32.mxu0 0.0
        %1753 = vmatmul.mubr.f32.gmra.mrb[0].mxu0 %v1137
        %v1754 = vpop.f32.mrb[0].mxu0
        %v1755 = vadd.f32 0.0, %v1754
        %v1756 = vpop.f32.mrb[0].mxu0
        %v1757 = vadd.f32 0.0, %v1756
        %1758 = vmatprep.mubr.f32.mxu0 0.0
        %1759 = vmatmul.mubr.f32.gmra.mrb[0].mxu0 %v1140
        %v1760 = vpop.f32.mrb[0].mxu0
        %v1761 = vadd.f32 0.0, %v1760
        %v1762 = vpop.f32.mrb[0].mxu0
        %v1763 = vadd.f32 0.0, %v1762
        %1764 = vmatprep.mubr.f32.mxu0 0.0
        %1765 = vmatmul.mubr.f32.gmra.mrb[0].mxu0 %v1143
        %v1766 = vpop.f32.mrb[0].mxu0
        %v1767 = vadd.f32 0.0, %v1766
        %v1768 = vpop.f32.mrb[0].mxu0
        %v1769 = vadd.f32 0.0, %v1768
        %1770 = vmatprep.mubr.f32.mxu0 0.0
        %1771 = vmatmul.mubr.f32.gmra.mrb[0].mxu0 %v1146
        %v1772 = vpop.f32.mrb[0].mxu0
        %v1773 = vadd.f32 0.0, %v1772
        %v1774 = vpop.f32.mrb[0].mxu0
        %v1775 = vadd.f32 0.0, %v1774
        %1776 = vmatprep.mubr.f32.mxu0 0.0
        %1777 = vmatmul.mubr.f32.gmra.mrb[0].mxu0 %v1149
        %v1778 = vpop.f32.mrb[0].mxu0
        %v1779 = vadd.f32 0.0, %v1778
        %v1780 = vpop.f32.mrb[0].mxu0
        %v1781 = vadd.f32 0.0, %v1780
        %1782 = vmatprep.mubr.f32.mxu0 0.0
        %1783 = vmatmul.mubr.f32.gmra.mrb[0].mxu0 %v1152
        %v1784 = vpop.f32.mrb[0].mxu0
        %v1785 = vadd.f32 0.0, %v1784
        %v1786 = vpop.f32.mrb[0].mxu0
        %v1787 = vadd.f32 0.0, %v1786
        %1788 = vmatprep.mubr.f32.mxu0 0.0
        %1789 = vmatmul.mubr.f32.gmra.mrb[0].mxu0 %v1155
        %v1790 = vpop.f32.mrb[0].mxu0
        %v1791 = vadd.f32 0.0, %v1790
        %v1792 = vpop.f32.mrb[0].mxu0
        %v1793 = vadd.f32 0.0, %v1792
        %1794 = vmatprep.mubr.f32.mxu0 0.0
        %1795 = vmatmul.mubr.f32.gmra.mrb[0].mxu0 %v1158
        %v1796 = vpop.f32.mrb[0].mxu0
        %v1797 = vadd.f32 0.0, %v1796
        %v1798 = vpop.f32.mrb[0].mxu0
        %v1799 = vadd.f32 0.0, %v1798
        %1800 = vdwg.mxu0
        %v1802 = vsel %vm871, 0.0, 0
        %1804 = vmatprep.subr.mxu0 %v847
        %1805 = vmatpush1.msra.mxu0 %v846
        %1806 = vmatprep.subr.mxu0 %v849
        %1807 = vmatpush1.msra.mxu0 %v848
        %1808 = vmatprep.subr.mxu0 %v851
        %1809 = vmatpush1.msra.mxu0 %v850
        %1810 = vmatprep.subr.mxu0 %v853
        %1811 = vmatpush1.msra.mxu0 %v852
        %1812 = vmatprep.subr.mxu0 %v855
        %1813 = vmatpush1.msra.mxu0 %v854
        %1814 = vmatprep.subr.mxu0 %v857
        %1815 = vmatpush1.msra.mxu0 %v856
        %1816 = vmatprep.subr.mxu0 0.0
        %1817 = vmatpush1.msra.mxu0 0.0
        %1818 = vmatprep.subr.mxu0 0.0
        %1819 = vmatpush1.msra.mxu0 0.0
        %1820 = vmatprep.subr.mxu0 0.0
        %1821 = vmatpush1.msra.mxu0 0.0
        %1822 = vmatprep.subr.mxu0 0.0
        %1823 = vmatpush1.msra.mxu0 0.0
        %1824 = vmatprep.subr.mxu0 0.0
        %1825 = vmatpush1.msra.mxu0 0.0
        %1826 = vmatprep.subr.mxu0 0.0
        %1827 = vmatpush1.msra.mxu0 0.0
        %1828 = vmatprep.subr.mxu0 0.0
        %1829 = vmatpush1.msra.mxu0 0.0
        %1830 = vmatprep.subr.mxu0 0.0
        %1831 = vmatpush1.msra.mxu0 0.0
        %1832 = vmatprep.subr.mxu0 0.0
        %1833 = vmatpush1.msra.mxu0 0.0
        %1834 = vmatprep.subr.mxu0 0.0
        %1835 = vmatpush1.msra.mxu0 0.0
        %1836 = vmatprep.subr.mxu0 0.0
        %1837 = vmatpush1.msra.mxu0 0.0
        %1838 = vmatprep.subr.mxu0 0.0
        %1839 = vmatpush1.msra.mxu0 0.0
        %1840 = vmatprep.subr.mxu0 0.0
        %1841 = vmatpush1.msra.mxu0 0.0
        %1842 = vmatprep.subr.mxu0 0.0
        %1843 = vmatpush1.msra.mxu0 0.0
        %1844 = vmatprep.subr.mxu0 0.0
        %1845 = vmatpush1.msra.mxu0 0.0
        %1846 = vmatprep.subr.mxu0 0.0
        %1847 = vmatpush1.msra.mxu0 0.0
        %1848 = vmatprep.subr.mxu0 0.0
        %1849 = vmatpush1.msra.mxu0 0.0
        %1850 = vmatprep.subr.mxu0 0.0
        %1851 = vmatpush1.msra.mxu0 0.0
        %1852 = vmatprep.subr.mxu0 0.0
        %1853 = vmatpush1.msra.mxu0 0.0
        %1854 = vmatprep.subr.mxu0 0.0
        %1855 = vmatpush1.msra.mxu0 0.0
        %1856 = vmatprep.subr.mxu0 0.0
        %1857 = vmatpush1.msra.mxu0 0.0
        %1858 = vmatprep.subr.mxu0 0.0
        %1859 = vmatpush1.msra.mxu0 0.0
        %1860 = vmatprep.subr.mxu0 0.0
        %1861 = vmatpush1.msra.mxu0 0.0
        %1862 = vmatprep.subr.mxu0 0.0
        %1863 = vmatpush1.msra.mxu0 0.0
        %1864 = vmatprep.subr.mxu0 0.0
        %1865 = vmatpush1.msra.mxu0 0.0
        %1866 = vmatprep.subr.mxu0 0.0
        %1867 = vmatpush1.msra.mxu0 0.0
        %1868 = vmatprep.mubr.f32.mxu0 0.0
        %1869 = vmatmul.mubr.f32.gmra.mrb[0].mxu0 %v1802
        %v1870 = vpop.f32.mrb[0].mxu0
        %v1871 = vadd.f32 %v1227, %v1870
        %v1872 = vpop.f32.mrb[0].mxu0
        %v1873 = vadd.f32 %v1229, %v1872
        %1874 = vmatprep.mubr.f32.mxu0 0.0
        %1875 = vmatmul.mubr.f32.gmra.mrb[0].mxu0 %v1802
        %v1876 = vpop.f32.mrb[0].mxu0
        %v1877 = vadd.f32 %v1233, %v1876
        %v1878 = vpop.f32.mrb[0].mxu0
        %v1879 = vadd.f32 %v1235, %v1878
        %1880 = vmatprep.mubr.f32.mxu0 0.0
        %1881 = vmatmul.mubr.f32.gmra.mrb[0].mxu0 %v873
        %v1882 = vpop.f32.mrb[0].mxu0
        %v1883 = vadd.f32 %v1239, %v1882
        %v1884 = vpop.f32.mrb[0].mxu0
        %v1885 = vadd.f32 %v1241, %v1884
        %1886 = vmatprep.mubr.f32.mxu0 0.0
        %1887 = vmatmul.mubr.f32.gmra.mrb[0].mxu0 %v876
        %v1888 = vpop.f32.mrb[0].mxu0
        %v1889 = vadd.f32 %v1245, %v1888
        %v1890 = vpop.f32.mrb[0].mxu0
        %v1891 = vadd.f32 %v1247, %v1890
        %1892 = vmatprep.mubr.f32.mxu0 0.0
        %1893 = vmatmul.mubr.f32.gmra.mrb[0].mxu0 %v879
        %v1894 = vpop.f32.mrb[0].mxu0
        %v1895 = vadd.f32 %v1251, %v1894
        %v1896 = vpop.f32.mrb[0].mxu0
        %v1897 = vadd.f32 %v1253, %v1896
        %1898 = vmatprep.mubr.f32.mxu0 0.0
        %1899 = vmatmul.mubr.f32.gmra.mrb[0].mxu0 %v882
        %v1900 = vpop.f32.mrb[0].mxu0
        %v1901 = vadd.f32 %v1257, %v1900
        %v1902 = vpop.f32.mrb[0].mxu0
        %v1903 = vadd.f32 %v1259, %v1902
        %1904 = vmatprep.mubr.f32.mxu0 0.0
        %1905 = vmatmul.mubr.f32.gmra.mrb[0].mxu0 %v885
        %v1906 = vpop.f32.mrb[0].mxu0
        %v1907 = vadd.f32 %v1263, %v1906
        %v1908 = vpop.f32.mrb[0].mxu0
        %v1909 = vadd.f32 %v1265, %v1908
        %1910 = vmatprep.mubr.f32.mxu0 0.0
        %1911 = vmatmul.mubr.f32.gmra.mrb[0].mxu0 %v888
        %v1912 = vpop.f32.mrb[0].mxu0
        %v1913 = vadd.f32 %v1269, %v1912
        %v1914 = vpop.f32.mrb[0].mxu0
        %v1915 = vadd.f32 %v1271, %v1914
        %1916 = vmatprep.mubr.f32.mxu0 0.0
        %1917 = vmatmul.mubr.f32.gmra.mrb[0].mxu0 %v891
        %v1918 = vpop.f32.mrb[0].mxu0
        %v1919 = vadd.f32 %v1275, %v1918
        %v1920 = vpop.f32.mrb[0].mxu0
        %v1921 = vadd.f32 %v1277, %v1920
        %1922 = vmatprep.mubr.f32.mxu0 0.0
        %1923 = vmatmul.mubr.f32.gmra.mrb[0].mxu0 %v894
        %v1924 = vpop.f32.mrb[0].mxu0
        %v1925 = vadd.f32 %v1281, %v1924
        %v1926 = vpop.f32.mrb[0].mxu0
        %v1927 = vadd.f32 %v1283, %v1926
        %1928 = vmatprep.mubr.f32.mxu0 0.0
        %1929 = vmatmul.mubr.f32.gmra.mrb[0].mxu0 %v897
        %v1930 = vpop.f32.mrb[0].mxu0
        %v1931 = vadd.f32 %v1287, %v1930
        %v1932 = vpop.f32.mrb[0].mxu0
        %v1933 = vadd.f32 %v1289, %v1932
        %1934 = vmatprep.mubr.f32.mxu0 0.0
        %1935 = vmatmul.mubr.f32.gmra.mrb[0].mxu0 %v900
        %v1936 = vpop.f32.mrb[0].mxu0
        %v1937 = vadd.f32 %v1293, %v1936
        %v1938 = vpop.f32.mrb[0].mxu0
        %v1939 = vadd.f32 %v1295, %v1938
        %1940 = vmatprep.mubr.f32.mxu0 0.0
        %1941 = vmatmul.mubr.f32.gmra.mrb[0].mxu0 %v903
        %v1942 = vpop.f32.mrb[0].mxu0
        %v1943 = vadd.f32 %v1299, %v1942
        %v1944 = vpop.f32.mrb[0].mxu0
        %v1945 = vadd.f32 %v1301, %v1944
        %1946 = vmatprep.mubr.f32.mxu0 0.0
        %1947 = vmatmul.mubr.f32.gmra.mrb[0].mxu0 %v906
        %v1948 = vpop.f32.mrb[0].mxu0
        %v1949 = vadd.f32 %v1305, %v1948
        %v1950 = vpop.f32.mrb[0].mxu0
        %v1951 = vadd.f32 %v1307, %v1950
        %1952 = vmatprep.mubr.f32.mxu0 0.0
        %1953 = vmatmul.mubr.f32.gmra.mrb[0].mxu0 %v909
        %v1954 = vpop.f32.mrb[0].mxu0
        %v1955 = vadd.f32 %v1311, %v1954
        %v1956 = vpop.f32.mrb[0].mxu0
        %v1957 = vadd.f32 %v1313, %v1956
        %1958 = vmatprep.mubr.f32.mxu0 0.0
        %1959 = vmatmul.mubr.f32.gmra.mrb[0].mxu0 %v912
        %v1960 = vpop.f32.mrb[0].mxu0
        %v1961 = vadd.f32 %v1317, %v1960
        %v1962 = vpop.f32.mrb[0].mxu0
        %v1963 = vadd.f32 %v1319, %v1962
        %1964 = vmatprep.mubr.f32.mxu0 0.0
        %1965 = vmatmul.mubr.f32.gmra.mrb[0].mxu0 %v915
        %v1966 = vpop.f32.mrb[0].mxu0
        %v1967 = vadd.f32 %v1323, %v1966
        %v1968 = vpop.f32.mrb[0].mxu0
        %v1969 = vadd.f32 %v1325, %v1968
        %1970 = vmatprep.mubr.f32.mxu0 0.0
        %1971 = vmatmul.mubr.f32.gmra.mrb[0].mxu0 %v918
        %v1972 = vpop.f32.mrb[0].mxu0
        %v1973 = vadd.f32 %v1329, %v1972
        %v1974 = vpop.f32.mrb[0].mxu0
        %v1975 = vadd.f32 %v1331, %v1974
        %1976 = vmatprep.mubr.f32.mxu0 0.0
        %1977 = vmatmul.mubr.f32.gmra.mrb[0].mxu0 %v921
        %v1978 = vpop.f32.mrb[0].mxu0
        %v1979 = vadd.f32 %v1335, %v1978
        %v1980 = vpop.f32.mrb[0].mxu0
        %v1981 = vadd.f32 %v1337, %v1980
        %1982 = vmatprep.mubr.f32.mxu0 0.0
        %1983 = vmatmul.mubr.f32.gmra.mrb[0].mxu0 %v924
        %v1984 = vpop.f32.mrb[0].mxu0
        %v1985 = vadd.f32 %v1341, %v1984
        %v1986 = vpop.f32.mrb[0].mxu0
        %v1987 = vadd.f32 %v1343, %v1986
        %1988 = vmatprep.mubr.f32.mxu0 0.0
        %1989 = vmatmul.mubr.f32.gmra.mrb[0].mxu0 %v927
        %v1990 = vpop.f32.mrb[0].mxu0
        %v1991 = vadd.f32 %v1347, %v1990
        %v1992 = vpop.f32.mrb[0].mxu0
        %v1993 = vadd.f32 %v1349, %v1992
        %1994 = vmatprep.mubr.f32.mxu0 0.0
        %1995 = vmatmul.mubr.f32.gmra.mrb[0].mxu0 %v930
        %v1996 = vpop.f32.mrb[0].mxu0
        %v1997 = vadd.f32 %v1353, %v1996
        %v1998 = vpop.f32.mrb[0].mxu0
        %v1999 = vadd.f32 %v1355, %v1998
        %2000 = vmatprep.mubr.f32.mxu0 0.0
        %2001 = vmatmul.mubr.f32.gmra.mrb[0].mxu0 %v933
        %v2002 = vpop.f32.mrb[0].mxu0
        %v2003 = vadd.f32 %v1359, %v2002
        %v2004 = vpop.f32.mrb[0].mxu0
        %v2005 = vadd.f32 %v1361, %v2004
        %2006 = vmatprep.mubr.f32.mxu0 0.0
        %2007 = vmatmul.mubr.f32.gmra.mrb[0].mxu0 %v936
        %v2008 = vpop.f32.mrb[0].mxu0
        %v2009 = vadd.f32 %v1365, %v2008
        %v2010 = vpop.f32.mrb[0].mxu0
        %v2011 = vadd.f32 %v1367, %v2010
        %2012 = vmatprep.mubr.f32.mxu0 0.0
        %2013 = vmatmul.mubr.f32.gmra.mrb[0].mxu0 %v939
        %v2014 = vpop.f32.mrb[0].mxu0
        %v2015 = vadd.f32 %v1371, %v2014
        %v2016 = vpop.f32.mrb[0].mxu0
        %v2017 = vadd.f32 %v1373, %v2016
        %2018 = vmatprep.mubr.f32.mxu0 0.0
        %2019 = vmatmul.mubr.f32.gmra.mrb[0].mxu0 %v942
        %v2020 = vpop.f32.mrb[0].mxu0
        %v2021 = vadd.f32 %v1377, %v2020
        %v2022 = vpop.f32.mrb[0].mxu0
        %v2023 = vadd.f32 %v1379, %v2022
        %2024 = vmatprep.mubr.f32.mxu0 0.0
        %2025 = vmatmul.mubr.f32.gmra.mrb[0].mxu0 %v945
        %v2026 = vpop.f32.mrb[0].mxu0
        %v2027 = vadd.f32 %v1383, %v2026
        %v2028 = vpop.f32.mrb[0].mxu0
        %v2029 = vadd.f32 %v1385, %v2028
        %2030 = vmatprep.mubr.f32.mxu0 0.0
        %2031 = vmatmul.mubr.f32.gmra.mrb[0].mxu0 %v948
        %v2032 = vpop.f32.mrb[0].mxu0
        %v2033 = vadd.f32 %v1389, %v2032
        %v2034 = vpop.f32.mrb[0].mxu0
        %v2035 = vadd.f32 %v1391, %v2034
        %2036 = vmatprep.mubr.f32.mxu0 0.0
        %2037 = vmatmul.mubr.f32.gmra.mrb[0].mxu0 %v951
        %v2038 = vpop.f32.mrb[0].mxu0
        %v2039 = vadd.f32 %v1395, %v2038
        %v2040 = vpop.f32.mrb[0].mxu0
        %v2041 = vadd.f32 %v1397, %v2040
        %2042 = vmatprep.mubr.f32.mxu0 0.0
        %2043 = vmatmul.mubr.f32.gmra.mrb[0].mxu0 %v954
        %v2044 = vpop.f32.mrb[0].mxu0
        %v2045 = vadd.f32 %v1401, %v2044
        %v2046 = vpop.f32.mrb[0].mxu0
        %v2047 = vadd.f32 %v1403, %v2046
        %2048 = vmatprep.mubr.f32.mxu0 0.0
        %2049 = vmatmul.mubr.f32.gmra.mrb[0].mxu0 %v957
        %v2050 = vpop.f32.mrb[0].mxu0
        %v2051 = vadd.f32 %v1407, %v2050
        %v2052 = vpop.f32.mrb[0].mxu0
        %v2053 = vadd.f32 %v1409, %v2052
        %2054 = vmatprep.mubr.f32.mxu0 0.0
        %2055 = vmatmul.mubr.f32.gmra.mrb[0].mxu0 %v960
        %v2056 = vpop.f32.mrb[0].mxu0
        %v2057 = vadd.f32 %v1413, %v2056
        %v2058 = vpop.f32.mrb[0].mxu0
        %v2059 = vadd.f32 %v1415, %v2058
        %2060 = vmatprep.mubr.f32.mxu0 0.0
        %2061 = vmatmul.mubr.f32.gmra.mrb[0].mxu0 %v963
        %v2062 = vpop.f32.mrb[0].mxu0
        %v2063 = vadd.f32 %v1419, %v2062
        %v2064 = vpop.f32.mrb[0].mxu0
        %v2065 = vadd.f32 %v1421, %v2064
        %2066 = vmatprep.mubr.f32.mxu0 0.0
        %2067 = vmatmul.mubr.f32.gmra.mrb[0].mxu0 %v966
        %v2068 = vpop.f32.mrb[0].mxu0
        %v2069 = vadd.f32 %v1425, %v2068
        %v2070 = vpop.f32.mrb[0].mxu0
        %v2071 = vadd.f32 %v1427, %v2070
        %2072 = vmatprep.mubr.f32.mxu0 0.0
        %2073 = vmatmul.mubr.f32.gmra.mrb[0].mxu0 %v969
        %v2074 = vpop.f32.mrb[0].mxu0
        %v2075 = vadd.f32 %v1431, %v2074
        %v2076 = vpop.f32.mrb[0].mxu0
        %v2077 = vadd.f32 %v1433, %v2076
        %2078 = vmatprep.mubr.f32.mxu0 0.0
        %2079 = vmatmul.mubr.f32.gmra.mrb[0].mxu0 %v972
        %v2080 = vpop.f32.mrb[0].mxu0
        %v2081 = vadd.f32 %v1437, %v2080
        %v2082 = vpop.f32.mrb[0].mxu0
        %v2083 = vadd.f32 %v1439, %v2082
        %2084 = vmatprep.mubr.f32.mxu0 0.0
        %2085 = vmatmul.mubr.f32.gmra.mrb[0].mxu0 %v975
        %v2086 = vpop.f32.mrb[0].mxu0
        %v2087 = vadd.f32 %v1443, %v2086
        %v2088 = vpop.f32.mrb[0].mxu0
        %v2089 = vadd.f32 %v1445, %v2088
        %2090 = vmatprep.mubr.f32.mxu0 0.0
        %2091 = vmatmul.mubr.f32.gmra.mrb[0].mxu0 %v978
        %v2092 = vpop.f32.mrb[0].mxu0
        %v2093 = vadd.f32 %v1449, %v2092
        %v2094 = vpop.f32.mrb[0].mxu0
        %v2095 = vadd.f32 %v1451, %v2094
        %2096 = vmatprep.mubr.f32.mxu0 0.0
        %2097 = vmatmul.mubr.f32.gmra.mrb[0].mxu0 %v981
        %v2098 = vpop.f32.mrb[0].mxu0
        %v2099 = vadd.f32 %v1455, %v2098
        %v2100 = vpop.f32.mrb[0].mxu0
        %v2101 = vadd.f32 %v1457, %v2100
        %2102 = vmatprep.mubr.f32.mxu0 0.0
        %2103 = vmatmul.mubr.f32.gmra.mrb[0].mxu0 %v984
        %v2104 = vpop.f32.mrb[0].mxu0
        %v2105 = vadd.f32 %v1461, %v2104
        %v2106 = vpop.f32.mrb[0].mxu0
        %v2107 = vadd.f32 %v1463, %v2106
        %2108 = vmatprep.mubr.f32.mxu0 0.0
        %2109 = vmatmul.mubr.f32.gmra.mrb[0].mxu0 %v987
        %v2110 = vpop.f32.mrb[0].mxu0
        %v2111 = vadd.f32 %v1467, %v2110
        %v2112 = vpop.f32.mrb[0].mxu0
        %v2113 = vadd.f32 %v1469, %v2112
        %2114 = vmatprep.mubr.f32.mxu0 0.0
        %2115 = vmatmul.mubr.f32.gmra.mrb[0].mxu0 %v990
        %v2116 = vpop.f32.mrb[0].mxu0
        %v2117 = vadd.f32 %v1473, %v2116
        %v2118 = vpop.f32.mrb[0].mxu0
        %v2119 = vadd.f32 %v1475, %v2118
        %2120 = vmatprep.mubr.f32.mxu0 0.0
        %2121 = vmatmul.mubr.f32.gmra.mrb[0].mxu0 %v993
        %v2122 = vpop.f32.mrb[0].mxu0
        %v2123 = vadd.f32 %v1479, %v2122
        %v2124 = vpop.f32.mrb[0].mxu0
        %v2125 = vadd.f32 %v1481, %v2124
        %2126 = vmatprep.mubr.f32.mxu0 0.0
        %2127 = vmatmul.mubr.f32.gmra.mrb[0].mxu0 %v996
        %v2128 = vpop.f32.mrb[0].mxu0
        %v2129 = vadd.f32 %v1485, %v2128
        %v2130 = vpop.f32.mrb[0].mxu0
        %v2131 = vadd.f32 %v1487, %v2130
        %2132 = vmatprep.mubr.f32.mxu0 0.0
        %2133 = vmatmul.mubr.f32.gmra.mrb[0].mxu0 %v999
        %v2134 = vpop.f32.mrb[0].mxu0
        %v2135 = vadd.f32 %v1491, %v2134
        %v2136 = vpop.f32.mrb[0].mxu0
        %v2137 = vadd.f32 %v1493, %v2136
        %2138 = vmatprep.mubr.f32.mxu0 0.0
        %2139 = vmatmul.mubr.f32.gmra.mrb[0].mxu0 %v1002
        %v2140 = vpop.f32.mrb[0].mxu0
        %v2141 = vadd.f32 %v1497, %v2140
        %v2142 = vpop.f32.mrb[0].mxu0
        %v2143 = vadd.f32 %v1499, %v2142
        %2144 = vmatprep.mubr.f32.mxu0 0.0
        %2145 = vmatmul.mubr.f32.gmra.mrb[0].mxu0 %v1005
        %v2146 = vpop.f32.mrb[0].mxu0
        %v2147 = vadd.f32 %v1503, %v2146
        %v2148 = vpop.f32.mrb[0].mxu0
        %v2149 = vadd.f32 %v1505, %v2148
        %2150 = vmatprep.mubr.f32.mxu0 0.0
        %2151 = vmatmul.mubr.f32.gmra.mrb[0].mxu0 %v1008
        %v2152 = vpop.f32.mrb[0].mxu0
        %v2153 = vadd.f32 %v1509, %v2152
        %v2154 = vpop.f32.mrb[0].mxu0
        %v2155 = vadd.f32 %v1511, %v2154
        %2156 = vmatprep.mubr.f32.mxu0 0.0
        %2157 = vmatmul.mubr.f32.gmra.mrb[0].mxu0 %v1011
        %v2158 = vpop.f32.mrb[0].mxu0
        %v2159 = vadd.f32 %v1515, %v2158
        %v2160 = vpop.f32.mrb[0].mxu0
        %v2161 = vadd.f32 %v1517, %v2160
        %2162 = vmatprep.mubr.f32.mxu0 0.0
        %2163 = vmatmul.mubr.f32.gmra.mrb[0].mxu0 %v1014
        %v2164 = vpop.f32.mrb[0].mxu0
        %v2165 = vadd.f32 %v1521, %v2164
        %v2166 = vpop.f32.mrb[0].mxu0
        %v2167 = vadd.f32 %v1523, %v2166
        %2168 = vmatprep.mubr.f32.mxu0 0.0
        %2169 = vmatmul.mubr.f32.gmra.mrb[0].mxu0 %v1017
        %v2170 = vpop.f32.mrb[0].mxu0
        %v2171 = vadd.f32 %v1527, %v2170
        %v2172 = vpop.f32.mrb[0].mxu0
        %v2173 = vadd.f32 %v1529, %v2172
        %2174 = vmatprep.mubr.f32.mxu0 0.0
        %2175 = vmatmul.mubr.f32.gmra.mrb[0].mxu0 %v1020
        %v2176 = vpop.f32.mrb[0].mxu0
        %v2177 = vadd.f32 %v1533, %v2176
        %v2178 = vpop.f32.mrb[0].mxu0
        %v2179 = vadd.f32 %v1535, %v2178
        %2180 = vmatprep.mubr.f32.mxu0 0.0
        %2181 = vmatmul.mubr.f32.gmra.mrb[0].mxu0 %v1023
        %v2182 = vpop.f32.mrb[0].mxu0
        %v2183 = vadd.f32 %v1539, %v2182
        %v2184 = vpop.f32.mrb[0].mxu0
        %v2185 = vadd.f32 %v1541, %v2184
        %2186 = vmatprep.mubr.f32.mxu0 0.0
        %2187 = vmatmul.mubr.f32.gmra.mrb[0].mxu0 %v1026
        %v2188 = vpop.f32.mrb[0].mxu0
        %v2189 = vadd.f32 %v1545, %v2188
        %v2190 = vpop.f32.mrb[0].mxu0
        %v2191 = vadd.f32 %v1547, %v2190
        %2192 = vmatprep.mubr.f32.mxu0 0.0
        %2193 = vmatmul.mubr.f32.gmra.mrb[0].mxu0 %v1029
        %v2194 = vpop.f32.mrb[0].mxu0
        %v2195 = vadd.f32 %v1551, %v2194
        %v2196 = vpop.f32.mrb[0].mxu0
        %v2197 = vadd.f32 %v1553, %v2196
        %2198 = vmatprep.mubr.f32.mxu0 0.0
        %2199 = vmatmul.mubr.f32.gmra.mrb[0].mxu0 %v1032
        %v2200 = vpop.f32.mrb[0].mxu0
        %v2201 = vadd.f32 %v1557, %v2200
        %v2202 = vpop.f32.mrb[0].mxu0
        %v2203 = vadd.f32 %v1559, %v2202
        %2204 = vmatprep.mubr.f32.mxu0 0.0
        %2205 = vmatmul.mubr.f32.gmra.mrb[0].mxu0 %v1035
        %v2206 = vpop.f32.mrb[0].mxu0
        %v2207 = vadd.f32 %v1563, %v2206
        %v2208 = vpop.f32.mrb[0].mxu0
        %v2209 = vadd.f32 %v1565, %v2208
        %2210 = vmatprep.mubr.f32.mxu0 0.0
        %2211 = vmatmul.mubr.f32.gmra.mrb[0].mxu0 %v1038
        %v2212 = vpop.f32.mrb[0].mxu0
        %v2213 = vadd.f32 %v1569, %v2212
        %v2214 = vpop.f32.mrb[0].mxu0
        %v2215 = vadd.f32 %v1571, %v2214
        %2216 = vmatprep.mubr.f32.mxu0 0.0
        %2217 = vmatmul.mubr.f32.gmra.mrb[0].mxu0 %v1041
        %v2218 = vpop.f32.mrb[0].mxu0
        %v2219 = vadd.f32 %v1575, %v2218
        %v2220 = vpop.f32.mrb[0].mxu0
        %v2221 = vadd.f32 %v1577, %v2220
        %2222 = vmatprep.mubr.f32.mxu0 0.0
        %2223 = vmatmul.mubr.f32.gmra.mrb[0].mxu0 %v1044
        %v2224 = vpop.f32.mrb[0].mxu0
        %v2225 = vadd.f32 %v1581, %v2224
        %v2226 = vpop.f32.mrb[0].mxu0
        %v2227 = vadd.f32 %v1583, %v2226
        %2228 = vmatprep.mubr.f32.mxu0 0.0
        %2229 = vmatmul.mubr.f32.gmra.mrb[0].mxu0 %v1047
        %v2230 = vpop.f32.mrb[0].mxu0
        %v2231 = vadd.f32 %v1587, %v2230
        %v2232 = vpop.f32.mrb[0].mxu0
        %v2233 = vadd.f32 %v1589, %v2232
        %2234 = vmatprep.mubr.f32.mxu0 0.0
        %2235 = vmatmul.mubr.f32.gmra.mrb[0].mxu0 %v1050
        %v2236 = vpop.f32.mrb[0].mxu0
        %v2237 = vadd.f32 %v1593, %v2236
        %v2238 = vpop.f32.mrb[0].mxu0
        %v2239 = vadd.f32 %v1595, %v2238
        %2240 = vmatprep.mubr.f32.mxu0 0.0
        %2241 = vmatmul.mubr.f32.gmra.mrb[0].mxu0 %v1053
        %v2242 = vpop.f32.mrb[0].mxu0
        %v2243 = vadd.f32 %v1599, %v2242
        %v2244 = vpop.f32.mrb[0].mxu0
        %v2245 = vadd.f32 %v1601, %v2244
        %2246 = vmatprep.mubr.f32.mxu0 0.0
        %2247 = vmatmul.mubr.f32.gmra.mrb[0].mxu0 %v1056
        %v2248 = vpop.f32.mrb[0].mxu0
        %v2249 = vadd.f32 %v1605, %v2248
        %v2250 = vpop.f32.mrb[0].mxu0
        %v2251 = vadd.f32 %v1607, %v2250
        %2252 = vmatprep.mubr.f32.mxu0 0.0
        %2253 = vmatmul.mubr.f32.gmra.mrb[0].mxu0 %v1059
        %v2254 = vpop.f32.mrb[0].mxu0
        %v2255 = vadd.f32 %v1611, %v2254
        %v2256 = vpop.f32.mrb[0].mxu0
        %v2257 = vadd.f32 %v1613, %v2256
        %2258 = vmatprep.mubr.f32.mxu0 0.0
        %2259 = vmatmul.mubr.f32.gmra.mrb[0].mxu0 %v1062
        %v2260 = vpop.f32.mrb[0].mxu0
        %v2261 = vadd.f32 %v1617, %v2260
        %v2262 = vpop.f32.mrb[0].mxu0
        %v2263 = vadd.f32 %v1619, %v2262
        %2264 = vmatprep.mubr.f32.mxu0 0.0
        %2265 = vmatmul.mubr.f32.gmra.mrb[0].mxu0 %v1065
        %v2266 = vpop.f32.mrb[0].mxu0
        %v2267 = vadd.f32 %v1623, %v2266
        %v2268 = vpop.f32.mrb[0].mxu0
        %v2269 = vadd.f32 %v1625, %v2268
        %2270 = vmatprep.mubr.f32.mxu0 0.0
        %2271 = vmatmul.mubr.f32.gmra.mrb[0].mxu0 %v1068
        %v2272 = vpop.f32.mrb[0].mxu0
        %v2273 = vadd.f32 %v1629, %v2272
        %v2274 = vpop.f32.mrb[0].mxu0
        %v2275 = vadd.f32 %v1631, %v2274
        %2276 = vmatprep.mubr.f32.mxu0 0.0
        %2277 = vmatmul.mubr.f32.gmra.mrb[0].mxu0 %v1071
        %v2278 = vpop.f32.mrb[0].mxu0
        %v2279 = vadd.f32 %v1635, %v2278
        %v2280 = vpop.f32.mrb[0].mxu0
        %v2281 = vadd.f32 %v1637, %v2280
        %2282 = vmatprep.mubr.f32.mxu0 0.0
        %2283 = vmatmul.mubr.f32.gmra.mrb[0].mxu0 %v1074
        %v2284 = vpop.f32.mrb[0].mxu0
        %v2285 = vadd.f32 %v1641, %v2284
        %v2286 = vpop.f32.mrb[0].mxu0
        %v2287 = vadd.f32 %v1643, %v2286
        %2288 = vmatprep.mubr.f32.mxu0 0.0
        %2289 = vmatmul.mubr.f32.gmra.mrb[0].mxu0 %v1077
        %v2290 = vpop.f32.mrb[0].mxu0
        %v2291 = vadd.f32 %v1647, %v2290
        %v2292 = vpop.f32.mrb[0].mxu0
        %v2293 = vadd.f32 %v1649, %v2292
        %2294 = vmatprep.mubr.f32.mxu0 0.0
        %2295 = vmatmul.mubr.f32.gmra.mrb[0].mxu0 %v1080
        %v2296 = vpop.f32.mrb[0].mxu0
        %v2297 = vadd.f32 %v1653, %v2296
        %v2298 = vpop.f32.mrb[0].mxu0
        %v2299 = vadd.f32 %v1655, %v2298
        %2300 = vmatprep.mubr.f32.mxu0 0.0
        %2301 = vmatmul.mubr.f32.gmra.mrb[0].mxu0 %v1083
        %v2302 = vpop.f32.mrb[0].mxu0
        %v2303 = vadd.f32 %v1659, %v2302
        %v2304 = vpop.f32.mrb[0].mxu0
        %v2305 = vadd.f32 %v1661, %v2304
        %2306 = vmatprep.mubr.f32.mxu0 0.0
        %2307 = vmatmul.mubr.f32.gmra.mrb[0].mxu0 %v1086
        %v2308 = vpop.f32.mrb[0].mxu0
        %v2309 = vadd.f32 %v1665, %v2308
        %v2310 = vpop.f32.mrb[0].mxu0
        %v2311 = vadd.f32 %v1667, %v2310
        %2312 = vmatprep.mubr.f32.mxu0 0.0
        %2313 = vmatmul.mubr.f32.gmra.mrb[0].mxu0 %v1089
        %v2314 = vpop.f32.mrb[0].mxu0
        %v2315 = vadd.f32 %v1671, %v2314
        %v2316 = vpop.f32.mrb[0].mxu0
        %v2317 = vadd.f32 %v1673, %v2316
        %2318 = vmatprep.mubr.f32.mxu0 0.0
        %2319 = vmatmul.mubr.f32.gmra.mrb[0].mxu0 %v1092
        %v2320 = vpop.f32.mrb[0].mxu0
        %v2321 = vadd.f32 %v1677, %v2320
        %v2322 = vpop.f32.mrb[0].mxu0
        %v2323 = vadd.f32 %v1679, %v2322
        %2324 = vmatprep.mubr.f32.mxu0 0.0
        %2325 = vmatmul.mubr.f32.gmra.mrb[0].mxu0 %v1095
        %v2326 = vpop.f32.mrb[0].mxu0
        %v2327 = vadd.f32 %v1683, %v2326
        %v2328 = vpop.f32.mrb[0].mxu0
        %v2329 = vadd.f32 %v1685, %v2328
        %2330 = vmatprep.mubr.f32.mxu0 0.0
        %2331 = vmatmul.mubr.f32.gmra.mrb[0].mxu0 %v1098
        %v2332 = vpop.f32.mrb[0].mxu0
        %v2333 = vadd.f32 %v1689, %v2332
        %v2334 = vpop.f32.mrb[0].mxu0
        %v2335 = vadd.f32 %v1691, %v2334
        %2336 = vmatprep.mubr.f32.mxu0 0.0
        %2337 = vmatmul.mubr.f32.gmra.mrb[0].mxu0 %v1101
        %v2338 = vpop.f32.mrb[0].mxu0
        %v2339 = vadd.f32 %v1695, %v2338
        %v2340 = vpop.f32.mrb[0].mxu0
        %v2341 = vadd.f32 %v1697, %v2340
        %2342 = vmatprep.mubr.f32.mxu0 0.0
        %2343 = vmatmul.mubr.f32.gmra.mrb[0].mxu0 %v1104
        %v2344 = vpop.f32.mrb[0].mxu0
        %v2345 = vadd.f32 %v1701, %v2344
        %v2346 = vpop.f32.mrb[0].mxu0
        %v2347 = vadd.f32 %v1703, %v2346
        %2348 = vmatprep.mubr.f32.mxu0 0.0
        %2349 = vmatmul.mubr.f32.gmra.mrb[0].mxu0 %v1107
        %v2350 = vpop.f32.mrb[0].mxu0
        %v2351 = vadd.f32 %v1707, %v2350
        %v2352 = vpop.f32.mrb[0].mxu0
        %v2353 = vadd.f32 %v1709, %v2352
        %2354 = vmatprep.mubr.f32.mxu0 0.0
        %2355 = vmatmul.mubr.f32.gmra.mrb[0].mxu0 %v1110
        %v2356 = vpop.f32.mrb[0].mxu0
        %v2357 = vadd.f32 %v1713, %v2356
        %v2358 = vpop.f32.mrb[0].mxu0
        %v2359 = vadd.f32 %v1715, %v2358
        %2360 = vmatprep.mubr.f32.mxu0 0.0
        %2361 = vmatmul.mubr.f32.gmra.mrb[0].mxu0 %v1113
        %v2362 = vpop.f32.mrb[0].mxu0
        %v2363 = vadd.f32 %v1719, %v2362
        %v2364 = vpop.f32.mrb[0].mxu0
        %v2365 = vadd.f32 %v1721, %v2364
        %2366 = vmatprep.mubr.f32.mxu0 0.0
        %2367 = vmatmul.mubr.f32.gmra.mrb[0].mxu0 %v1116
        %v2368 = vpop.f32.mrb[0].mxu0
        %v2369 = vadd.f32 %v1725, %v2368
        %v2370 = vpop.f32.mrb[0].mxu0
        %v2371 = vadd.f32 %v1727, %v2370
        %2372 = vmatprep.mubr.f32.mxu0 0.0
        %2373 = vmatmul.mubr.f32.gmra.mrb[0].mxu0 %v1119
        %v2374 = vpop.f32.mrb[0].mxu0
        %v2375 = vadd.f32 %v1731, %v2374
        %v2376 = vpop.f32.mrb[0].mxu0
        %v2377 = vadd.f32 %v1733, %v2376
        %2378 = vmatprep.mubr.f32.mxu0 0.0
        %2379 = vmatmul.mubr.f32.gmra.mrb[0].mxu0 %v1122
        %v2380 = vpop.f32.mrb[0].mxu0
        %v2381 = vadd.f32 %v1737, %v2380
        %v2382 = vpop.f32.mrb[0].mxu0
        %v2383 = vadd.f32 %v1739, %v2382
        %2384 = vmatprep.mubr.f32.mxu0 0.0
        %2385 = vmatmul.mubr.f32.gmra.mrb[0].mxu0 %v1125
        %v2386 = vpop.f32.mrb[0].mxu0
        %v2387 = vadd.f32 %v1743, %v2386
        %v2388 = vpop.f32.mrb[0].mxu0
        %v2389 = vadd.f32 %v1745, %v2388
        %2390 = vmatprep.mubr.f32.mxu0 0.0
        %2391 = vmatmul.mubr.f32.gmra.mrb[0].mxu0 %v1128
        %v2392 = vpop.f32.mrb[0].mxu0
        %v2393 = vadd.f32 %v1749, %v2392
        %v2394 = vpop.f32.mrb[0].mxu0
        %v2395 = vadd.f32 %v1751, %v2394
        %2396 = vmatprep.mubr.f32.mxu0 0.0
        %2397 = vmatmul.mubr.f32.gmra.mrb[0].mxu0 %v1131
        %v2398 = vpop.f32.mrb[0].mxu0
        %v2399 = vadd.f32 %v1755, %v2398
        %v2400 = vpop.f32.mrb[0].mxu0
        %v2401 = vadd.f32 %v1757, %v2400
        %2402 = vmatprep.mubr.f32.mxu0 0.0
        %2403 = vmatmul.mubr.f32.gmra.mrb[0].mxu0 %v1134
        %v2404 = vpop.f32.mrb[0].mxu0
        %v2405 = vadd.f32 %v1761, %v2404
        %v2406 = vpop.f32.mrb[0].mxu0
        %v2407 = vadd.f32 %v1763, %v2406
        %2408 = vmatprep.mubr.f32.mxu0 0.0
        %2409 = vmatmul.mubr.f32.gmra.mrb[0].mxu0 %v1137
        %v2410 = vpop.f32.mrb[0].mxu0
        %v2411 = vadd.f32 %v1767, %v2410
        %v2412 = vpop.f32.mrb[0].mxu0
        %v2413 = vadd.f32 %v1769, %v2412
        %2414 = vmatprep.mubr.f32.mxu0 0.0
        %2415 = vmatmul.mubr.f32.gmra.mrb[0].mxu0 %v1140
        %v2416 = vpop.f32.mrb[0].mxu0
        %v2417 = vadd.f32 %v1773, %v2416
        %v2418 = vpop.f32.mrb[0].mxu0
        %v2419 = vadd.f32 %v1775, %v2418
        %2420 = vmatprep.mubr.f32.mxu0 0.0
        %2421 = vmatmul.mubr.f32.gmra.mrb[0].mxu0 %v1143
        %v2422 = vpop.f32.mrb[0].mxu0
        %v2423 = vadd.f32 %v1779, %v2422
        %v2424 = vpop.f32.mrb[0].mxu0
        %v2425 = vadd.f32 %v1781, %v2424
        %2426 = vmatprep.mubr.f32.mxu0 0.0
        %2427 = vmatmul.mubr.f32.gmra.mrb[0].mxu0 %v1146
        %v2428 = vpop.f32.mrb[0].mxu0
        %v2429 = vadd.f32 %v1785, %v2428
        %v2430 = vpop.f32.mrb[0].mxu0
        %v2431 = vadd.f32 %v1787, %v2430
        %2432 = vmatprep.mubr.f32.mxu0 0.0
        %2433 = vmatmul.mubr.f32.gmra.mrb[0].mxu0 %v1149
        %v2434 = vpop.f32.mrb[0].mxu0
        %v2435 = vadd.f32 %v1791, %v2434
        %v2436 = vpop.f32.mrb[0].mxu0
        %v2437 = vadd.f32 %v1793, %v2436
        %2438 = vmatprep.mubr.f32.mxu0 0.0
        %2439 = vmatmul.mubr.f32.gmra.mrb[0].mxu0 %v1152
        %v2440 = vpop.f32.mrb[0].mxu0
        %v2441 = vadd.f32 %v1797, %v2440
        %v2442 = vpop.f32.mrb[0].mxu0
        %v2443 = vadd.f32 %v1799, %v2442
        %2444 = vdwg.mxu0
        %s2445 = scalar_lea.vmem %s1, 192
        %v2446 = vld [vmem:[%s2445] sm:$0xff]
        %v2447 = vld [vmem:[%s2445 + $0x8] sm:$0xff]
        %v2448 = vld [vmem:[%s2445 + $0x10] sm:$0xff]
        %v2449 = vld [vmem:[%s2445 + $0x18] sm:$0xff]
        %v2450 = vld [vmem:[%s2445 + $0x20] sm:$0xff]
        %v2451 = vld [vmem:[%s2445 + $0x28] sm:$0xff]
        %v2452 = vld [vmem:[%s2445 + $0x30] sm:$0xff]
        %v2453 = vld [vmem:[%s2445 + $0x38] sm:$0xff]
        %v2454 = vld [vmem:[%s2445 + $0x40] sm:$0xff]
        %v2455 = vld [vmem:[%s2445 + $0x48] sm:$0xff]
        %v2456 = vld [vmem:[%s2445 + $0x50] sm:$0xff]
        %v2457 = vld [vmem:[%s2445 + $0x58] sm:$0xff]
        %2458 = vmatprep.subr.mxu0 %v2447
        %2459 = vmatpush1.msra.mxu0 %v2446
        %2460 = vmatprep.subr.mxu0 %v2449
        %2461 = vmatpush1.msra.mxu0 %v2448
        %2462 = vmatprep.subr.mxu0 %v2451
        %2463 = vmatpush1.msra.mxu0 %v2450
        %2464 = vmatprep.subr.mxu0 %v2453
        %2465 = vmatpush1.msra.mxu0 %v2452
        %2466 = vmatprep.subr.mxu0 %v2455
        %2467 = vmatpush1.msra.mxu0 %v2454
        %2468 = vmatprep.subr.mxu0 %v2457
        %2469 = vmatpush1.msra.mxu0 %v2456
        %2470 = vmatprep.subr.mxu0 0.0
        %2471 = vmatpush1.msra.mxu0 0.0
        %2472 = vmatprep.subr.mxu0 0.0
        %2473 = vmatpush1.msra.mxu0 0.0
        %2474 = vmatprep.subr.mxu0 0.0
        %2475 = vmatpush1.msra.mxu0 0.0
        %2476 = vmatprep.subr.mxu0 0.0
        %2477 = vmatpush1.msra.mxu0 0.0
        %2478 = vmatprep.subr.mxu0 0.0
        %2479 = vmatpush1.msra.mxu0 0.0
        %2480 = vmatprep.subr.mxu0 0.0
        %2481 = vmatpush1.msra.mxu0 0.0
        %2482 = vmatprep.subr.mxu0 0.0
        %2483 = vmatpush1.msra.mxu0 0.0
        %2484 = vmatprep.subr.mxu0 0.0
        %2485 = vmatpush1.msra.mxu0 0.0
        %2486 = vmatprep.subr.mxu0 0.0
        %2487 = vmatpush1.msra.mxu0 0.0
        %2488 = vmatprep.subr.mxu0 0.0
        %2489 = vmatpush1.msra.mxu0 0.0
        %2490 = vmatprep.subr.mxu0 0.0
        %2491 = vmatpush1.msra.mxu0 0.0
        %2492 = vmatprep.subr.mxu0 0.0
        %2493 = vmatpush1.msra.mxu0 0.0
        %2494 = vmatprep.subr.mxu0 0.0
        %2495 = vmatpush1.msra.mxu0 0.0
        %2496 = vmatprep.subr.mxu0 0.0
        %2497 = vmatpush1.msra.mxu0 0.0
        %2498 = vmatprep.subr.mxu0 0.0
        %2499 = vmatpush1.msra.mxu0 0.0
        %2500 = vmatprep.subr.mxu0 0.0
        %2501 = vmatpush1.msra.mxu0 0.0
        %2502 = vmatprep.subr.mxu0 0.0
        %2503 = vmatpush1.msra.mxu0 0.0
        %2504 = vmatprep.subr.mxu0 0.0
        %2505 = vmatpush1.msra.mxu0 0.0
        %2506 = vmatprep.subr.mxu0 0.0
        %2507 = vmatpush1.msra.mxu0 0.0
        %2508 = vmatprep.subr.mxu0 0.0
        %2509 = vmatpush1.msra.mxu0 0.0
        %2510 = vmatprep.subr.mxu0 0.0
        %2511 = vmatpush1.msra.mxu0 0.0
        %2512 = vmatprep.subr.mxu0 0.0
        %2513 = vmatpush1.msra.mxu0 0.0
        %2514 = vmatprep.subr.mxu0 0.0
        %2515 = vmatpush1.msra.mxu0 0.0
        %2516 = vmatprep.subr.mxu0 0.0
        %2517 = vmatpush1.msra.mxu0 0.0
        %2518 = vmatprep.subr.mxu0 0.0
        %2519 = vmatpush1.msra.mxu0 0.0
        %2520 = vmatprep.subr.mxu0 0.0
        %2521 = vmatpush1.msra.mxu0 0.0
        %2522 = vmatprep.mubr.f32.mxu0 0.0
        %2523 = vmatmul.mubr.f32.gmra.mrb[0].mxu0 %v879
        %v2524 = vpop.f32.mrb[0].mxu0
        %v2525 = vadd.f32 0.0, %v2524
        %v2526 = vpop.f32.mrb[0].mxu0
        %v2527 = vadd.f32 0.0, %v2526
        %2528 = vmatprep.mubr.f32.mxu0 0.0
        %2529 = vmatmul.mubr.f32.gmra.mrb[0].mxu0 %v882
        %v2530 = vpop.f32.mrb[0].mxu0
        %v2531 = vadd.f32 0.0, %v2530
        %v2532 = vpop.f32.mrb[0].mxu0
        %v2533 = vadd.f32 0.0, %v2532
        %2534 = vmatprep.mubr.f32.mxu0 0.0
        %2535 = vmatmul.mubr.f32.gmra.mrb[0].mxu0 %v885
        %v2536 = vpop.f32.mrb[0].mxu0
        %v2537 = vadd.f32 0.0, %v2536
        %v2538 = vpop.f32.mrb[0].mxu0
        %v2539 = vadd.f32 0.0, %v2538
        %2540 = vmatprep.mubr.f32.mxu0 0.0
        %2541 = vmatmul.mubr.f32.gmra.mrb[0].mxu0 %v888
        %v2542 = vpop.f32.mrb[0].mxu0
        %v2543 = vadd.f32 0.0, %v2542
        %v2544 = vpop.f32.mrb[0].mxu0
        %v2545 = vadd.f32 0.0, %v2544
        %2546 = vmatprep.mubr.f32.mxu0 0.0
        %2547 = vmatmul.mubr.f32.gmra.mrb[0].mxu0 %v891
        %v2548 = vpop.f32.mrb[0].mxu0
        %v2549 = vadd.f32 0.0, %v2548
        %v2550 = vpop.f32.mrb[0].mxu0
        %v2551 = vadd.f32 0.0, %v2550
        %2552 = vmatprep.mubr.f32.mxu0 0.0
        %2553 = vmatmul.mubr.f32.gmra.mrb[0].mxu0 %v894
        %v2554 = vpop.f32.mrb[0].mxu0
        %v2555 = vadd.f32 0.0, %v2554
        %v2556 = vpop.f32.mrb[0].mxu0
        %v2557 = vadd.f32 0.0, %v2556
        %2558 = vmatprep.mubr.f32.mxu0 0.0
        %2559 = vmatmul.mubr.f32.gmra.mrb[0].mxu0 %v897
        %v2560 = vpop.f32.mrb[0].mxu0
        %v2561 = vadd.f32 0.0, %v2560
        %v2562 = vpop.f32.mrb[0].mxu0
        %v2563 = vadd.f32 0.0, %v2562
        %2564 = vmatprep.mubr.f32.mxu0 0.0
        %2565 = vmatmul.mubr.f32.gmra.mrb[0].mxu0 %v900
        %v2566 = vpop.f32.mrb[0].mxu0
        %v2567 = vadd.f32 0.0, %v2566
        %v2568 = vpop.f32.mrb[0].mxu0
        %v2569 = vadd.f32 0.0, %v2568
        %2570 = vmatprep.mubr.f32.mxu0 0.0
        %2571 = vmatmul.mubr.f32.gmra.mrb[0].mxu0 %v903
        %v2572 = vpop.f32.mrb[0].mxu0
        %v2573 = vadd.f32 0.0, %v2572
        %v2574 = vpop.f32.mrb[0].mxu0
        %v2575 = vadd.f32 0.0, %v2574
        %2576 = vmatprep.mubr.f32.mxu0 0.0
        %2577 = vmatmul.mubr.f32.gmra.mrb[0].mxu0 %v906
        %v2578 = vpop.f32.mrb[0].mxu0
        %v2579 = vadd.f32 0.0, %v2578
        %v2580 = vpop.f32.mrb[0].mxu0
        %v2581 = vadd.f32 0.0, %v2580
        %2582 = vmatprep.mubr.f32.mxu0 0.0
        %2583 = vmatmul.mubr.f32.gmra.mrb[0].mxu0 %v909
        %v2584 = vpop.f32.mrb[0].mxu0
        %v2585 = vadd.f32 0.0, %v2584
        %v2586 = vpop.f32.mrb[0].mxu0
        %v2587 = vadd.f32 0.0, %v2586
        %2588 = vmatprep.mubr.f32.mxu0 0.0
        %2589 = vmatmul.mubr.f32.gmra.mrb[0].mxu0 %v912
        %v2590 = vpop.f32.mrb[0].mxu0
        %v2591 = vadd.f32 0.0, %v2590
        %v2592 = vpop.f32.mrb[0].mxu0
        %v2593 = vadd.f32 0.0, %v2592
        %2594 = vmatprep.mubr.f32.mxu0 0.0
        %2595 = vmatmul.mubr.f32.gmra.mrb[0].mxu0 %v915
        %v2596 = vpop.f32.mrb[0].mxu0
        %v2597 = vadd.f32 0.0, %v2596
        %v2598 = vpop.f32.mrb[0].mxu0
        %v2599 = vadd.f32 0.0, %v2598
        %2600 = vmatprep.mubr.f32.mxu0 0.0
        %2601 = vmatmul.mubr.f32.gmra.mrb[0].mxu0 %v918
        %v2602 = vpop.f32.mrb[0].mxu0
        %v2603 = vadd.f32 0.0, %v2602
        %v2604 = vpop.f32.mrb[0].mxu0
        %v2605 = vadd.f32 0.0, %v2604
        %2606 = vmatprep.mubr.f32.mxu0 0.0
        %2607 = vmatmul.mubr.f32.gmra.mrb[0].mxu0 %v921
        %v2608 = vpop.f32.mrb[0].mxu0
        %v2609 = vadd.f32 0.0, %v2608
        %v2610 = vpop.f32.mrb[0].mxu0
        %v2611 = vadd.f32 0.0, %v2610
        %2612 = vmatprep.mubr.f32.mxu0 0.0
        %2613 = vmatmul.mubr.f32.gmra.mrb[0].mxu0 %v924
        %v2614 = vpop.f32.mrb[0].mxu0
        %v2615 = vadd.f32 0.0, %v2614
        %v2616 = vpop.f32.mrb[0].mxu0
        %v2617 = vadd.f32 0.0, %v2616
        %2618 = vmatprep.mubr.f32.mxu0 0.0
        %2619 = vmatmul.mubr.f32.gmra.mrb[0].mxu0 %v927
        %v2620 = vpop.f32.mrb[0].mxu0
        %v2621 = vadd.f32 0.0, %v2620
        %v2622 = vpop.f32.mrb[0].mxu0
        %v2623 = vadd.f32 0.0, %v2622
        %2624 = vmatprep.mubr.f32.mxu0 0.0
        %2625 = vmatmul.mubr.f32.gmra.mrb[0].mxu0 %v930
        %v2626 = vpop.f32.mrb[0].mxu0
        %v2627 = vadd.f32 0.0, %v2626
        %v2628 = vpop.f32.mrb[0].mxu0
        %v2629 = vadd.f32 0.0, %v2628
        %2630 = vmatprep.mubr.f32.mxu0 0.0
        %2631 = vmatmul.mubr.f32.gmra.mrb[0].mxu0 %v933
        %v2632 = vpop.f32.mrb[0].mxu0
        %v2633 = vadd.f32 0.0, %v2632
        %v2634 = vpop.f32.mrb[0].mxu0
        %v2635 = vadd.f32 0.0, %v2634
        %2636 = vmatprep.mubr.f32.mxu0 0.0
        %2637 = vmatmul.mubr.f32.gmra.mrb[0].mxu0 %v936
        %v2638 = vpop.f32.mrb[0].mxu0
        %v2639 = vadd.f32 0.0, %v2638
        %v2640 = vpop.f32.mrb[0].mxu0
        %v2641 = vadd.f32 0.0, %v2640
        %2642 = vmatprep.mubr.f32.mxu0 0.0
        %2643 = vmatmul.mubr.f32.gmra.mrb[0].mxu0 %v939
        %v2644 = vpop.f32.mrb[0].mxu0
        %v2645 = vadd.f32 0.0, %v2644
        %v2646 = vpop.f32.mrb[0].mxu0
        %v2647 = vadd.f32 0.0, %v2646
        %2648 = vmatprep.mubr.f32.mxu0 0.0
        %2649 = vmatmul.mubr.f32.gmra.mrb[0].mxu0 %v942
        %v2650 = vpop.f32.mrb[0].mxu0
        %v2651 = vadd.f32 0.0, %v2650
        %v2652 = vpop.f32.mrb[0].mxu0
        %v2653 = vadd.f32 0.0, %v2652
        %2654 = vmatprep.mubr.f32.mxu0 0.0
        %2655 = vmatmul.mubr.f32.gmra.mrb[0].mxu0 %v945
        %v2656 = vpop.f32.mrb[0].mxu0
        %v2657 = vadd.f32 0.0, %v2656
        %v2658 = vpop.f32.mrb[0].mxu0
        %v2659 = vadd.f32 0.0, %v2658
        %2660 = vmatprep.mubr.f32.mxu0 0.0
        %2661 = vmatmul.mubr.f32.gmra.mrb[0].mxu0 %v948
        %v2662 = vpop.f32.mrb[0].mxu0
        %v2663 = vadd.f32 0.0, %v2662
        %v2664 = vpop.f32.mrb[0].mxu0
        %v2665 = vadd.f32 0.0, %v2664
        %2666 = vmatprep.mubr.f32.mxu0 0.0
        %2667 = vmatmul.mubr.f32.gmra.mrb[0].mxu0 %v951
        %v2668 = vpop.f32.mrb[0].mxu0
        %v2669 = vadd.f32 0.0, %v2668
        %v2670 = vpop.f32.mrb[0].mxu0
        %v2671 = vadd.f32 0.0, %v2670
        %2672 = vmatprep.mubr.f32.mxu0 0.0
        %2673 = vmatmul.mubr.f32.gmra.mrb[0].mxu0 %v954
        %v2674 = vpop.f32.mrb[0].mxu0
        %v2675 = vadd.f32 0.0, %v2674
        %v2676 = vpop.f32.mrb[0].mxu0
        %v2677 = vadd.f32 0.0, %v2676
        %2678 = vmatprep.mubr.f32.mxu0 0.0
        %2679 = vmatmul.mubr.f32.gmra.mrb[0].mxu0 %v957
        %v2680 = vpop.f32.mrb[0].mxu0
        %v2681 = vadd.f32 0.0, %v2680
        %v2682 = vpop.f32.mrb[0].mxu0
        %v2683 = vadd.f32 0.0, %v2682
        %2684 = vmatprep.mubr.f32.mxu0 0.0
        %2685 = vmatmul.mubr.f32.gmra.mrb[0].mxu0 %v960
        %v2686 = vpop.f32.mrb[0].mxu0
        %v2687 = vadd.f32 0.0, %v2686
        %v2688 = vpop.f32.mrb[0].mxu0
        %v2689 = vadd.f32 0.0, %v2688
        %2690 = vmatprep.mubr.f32.mxu0 0.0
        %2691 = vmatmul.mubr.f32.gmra.mrb[0].mxu0 %v963
        %v2692 = vpop.f32.mrb[0].mxu0
        %v2693 = vadd.f32 0.0, %v2692
        %v2694 = vpop.f32.mrb[0].mxu0
        %v2695 = vadd.f32 0.0, %v2694
        %2696 = vmatprep.mubr.f32.mxu0 0.0
        %2697 = vmatmul.mubr.f32.gmra.mrb[0].mxu0 %v966
        %v2698 = vpop.f32.mrb[0].mxu0
        %v2699 = vadd.f32 0.0, %v2698
        %v2700 = vpop.f32.mrb[0].mxu0
        %v2701 = vadd.f32 0.0, %v2700
        %2702 = vmatprep.mubr.f32.mxu0 0.0
        %2703 = vmatmul.mubr.f32.gmra.mrb[0].mxu0 %v969
        %v2704 = vpop.f32.mrb[0].mxu0
        %v2705 = vadd.f32 0.0, %v2704
        %v2706 = vpop.f32.mrb[0].mxu0
        %v2707 = vadd.f32 0.0, %v2706
        %2708 = vmatprep.mubr.f32.mxu0 0.0
        %2709 = vmatmul.mubr.f32.gmra.mrb[0].mxu0 %v972
        %v2710 = vpop.f32.mrb[0].mxu0
        %v2711 = vadd.f32 0.0, %v2710
        %v2712 = vpop.f32.mrb[0].mxu0
        %v2713 = vadd.f32 0.0, %v2712
        %2714 = vmatprep.mubr.f32.mxu0 0.0
        %2715 = vmatmul.mubr.f32.gmra.mrb[0].mxu0 %v975
        %v2716 = vpop.f32.mrb[0].mxu0
        %v2717 = vadd.f32 0.0, %v2716
        %v2718 = vpop.f32.mrb[0].mxu0
        %v2719 = vadd.f32 0.0, %v2718
        %2720 = vmatprep.mubr.f32.mxu0 0.0
        %2721 = vmatmul.mubr.f32.gmra.mrb[0].mxu0 %v978
        %v2722 = vpop.f32.mrb[0].mxu0
        %v2723 = vadd.f32 0.0, %v2722
        %v2724 = vpop.f32.mrb[0].mxu0
        %v2725 = vadd.f32 0.0, %v2724
        %2726 = vmatprep.mubr.f32.mxu0 0.0
        %2727 = vmatmul.mubr.f32.gmra.mrb[0].mxu0 %v981
        %v2728 = vpop.f32.mrb[0].mxu0
        %v2729 = vadd.f32 0.0, %v2728
        %v2730 = vpop.f32.mrb[0].mxu0
        %v2731 = vadd.f32 0.0, %v2730
        %2732 = vmatprep.mubr.f32.mxu0 0.0
        %2733 = vmatmul.mubr.f32.gmra.mrb[0].mxu0 %v984
        %v2734 = vpop.f32.mrb[0].mxu0
        %v2735 = vadd.f32 0.0, %v2734
        %v2736 = vpop.f32.mrb[0].mxu0
        %v2737 = vadd.f32 0.0, %v2736
        %2738 = vmatprep.mubr.f32.mxu0 0.0
        %2739 = vmatmul.mubr.f32.gmra.mrb[0].mxu0 %v987
        %v2740 = vpop.f32.mrb[0].mxu0
        %v2741 = vadd.f32 0.0, %v2740
        %v2742 = vpop.f32.mrb[0].mxu0
        %v2743 = vadd.f32 0.0, %v2742
        %2744 = vmatprep.mubr.f32.mxu0 0.0
        %2745 = vmatmul.mubr.f32.gmra.mrb[0].mxu0 %v990
        %v2746 = vpop.f32.mrb[0].mxu0
        %v2747 = vadd.f32 0.0, %v2746
        %v2748 = vpop.f32.mrb[0].mxu0
        %v2749 = vadd.f32 0.0, %v2748
        %2750 = vmatprep.mubr.f32.mxu0 0.0
        %2751 = vmatmul.mubr.f32.gmra.mrb[0].mxu0 %v993
        %v2752 = vpop.f32.mrb[0].mxu0
        %v2753 = vadd.f32 0.0, %v2752
        %v2754 = vpop.f32.mrb[0].mxu0
        %v2755 = vadd.f32 0.0, %v2754
        %2756 = vmatprep.mubr.f32.mxu0 0.0
        %2757 = vmatmul.mubr.f32.gmra.mrb[0].mxu0 %v996
        %v2758 = vpop.f32.mrb[0].mxu0
        %v2759 = vadd.f32 0.0, %v2758
        %v2760 = vpop.f32.mrb[0].mxu0
        %v2761 = vadd.f32 0.0, %v2760
        %2762 = vmatprep.mubr.f32.mxu0 0.0
        %2763 = vmatmul.mubr.f32.gmra.mrb[0].mxu0 %v999
        %v2764 = vpop.f32.mrb[0].mxu0
        %v2765 = vadd.f32 0.0, %v2764
        %v2766 = vpop.f32.mrb[0].mxu0
        %v2767 = vadd.f32 0.0, %v2766
        %2768 = vmatprep.mubr.f32.mxu0 0.0
        %2769 = vmatmul.mubr.f32.gmra.mrb[0].mxu0 %v1002
        %v2770 = vpop.f32.mrb[0].mxu0
        %v2771 = vadd.f32 0.0, %v2770
        %v2772 = vpop.f32.mrb[0].mxu0
        %v2773 = vadd.f32 0.0, %v2772
        %2774 = vmatprep.mubr.f32.mxu0 0.0
        %2775 = vmatmul.mubr.f32.gmra.mrb[0].mxu0 %v1005
        %v2776 = vpop.f32.mrb[0].mxu0
        %v2777 = vadd.f32 0.0, %v2776
        %v2778 = vpop.f32.mrb[0].mxu0
        %v2779 = vadd.f32 0.0, %v2778
        %2780 = vmatprep.mubr.f32.mxu0 0.0
        %2781 = vmatmul.mubr.f32.gmra.mrb[0].mxu0 %v1008
        %v2782 = vpop.f32.mrb[0].mxu0
        %v2783 = vadd.f32 0.0, %v2782
        %v2784 = vpop.f32.mrb[0].mxu0
        %v2785 = vadd.f32 0.0, %v2784
        %2786 = vmatprep.mubr.f32.mxu0 0.0
        %2787 = vmatmul.mubr.f32.gmra.mrb[0].mxu0 %v1011
        %v2788 = vpop.f32.mrb[0].mxu0
        %v2789 = vadd.f32 0.0, %v2788
        %v2790 = vpop.f32.mrb[0].mxu0
        %v2791 = vadd.f32 0.0, %v2790
        %2792 = vmatprep.mubr.f32.mxu0 0.0
        %2793 = vmatmul.mubr.f32.gmra.mrb[0].mxu0 %v1014
        %v2794 = vpop.f32.mrb[0].mxu0
        %v2795 = vadd.f32 0.0, %v2794
        %v2796 = vpop.f32.mrb[0].mxu0
        %v2797 = vadd.f32 0.0, %v2796
        %2798 = vmatprep.mubr.f32.mxu0 0.0
        %2799 = vmatmul.mubr.f32.gmra.mrb[0].mxu0 %v1017
        %v2800 = vpop.f32.mrb[0].mxu0
        %v2801 = vadd.f32 0.0, %v2800
        %v2802 = vpop.f32.mrb[0].mxu0
        %v2803 = vadd.f32 0.0, %v2802
        %2804 = vmatprep.mubr.f32.mxu0 0.0
        %2805 = vmatmul.mubr.f32.gmra.mrb[0].mxu0 %v1020
        %v2806 = vpop.f32.mrb[0].mxu0
        %v2807 = vadd.f32 0.0, %v2806
        %v2808 = vpop.f32.mrb[0].mxu0
        %v2809 = vadd.f32 0.0, %v2808
        %2810 = vmatprep.mubr.f32.mxu0 0.0
        %2811 = vmatmul.mubr.f32.gmra.mrb[0].mxu0 %v1023
        %v2812 = vpop.f32.mrb[0].mxu0
        %v2813 = vadd.f32 0.0, %v2812
        %v2814 = vpop.f32.mrb[0].mxu0
        %v2815 = vadd.f32 0.0, %v2814
        %2816 = vmatprep.mubr.f32.mxu0 0.0
        %2817 = vmatmul.mubr.f32.gmra.mrb[0].mxu0 %v1026
        %v2818 = vpop.f32.mrb[0].mxu0
        %v2819 = vadd.f32 0.0, %v2818
        %v2820 = vpop.f32.mrb[0].mxu0
        %v2821 = vadd.f32 0.0, %v2820
        %2822 = vmatprep.mubr.f32.mxu0 0.0
        %2823 = vmatmul.mubr.f32.gmra.mrb[0].mxu0 %v1029
        %v2824 = vpop.f32.mrb[0].mxu0
        %v2825 = vadd.f32 0.0, %v2824
        %v2826 = vpop.f32.mrb[0].mxu0
        %v2827 = vadd.f32 0.0, %v2826
        %2828 = vmatprep.mubr.f32.mxu0 0.0
        %2829 = vmatmul.mubr.f32.gmra.mrb[0].mxu0 %v1032
        %v2830 = vpop.f32.mrb[0].mxu0
        %v2831 = vadd.f32 0.0, %v2830
        %v2832 = vpop.f32.mrb[0].mxu0
        %v2833 = vadd.f32 0.0, %v2832
        %2834 = vmatprep.mubr.f32.mxu0 0.0
        %2835 = vmatmul.mubr.f32.gmra.mrb[0].mxu0 %v1035
        %v2836 = vpop.f32.mrb[0].mxu0
        %v2837 = vadd.f32 0.0, %v2836
        %v2838 = vpop.f32.mrb[0].mxu0
        %v2839 = vadd.f32 0.0, %v2838
        %2840 = vmatprep.mubr.f32.mxu0 0.0
        %2841 = vmatmul.mubr.f32.gmra.mrb[0].mxu0 %v1038
        %v2842 = vpop.f32.mrb[0].mxu0
        %v2843 = vadd.f32 0.0, %v2842
        %v2844 = vpop.f32.mrb[0].mxu0
        %v2845 = vadd.f32 0.0, %v2844
        %2846 = vmatprep.mubr.f32.mxu0 0.0
        %2847 = vmatmul.mubr.f32.gmra.mrb[0].mxu0 %v1041
        %v2848 = vpop.f32.mrb[0].mxu0
        %v2849 = vadd.f32 0.0, %v2848
        %v2850 = vpop.f32.mrb[0].mxu0
        %v2851 = vadd.f32 0.0, %v2850
        %2852 = vmatprep.mubr.f32.mxu0 0.0
        %2853 = vmatmul.mubr.f32.gmra.mrb[0].mxu0 %v1044
        %v2854 = vpop.f32.mrb[0].mxu0
        %v2855 = vadd.f32 0.0, %v2854
        %v2856 = vpop.f32.mrb[0].mxu0
        %v2857 = vadd.f32 0.0, %v2856
        %2858 = vmatprep.mubr.f32.mxu0 0.0
        %2859 = vmatmul.mubr.f32.gmra.mrb[0].mxu0 %v1047
        %v2860 = vpop.f32.mrb[0].mxu0
        %v2861 = vadd.f32 0.0, %v2860
        %v2862 = vpop.f32.mrb[0].mxu0
        %v2863 = vadd.f32 0.0, %v2862
        %2864 = vmatprep.mubr.f32.mxu0 0.0
        %2865 = vmatmul.mubr.f32.gmra.mrb[0].mxu0 %v1050
        %v2866 = vpop.f32.mrb[0].mxu0
        %v2867 = vadd.f32 0.0, %v2866
        %v2868 = vpop.f32.mrb[0].mxu0
        %v2869 = vadd.f32 0.0, %v2868
        %2870 = vmatprep.mubr.f32.mxu0 0.0
        %2871 = vmatmul.mubr.f32.gmra.mrb[0].mxu0 %v1053
        %v2872 = vpop.f32.mrb[0].mxu0
        %v2873 = vadd.f32 0.0, %v2872
        %v2874 = vpop.f32.mrb[0].mxu0
        %v2875 = vadd.f32 0.0, %v2874
        %2876 = vmatprep.mubr.f32.mxu0 0.0
        %2877 = vmatmul.mubr.f32.gmra.mrb[0].mxu0 %v1056
        %v2878 = vpop.f32.mrb[0].mxu0
        %v2879 = vadd.f32 0.0, %v2878
        %v2880 = vpop.f32.mrb[0].mxu0
        %v2881 = vadd.f32 0.0, %v2880
        %2882 = vmatprep.mubr.f32.mxu0 0.0
        %2883 = vmatmul.mubr.f32.gmra.mrb[0].mxu0 %v1059
        %v2884 = vpop.f32.mrb[0].mxu0
        %v2885 = vadd.f32 0.0, %v2884
        %v2886 = vpop.f32.mrb[0].mxu0
        %v2887 = vadd.f32 0.0, %v2886
        %2888 = vmatprep.mubr.f32.mxu0 0.0
        %2889 = vmatmul.mubr.f32.gmra.mrb[0].mxu0 %v1062
        %v2890 = vpop.f32.mrb[0].mxu0
        %v2891 = vadd.f32 0.0, %v2890
        %v2892 = vpop.f32.mrb[0].mxu0
        %v2893 = vadd.f32 0.0, %v2892
        %2894 = vmatprep.mubr.f32.mxu0 0.0
        %2895 = vmatmul.mubr.f32.gmra.mrb[0].mxu0 %v1065
        %v2896 = vpop.f32.mrb[0].mxu0
        %v2897 = vadd.f32 0.0, %v2896
        %v2898 = vpop.f32.mrb[0].mxu0
        %v2899 = vadd.f32 0.0, %v2898
        %2900 = vmatprep.mubr.f32.mxu0 0.0
        %2901 = vmatmul.mubr.f32.gmra.mrb[0].mxu0 %v1068
        %v2902 = vpop.f32.mrb[0].mxu0
        %v2903 = vadd.f32 0.0, %v2902
        %v2904 = vpop.f32.mrb[0].mxu0
        %v2905 = vadd.f32 0.0, %v2904
        %2906 = vmatprep.mubr.f32.mxu0 0.0
        %2907 = vmatmul.mubr.f32.gmra.mrb[0].mxu0 %v1071
        %v2908 = vpop.f32.mrb[0].mxu0
        %v2909 = vadd.f32 0.0, %v2908
        %v2910 = vpop.f32.mrb[0].mxu0
        %v2911 = vadd.f32 0.0, %v2910
        %2912 = vmatprep.mubr.f32.mxu0 0.0
        %2913 = vmatmul.mubr.f32.gmra.mrb[0].mxu0 %v1074
        %v2914 = vpop.f32.mrb[0].mxu0
        %v2915 = vadd.f32 0.0, %v2914
        %v2916 = vpop.f32.mrb[0].mxu0
        %v2917 = vadd.f32 0.0, %v2916
        %2918 = vmatprep.mubr.f32.mxu0 0.0
        %2919 = vmatmul.mubr.f32.gmra.mrb[0].mxu0 %v1077
        %v2920 = vpop.f32.mrb[0].mxu0
        %v2921 = vadd.f32 0.0, %v2920
        %v2922 = vpop.f32.mrb[0].mxu0
        %v2923 = vadd.f32 0.0, %v2922
        %2924 = vmatprep.mubr.f32.mxu0 0.0
        %2925 = vmatmul.mubr.f32.gmra.mrb[0].mxu0 %v1080
        %v2926 = vpop.f32.mrb[0].mxu0
        %v2927 = vadd.f32 0.0, %v2926
        %v2928 = vpop.f32.mrb[0].mxu0
        %v2929 = vadd.f32 0.0, %v2928
        %2930 = vmatprep.mubr.f32.mxu0 0.0
        %2931 = vmatmul.mubr.f32.gmra.mrb[0].mxu0 %v1083
        %v2932 = vpop.f32.mrb[0].mxu0
        %v2933 = vadd.f32 0.0, %v2932
        %v2934 = vpop.f32.mrb[0].mxu0
        %v2935 = vadd.f32 0.0, %v2934
        %2936 = vmatprep.mubr.f32.mxu0 0.0
        %2937 = vmatmul.mubr.f32.gmra.mrb[0].mxu0 %v1086
        %v2938 = vpop.f32.mrb[0].mxu0
        %v2939 = vadd.f32 0.0, %v2938
        %v2940 = vpop.f32.mrb[0].mxu0
        %v2941 = vadd.f32 0.0, %v2940
        %2942 = vmatprep.mubr.f32.mxu0 0.0
        %2943 = vmatmul.mubr.f32.gmra.mrb[0].mxu0 %v1089
        %v2944 = vpop.f32.mrb[0].mxu0
        %v2945 = vadd.f32 0.0, %v2944
        %v2946 = vpop.f32.mrb[0].mxu0
        %v2947 = vadd.f32 0.0, %v2946
        %2948 = vmatprep.mubr.f32.mxu0 0.0
        %2949 = vmatmul.mubr.f32.gmra.mrb[0].mxu0 %v1092
        %v2950 = vpop.f32.mrb[0].mxu0
        %v2951 = vadd.f32 0.0, %v2950
        %v2952 = vpop.f32.mrb[0].mxu0
        %v2953 = vadd.f32 0.0, %v2952
        %2954 = vmatprep.mubr.f32.mxu0 0.0
        %2955 = vmatmul.mubr.f32.gmra.mrb[0].mxu0 %v1095
        %v2956 = vpop.f32.mrb[0].mxu0
        %v2957 = vadd.f32 0.0, %v2956
        %v2958 = vpop.f32.mrb[0].mxu0
        %v2959 = vadd.f32 0.0, %v2958
        %2960 = vmatprep.mubr.f32.mxu0 0.0
        %2961 = vmatmul.mubr.f32.gmra.mrb[0].mxu0 %v1098
        %v2962 = vpop.f32.mrb[0].mxu0
        %v2963 = vadd.f32 0.0, %v2962
        %v2964 = vpop.f32.mrb[0].mxu0
        %v2965 = vadd.f32 0.0, %v2964
        %2966 = vmatprep.mubr.f32.mxu0 0.0
        %2967 = vmatmul.mubr.f32.gmra.mrb[0].mxu0 %v1101
        %v2968 = vpop.f32.mrb[0].mxu0
        %v2969 = vadd.f32 0.0, %v2968
        %v2970 = vpop.f32.mrb[0].mxu0
        %v2971 = vadd.f32 0.0, %v2970
        %2972 = vmatprep.mubr.f32.mxu0 0.0
        %2973 = vmatmul.mubr.f32.gmra.mrb[0].mxu0 %v1104
        %v2974 = vpop.f32.mrb[0].mxu0
        %v2975 = vadd.f32 0.0, %v2974
        %v2976 = vpop.f32.mrb[0].mxu0
        %v2977 = vadd.f32 0.0, %v2976
        %2978 = vmatprep.mubr.f32.mxu0 0.0
        %2979 = vmatmul.mubr.f32.gmra.mrb[0].mxu0 %v1107
        %v2980 = vpop.f32.mrb[0].mxu0
        %v2981 = vadd.f32 0.0, %v2980
        %v2982 = vpop.f32.mrb[0].mxu0
        %v2983 = vadd.f32 0.0, %v2982
        %2984 = vmatprep.mubr.f32.mxu0 0.0
        %2985 = vmatmul.mubr.f32.gmra.mrb[0].mxu0 %v1110
        %v2986 = vpop.f32.mrb[0].mxu0
        %v2987 = vadd.f32 0.0, %v2986
        %v2988 = vpop.f32.mrb[0].mxu0
        %v2989 = vadd.f32 0.0, %v2988
        %2990 = vmatprep.mubr.f32.mxu0 0.0
        %2991 = vmatmul.mubr.f32.gmra.mrb[0].mxu0 %v1113
        %v2992 = vpop.f32.mrb[0].mxu0
        %v2993 = vadd.f32 0.0, %v2992
        %v2994 = vpop.f32.mrb[0].mxu0
        %v2995 = vadd.f32 0.0, %v2994
        %2996 = vmatprep.mubr.f32.mxu0 0.0
        %2997 = vmatmul.mubr.f32.gmra.mrb[0].mxu0 %v1116
        %v2998 = vpop.f32.mrb[0].mxu0
        %v2999 = vadd.f32 0.0, %v2998
        %v3000 = vpop.f32.mrb[0].mxu0
        %v3001 = vadd.f32 0.0, %v3000
        %3002 = vmatprep.mubr.f32.mxu0 0.0
        %3003 = vmatmul.mubr.f32.gmra.mrb[0].mxu0 %v1119
        %v3004 = vpop.f32.mrb[0].mxu0
        %v3005 = vadd.f32 0.0, %v3004
        %v3006 = vpop.f32.mrb[0].mxu0
        %v3007 = vadd.f32 0.0, %v3006
        %3008 = vmatprep.mubr.f32.mxu0 0.0
        %3009 = vmatmul.mubr.f32.gmra.mrb[0].mxu0 %v1122
        %v3010 = vpop.f32.mrb[0].mxu0
        %v3011 = vadd.f32 0.0, %v3010
        %v3012 = vpop.f32.mrb[0].mxu0
        %v3013 = vadd.f32 0.0, %v3012
        %3014 = vmatprep.mubr.f32.mxu0 0.0
        %3015 = vmatmul.mubr.f32.gmra.mrb[0].mxu0 %v1125
        %v3016 = vpop.f32.mrb[0].mxu0
        %v3017 = vadd.f32 0.0, %v3016
        %v3018 = vpop.f32.mrb[0].mxu0
        %v3019 = vadd.f32 0.0, %v3018
        %3020 = vmatprep.mubr.f32.mxu0 0.0
        %3021 = vmatmul.mubr.f32.gmra.mrb[0].mxu0 %v1128
        %v3022 = vpop.f32.mrb[0].mxu0
        %v3023 = vadd.f32 0.0, %v3022
        %v3024 = vpop.f32.mrb[0].mxu0
        %v3025 = vadd.f32 0.0, %v3024
        %3026 = vmatprep.mubr.f32.mxu0 0.0
        %3027 = vmatmul.mubr.f32.gmra.mrb[0].mxu0 %v1131
        %v3028 = vpop.f32.mrb[0].mxu0
        %v3029 = vadd.f32 0.0, %v3028
        %v3030 = vpop.f32.mrb[0].mxu0
        %v3031 = vadd.f32 0.0, %v3030
        %3032 = vmatprep.mubr.f32.mxu0 0.0
        %3033 = vmatmul.mubr.f32.gmra.mrb[0].mxu0 %v1134
        %v3034 = vpop.f32.mrb[0].mxu0
        %v3035 = vadd.f32 0.0, %v3034
        %v3036 = vpop.f32.mrb[0].mxu0
        %v3037 = vadd.f32 0.0, %v3036
        %3038 = vmatprep.mubr.f32.mxu0 0.0
        %3039 = vmatmul.mubr.f32.gmra.mrb[0].mxu0 %v1137
        %v3040 = vpop.f32.mrb[0].mxu0
        %v3041 = vadd.f32 0.0, %v3040
        %v3042 = vpop.f32.mrb[0].mxu0
        %v3043 = vadd.f32 0.0, %v3042
        %3044 = vmatprep.mubr.f32.mxu0 0.0
        %3045 = vmatmul.mubr.f32.gmra.mrb[0].mxu0 %v1140
        %v3046 = vpop.f32.mrb[0].mxu0
        %v3047 = vadd.f32 0.0, %v3046
        %v3048 = vpop.f32.mrb[0].mxu0
        %v3049 = vadd.f32 0.0, %v3048
        %3050 = vmatprep.mubr.f32.mxu0 0.0
        %3051 = vmatmul.mubr.f32.gmra.mrb[0].mxu0 %v1143
        %v3052 = vpop.f32.mrb[0].mxu0
        %v3053 = vadd.f32 0.0, %v3052
        %v3054 = vpop.f32.mrb[0].mxu0
        %v3055 = vadd.f32 0.0, %v3054
        %3056 = vmatprep.mubr.f32.mxu0 0.0
        %3057 = vmatmul.mubr.f32.gmra.mrb[0].mxu0 %v1146
        %v3058 = vpop.f32.mrb[0].mxu0
        %v3059 = vadd.f32 0.0, %v3058
        %v3060 = vpop.f32.mrb[0].mxu0
        %v3061 = vadd.f32 0.0, %v3060
        %3062 = vmatprep.mubr.f32.mxu0 0.0
        %3063 = vmatmul.mubr.f32.gmra.mrb[0].mxu0 %v1149
        %v3064 = vpop.f32.mrb[0].mxu0
        %v3065 = vadd.f32 0.0, %v3064
        %v3066 = vpop.f32.mrb[0].mxu0
        %v3067 = vadd.f32 0.0, %v3066
        %3068 = vmatprep.mubr.f32.mxu0 0.0
        %3069 = vmatmul.mubr.f32.gmra.mrb[0].mxu0 %v1152
        %v3070 = vpop.f32.mrb[0].mxu0
        %v3071 = vadd.f32 0.0, %v3070
        %v3072 = vpop.f32.mrb[0].mxu0
        %v3073 = vadd.f32 0.0, %v3072
        %3074 = vmatprep.mubr.f32.mxu0 0.0
        %3075 = vmatmul.mubr.f32.gmra.mrb[0].mxu0 %v1155
        %v3076 = vpop.f32.mrb[0].mxu0
        %v3077 = vadd.f32 0.0, %v3076
        %v3078 = vpop.f32.mrb[0].mxu0
        %v3079 = vadd.f32 0.0, %v3078
        %3080 = vmatprep.mubr.f32.mxu0 0.0
        %3081 = vmatmul.mubr.f32.gmra.mrb[0].mxu0 %v1158
        %v3082 = vpop.f32.mrb[0].mxu0
        %v3083 = vadd.f32 0.0, %v3082
        %v3084 = vpop.f32.mrb[0].mxu0
        %v3085 = vadd.f32 0.0, %v3084
        %3086 = vmatprep.mubr.f32.mxu0 0.0
        %3087 = vmatmul.mubr.f32.gmra.mrb[0].mxu0 %v1802
        %v3088 = vpop.f32.mrb[0].mxu0
        %v3089 = vadd.f32 0.0, %v3088
        %v3090 = vpop.f32.mrb[0].mxu0
        %v3091 = vadd.f32 0.0, %v3090
        %3092 = vmatprep.mubr.f32.mxu0 0.0
        %3093 = vmatmul.mubr.f32.gmra.mrb[0].mxu0 %v1802
        %v3094 = vpop.f32.mrb[0].mxu0
        %v3095 = vadd.f32 0.0, %v3094
        %v3096 = vpop.f32.mrb[0].mxu0
        %v3097 = vadd.f32 0.0, %v3096
        %3098 = vdwg.mxu0
        %v3099 = vadd.f32 %v1871, %v2525
        %v3100 = vadd.f32 %v1873, %v2527
        %v3101 = vadd.f32 %v1877, %v2531
        %v3102 = vadd.f32 %v1879, %v2533
        %v3103 = vadd.f32 %v1883, %v2537
        %v3104 = vadd.f32 %v1885, %v2539
        %v3105 = vadd.f32 %v1889, %v2543
        %v3106 = vadd.f32 %v1891, %v2545
        %v3107 = vadd.f32 %v1895, %v2549
        %v3108 = vadd.f32 %v1897, %v2551
        %v3109 = vadd.f32 %v1901, %v2555
        %v3110 = vadd.f32 %v1903, %v2557
        %v3111 = vadd.f32 %v1907, %v2561
        %v3112 = vadd.f32 %v1909, %v2563
        %v3113 = vadd.f32 %v1913, %v2567
        %v3114 = vadd.f32 %v1915, %v2569
        %v3115 = vadd.f32 %v1919, %v2573
        %v3116 = vadd.f32 %v1921, %v2575
        %v3117 = vadd.f32 %v1925, %v2579
        %v3118 = vadd.f32 %v1927, %v2581
        %v3119 = vadd.f32 %v1931, %v2585
        %v3120 = vadd.f32 %v1933, %v2587
        %v3121 = vadd.f32 %v1937, %v2591
        %v3122 = vadd.f32 %v1939, %v2593
        %v3123 = vadd.f32 %v1943, %v2597
        %v3124 = vadd.f32 %v1945, %v2599
        %v3125 = vadd.f32 %v1949, %v2603
        %v3126 = vadd.f32 %v1951, %v2605
        %v3127 = vadd.f32 %v1955, %v2609
        %v3128 = vadd.f32 %v1957, %v2611
        %v3129 = vadd.f32 %v1961, %v2615
        %v3130 = vadd.f32 %v1963, %v2617
        %v3131 = vadd.f32 %v1967, %v2621
        %v3132 = vadd.f32 %v1969, %v2623
        %v3133 = vadd.f32 %v1973, %v2627
        %v3134 = vadd.f32 %v1975, %v2629
        %v3135 = vadd.f32 %v1979, %v2633
        %v3136 = vadd.f32 %v1981, %v2635
        %v3137 = vadd.f32 %v1985, %v2639
        %v3138 = vadd.f32 %v1987, %v2641
        %v3139 = vadd.f32 %v1991, %v2645
        %v3140 = vadd.f32 %v1993, %v2647
        %v3141 = vadd.f32 %v1997, %v2651
        %v3142 = vadd.f32 %v1999, %v2653
        %v3143 = vadd.f32 %v2003, %v2657
        %v3144 = vadd.f32 %v2005, %v2659
        %v3145 = vadd.f32 %v2009, %v2663
        %v3146 = vadd.f32 %v2011, %v2665
        %v3147 = vadd.f32 %v2015, %v2669
        %v3148 = vadd.f32 %v2017, %v2671
        %v3149 = vadd.f32 %v2021, %v2675
        %v3150 = vadd.f32 %v2023, %v2677
        %v3151 = vadd.f32 %v2027, %v2681
        %v3152 = vadd.f32 %v2029, %v2683
        %v3153 = vadd.f32 %v2033, %v2687
        %v3154 = vadd.f32 %v2035, %v2689
        %v3155 = vadd.f32 %v2039, %v2693
        %v3156 = vadd.f32 %v2041, %v2695
        %v3157 = vadd.f32 %v2045, %v2699
        %v3158 = vadd.f32 %v2047, %v2701
        %v3159 = vadd.f32 %v2051, %v2705
        %v3160 = vadd.f32 %v2053, %v2707
        %v3161 = vadd.f32 %v2057, %v2711
        %v3162 = vadd.f32 %v2059, %v2713
        %v3163 = vadd.f32 %v2063, %v2717
        %v3164 = vadd.f32 %v2065, %v2719
        %v3165 = vadd.f32 %v2069, %v2723
        %v3166 = vadd.f32 %v2071, %v2725
        %v3167 = vadd.f32 %v2075, %v2729
        %v3168 = vadd.f32 %v2077, %v2731
        %v3169 = vadd.f32 %v2081, %v2735
        %v3170 = vadd.f32 %v2083, %v2737
        %v3171 = vadd.f32 %v2087, %v2741
        %v3172 = vadd.f32 %v2089, %v2743
        %v3173 = vadd.f32 %v2093, %v2747
        %v3174 = vadd.f32 %v2095, %v2749
        %v3175 = vadd.f32 %v2099, %v2753
        %v3176 = vadd.f32 %v2101, %v2755
        %v3177 = vadd.f32 %v2105, %v2759
        %v3178 = vadd.f32 %v2107, %v2761
        %v3179 = vadd.f32 %v2111, %v2765
        %v3180 = vadd.f32 %v2113, %v2767
        %v3181 = vadd.f32 %v2117, %v2771
        %v3182 = vadd.f32 %v2119, %v2773
        %v3183 = vadd.f32 %v2123, %v2777
        %v3184 = vadd.f32 %v2125, %v2779
        %v3185 = vadd.f32 %v2129, %v2783
        %v3186 = vadd.f32 %v2131, %v2785
        %v3187 = vadd.f32 %v2135, %v2789
        %v3188 = vadd.f32 %v2137, %v2791
        %v3189 = vadd.f32 %v2141, %v2795
        %v3190 = vadd.f32 %v2143, %v2797
        %v3191 = vadd.f32 %v2147, %v2801
        %v3192 = vadd.f32 %v2149, %v2803
        %v3193 = vadd.f32 %v2153, %v2807
        %v3194 = vadd.f32 %v2155, %v2809
        %v3195 = vadd.f32 %v2159, %v2813
        %v3196 = vadd.f32 %v2161, %v2815
        %v3197 = vadd.f32 %v2165, %v2819
        %v3198 = vadd.f32 %v2167, %v2821
        %v3199 = vadd.f32 %v2171, %v2825
        %v3200 = vadd.f32 %v2173, %v2827
        %v3201 = vadd.f32 %v2177, %v2831
        %v3202 = vadd.f32 %v2179, %v2833
        %v3203 = vadd.f32 %v2183, %v2837
        %v3204 = vadd.f32 %v2185, %v2839
        %v3205 = vadd.f32 %v2189, %v2843
        %v3206 = vadd.f32 %v2191, %v2845
        %v3207 = vadd.f32 %v2195, %v2849
        %v3208 = vadd.f32 %v2197, %v2851
        %v3209 = vadd.f32 %v2201, %v2855
        %v3210 = vadd.f32 %v2203, %v2857
        %v3211 = vadd.f32 %v2207, %v2861
        %v3212 = vadd.f32 %v2209, %v2863
        %v3213 = vadd.f32 %v2213, %v2867
        %v3214 = vadd.f32 %v2215, %v2869
        %v3215 = vadd.f32 %v2219, %v2873
        %v3216 = vadd.f32 %v2221, %v2875
        %v3217 = vadd.f32 %v2225, %v2879
        %v3218 = vadd.f32 %v2227, %v2881
        %v3219 = vadd.f32 %v2231, %v2885
        %v3220 = vadd.f32 %v2233, %v2887
        %v3221 = vadd.f32 %v2237, %v2891
        %v3222 = vadd.f32 %v2239, %v2893
        %v3223 = vadd.f32 %v2243, %v2897
        %v3224 = vadd.f32 %v2245, %v2899
        %v3225 = vadd.f32 %v2249, %v2903
        %v3226 = vadd.f32 %v2251, %v2905
        %v3227 = vadd.f32 %v2255, %v2909
        %v3228 = vadd.f32 %v2257, %v2911
        %v3229 = vadd.f32 %v2261, %v2915
        %v3230 = vadd.f32 %v2263, %v2917
        %v3231 = vadd.f32 %v2267, %v2921
        %v3232 = vadd.f32 %v2269, %v2923
        %v3233 = vadd.f32 %v2273, %v2927
        %v3234 = vadd.f32 %v2275, %v2929
        %v3235 = vadd.f32 %v2279, %v2933
        %v3236 = vadd.f32 %v2281, %v2935
        %v3237 = vadd.f32 %v2285, %v2939
        %v3238 = vadd.f32 %v2287, %v2941
        %v3239 = vadd.f32 %v2291, %v2945
        %v3240 = vadd.f32 %v2293, %v2947
        %v3241 = vadd.f32 %v2297, %v2951
        %v3242 = vadd.f32 %v2299, %v2953
        %v3243 = vadd.f32 %v2303, %v2957
        %v3244 = vadd.f32 %v2305, %v2959
        %v3245 = vadd.f32 %v2309, %v2963
        %v3246 = vadd.f32 %v2311, %v2965
        %v3247 = vadd.f32 %v2315, %v2969
        %v3248 = vadd.f32 %v2317, %v2971
        %v3249 = vadd.f32 %v2321, %v2975
        %v3250 = vadd.f32 %v2323, %v2977
        %v3251 = vadd.f32 %v2327, %v2981
        %v3252 = vadd.f32 %v2329, %v2983
        %v3253 = vadd.f32 %v2333, %v2987
        %v3254 = vadd.f32 %v2335, %v2989
        %v3255 = vadd.f32 %v2339, %v2993
        %v3256 = vadd.f32 %v2341, %v2995
        %v3257 = vadd.f32 %v2345, %v2999
        %v3258 = vadd.f32 %v2347, %v3001
        %v3259 = vadd.f32 %v2351, %v3005
        %v3260 = vadd.f32 %v2353, %v3007
        %v3261 = vadd.f32 %v2357, %v3011
        %v3262 = vadd.f32 %v2359, %v3013
        %v3263 = vadd.f32 %v2363, %v3017
        %v3264 = vadd.f32 %v2365, %v3019
        %v3265 = vadd.f32 %v2369, %v3023
        %v3266 = vadd.f32 %v2371, %v3025
        %v3267 = vadd.f32 %v2375, %v3029
        %v3268 = vadd.f32 %v2377, %v3031
        %v3269 = vadd.f32 %v2381, %v3035
        %v3270 = vadd.f32 %v2383, %v3037
        %v3271 = vadd.f32 %v2387, %v3041
        %v3272 = vadd.f32 %v2389, %v3043
        %v3273 = vadd.f32 %v2393, %v3047
        %v3274 = vadd.f32 %v2395, %v3049
        %v3275 = vadd.f32 %v2399, %v3053
        %v3276 = vadd.f32 %v2401, %v3055
        %v3277 = vadd.f32 %v2405, %v3059
        %v3278 = vadd.f32 %v2407, %v3061
        %v3279 = vadd.f32 %v2411, %v3065
        %v3280 = vadd.f32 %v2413, %v3067
        %v3281 = vadd.f32 %v2417, %v3071
        %v3282 = vadd.f32 %v2419, %v3073
        %v3283 = vadd.f32 %v2423, %v3077
        %v3284 = vadd.f32 %v2425, %v3079
        %v3285 = vadd.f32 %v2429, %v3083
        %v3286 = vadd.f32 %v2431, %v3085
        %v3287 = vadd.f32 %v2435, %v3089
        %v3288 = vadd.f32 %v2437, %v3091
        %v3289 = vadd.f32 %v2441, %v3095
        %v3290 = vadd.f32 %v2443, %v3097
        %v3291 = vld [vmem:[%s8] ss:$8 sm:$0x3]
        %v3293 = vlaneseq
        %v3294 = vshrl.u32 %v3293, 7
        %v3295 = vsub.s32 0, %v3294
        %v3296 = vrot.slane %v3291, %v3295
        %v3297 = vlaneseq
        %v3298 = vshrl.u32 %v3297, 7
        %v3299 = vsub.s32 1, %v3298
        %v3300 = vrot.slane %v3291, %v3299
        %v3303 = vadd.f32 %v3099, %v3296
        %v3304 = vadd.f32 %v3100, %v3300
        %v3305 = vadd.f32 %v3101, %v3296
        %v3306 = vadd.f32 %v3102, %v3300
        %v3307 = vadd.f32 %v3103, %v3296
        %v3308 = vadd.f32 %v3104, %v3300
        %v3309 = vadd.f32 %v3105, %v3296
        %v3310 = vadd.f32 %v3106, %v3300
        %v3311 = vadd.f32 %v3107, %v3296
        %v3312 = vadd.f32 %v3108, %v3300
        %v3313 = vadd.f32 %v3109, %v3296
        %v3314 = vadd.f32 %v3110, %v3300
        %v3315 = vadd.f32 %v3111, %v3296
        %v3316 = vadd.f32 %v3112, %v3300
        %v3317 = vadd.f32 %v3113, %v3296
        %v3318 = vadd.f32 %v3114, %v3300
        %v3319 = vadd.f32 %v3115, %v3296
        %v3320 = vadd.f32 %v3116, %v3300
        %v3321 = vadd.f32 %v3117, %v3296
        %v3322 = vadd.f32 %v3118, %v3300
        %v3323 = vadd.f32 %v3119, %v3296
        %v3324 = vadd.f32 %v3120, %v3300
        %v3325 = vadd.f32 %v3121, %v3296
        %v3326 = vadd.f32 %v3122, %v3300
        %v3327 = vadd.f32 %v3123, %v3296
        %v3328 = vadd.f32 %v3124, %v3300
        %v3329 = vadd.f32 %v3125, %v3296
        %v3330 = vadd.f32 %v3126, %v3300
        %v3331 = vadd.f32 %v3127, %v3296
        %v3332 = vadd.f32 %v3128, %v3300
        %v3333 = vadd.f32 %v3129, %v3296
        %v3334 = vadd.f32 %v3130, %v3300
        %v3335 = vadd.f32 %v3131, %v3296
        %v3336 = vadd.f32 %v3132, %v3300
        %v3337 = vadd.f32 %v3133, %v3296
        %v3338 = vadd.f32 %v3134, %v3300
        %v3339 = vadd.f32 %v3135, %v3296
        %v3340 = vadd.f32 %v3136, %v3300
        %v3341 = vadd.f32 %v3137, %v3296
        %v3342 = vadd.f32 %v3138, %v3300
        %v3343 = vadd.f32 %v3139, %v3296
        %v3344 = vadd.f32 %v3140, %v3300
        %v3345 = vadd.f32 %v3141, %v3296
        %v3346 = vadd.f32 %v3142, %v3300
        %v3347 = vadd.f32 %v3143, %v3296
        %v3348 = vadd.f32 %v3144, %v3300
        %v3349 = vadd.f32 %v3145, %v3296
        %v3350 = vadd.f32 %v3146, %v3300
        %v3351 = vadd.f32 %v3147, %v3296
        %v3352 = vadd.f32 %v3148, %v3300
        %v3353 = vadd.f32 %v3149, %v3296
        %v3354 = vadd.f32 %v3150, %v3300
        %v3355 = vadd.f32 %v3151, %v3296
        %v3356 = vadd.f32 %v3152, %v3300
        %v3357 = vadd.f32 %v3153, %v3296
        %v3358 = vadd.f32 %v3154, %v3300
        %v3359 = vadd.f32 %v3155, %v3296
        %v3360 = vadd.f32 %v3156, %v3300
        %v3361 = vadd.f32 %v3157, %v3296
        %v3362 = vadd.f32 %v3158, %v3300
        %v3363 = vadd.f32 %v3159, %v3296
        %v3364 = vadd.f32 %v3160, %v3300
        %v3365 = vadd.f32 %v3161, %v3296
        %v3366 = vadd.f32 %v3162, %v3300
        %v3367 = vadd.f32 %v3163, %v3296
        %v3368 = vadd.f32 %v3164, %v3300
        %v3369 = vadd.f32 %v3165, %v3296
        %v3370 = vadd.f32 %v3166, %v3300
        %v3371 = vadd.f32 %v3167, %v3296
        %v3372 = vadd.f32 %v3168, %v3300
        %v3373 = vadd.f32 %v3169, %v3296
        %v3374 = vadd.f32 %v3170, %v3300
        %v3375 = vadd.f32 %v3171, %v3296
        %v3376 = vadd.f32 %v3172, %v3300
        %v3377 = vadd.f32 %v3173, %v3296
        %v3378 = vadd.f32 %v3174, %v3300
        %v3379 = vadd.f32 %v3175, %v3296
        %v3380 = vadd.f32 %v3176, %v3300
        %v3381 = vadd.f32 %v3177, %v3296
        %v3382 = vadd.f32 %v3178, %v3300
        %v3383 = vadd.f32 %v3179, %v3296
        %v3384 = vadd.f32 %v3180, %v3300
        %v3385 = vadd.f32 %v3181, %v3296
        %v3386 = vadd.f32 %v3182, %v3300
        %v3387 = vadd.f32 %v3183, %v3296
        %v3388 = vadd.f32 %v3184, %v3300
        %v3389 = vadd.f32 %v3185, %v3296
        %v3390 = vadd.f32 %v3186, %v3300
        %v3391 = vadd.f32 %v3187, %v3296
        %v3392 = vadd.f32 %v3188, %v3300
        %v3393 = vadd.f32 %v3189, %v3296
        %v3394 = vadd.f32 %v3190, %v3300
        %v3395 = vadd.f32 %v3191, %v3296
        %v3396 = vadd.f32 %v3192, %v3300
        %v3397 = vadd.f32 %v3193, %v3296
        %v3398 = vadd.f32 %v3194, %v3300
        %v3399 = vadd.f32 %v3195, %v3296
        %v3400 = vadd.f32 %v3196, %v3300
        %v3401 = vadd.f32 %v3197, %v3296
        %v3402 = vadd.f32 %v3198, %v3300
        %v3403 = vadd.f32 %v3199, %v3296
        %v3404 = vadd.f32 %v3200, %v3300
        %v3405 = vadd.f32 %v3201, %v3296
        %v3406 = vadd.f32 %v3202, %v3300
        %v3407 = vadd.f32 %v3203, %v3296
        %v3408 = vadd.f32 %v3204, %v3300
        %v3409 = vadd.f32 %v3205, %v3296
        %v3410 = vadd.f32 %v3206, %v3300
        %v3411 = vadd.f32 %v3207, %v3296
        %v3412 = vadd.f32 %v3208, %v3300
        %v3413 = vadd.f32 %v3209, %v3296
        %v3414 = vadd.f32 %v3210, %v3300
        %v3415 = vadd.f32 %v3211, %v3296
        %v3416 = vadd.f32 %v3212, %v3300
        %v3417 = vadd.f32 %v3213, %v3296
        %v3418 = vadd.f32 %v3214, %v3300
        %v3419 = vadd.f32 %v3215, %v3296
        %v3420 = vadd.f32 %v3216, %v3300
        %v3421 = vadd.f32 %v3217, %v3296
        %v3422 = vadd.f32 %v3218, %v3300
        %v3423 = vadd.f32 %v3219, %v3296
        %v3424 = vadd.f32 %v3220, %v3300
        %v3425 = vadd.f32 %v3221, %v3296
        %v3426 = vadd.f32 %v3222, %v3300
        %v3427 = vadd.f32 %v3223, %v3296
        %v3428 = vadd.f32 %v3224, %v3300
        %v3429 = vadd.f32 %v3225, %v3296
        %v3430 = vadd.f32 %v3226, %v3300
        %v3431 = vadd.f32 %v3227, %v3296
        %v3432 = vadd.f32 %v3228, %v3300
        %v3433 = vadd.f32 %v3229, %v3296
        %v3434 = vadd.f32 %v3230, %v3300
        %v3435 = vadd.f32 %v3231, %v3296
        %v3436 = vadd.f32 %v3232, %v3300
        %v3437 = vadd.f32 %v3233, %v3296
        %v3438 = vadd.f32 %v3234, %v3300
        %v3439 = vadd.f32 %v3235, %v3296
        %v3440 = vadd.f32 %v3236, %v3300
        %v3441 = vadd.f32 %v3237, %v3296
        %v3442 = vadd.f32 %v3238, %v3300
        %v3443 = vadd.f32 %v3239, %v3296
        %v3444 = vadd.f32 %v3240, %v3300
        %v3445 = vadd.f32 %v3241, %v3296
        %v3446 = vadd.f32 %v3242, %v3300
        %v3447 = vadd.f32 %v3243, %v3296
        %v3448 = vadd.f32 %v3244, %v3300
        %v3449 = vadd.f32 %v3245, %v3296
        %v3450 = vadd.f32 %v3246, %v3300
        %v3451 = vadd.f32 %v3247, %v3296
        %v3452 = vadd.f32 %v3248, %v3300
        %v3453 = vadd.f32 %v3249, %v3296
        %v3454 = vadd.f32 %v3250, %v3300
        %v3455 = vadd.f32 %v3251, %v3296
        %v3456 = vadd.f32 %v3252, %v3300
        %v3457 = vadd.f32 %v3253, %v3296
        %v3458 = vadd.f32 %v3254, %v3300
        %v3459 = vadd.f32 %v3255, %v3296
        %v3460 = vadd.f32 %v3256, %v3300
        %v3461 = vadd.f32 %v3257, %v3296
        %v3462 = vadd.f32 %v3258, %v3300
        %v3463 = vadd.f32 %v3259, %v3296
        %v3464 = vadd.f32 %v3260, %v3300
        %v3465 = vadd.f32 %v3261, %v3296
        %v3466 = vadd.f32 %v3262, %v3300
        %v3467 = vadd.f32 %v3263, %v3296
        %v3468 = vadd.f32 %v3264, %v3300
        %v3469 = vadd.f32 %v3265, %v3296
        %v3470 = vadd.f32 %v3266, %v3300
        %v3471 = vadd.f32 %v3267, %v3296
        %v3472 = vadd.f32 %v3268, %v3300
        %v3473 = vadd.f32 %v3269, %v3296
        %v3474 = vadd.f32 %v3270, %v3300
        %v3475 = vadd.f32 %v3271, %v3296
        %v3476 = vadd.f32 %v3272, %v3300
        %v3477 = vadd.f32 %v3273, %v3296
        %v3478 = vadd.f32 %v3274, %v3300
        %v3479 = vadd.f32 %v3275, %v3296
        %v3480 = vadd.f32 %v3276, %v3300
        %v3481 = vadd.f32 %v3277, %v3296
        %v3482 = vadd.f32 %v3278, %v3300
        %v3483 = vadd.f32 %v3279, %v3296
        %v3484 = vadd.f32 %v3280, %v3300
        %v3485 = vadd.f32 %v3281, %v3296
        %v3486 = vadd.f32 %v3282, %v3300
        %v3487 = vadd.f32 %v3283, %v3296
        %v3488 = vadd.f32 %v3284, %v3300
        %v3489 = vadd.f32 %v3285, %v3296
        %v3490 = vadd.f32 %v3286, %v3300
        %v3491 = vadd.f32 %v3287, %v3296
        %v3492 = vadd.f32 %v3288, %v3300
        %v3493 = vadd.f32 %v3289, %v3296
        %v3494 = vadd.f32 %v3290, %v3300
        %v3495 = vtanh.pop %v3303
        %v3496 = vtanh.pop %v3304
        %v3497 = vtanh.pop %v3305
        %v3498 = vtanh.pop %v3306
        %v3499 = vtanh.pop %v3307
        %v3500 = vtanh.pop %v3308
        %v3501 = vtanh.pop %v3309
        %v3502 = vtanh.pop %v3310
        %v3503 = vtanh.pop %v3311
        %v3504 = vtanh.pop %v3312
        %v3505 = vtanh.pop %v3313
        %v3506 = vtanh.pop %v3314
        %v3507 = vtanh.pop %v3315
        %v3508 = vtanh.pop %v3316
        %v3509 = vtanh.pop %v3317
        %v3510 = vtanh.pop %v3318
        %v3511 = vtanh.pop %v3319
        %v3512 = vtanh.pop %v3320
        %v3513 = vtanh.pop %v3321
        %v3514 = vtanh.pop %v3322
        %v3515 = vtanh.pop %v3323
        %v3516 = vtanh.pop %v3324
        %v3517 = vtanh.pop %v3325
        %v3518 = vtanh.pop %v3326
        %v3519 = vtanh.pop %v3327
        %v3520 = vtanh.pop %v3328
        %v3521 = vtanh.pop %v3329
        %v3522 = vtanh.pop %v3330
        %v3523 = vtanh.pop %v3331
        %v3524 = vtanh.pop %v3332
        %v3525 = vtanh.pop %v3333
        %v3526 = vtanh.pop %v3334
        %v3527 = vtanh.pop %v3335
        %v3528 = vtanh.pop %v3336
        %v3529 = vtanh.pop %v3337
        %v3530 = vtanh.pop %v3338
        %v3531 = vtanh.pop %v3339
        %v3532 = vtanh.pop %v3340
        %v3533 = vtanh.pop %v3341
        %v3534 = vtanh.pop %v3342
        %v3535 = vtanh.pop %v3343
        %v3536 = vtanh.pop %v3344
        %v3537 = vtanh.pop %v3345
        %v3538 = vtanh.pop %v3346
        %v3539 = vtanh.pop %v3347
        %v3540 = vtanh.pop %v3348
        %v3541 = vtanh.pop %v3349
        %v3542 = vtanh.pop %v3350
        %v3543 = vtanh.pop %v3351
        %v3544 = vtanh.pop %v3352
        %v3545 = vtanh.pop %v3353
        %v3546 = vtanh.pop %v3354
        %v3547 = vtanh.pop %v3355
        %v3548 = vtanh.pop %v3356
        %v3549 = vtanh.pop %v3357
        %v3550 = vtanh.pop %v3358
        %v3551 = vtanh.pop %v3359
        %v3552 = vtanh.pop %v3360
        %v3553 = vtanh.pop %v3361
        %v3554 = vtanh.pop %v3362
        %v3555 = vtanh.pop %v3363
        %v3556 = vtanh.pop %v3364
        %v3557 = vtanh.pop %v3365
        %v3558 = vtanh.pop %v3366
        %v3559 = vtanh.pop %v3367
        %v3560 = vtanh.pop %v3368
        %v3561 = vtanh.pop %v3369
        %v3562 = vtanh.pop %v3370
        %v3563 = vtanh.pop %v3371
        %v3564 = vtanh.pop %v3372
        %v3565 = vtanh.pop %v3373
        %v3566 = vtanh.pop %v3374
        %v3567 = vtanh.pop %v3375
        %v3568 = vtanh.pop %v3376
        %v3569 = vtanh.pop %v3377
        %v3570 = vtanh.pop %v3378
        %v3571 = vtanh.pop %v3379
        %v3572 = vtanh.pop %v3380
        %v3573 = vtanh.pop %v3381
        %v3574 = vtanh.pop %v3382
        %v3575 = vtanh.pop %v3383
        %v3576 = vtanh.pop %v3384
        %v3577 = vtanh.pop %v3385
        %v3578 = vtanh.pop %v3386
        %v3579 = vtanh.pop %v3387
        %v3580 = vtanh.pop %v3388
        %v3581 = vtanh.pop %v3389
        %v3582 = vtanh.pop %v3390
        %v3583 = vtanh.pop %v3391
        %v3584 = vtanh.pop %v3392
        %v3585 = vtanh.pop %v3393
        %v3586 = vtanh.pop %v3394
        %v3587 = vtanh.pop %v3395
        %v3588 = vtanh.pop %v3396
        %v3589 = vtanh.pop %v3397
        %v3590 = vtanh.pop %v3398
        %v3591 = vtanh.pop %v3399
        %v3592 = vtanh.pop %v3400
        %v3593 = vtanh.pop %v3401
        %v3594 = vtanh.pop %v3402
        %v3595 = vtanh.pop %v3403
        %v3596 = vtanh.pop %v3404
        %v3597 = vtanh.pop %v3405
        %v3598 = vtanh.pop %v3406
        %v3599 = vtanh.pop %v3407
        %v3600 = vtanh.pop %v3408
        %v3601 = vtanh.pop %v3409
        %v3602 = vtanh.pop %v3410
        %v3603 = vtanh.pop %v3411
        %v3604 = vtanh.pop %v3412
        %v3605 = vtanh.pop %v3413
        %v3606 = vtanh.pop %v3414
        %v3607 = vtanh.pop %v3415
        %v3608 = vtanh.pop %v3416
        %v3609 = vtanh.pop %v3417
        %v3610 = vtanh.pop %v3418
        %v3611 = vtanh.pop %v3419
        %v3612 = vtanh.pop %v3420
        %v3613 = vtanh.pop %v3421
        %v3614 = vtanh.pop %v3422
        %v3615 = vtanh.pop %v3423
        %v3616 = vtanh.pop %v3424
        %v3617 = vtanh.pop %v3425
        %v3618 = vtanh.pop %v3426
        %v3619 = vtanh.pop %v3427
        %v3620 = vtanh.pop %v3428
        %v3621 = vtanh.pop %v3429
        %v3622 = vtanh.pop %v3430
        %v3623 = vtanh.pop %v3431
        %v3624 = vtanh.pop %v3432
        %v3625 = vtanh.pop %v3433
        %v3626 = vtanh.pop %v3434
        %v3627 = vtanh.pop %v3435
        %v3628 = vtanh.pop %v3436
        %v3629 = vtanh.pop %v3437
        %v3630 = vtanh.pop %v3438
        %v3631 = vtanh.pop %v3439
        %v3632 = vtanh.pop %v3440
        %v3633 = vtanh.pop %v3441
        %v3634 = vtanh.pop %v3442
        %v3635 = vtanh.pop %v3443
        %v3636 = vtanh.pop %v3444
        %v3637 = vtanh.pop %v3445
        %v3638 = vtanh.pop %v3446
        %v3639 = vtanh.pop %v3447
        %v3640 = vtanh.pop %v3448
        %v3641 = vtanh.pop %v3449
        %v3642 = vtanh.pop %v3450
        %v3643 = vtanh.pop %v3451
        %v3644 = vtanh.pop %v3452
        %v3645 = vtanh.pop %v3453
        %v3646 = vtanh.pop %v3454
        %v3647 = vtanh.pop %v3455
        %v3648 = vtanh.pop %v3456
        %v3649 = vtanh.pop %v3457
        %v3650 = vtanh.pop %v3458
        %v3651 = vtanh.pop %v3459
        %v3652 = vtanh.pop %v3460
        %v3653 = vtanh.pop %v3461
        %v3654 = vtanh.pop %v3462
        %v3655 = vtanh.pop %v3463
        %v3656 = vtanh.pop %v3464
        %v3657 = vtanh.pop %v3465
        %v3658 = vtanh.pop %v3466
        %v3659 = vtanh.pop %v3467
        %v3660 = vtanh.pop %v3468
        %v3661 = vtanh.pop %v3469
        %v3662 = vtanh.pop %v3470
        %v3663 = vtanh.pop %v3471
        %v3664 = vtanh.pop %v3472
        %v3665 = vtanh.pop %v3473
        %v3666 = vtanh.pop %v3474
        %v3667 = vtanh.pop %v3475
        %v3668 = vtanh.pop %v3476
        %v3669 = vtanh.pop %v3477
        %v3670 = vtanh.pop %v3478
        %v3671 = vtanh.pop %v3479
        %v3672 = vtanh.pop %v3480
        %v3673 = vtanh.pop %v3481
        %v3674 = vtanh.pop %v3482
        %v3675 = vtanh.pop %v3483
        %v3676 = vtanh.pop %v3484
        %v3677 = vtanh.pop %v3485
        %v3678 = vtanh.pop %v3486
        %v3679 = vtanh.pop %v3487
        %v3680 = vtanh.pop %v3488
        %v3681 = vtanh.pop %v3489
        %v3682 = vtanh.pop %v3490
        %v3683 = vtanh.pop %v3491
        %v3684 = vtanh.pop %v3492
        %v3685 = vtanh.pop %v3493
        %v3686 = vtanh.pop %v3494
        %v3687 = vld [vmem:[%s2] sm:$0xff]
        %v3688 = vld [vmem:[%s2 + $0x8] sm:$0xff]
        %v3689 = vld [vmem:[%s2 + $0x10] sm:$0xff]
        %v3690 = vld [vmem:[%s2 + $0x18] sm:$0xff]
        %v3691 = vld [vmem:[%s2 + $0x20] sm:$0xff]
        %v3692 = vld [vmem:[%s2 + $0x28] sm:$0xff]
        %v3693 = vld [vmem:[%s2 + $0x30] sm:$0xff]
        %v3694 = vld [vmem:[%s2 + $0x38] sm:$0xff]
        %v3695 = vld [vmem:[%s2 + $0x40] sm:$0xff]
        %v3696 = vld [vmem:[%s2 + $0x48] sm:$0xff]
        %v3697 = vld [vmem:[%s2 + $0x50] sm:$0xff]
        %v3698 = vld [vmem:[%s2 + $0x58] sm:$0xff]
        %v3699 = vld [vmem:[%s2 + $0x60] sm:$0xff]
        %v3700 = vld [vmem:[%s2 + $0x68] sm:$0xff]
        %v3701 = vld [vmem:[%s2 + $0x70] sm:$0xff]
        %v3702 = vld [vmem:[%s2 + $0x78] sm:$0xff]
        %v3703 = vld [vmem:[%s2 + $0x80] sm:$0xff]
        %v3704 = vld [vmem:[%s2 + $0x88] sm:$0xff]
        %v3705 = vld [vmem:[%s2 + $0x90] sm:$0xff]
        %v3706 = vld [vmem:[%s2 + $0x98] sm:$0xff]
        %v3707 = vld [vmem:[%s2 + $0xa0] sm:$0xff]
        %v3708 = vld [vmem:[%s2 + $0xa8] sm:$0xff]
        %v3709 = vld [vmem:[%s2 + $0xb0] sm:$0xff]
        %v3710 = vld [vmem:[%s2 + $0xb8] sm:$0xff]
        %v3711 = vld [vmem:[%s2 + $0xc0] sm:$0xff]
        %v3712 = vld [vmem:[%s2 + $0xc8] sm:$0xff]
        %v3713 = vld [vmem:[%s2 + $0xd0] sm:$0xff]
        %v3714 = vld [vmem:[%s2 + $0xd8] sm:$0xff]
        %v3715 = vld [vmem:[%s2 + $0xe0] sm:$0xff]
        %v3716 = vld [vmem:[%s2 + $0xe8] sm:$0xff]
        %v3717 = vld [vmem:[%s2 + $0xf0] sm:$0xff]
        %v3718 = vld [vmem:[%s2 + $0xf8] sm:$0xff]
        %v3719 = vld [vmem:[%s2 + $0x100] sm:$0xff]
        %v3720 = vld [vmem:[%s2 + $0x108] sm:$0xff]
        %v3721 = vld [vmem:[%s2 + $0x110] sm:$0xff]
        %v3722 = vld [vmem:[%s2 + $0x118] sm:$0xff]
        %v3723 = vld [vmem:[%s2 + $0x120] sm:$0xff]
        %v3724 = vld [vmem:[%s2 + $0x128] sm:$0xff]
        %v3725 = vld [vmem:[%s2 + $0x130] sm:$0xff]
        %v3726 = vld [vmem:[%s2 + $0x138] sm:$0xff]
        %v3727 = vld [vmem:[%s2 + $0x140] sm:$0xff]
        %v3728 = vld [vmem:[%s2 + $0x148] sm:$0xff]
        %v3729 = vld [vmem:[%s2 + $0x150] sm:$0xff]
        %v3730 = vld [vmem:[%s2 + $0x158] sm:$0xff]
        %v3731 = vld [vmem:[%s2 + $0x160] sm:$0xff]
        %v3732 = vld [vmem:[%s2 + $0x168] sm:$0xff]
        %v3733 = vld [vmem:[%s2 + $0x170] sm:$0xff]
        %v3734 = vld [vmem:[%s2 + $0x178] sm:$0xff]
        %s3735 = scalar_lea.vmem %s2, 384
        %v3736 = vld [vmem:[%s3735] sm:$0xff]
        %v3737 = vld [vmem:[%s3735 + $0x8] sm:$0xff]
        %v3738 = vld [vmem:[%s3735 + $0x10] sm:$0xff]
        %v3739 = vld [vmem:[%s3735 + $0x18] sm:$0xff]
        %v3740 = vld [vmem:[%s3735 + $0x20] sm:$0xff]
        %v3741 = vld [vmem:[%s3735 + $0x28] sm:$0xff]
        %v3742 = vld [vmem:[%s3735 + $0x30] sm:$0xff]
        %v3743 = vld [vmem:[%s3735 + $0x38] sm:$0xff]
        %v3744 = vld [vmem:[%s3735 + $0x40] sm:$0xff]
        %v3745 = vld [vmem:[%s3735 + $0x48] sm:$0xff]
        %v3746 = vld [vmem:[%s3735 + $0x50] sm:$0xff]
        %v3747 = vld [vmem:[%s3735 + $0x58] sm:$0xff]
        %v3748 = vld [vmem:[%s3735 + $0x60] sm:$0xff]
        %v3749 = vld [vmem:[%s3735 + $0x68] sm:$0xff]
        %v3750 = vld [vmem:[%s3735 + $0x70] sm:$0xff]
        %v3751 = vld [vmem:[%s3735 + $0x78] sm:$0xff]
        %v3752 = vld [vmem:[%s3735 + $0x80] sm:$0xff]
        %v3753 = vld [vmem:[%s3735 + $0x88] sm:$0xff]
        %v3754 = vld [vmem:[%s3735 + $0x90] sm:$0xff]
        %v3755 = vld [vmem:[%s3735 + $0x98] sm:$0xff]
        %v3756 = vld [vmem:[%s3735 + $0xa0] sm:$0xff]
        %v3757 = vld [vmem:[%s3735 + $0xa8] sm:$0xff]
        %v3758 = vld [vmem:[%s3735 + $0xb0] sm:$0xff]
        %v3759 = vld [vmem:[%s3735 + $0xb8] sm:$0xff]
        %v3760 = vld [vmem:[%s3735 + $0xc0] sm:$0xff]
        %v3761 = vld [vmem:[%s3735 + $0xc8] sm:$0xff]
        %v3762 = vld [vmem:[%s3735 + $0xd0] sm:$0xff]
        %v3763 = vld [vmem:[%s3735 + $0xd8] sm:$0xff]
        %v3764 = vld [vmem:[%s3735 + $0xe0] sm:$0xff]
        %v3765 = vld [vmem:[%s3735 + $0xe8] sm:$0xff]
        %v3766 = vld [vmem:[%s3735 + $0xf0] sm:$0xff]
        %v3767 = vld [vmem:[%s3735 + $0xf8] sm:$0xff]
        %v3768 = vld [vmem:[%s3735 + $0x100] sm:$0xff]
        %v3769 = vld [vmem:[%s3735 + $0x108] sm:$0xff]
        %v3770 = vld [vmem:[%s3735 + $0x110] sm:$0xff]
        %v3771 = vld [vmem:[%s3735 + $0x118] sm:$0xff]
        %v3772 = vld [vmem:[%s3735 + $0x120] sm:$0xff]
        %v3773 = vld [vmem:[%s3735 + $0x128] sm:$0xff]
        %v3774 = vld [vmem:[%s3735 + $0x130] sm:$0xff]
        %v3775 = vld [vmem:[%s3735 + $0x138] sm:$0xff]
        %v3776 = vld [vmem:[%s3735 + $0x140] sm:$0xff]
        %v3777 = vld [vmem:[%s3735 + $0x148] sm:$0xff]
        %v3778 = vld [vmem:[%s3735 + $0x150] sm:$0xff]
        %v3779 = vld [vmem:[%s3735 + $0x158] sm:$0xff]
        %v3780 = vld [vmem:[%s3735 + $0x160] sm:$0xff]
        %v3781 = vld [vmem:[%s3735 + $0x168] sm:$0xff]
        %v3782 = vld [vmem:[%s3735 + $0x170] sm:$0xff]
        %v3783 = vld [vmem:[%s3735 + $0x178] sm:$0xff]
        %vm3784 = vcmask 523264
        %v3786 = vsel %vm3784, %v3496, 0
        %v3789 = vsel %vm3784, %v3498, 0
        %v3792 = vsel %vm3784, %v3504, 0
        %v3795 = vsel %vm3784, %v3506, 0
        %v3798 = vsel %vm3784, %v3512, 0
        %v3801 = vsel %vm3784, %v3514, 0
        %v3804 = vsel %vm3784, %v3520, 0
        %v3807 = vsel %vm3784, %v3522, 0
        %v3810 = vsel %vm3784, %v3528, 0
        %v3813 = vsel %vm3784, %v3530, 0
        %v3816 = vsel %vm3784, %v3536, 0
        %v3819 = vsel %vm3784, %v3538, 0
        %v3822 = vsel %vm3784, %v3544, 0
        %v3825 = vsel %vm3784, %v3546, 0
        %v3828 = vsel %vm3784, %v3552, 0
        %v3831 = vsel %vm3784, %v3554, 0
        %v3834 = vsel %vm3784, %v3560, 0
        %v3837 = vsel %vm3784, %v3562, 0
        %v3840 = vsel %vm3784, %v3568, 0
        %v3843 = vsel %vm3784, %v3570, 0
        %v3846 = vsel %vm3784, %v3576, 0
        %v3849 = vsel %vm3784, %v3578, 0
        %v3852 = vsel %vm3784, %v3584, 0
        %v3855 = vsel %vm3784, %v3586, 0
        %v3858 = vsel %vm3784, %v3592, 0
        %v3861 = vsel %vm3784, %v3594, 0
        %v3864 = vsel %vm3784, %v3600, 0
        %v3867 = vsel %vm3784, %v3602, 0
        %v3870 = vsel %vm3784, %v3608, 0
        %v3873 = vsel %vm3784, %v3610, 0
        %v3876 = vsel %vm3784, %v3616, 0
        %v3879 = vsel %vm3784, %v3618, 0
        %v3882 = vsel %vm3784, %v3624, 0
        %v3885 = vsel %vm3784, %v3626, 0
        %v3888 = vsel %vm3784, %v3632, 0
        %v3891 = vsel %vm3784, %v3634, 0
        %v3894 = vsel %vm3784, %v3640, 0
        %v3897 = vsel %vm3784, %v3642, 0
        %v3900 = vsel %vm3784, %v3648, 0
        %v3903 = vsel %vm3784, %v3650, 0
        %v3906 = vsel %vm3784, %v3656, 0
        %v3909 = vsel %vm3784, %v3658, 0
        %v3912 = vsel %vm3784, %v3664, 0
        %v3915 = vsel %vm3784, %v3666, 0
        %v3918 = vsel %vm3784, %v3672, 0
        %v3921 = vsel %vm3784, %v3674, 0
        %v3924 = vsel %vm3784, %v3680, 0
        %v3927 = vsel %vm3784, %v3682, 0
        %3929 = vmatprep.subr.mxu0 %v3737
        %3930 = vmatpush1.msra.mxu0 %v3736
        %3931 = vmatprep.subr.mxu0 %v3739
        %3932 = vmatpush1.msra.mxu0 %v3738
        %3933 = vmatprep.subr.mxu0 %v3741
        %3934 = vmatpush1.msra.mxu0 %v3740
        %3935 = vmatprep.subr.mxu0 %v3743
        %3936 = vmatpush1.msra.mxu0 %v3742
        %3937 = vmatprep.subr.mxu0 %v3745
        %3938 = vmatpush1.msra.mxu0 %v3744
        %3939 = vmatprep.subr.mxu0 %v3747
        %3940 = vmatpush1.msra.mxu0 %v3746
        %3941 = vmatprep.subr.mxu0 %v3749
        %3942 = vmatpush1.msra.mxu0 %v3748
        %3943 = vmatprep.subr.mxu0 %v3751
        %3944 = vmatpush1.msra.mxu0 %v3750
        %3945 = vmatprep.subr.mxu0 %v3753
        %3946 = vmatpush1.msra.mxu0 %v3752
        %3947 = vmatprep.subr.mxu0 %v3755
        %3948 = vmatpush1.msra.mxu0 %v3754
        %3949 = vmatprep.subr.mxu0 %v3757
        %3950 = vmatpush1.msra.mxu0 %v3756
        %3951 = vmatprep.subr.mxu0 %v3759
        %3952 = vmatpush1.msra.mxu0 %v3758
        %3953 = vmatprep.subr.mxu0 %v3761
        %3954 = vmatpush1.msra.mxu0 %v3760
        %3955 = vmatprep.subr.mxu0 %v3763
        %3956 = vmatpush1.msra.mxu0 %v3762
        %3957 = vmatprep.subr.mxu0 %v3765
        %3958 = vmatpush1.msra.mxu0 %v3764
        %3959 = vmatprep.subr.mxu0 %v3767
        %3960 = vmatpush1.msra.mxu0 %v3766
        %3961 = vmatprep.subr.mxu0 %v3769
        %3962 = vmatpush1.msra.mxu0 %v3768
        %3963 = vmatprep.subr.mxu0 %v3771
        %3964 = vmatpush1.msra.mxu0 %v3770
        %3965 = vmatprep.subr.mxu0 %v3773
        %3966 = vmatpush1.msra.mxu0 %v3772
        %3967 = vmatprep.subr.mxu0 %v3775
        %3968 = vmatpush1.msra.mxu0 %v3774
        %3969 = vmatprep.subr.mxu0 %v3777
        %3970 = vmatpush1.msra.mxu0 %v3776
        %3971 = vmatprep.subr.mxu0 %v3779
        %3972 = vmatpush1.msra.mxu0 %v3778
        %3973 = vmatprep.subr.mxu0 %v3781
        %3974 = vmatpush1.msra.mxu0 %v3780
        %3975 = vmatprep.subr.mxu0 %v3783
        %3976 = vmatpush1.msra.mxu0 %v3782
        %3977 = vmatprep.subr.mxu0 0.0
        %3978 = vmatpush1.msra.mxu0 0.0
        %3979 = vmatprep.subr.mxu0 0.0
        %3980 = vmatpush1.msra.mxu0 0.0
        %3981 = vmatprep.subr.mxu0 0.0
        %3982 = vmatpush1.msra.mxu0 0.0
        %3983 = vmatprep.subr.mxu0 0.0
        %3984 = vmatpush1.msra.mxu0 0.0
        %3985 = vmatprep.subr.mxu0 0.0
        %3986 = vmatpush1.msra.mxu0 0.0
        %3987 = vmatprep.subr.mxu0 0.0
        %3988 = vmatpush1.msra.mxu0 0.0
        %3989 = vmatprep.subr.mxu0 0.0
        %3990 = vmatpush1.msra.mxu0 0.0
        %3991 = vmatprep.subr.mxu0 0.0
        %3992 = vmatpush1.msra.mxu0 0.0
        %3993 = vmatprep.mubr.f32.mxu0 %v3786
        %3994 = vmatmul.mubr.f32.gmra.mrb[0].mxu0 %v3495
        %v3995 = vpop.f32.mrb[0].mxu0
        %v3996 = vadd.f32 0.0, %v3995
        %v3997 = vpop.f32.mrb[0].mxu0
        %v3998 = vadd.f32 0.0, %v3997
        %3999 = vmatprep.mubr.f32.mxu0 %v3789
        %4000 = vmatmul.mubr.f32.gmra.mrb[0].mxu0 %v3497
        %v4001 = vpop.f32.mrb[0].mxu0
        %v4002 = vadd.f32 0.0, %v4001
        %v4003 = vpop.f32.mrb[0].mxu0
        %v4004 = vadd.f32 0.0, %v4003
        %4005 = vmatprep.mubr.f32.mxu0 %v3792
        %4006 = vmatmul.mubr.f32.gmra.mrb[0].mxu0 %v3503
        %v4007 = vpop.f32.mrb[0].mxu0
        %v4008 = vadd.f32 0.0, %v4007
        %v4009 = vpop.f32.mrb[0].mxu0
        %v4010 = vadd.f32 0.0, %v4009
        %4011 = vmatprep.mubr.f32.mxu0 %v3795
        %4012 = vmatmul.mubr.f32.gmra.mrb[0].mxu0 %v3505
        %v4013 = vpop.f32.mrb[0].mxu0
        %v4014 = vadd.f32 0.0, %v4013
        %v4015 = vpop.f32.mrb[0].mxu0
        %v4016 = vadd.f32 0.0, %v4015
        %4017 = vmatprep.mubr.f32.mxu0 %v3798
        %4018 = vmatmul.mubr.f32.gmra.mrb[0].mxu0 %v3511
        %v4019 = vpop.f32.mrb[0].mxu0
        %v4020 = vadd.f32 0.0, %v4019
        %v4021 = vpop.f32.mrb[0].mxu0
        %v4022 = vadd.f32 0.0, %v4021
        %4023 = vmatprep.mubr.f32.mxu0 %v3801
        %4024 = vmatmul.mubr.f32.gmra.mrb[0].mxu0 %v3513
        %v4025 = vpop.f32.mrb[0].mxu0
        %v4026 = vadd.f32 0.0, %v4025
        %v4027 = vpop.f32.mrb[0].mxu0
        %v4028 = vadd.f32 0.0, %v4027
        %4029 = vmatprep.mubr.f32.mxu0 %v3804
        %4030 = vmatmul.mubr.f32.gmra.mrb[0].mxu0 %v3519
        %v4031 = vpop.f32.mrb[0].mxu0
        %v4032 = vadd.f32 0.0, %v4031
        %v4033 = vpop.f32.mrb[0].mxu0
        %v4034 = vadd.f32 0.0, %v4033
        %4035 = vmatprep.mubr.f32.mxu0 %v3807
        %4036 = vmatmul.mubr.f32.gmra.mrb[0].mxu0 %v3521
        %v4037 = vpop.f32.mrb[0].mxu0
        %v4038 = vadd.f32 0.0, %v4037
        %v4039 = vpop.f32.mrb[0].mxu0
        %v4040 = vadd.f32 0.0, %v4039
        %4041 = vmatprep.mubr.f32.mxu0 %v3810
        %4042 = vmatmul.mubr.f32.gmra.mrb[0].mxu0 %v3527
        %v4043 = vpop.f32.mrb[0].mxu0
        %v4044 = vadd.f32 0.0, %v4043
        %v4045 = vpop.f32.mrb[0].mxu0
        %v4046 = vadd.f32 0.0, %v4045
        %4047 = vmatprep.mubr.f32.mxu0 %v3813
        %4048 = vmatmul.mubr.f32.gmra.mrb[0].mxu0 %v3529
        %v4049 = vpop.f32.mrb[0].mxu0
        %v4050 = vadd.f32 0.0, %v4049
        %v4051 = vpop.f32.mrb[0].mxu0
        %v4052 = vadd.f32 0.0, %v4051
        %4053 = vmatprep.mubr.f32.mxu0 %v3816
        %4054 = vmatmul.mubr.f32.gmra.mrb[0].mxu0 %v3535
        %v4055 = vpop.f32.mrb[0].mxu0
        %v4056 = vadd.f32 0.0, %v4055
        %v4057 = vpop.f32.mrb[0].mxu0
        %v4058 = vadd.f32 0.0, %v4057
        %4059 = vmatprep.mubr.f32.mxu0 %v3819
        %4060 = vmatmul.mubr.f32.gmra.mrb[0].mxu0 %v3537
        %v4061 = vpop.f32.mrb[0].mxu0
        %v4062 = vadd.f32 0.0, %v4061
        %v4063 = vpop.f32.mrb[0].mxu0
        %v4064 = vadd.f32 0.0, %v4063
        %4065 = vmatprep.mubr.f32.mxu0 %v3822
        %4066 = vmatmul.mubr.f32.gmra.mrb[0].mxu0 %v3543
        %v4067 = vpop.f32.mrb[0].mxu0
        %v4068 = vadd.f32 0.0, %v4067
        %v4069 = vpop.f32.mrb[0].mxu0
        %v4070 = vadd.f32 0.0, %v4069
        %4071 = vmatprep.mubr.f32.mxu0 %v3825
        %4072 = vmatmul.mubr.f32.gmra.mrb[0].mxu0 %v3545
        %v4073 = vpop.f32.mrb[0].mxu0
        %v4074 = vadd.f32 0.0, %v4073
        %v4075 = vpop.f32.mrb[0].mxu0
        %v4076 = vadd.f32 0.0, %v4075
        %4077 = vmatprep.mubr.f32.mxu0 %v3828
        %4078 = vmatmul.mubr.f32.gmra.mrb[0].mxu0 %v3551
        %v4079 = vpop.f32.mrb[0].mxu0
        %v4080 = vadd.f32 0.0, %v4079
        %v4081 = vpop.f32.mrb[0].mxu0
        %v4082 = vadd.f32 0.0, %v4081
        %4083 = vmatprep.mubr.f32.mxu0 %v3831
        %4084 = vmatmul.mubr.f32.gmra.mrb[0].mxu0 %v3553
        %v4085 = vpop.f32.mrb[0].mxu0
        %v4086 = vadd.f32 0.0, %v4085
        %v4087 = vpop.f32.mrb[0].mxu0
        %v4088 = vadd.f32 0.0, %v4087
        %4089 = vmatprep.mubr.f32.mxu0 %v3834
        %4090 = vmatmul.mubr.f32.gmra.mrb[0].mxu0 %v3559
        %v4091 = vpop.f32.mrb[0].mxu0
        %v4092 = vadd.f32 0.0, %v4091
        %v4093 = vpop.f32.mrb[0].mxu0
        %v4094 = vadd.f32 0.0, %v4093
        %4095 = vmatprep.mubr.f32.mxu0 %v3837
        %4096 = vmatmul.mubr.f32.gmra.mrb[0].mxu0 %v3561
        %v4097 = vpop.f32.mrb[0].mxu0
        %v4098 = vadd.f32 0.0, %v4097
        %v4099 = vpop.f32.mrb[0].mxu0
        %v4100 = vadd.f32 0.0, %v4099
        %4101 = vmatprep.mubr.f32.mxu0 %v3840
        %4102 = vmatmul.mubr.f32.gmra.mrb[0].mxu0 %v3567
        %v4103 = vpop.f32.mrb[0].mxu0
        %v4104 = vadd.f32 0.0, %v4103
        %v4105 = vpop.f32.mrb[0].mxu0
        %v4106 = vadd.f32 0.0, %v4105
        %4107 = vmatprep.mubr.f32.mxu0 %v3843
        %4108 = vmatmul.mubr.f32.gmra.mrb[0].mxu0 %v3569
        %v4109 = vpop.f32.mrb[0].mxu0
        %v4110 = vadd.f32 0.0, %v4109
        %v4111 = vpop.f32.mrb[0].mxu0
        %v4112 = vadd.f32 0.0, %v4111
        %4113 = vmatprep.mubr.f32.mxu0 %v3846
        %4114 = vmatmul.mubr.f32.gmra.mrb[0].mxu0 %v3575
        %v4115 = vpop.f32.mrb[0].mxu0
        %v4116 = vadd.f32 0.0, %v4115
        %v4117 = vpop.f32.mrb[0].mxu0
        %v4118 = vadd.f32 0.0, %v4117
        %4119 = vmatprep.mubr.f32.mxu0 %v3849
        %4120 = vmatmul.mubr.f32.gmra.mrb[0].mxu0 %v3577
        %v4121 = vpop.f32.mrb[0].mxu0
        %v4122 = vadd.f32 0.0, %v4121
        %v4123 = vpop.f32.mrb[0].mxu0
        %v4124 = vadd.f32 0.0, %v4123
        %4125 = vmatprep.mubr.f32.mxu0 %v3852
        %4126 = vmatmul.mubr.f32.gmra.mrb[0].mxu0 %v3583
        %v4127 = vpop.f32.mrb[0].mxu0
        %v4128 = vadd.f32 0.0, %v4127
        %v4129 = vpop.f32.mrb[0].mxu0
        %v4130 = vadd.f32 0.0, %v4129
        %4131 = vmatprep.mubr.f32.mxu0 %v3855
        %4132 = vmatmul.mubr.f32.gmra.mrb[0].mxu0 %v3585
        %v4133 = vpop.f32.mrb[0].mxu0
        %v4134 = vadd.f32 0.0, %v4133
        %v4135 = vpop.f32.mrb[0].mxu0
        %v4136 = vadd.f32 0.0, %v4135
        %4137 = vmatprep.mubr.f32.mxu0 %v3858
        %4138 = vmatmul.mubr.f32.gmra.mrb[0].mxu0 %v3591
        %v4139 = vpop.f32.mrb[0].mxu0
        %v4140 = vadd.f32 0.0, %v4139
        %v4141 = vpop.f32.mrb[0].mxu0
        %v4142 = vadd.f32 0.0, %v4141
        %4143 = vmatprep.mubr.f32.mxu0 %v3861
        %4144 = vmatmul.mubr.f32.gmra.mrb[0].mxu0 %v3593
        %v4145 = vpop.f32.mrb[0].mxu0
        %v4146 = vadd.f32 0.0, %v4145
        %v4147 = vpop.f32.mrb[0].mxu0
        %v4148 = vadd.f32 0.0, %v4147
        %4149 = vmatprep.mubr.f32.mxu0 %v3864
        %4150 = vmatmul.mubr.f32.gmra.mrb[0].mxu0 %v3599
        %v4151 = vpop.f32.mrb[0].mxu0
        %v4152 = vadd.f32 0.0, %v4151
        %v4153 = vpop.f32.mrb[0].mxu0
        %v4154 = vadd.f32 0.0, %v4153
        %4155 = vmatprep.mubr.f32.mxu0 %v3867
        %4156 = vmatmul.mubr.f32.gmra.mrb[0].mxu0 %v3601
        %v4157 = vpop.f32.mrb[0].mxu0
        %v4158 = vadd.f32 0.0, %v4157
        %v4159 = vpop.f32.mrb[0].mxu0
        %v4160 = vadd.f32 0.0, %v4159
        %4161 = vmatprep.mubr.f32.mxu0 %v3870
        %4162 = vmatmul.mubr.f32.gmra.mrb[0].mxu0 %v3607
        %v4163 = vpop.f32.mrb[0].mxu0
        %v4164 = vadd.f32 0.0, %v4163
        %v4165 = vpop.f32.mrb[0].mxu0
        %v4166 = vadd.f32 0.0, %v4165
        %4167 = vmatprep.mubr.f32.mxu0 %v3873
        %4168 = vmatmul.mubr.f32.gmra.mrb[0].mxu0 %v3609
        %v4169 = vpop.f32.mrb[0].mxu0
        %v4170 = vadd.f32 0.0, %v4169
        %v4171 = vpop.f32.mrb[0].mxu0
        %v4172 = vadd.f32 0.0, %v4171
        %4173 = vmatprep.mubr.f32.mxu0 %v3876
        %4174 = vmatmul.mubr.f32.gmra.mrb[0].mxu0 %v3615
        %v4175 = vpop.f32.mrb[0].mxu0
        %v4176 = vadd.f32 0.0, %v4175
        %v4177 = vpop.f32.mrb[0].mxu0
        %v4178 = vadd.f32 0.0, %v4177
        %4179 = vmatprep.mubr.f32.mxu0 %v3879
        %4180 = vmatmul.mubr.f32.gmra.mrb[0].mxu0 %v3617
        %v4181 = vpop.f32.mrb[0].mxu0
        %v4182 = vadd.f32 0.0, %v4181
        %v4183 = vpop.f32.mrb[0].mxu0
        %v4184 = vadd.f32 0.0, %v4183
        %4185 = vmatprep.mubr.f32.mxu0 %v3882
        %4186 = vmatmul.mubr.f32.gmra.mrb[0].mxu0 %v3623
        %v4187 = vpop.f32.mrb[0].mxu0
        %v4188 = vadd.f32 0.0, %v4187
        %v4189 = vpop.f32.mrb[0].mxu0
        %v4190 = vadd.f32 0.0, %v4189
        %4191 = vmatprep.mubr.f32.mxu0 %v3885
        %4192 = vmatmul.mubr.f32.gmra.mrb[0].mxu0 %v3625
        %v4193 = vpop.f32.mrb[0].mxu0
        %v4194 = vadd.f32 0.0, %v4193
        %v4195 = vpop.f32.mrb[0].mxu0
        %v4196 = vadd.f32 0.0, %v4195
        %4197 = vmatprep.mubr.f32.mxu0 %v3888
        %4198 = vmatmul.mubr.f32.gmra.mrb[0].mxu0 %v3631
        %v4199 = vpop.f32.mrb[0].mxu0
        %v4200 = vadd.f32 0.0, %v4199
        %v4201 = vpop.f32.mrb[0].mxu0
        %v4202 = vadd.f32 0.0, %v4201
        %4203 = vmatprep.mubr.f32.mxu0 %v3891
        %4204 = vmatmul.mubr.f32.gmra.mrb[0].mxu0 %v3633
        %v4205 = vpop.f32.mrb[0].mxu0
        %v4206 = vadd.f32 0.0, %v4205
        %v4207 = vpop.f32.mrb[0].mxu0
        %v4208 = vadd.f32 0.0, %v4207
        %4209 = vmatprep.mubr.f32.mxu0 %v3894
        %4210 = vmatmul.mubr.f32.gmra.mrb[0].mxu0 %v3639
        %v4211 = vpop.f32.mrb[0].mxu0
        %v4212 = vadd.f32 0.0, %v4211
        %v4213 = vpop.f32.mrb[0].mxu0
        %v4214 = vadd.f32 0.0, %v4213
        %4215 = vmatprep.mubr.f32.mxu0 %v3897
        %4216 = vmatmul.mubr.f32.gmra.mrb[0].mxu0 %v3641
        %v4217 = vpop.f32.mrb[0].mxu0
        %v4218 = vadd.f32 0.0, %v4217
        %v4219 = vpop.f32.mrb[0].mxu0
        %v4220 = vadd.f32 0.0, %v4219
        %4221 = vmatprep.mubr.f32.mxu0 %v3900
        %4222 = vmatmul.mubr.f32.gmra.mrb[0].mxu0 %v3647
        %v4223 = vpop.f32.mrb[0].mxu0
        %v4224 = vadd.f32 0.0, %v4223
        %v4225 = vpop.f32.mrb[0].mxu0
        %v4226 = vadd.f32 0.0, %v4225
        %4227 = vmatprep.mubr.f32.mxu0 %v3903
        %4228 = vmatmul.mubr.f32.gmra.mrb[0].mxu0 %v3649
        %v4229 = vpop.f32.mrb[0].mxu0
        %v4230 = vadd.f32 0.0, %v4229
        %v4231 = vpop.f32.mrb[0].mxu0
        %v4232 = vadd.f32 0.0, %v4231
        %4233 = vmatprep.mubr.f32.mxu0 %v3906
        %4234 = vmatmul.mubr.f32.gmra.mrb[0].mxu0 %v3655
        %v4235 = vpop.f32.mrb[0].mxu0
        %v4236 = vadd.f32 0.0, %v4235
        %v4237 = vpop.f32.mrb[0].mxu0
        %v4238 = vadd.f32 0.0, %v4237
        %4239 = vmatprep.mubr.f32.mxu0 %v3909
        %4240 = vmatmul.mubr.f32.gmra.mrb[0].mxu0 %v3657
        %v4241 = vpop.f32.mrb[0].mxu0
        %v4242 = vadd.f32 0.0, %v4241
        %v4243 = vpop.f32.mrb[0].mxu0
        %v4244 = vadd.f32 0.0, %v4243
        %4245 = vmatprep.mubr.f32.mxu0 %v3912
        %4246 = vmatmul.mubr.f32.gmra.mrb[0].mxu0 %v3663
        %v4247 = vpop.f32.mrb[0].mxu0
        %v4248 = vadd.f32 0.0, %v4247
        %v4249 = vpop.f32.mrb[0].mxu0
        %v4250 = vadd.f32 0.0, %v4249
        %4251 = vmatprep.mubr.f32.mxu0 %v3915
        %4252 = vmatmul.mubr.f32.gmra.mrb[0].mxu0 %v3665
        %v4253 = vpop.f32.mrb[0].mxu0
        %v4254 = vadd.f32 0.0, %v4253
        %v4255 = vpop.f32.mrb[0].mxu0
        %v4256 = vadd.f32 0.0, %v4255
        %4257 = vmatprep.mubr.f32.mxu0 %v3918
        %4258 = vmatmul.mubr.f32.gmra.mrb[0].mxu0 %v3671
        %v4259 = vpop.f32.mrb[0].mxu0
        %v4260 = vadd.f32 0.0, %v4259
        %v4261 = vpop.f32.mrb[0].mxu0
        %v4262 = vadd.f32 0.0, %v4261
        %4263 = vmatprep.mubr.f32.mxu0 %v3921
        %4264 = vmatmul.mubr.f32.gmra.mrb[0].mxu0 %v3673
        %v4265 = vpop.f32.mrb[0].mxu0
        %v4266 = vadd.f32 0.0, %v4265
        %v4267 = vpop.f32.mrb[0].mxu0
        %v4268 = vadd.f32 0.0, %v4267
        %4269 = vmatprep.mubr.f32.mxu0 %v3924
        %4270 = vmatmul.mubr.f32.gmra.mrb[0].mxu0 %v3679
        %v4271 = vpop.f32.mrb[0].mxu0
        %v4272 = vadd.f32 0.0, %v4271
        %v4273 = vpop.f32.mrb[0].mxu0
        %v4274 = vadd.f32 0.0, %v4273
        %4275 = vmatprep.mubr.f32.mxu0 %v3927
        %4276 = vmatmul.mubr.f32.gmra.mrb[0].mxu0 %v3681
        %v4277 = vpop.f32.mrb[0].mxu0
        %v4278 = vadd.f32 0.0, %v4277
        %v4279 = vpop.f32.mrb[0].mxu0
        %v4280 = vadd.f32 0.0, %v4279
        %4281 = vdwg.mxu0
        %v4282 = vsel %vm3784, 0.0, 0
        %v4285 = vsel %vm3784, %v3500, 0
        %v4288 = vsel %vm3784, %v3502, 0
        %v4291 = vsel %vm3784, %v3508, 0
        %v4294 = vsel %vm3784, %v3510, 0
        %v4297 = vsel %vm3784, %v3516, 0
        %v4300 = vsel %vm3784, %v3518, 0
        %v4303 = vsel %vm3784, %v3524, 0
        %v4306 = vsel %vm3784, %v3526, 0
        %v4309 = vsel %vm3784, %v3532, 0
        %v4312 = vsel %vm3784, %v3534, 0
        %v4315 = vsel %vm3784, %v3540, 0
        %v4318 = vsel %vm3784, %v3542, 0
        %v4321 = vsel %vm3784, %v3548, 0
        %v4324 = vsel %vm3784, %v3550, 0
        %v4327 = vsel %vm3784, %v3556, 0
        %v4330 = vsel %vm3784, %v3558, 0
        %v4333 = vsel %vm3784, %v3564, 0
        %v4336 = vsel %vm3784, %v3566, 0
        %v4339 = vsel %vm3784, %v3572, 0
        %v4342 = vsel %vm3784, %v3574, 0
        %v4345 = vsel %vm3784, %v3580, 0
        %v4348 = vsel %vm3784, %v3582, 0
        %v4351 = vsel %vm3784, %v3588, 0
        %v4354 = vsel %vm3784, %v3590, 0
        %v4357 = vsel %vm3784, %v3596, 0
        %v4360 = vsel %vm3784, %v3598, 0
        %v4363 = vsel %vm3784, %v3604, 0
        %v4366 = vsel %vm3784, %v3606, 0
        %v4369 = vsel %vm3784, %v3612, 0
        %v4372 = vsel %vm3784, %v3614, 0
        %v4375 = vsel %vm3784, %v3620, 0
        %v4378 = vsel %vm3784, %v3622, 0
        %v4381 = vsel %vm3784, %v3628, 0
        %v4384 = vsel %vm3784, %v3630, 0
        %v4387 = vsel %vm3784, %v3636, 0
        %v4390 = vsel %vm3784, %v3638, 0
        %v4393 = vsel %vm3784, %v3644, 0
        %v4396 = vsel %vm3784, %v3646, 0
        %v4399 = vsel %vm3784, %v3652, 0
        %v4402 = vsel %vm3784, %v3654, 0
        %v4405 = vsel %vm3784, %v3660, 0
        %v4408 = vsel %vm3784, %v3662, 0
        %v4411 = vsel %vm3784, %v3668, 0
        %v4414 = vsel %vm3784, %v3670, 0
        %v4417 = vsel %vm3784, %v3676, 0
        %v4420 = vsel %vm3784, %v3678, 0
        %4422 = vmatprep.subr.mxu0 %v3688
        %4423 = vmatpush1.msra.mxu0 %v3687
        %4424 = vmatprep.subr.mxu0 %v3690
        %4425 = vmatpush1.msra.mxu0 %v3689
        %4426 = vmatprep.subr.mxu0 %v3692
        %4427 = vmatpush1.msra.mxu0 %v3691
        %4428 = vmatprep.subr.mxu0 %v3694
        %4429 = vmatpush1.msra.mxu0 %v3693
        %4430 = vmatprep.subr.mxu0 %v3696
        %4431 = vmatpush1.msra.mxu0 %v3695
        %4432 = vmatprep.subr.mxu0 %v3698
        %4433 = vmatpush1.msra.mxu0 %v3697
        %4434 = vmatprep.subr.mxu0 %v3700
        %4435 = vmatpush1.msra.mxu0 %v3699
        %4436 = vmatprep.subr.mxu0 %v3702
        %4437 = vmatpush1.msra.mxu0 %v3701
        %4438 = vmatprep.subr.mxu0 %v3704
        %4439 = vmatpush1.msra.mxu0 %v3703
        %4440 = vmatprep.subr.mxu0 %v3706
        %4441 = vmatpush1.msra.mxu0 %v3705
        %4442 = vmatprep.subr.mxu0 %v3708
        %4443 = vmatpush1.msra.mxu0 %v3707
        %4444 = vmatprep.subr.mxu0 %v3710
        %4445 = vmatpush1.msra.mxu0 %v3709
        %4446 = vmatprep.subr.mxu0 %v3712
        %4447 = vmatpush1.msra.mxu0 %v3711
        %4448 = vmatprep.subr.mxu0 %v3714
        %4449 = vmatpush1.msra.mxu0 %v3713
        %4450 = vmatprep.subr.mxu0 %v3716
        %4451 = vmatpush1.msra.mxu0 %v3715
        %4452 = vmatprep.subr.mxu0 %v3718
        %4453 = vmatpush1.msra.mxu0 %v3717
        %4454 = vmatprep.subr.mxu0 %v3720
        %4455 = vmatpush1.msra.mxu0 %v3719
        %4456 = vmatprep.subr.mxu0 %v3722
        %4457 = vmatpush1.msra.mxu0 %v3721
        %4458 = vmatprep.subr.mxu0 %v3724
        %4459 = vmatpush1.msra.mxu0 %v3723
        %4460 = vmatprep.subr.mxu0 %v3726
        %4461 = vmatpush1.msra.mxu0 %v3725
        %4462 = vmatprep.subr.mxu0 %v3728
        %4463 = vmatpush1.msra.mxu0 %v3727
        %4464 = vmatprep.subr.mxu0 %v3730
        %4465 = vmatpush1.msra.mxu0 %v3729
        %4466 = vmatprep.subr.mxu0 %v3732
        %4467 = vmatpush1.msra.mxu0 %v3731
        %4468 = vmatprep.subr.mxu0 %v3734
        %4469 = vmatpush1.msra.mxu0 %v3733
        %4470 = vmatprep.subr.mxu0 0.0
        %4471 = vmatpush1.msra.mxu0 0.0
        %4472 = vmatprep.subr.mxu0 0.0
        %4473 = vmatpush1.msra.mxu0 0.0
        %4474 = vmatprep.subr.mxu0 0.0
        %4475 = vmatpush1.msra.mxu0 0.0
        %4476 = vmatprep.subr.mxu0 0.0
        %4477 = vmatpush1.msra.mxu0 0.0
        %4478 = vmatprep.subr.mxu0 0.0
        %4479 = vmatpush1.msra.mxu0 0.0
        %4480 = vmatprep.subr.mxu0 0.0
        %4481 = vmatpush1.msra.mxu0 0.0
        %4482 = vmatprep.subr.mxu0 0.0
        %4483 = vmatpush1.msra.mxu0 0.0
        %4484 = vmatprep.subr.mxu0 0.0
        %4485 = vmatpush1.msra.mxu0 0.0
        %4486 = vmatprep.mubr.f32.mxu0 %v4282
        %4487 = vmatmul.mubr.f32.gmra.mrb[0].mxu0 0.0
        %v4488 = vpop.f32.mrb[0].mxu0
        %v4489 = vadd.f32 %v3996, %v4488
        %v4490 = vpop.f32.mrb[0].mxu0
        %v4491 = vadd.f32 %v3998, %v4490
        %4492 = vmatprep.mubr.f32.mxu0 %v4282
        %4493 = vmatmul.mubr.f32.gmra.mrb[0].mxu0 0.0
        %v4494 = vpop.f32.mrb[0].mxu0
        %v4495 = vadd.f32 %v4002, %v4494
        %v4496 = vpop.f32.mrb[0].mxu0
        %v4497 = vadd.f32 %v4004, %v4496
        %4498 = vmatprep.mubr.f32.mxu0 %v4285
        %4499 = vmatmul.mubr.f32.gmra.mrb[0].mxu0 %v3499
        %v4500 = vpop.f32.mrb[0].mxu0
        %v4501 = vadd.f32 %v4008, %v4500
        %v4502 = vpop.f32.mrb[0].mxu0
        %v4503 = vadd.f32 %v4010, %v4502
        %4504 = vmatprep.mubr.f32.mxu0 %v4288
        %4505 = vmatmul.mubr.f32.gmra.mrb[0].mxu0 %v3501
        %v4506 = vpop.f32.mrb[0].mxu0
        %v4507 = vadd.f32 %v4014, %v4506
        %v4508 = vpop.f32.mrb[0].mxu0
        %v4509 = vadd.f32 %v4016, %v4508
        %4510 = vmatprep.mubr.f32.mxu0 %v4291
        %4511 = vmatmul.mubr.f32.gmra.mrb[0].mxu0 %v3507
        %v4512 = vpop.f32.mrb[0].mxu0
        %v4513 = vadd.f32 %v4020, %v4512
        %v4514 = vpop.f32.mrb[0].mxu0
        %v4515 = vadd.f32 %v4022, %v4514
        %4516 = vmatprep.mubr.f32.mxu0 %v4294
        %4517 = vmatmul.mubr.f32.gmra.mrb[0].mxu0 %v3509
        %v4518 = vpop.f32.mrb[0].mxu0
        %v4519 = vadd.f32 %v4026, %v4518
        %v4520 = vpop.f32.mrb[0].mxu0
        %v4521 = vadd.f32 %v4028, %v4520
        %4522 = vmatprep.mubr.f32.mxu0 %v4297
        %4523 = vmatmul.mubr.f32.gmra.mrb[0].mxu0 %v3515
        %v4524 = vpop.f32.mrb[0].mxu0
        %v4525 = vadd.f32 %v4032, %v4524
        %v4526 = vpop.f32.mrb[0].mxu0
        %v4527 = vadd.f32 %v4034, %v4526
        %4528 = vmatprep.mubr.f32.mxu0 %v4300
        %4529 = vmatmul.mubr.f32.gmra.mrb[0].mxu0 %v3517
        %v4530 = vpop.f32.mrb[0].mxu0
        %v4531 = vadd.f32 %v4038, %v4530
        %v4532 = vpop.f32.mrb[0].mxu0
        %v4533 = vadd.f32 %v4040, %v4532
        %4534 = vmatprep.mubr.f32.mxu0 %v4303
        %4535 = vmatmul.mubr.f32.gmra.mrb[0].mxu0 %v3523
        %v4536 = vpop.f32.mrb[0].mxu0
        %v4537 = vadd.f32 %v4044, %v4536
        %v4538 = vpop.f32.mrb[0].mxu0
        %v4539 = vadd.f32 %v4046, %v4538
        %4540 = vmatprep.mubr.f32.mxu0 %v4306
        %4541 = vmatmul.mubr.f32.gmra.mrb[0].mxu0 %v3525
        %v4542 = vpop.f32.mrb[0].mxu0
        %v4543 = vadd.f32 %v4050, %v4542
        %v4544 = vpop.f32.mrb[0].mxu0
        %v4545 = vadd.f32 %v4052, %v4544
        %4546 = vmatprep.mubr.f32.mxu0 %v4309
        %4547 = vmatmul.mubr.f32.gmra.mrb[0].mxu0 %v3531
        %v4548 = vpop.f32.mrb[0].mxu0
        %v4549 = vadd.f32 %v4056, %v4548
        %v4550 = vpop.f32.mrb[0].mxu0
        %v4551 = vadd.f32 %v4058, %v4550
        %4552 = vmatprep.mubr.f32.mxu0 %v4312
        %4553 = vmatmul.mubr.f32.gmra.mrb[0].mxu0 %v3533
        %v4554 = vpop.f32.mrb[0].mxu0
        %v4555 = vadd.f32 %v4062, %v4554
        %v4556 = vpop.f32.mrb[0].mxu0
        %v4557 = vadd.f32 %v4064, %v4556
        %4558 = vmatprep.mubr.f32.mxu0 %v4315
        %4559 = vmatmul.mubr.f32.gmra.mrb[0].mxu0 %v3539
        %v4560 = vpop.f32.mrb[0].mxu0
        %v4561 = vadd.f32 %v4068, %v4560
        %v4562 = vpop.f32.mrb[0].mxu0
        %v4563 = vadd.f32 %v4070, %v4562
        %4564 = vmatprep.mubr.f32.mxu0 %v4318
        %4565 = vmatmul.mubr.f32.gmra.mrb[0].mxu0 %v3541
        %v4566 = vpop.f32.mrb[0].mxu0
        %v4567 = vadd.f32 %v4074, %v4566
        %v4568 = vpop.f32.mrb[0].mxu0
        %v4569 = vadd.f32 %v4076, %v4568
        %4570 = vmatprep.mubr.f32.mxu0 %v4321
        %4571 = vmatmul.mubr.f32.gmra.mrb[0].mxu0 %v3547
        %v4572 = vpop.f32.mrb[0].mxu0
        %v4573 = vadd.f32 %v4080, %v4572
        %v4574 = vpop.f32.mrb[0].mxu0
        %v4575 = vadd.f32 %v4082, %v4574
        %4576 = vmatprep.mubr.f32.mxu0 %v4324
        %4577 = vmatmul.mubr.f32.gmra.mrb[0].mxu0 %v3549
        %v4578 = vpop.f32.mrb[0].mxu0
        %v4579 = vadd.f32 %v4086, %v4578
        %v4580 = vpop.f32.mrb[0].mxu0
        %v4581 = vadd.f32 %v4088, %v4580
        %4582 = vmatprep.mubr.f32.mxu0 %v4327
        %4583 = vmatmul.mubr.f32.gmra.mrb[0].mxu0 %v3555
        %v4584 = vpop.f32.mrb[0].mxu0
        %v4585 = vadd.f32 %v4092, %v4584
        %v4586 = vpop.f32.mrb[0].mxu0
        %v4587 = vadd.f32 %v4094, %v4586
        %4588 = vmatprep.mubr.f32.mxu0 %v4330
        %4589 = vmatmul.mubr.f32.gmra.mrb[0].mxu0 %v3557
        %v4590 = vpop.f32.mrb[0].mxu0
        %v4591 = vadd.f32 %v4098, %v4590
        %v4592 = vpop.f32.mrb[0].mxu0
        %v4593 = vadd.f32 %v4100, %v4592
        %4594 = vmatprep.mubr.f32.mxu0 %v4333
        %4595 = vmatmul.mubr.f32.gmra.mrb[0].mxu0 %v3563
        %v4596 = vpop.f32.mrb[0].mxu0
        %v4597 = vadd.f32 %v4104, %v4596
        %v4598 = vpop.f32.mrb[0].mxu0
        %v4599 = vadd.f32 %v4106, %v4598
        %4600 = vmatprep.mubr.f32.mxu0 %v4336
        %4601 = vmatmul.mubr.f32.gmra.mrb[0].mxu0 %v3565
        %v4602 = vpop.f32.mrb[0].mxu0
        %v4603 = vadd.f32 %v4110, %v4602
        %v4604 = vpop.f32.mrb[0].mxu0
        %v4605 = vadd.f32 %v4112, %v4604
        %4606 = vmatprep.mubr.f32.mxu0 %v4339
        %4607 = vmatmul.mubr.f32.gmra.mrb[0].mxu0 %v3571
        %v4608 = vpop.f32.mrb[0].mxu0
        %v4609 = vadd.f32 %v4116, %v4608
        %v4610 = vpop.f32.mrb[0].mxu0
        %v4611 = vadd.f32 %v4118, %v4610
        %4612 = vmatprep.mubr.f32.mxu0 %v4342
        %4613 = vmatmul.mubr.f32.gmra.mrb[0].mxu0 %v3573
        %v4614 = vpop.f32.mrb[0].mxu0
        %v4615 = vadd.f32 %v4122, %v4614
        %v4616 = vpop.f32.mrb[0].mxu0
        %v4617 = vadd.f32 %v4124, %v4616
        %4618 = vmatprep.mubr.f32.mxu0 %v4345
        %4619 = vmatmul.mubr.f32.gmra.mrb[0].mxu0 %v3579
        %v4620 = vpop.f32.mrb[0].mxu0
        %v4621 = vadd.f32 %v4128, %v4620
        %v4622 = vpop.f32.mrb[0].mxu0
        %v4623 = vadd.f32 %v4130, %v4622
        %4624 = vmatprep.mubr.f32.mxu0 %v4348
        %4625 = vmatmul.mubr.f32.gmra.mrb[0].mxu0 %v3581
        %v4626 = vpop.f32.mrb[0].mxu0
        %v4627 = vadd.f32 %v4134, %v4626
        %v4628 = vpop.f32.mrb[0].mxu0
        %v4629 = vadd.f32 %v4136, %v4628
        %4630 = vmatprep.mubr.f32.mxu0 %v4351
        %4631 = vmatmul.mubr.f32.gmra.mrb[0].mxu0 %v3587
        %v4632 = vpop.f32.mrb[0].mxu0
        %v4633 = vadd.f32 %v4140, %v4632
        %v4634 = vpop.f32.mrb[0].mxu0
        %v4635 = vadd.f32 %v4142, %v4634
        %4636 = vmatprep.mubr.f32.mxu0 %v4354
        %4637 = vmatmul.mubr.f32.gmra.mrb[0].mxu0 %v3589
        %v4638 = vpop.f32.mrb[0].mxu0
        %v4639 = vadd.f32 %v4146, %v4638
        %v4640 = vpop.f32.mrb[0].mxu0
        %v4641 = vadd.f32 %v4148, %v4640
        %4642 = vmatprep.mubr.f32.mxu0 %v4357
        %4643 = vmatmul.mubr.f32.gmra.mrb[0].mxu0 %v3595
        %v4644 = vpop.f32.mrb[0].mxu0
        %v4645 = vadd.f32 %v4152, %v4644
        %v4646 = vpop.f32.mrb[0].mxu0
        %v4647 = vadd.f32 %v4154, %v4646
        %4648 = vmatprep.mubr.f32.mxu0 %v4360
        %4649 = vmatmul.mubr.f32.gmra.mrb[0].mxu0 %v3597
        %v4650 = vpop.f32.mrb[0].mxu0
        %v4651 = vadd.f32 %v4158, %v4650
        %v4652 = vpop.f32.mrb[0].mxu0
        %v4653 = vadd.f32 %v4160, %v4652
        %4654 = vmatprep.mubr.f32.mxu0 %v4363
        %4655 = vmatmul.mubr.f32.gmra.mrb[0].mxu0 %v3603
        %v4656 = vpop.f32.mrb[0].mxu0
        %v4657 = vadd.f32 %v4164, %v4656
        %v4658 = vpop.f32.mrb[0].mxu0
        %v4659 = vadd.f32 %v4166, %v4658
        %4660 = vmatprep.mubr.f32.mxu0 %v4366
        %4661 = vmatmul.mubr.f32.gmra.mrb[0].mxu0 %v3605
        %v4662 = vpop.f32.mrb[0].mxu0
        %v4663 = vadd.f32 %v4170, %v4662
        %v4664 = vpop.f32.mrb[0].mxu0
        %v4665 = vadd.f32 %v4172, %v4664
        %4666 = vmatprep.mubr.f32.mxu0 %v4369
        %4667 = vmatmul.mubr.f32.gmra.mrb[0].mxu0 %v3611
        %v4668 = vpop.f32.mrb[0].mxu0
        %v4669 = vadd.f32 %v4176, %v4668
        %v4670 = vpop.f32.mrb[0].mxu0
        %v4671 = vadd.f32 %v4178, %v4670
        %4672 = vmatprep.mubr.f32.mxu0 %v4372
        %4673 = vmatmul.mubr.f32.gmra.mrb[0].mxu0 %v3613
        %v4674 = vpop.f32.mrb[0].mxu0
        %v4675 = vadd.f32 %v4182, %v4674
        %v4676 = vpop.f32.mrb[0].mxu0
        %v4677 = vadd.f32 %v4184, %v4676
        %4678 = vmatprep.mubr.f32.mxu0 %v4375
        %4679 = vmatmul.mubr.f32.gmra.mrb[0].mxu0 %v3619
        %v4680 = vpop.f32.mrb[0].mxu0
        %v4681 = vadd.f32 %v4188, %v4680
        %v4682 = vpop.f32.mrb[0].mxu0
        %v4683 = vadd.f32 %v4190, %v4682
        %4684 = vmatprep.mubr.f32.mxu0 %v4378
        %4685 = vmatmul.mubr.f32.gmra.mrb[0].mxu0 %v3621
        %v4686 = vpop.f32.mrb[0].mxu0
        %v4687 = vadd.f32 %v4194, %v4686
        %v4688 = vpop.f32.mrb[0].mxu0
        %v4689 = vadd.f32 %v4196, %v4688
        %4690 = vmatprep.mubr.f32.mxu0 %v4381
        %4691 = vmatmul.mubr.f32.gmra.mrb[0].mxu0 %v3627
        %v4692 = vpop.f32.mrb[0].mxu0
        %v4693 = vadd.f32 %v4200, %v4692
        %v4694 = vpop.f32.mrb[0].mxu0
        %v4695 = vadd.f32 %v4202, %v4694
        %4696 = vmatprep.mubr.f32.mxu0 %v4384
        %4697 = vmatmul.mubr.f32.gmra.mrb[0].mxu0 %v3629
        %v4698 = vpop.f32.mrb[0].mxu0
        %v4699 = vadd.f32 %v4206, %v4698
        %v4700 = vpop.f32.mrb[0].mxu0
        %v4701 = vadd.f32 %v4208, %v4700
        %4702 = vmatprep.mubr.f32.mxu0 %v4387
        %4703 = vmatmul.mubr.f32.gmra.mrb[0].mxu0 %v3635
        %v4704 = vpop.f32.mrb[0].mxu0
        %v4705 = vadd.f32 %v4212, %v4704
        %v4706 = vpop.f32.mrb[0].mxu0
        %v4707 = vadd.f32 %v4214, %v4706
        %4708 = vmatprep.mubr.f32.mxu0 %v4390
        %4709 = vmatmul.mubr.f32.gmra.mrb[0].mxu0 %v3637
        %v4710 = vpop.f32.mrb[0].mxu0
        %v4711 = vadd.f32 %v4218, %v4710
        %v4712 = vpop.f32.mrb[0].mxu0
        %v4713 = vadd.f32 %v4220, %v4712
        %4714 = vmatprep.mubr.f32.mxu0 %v4393
        %4715 = vmatmul.mubr.f32.gmra.mrb[0].mxu0 %v3643
        %v4716 = vpop.f32.mrb[0].mxu0
        %v4717 = vadd.f32 %v4224, %v4716
        %v4718 = vpop.f32.mrb[0].mxu0
        %v4719 = vadd.f32 %v4226, %v4718
        %4720 = vmatprep.mubr.f32.mxu0 %v4396
        %4721 = vmatmul.mubr.f32.gmra.mrb[0].mxu0 %v3645
        %v4722 = vpop.f32.mrb[0].mxu0
        %v4723 = vadd.f32 %v4230, %v4722
        %v4724 = vpop.f32.mrb[0].mxu0
        %v4725 = vadd.f32 %v4232, %v4724
        %4726 = vmatprep.mubr.f32.mxu0 %v4399
        %4727 = vmatmul.mubr.f32.gmra.mrb[0].mxu0 %v3651
        %v4728 = vpop.f32.mrb[0].mxu0
        %v4729 = vadd.f32 %v4236, %v4728
        %v4730 = vpop.f32.mrb[0].mxu0
        %v4731 = vadd.f32 %v4238, %v4730
        %4732 = vmatprep.mubr.f32.mxu0 %v4402
        %4733 = vmatmul.mubr.f32.gmra.mrb[0].mxu0 %v3653
        %v4734 = vpop.f32.mrb[0].mxu0
        %v4735 = vadd.f32 %v4242, %v4734
        %v4736 = vpop.f32.mrb[0].mxu0
        %v4737 = vadd.f32 %v4244, %v4736
        %4738 = vmatprep.mubr.f32.mxu0 %v4405
        %4739 = vmatmul.mubr.f32.gmra.mrb[0].mxu0 %v3659
        %v4740 = vpop.f32.mrb[0].mxu0
        %v4741 = vadd.f32 %v4248, %v4740
        %v4742 = vpop.f32.mrb[0].mxu0
        %v4743 = vadd.f32 %v4250, %v4742
        %4744 = vmatprep.mubr.f32.mxu0 %v4408
        %4745 = vmatmul.mubr.f32.gmra.mrb[0].mxu0 %v3661
        %v4746 = vpop.f32.mrb[0].mxu0
        %v4747 = vadd.f32 %v4254, %v4746
        %v4748 = vpop.f32.mrb[0].mxu0
        %v4749 = vadd.f32 %v4256, %v4748
        %4750 = vmatprep.mubr.f32.mxu0 %v4411
        %4751 = vmatmul.mubr.f32.gmra.mrb[0].mxu0 %v3667
        %v4752 = vpop.f32.mrb[0].mxu0
        %v4753 = vadd.f32 %v4260, %v4752
        %v4754 = vpop.f32.mrb[0].mxu0
        %v4755 = vadd.f32 %v4262, %v4754
        %4756 = vmatprep.mubr.f32.mxu0 %v4414
        %4757 = vmatmul.mubr.f32.gmra.mrb[0].mxu0 %v3669
        %v4758 = vpop.f32.mrb[0].mxu0
        %v4759 = vadd.f32 %v4266, %v4758
        %v4760 = vpop.f32.mrb[0].mxu0
        %v4761 = vadd.f32 %v4268, %v4760
        %4762 = vmatprep.mubr.f32.mxu0 %v4417
        %4763 = vmatmul.mubr.f32.gmra.mrb[0].mxu0 %v3675
        %v4764 = vpop.f32.mrb[0].mxu0
        %v4765 = vadd.f32 %v4272, %v4764
        %v4766 = vpop.f32.mrb[0].mxu0
        %v4767 = vadd.f32 %v4274, %v4766
        %4768 = vmatprep.mubr.f32.mxu0 %v4420
        %4769 = vmatmul.mubr.f32.gmra.mrb[0].mxu0 %v3677
        %v4770 = vpop.f32.mrb[0].mxu0
        %v4771 = vadd.f32 %v4278, %v4770
        %v4772 = vpop.f32.mrb[0].mxu0
        %v4773 = vadd.f32 %v4280, %v4772
        %4774 = vdwg.mxu0
        %s4775 = scalar_lea.vmem %s2, 768
        %v4776 = vld [vmem:[%s4775] sm:$0xff]
        %v4777 = vld [vmem:[%s4775 + $0x8] sm:$0xff]
        %v4778 = vld [vmem:[%s4775 + $0x10] sm:$0xff]
        %v4779 = vld [vmem:[%s4775 + $0x18] sm:$0xff]
        %v4780 = vld [vmem:[%s4775 + $0x20] sm:$0xff]
        %v4781 = vld [vmem:[%s4775 + $0x28] sm:$0xff]
        %v4782 = vld [vmem:[%s4775 + $0x30] sm:$0xff]
        %v4783 = vld [vmem:[%s4775 + $0x38] sm:$0xff]
        %v4784 = vld [vmem:[%s4775 + $0x40] sm:$0xff]
        %v4785 = vld [vmem:[%s4775 + $0x48] sm:$0xff]
        %v4786 = vld [vmem:[%s4775 + $0x50] sm:$0xff]
        %v4787 = vld [vmem:[%s4775 + $0x58] sm:$0xff]
        %v4788 = vld [vmem:[%s4775 + $0x60] sm:$0xff]
        %v4789 = vld [vmem:[%s4775 + $0x68] sm:$0xff]
        %v4790 = vld [vmem:[%s4775 + $0x70] sm:$0xff]
        %v4791 = vld [vmem:[%s4775 + $0x78] sm:$0xff]
        %v4792 = vld [vmem:[%s4775 + $0x80] sm:$0xff]
        %v4793 = vld [vmem:[%s4775 + $0x88] sm:$0xff]
        %v4794 = vld [vmem:[%s4775 + $0x90] sm:$0xff]
        %v4795 = vld [vmem:[%s4775 + $0x98] sm:$0xff]
        %v4796 = vld [vmem:[%s4775 + $0xa0] sm:$0xff]
        %v4797 = vld [vmem:[%s4775 + $0xa8] sm:$0xff]
        %v4798 = vld [vmem:[%s4775 + $0xb0] sm:$0xff]
        %v4799 = vld [vmem:[%s4775 + $0xb8] sm:$0xff]
        %v4800 = vld [vmem:[%s4775 + $0xc0] sm:$0xff]
        %v4801 = vld [vmem:[%s4775 + $0xc8] sm:$0xff]
        %v4802 = vld [vmem:[%s4775 + $0xd0] sm:$0xff]
        %v4803 = vld [vmem:[%s4775 + $0xd8] sm:$0xff]
        %v4804 = vld [vmem:[%s4775 + $0xe0] sm:$0xff]
        %v4805 = vld [vmem:[%s4775 + $0xe8] sm:$0xff]
        %v4806 = vld [vmem:[%s4775 + $0xf0] sm:$0xff]
        %v4807 = vld [vmem:[%s4775 + $0xf8] sm:$0xff]
        %v4808 = vld [vmem:[%s4775 + $0x100] sm:$0xff]
        %v4809 = vld [vmem:[%s4775 + $0x108] sm:$0xff]
        %v4810 = vld [vmem:[%s4775 + $0x110] sm:$0xff]
        %v4811 = vld [vmem:[%s4775 + $0x118] sm:$0xff]
        %v4812 = vld [vmem:[%s4775 + $0x120] sm:$0xff]
        %v4813 = vld [vmem:[%s4775 + $0x128] sm:$0xff]
        %v4814 = vld [vmem:[%s4775 + $0x130] sm:$0xff]
        %v4815 = vld [vmem:[%s4775 + $0x138] sm:$0xff]
        %v4816 = vld [vmem:[%s4775 + $0x140] sm:$0xff]
        %v4817 = vld [vmem:[%s4775 + $0x148] sm:$0xff]
        %v4818 = vld [vmem:[%s4775 + $0x150] sm:$0xff]
        %v4819 = vld [vmem:[%s4775 + $0x158] sm:$0xff]
        %v4820 = vld [vmem:[%s4775 + $0x160] sm:$0xff]
        %v4821 = vld [vmem:[%s4775 + $0x168] sm:$0xff]
        %v4822 = vld [vmem:[%s4775 + $0x170] sm:$0xff]
        %v4823 = vld [vmem:[%s4775 + $0x178] sm:$0xff]
        %v4825 = vsel %vm3784, %v3684, 0
        %v4828 = vsel %vm3784, %v3686, 0
        %4830 = vmatprep.subr.mxu0 %v4777
        %4831 = vmatpush1.msra.mxu0 %v4776
        %4832 = vmatprep.subr.mxu0 %v4779
        %4833 = vmatpush1.msra.mxu0 %v4778
        %4834 = vmatprep.subr.mxu0 %v4781
        %4835 = vmatpush1.msra.mxu0 %v4780
        %4836 = vmatprep.subr.mxu0 %v4783
        %4837 = vmatpush1.msra.mxu0 %v4782
        %4838 = vmatprep.subr.mxu0 %v4785
        %4839 = vmatpush1.msra.mxu0 %v4784
        %4840 = vmatprep.subr.mxu0 %v4787
        %4841 = vmatpush1.msra.mxu0 %v4786
        %4842 = vmatprep.subr.mxu0 %v4789
        %4843 = vmatpush1.msra.mxu0 %v4788
        %4844 = vmatprep.subr.mxu0 %v4791
        %4845 = vmatpush1.msra.mxu0 %v4790
        %4846 = vmatprep.subr.mxu0 %v4793
        %4847 = vmatpush1.msra.mxu0 %v4792
        %4848 = vmatprep.subr.mxu0 %v4795
        %4849 = vmatpush1.msra.mxu0 %v4794
        %4850 = vmatprep.subr.mxu0 %v4797
        %4851 = vmatpush1.msra.mxu0 %v4796
        %4852 = vmatprep.subr.mxu0 %v4799
        %4853 = vmatpush1.msra.mxu0 %v4798
        %4854 = vmatprep.subr.mxu0 %v4801
        %4855 = vmatpush1.msra.mxu0 %v4800
        %4856 = vmatprep.subr.mxu0 %v4803
        %4857 = vmatpush1.msra.mxu0 %v4802
        %4858 = vmatprep.subr.mxu0 %v4805
        %4859 = vmatpush1.msra.mxu0 %v4804
        %4860 = vmatprep.subr.mxu0 %v4807
        %4861 = vmatpush1.msra.mxu0 %v4806
        %4862 = vmatprep.subr.mxu0 %v4809
        %4863 = vmatpush1.msra.mxu0 %v4808
        %4864 = vmatprep.subr.mxu0 %v4811
        %4865 = vmatpush1.msra.mxu0 %v4810
        %4866 = vmatprep.subr.mxu0 %v4813
        %4867 = vmatpush1.msra.mxu0 %v4812
        %4868 = vmatprep.subr.mxu0 %v4815
        %4869 = vmatpush1.msra.mxu0 %v4814
        %4870 = vmatprep.subr.mxu0 %v4817
        %4871 = vmatpush1.msra.mxu0 %v4816
        %4872 = vmatprep.subr.mxu0 %v4819
        %4873 = vmatpush1.msra.mxu0 %v4818
        %4874 = vmatprep.subr.mxu0 %v4821
        %4875 = vmatpush1.msra.mxu0 %v4820
        %4876 = vmatprep.subr.mxu0 %v4823
        %4877 = vmatpush1.msra.mxu0 %v4822
        %4878 = vmatprep.subr.mxu0 0.0
        %4879 = vmatpush1.msra.mxu0 0.0
        %4880 = vmatprep.subr.mxu0 0.0
        %4881 = vmatpush1.msra.mxu0 0.0
        %4882 = vmatprep.subr.mxu0 0.0
        %4883 = vmatpush1.msra.mxu0 0.0
        %4884 = vmatprep.subr.mxu0 0.0
        %4885 = vmatpush1.msra.mxu0 0.0
        %4886 = vmatprep.subr.mxu0 0.0
        %4887 = vmatpush1.msra.mxu0 0.0
        %4888 = vmatprep.subr.mxu0 0.0
        %4889 = vmatpush1.msra.mxu0 0.0
        %4890 = vmatprep.subr.mxu0 0.0
        %4891 = vmatpush1.msra.mxu0 0.0
        %4892 = vmatprep.subr.mxu0 0.0
        %4893 = vmatpush1.msra.mxu0 0.0
        %4894 = vmatprep.mubr.f32.mxu0 %v4285
        %4895 = vmatmul.mubr.f32.gmra.mrb[0].mxu0 %v3499
        %v4896 = vpop.f32.mrb[0].mxu0
        %v4897 = vadd.f32 0.0, %v4896
        %v4898 = vpop.f32.mrb[0].mxu0
        %v4899 = vadd.f32 0.0, %v4898
        %4900 = vmatprep.mubr.f32.mxu0 %v4288
        %4901 = vmatmul.mubr.f32.gmra.mrb[0].mxu0 %v3501
        %v4902 = vpop.f32.mrb[0].mxu0
        %v4903 = vadd.f32 0.0, %v4902
        %v4904 = vpop.f32.mrb[0].mxu0
        %v4905 = vadd.f32 0.0, %v4904
        %4906 = vmatprep.mubr.f32.mxu0 %v4291
        %4907 = vmatmul.mubr.f32.gmra.mrb[0].mxu0 %v3507
        %v4908 = vpop.f32.mrb[0].mxu0
        %v4909 = vadd.f32 0.0, %v4908
        %v4910 = vpop.f32.mrb[0].mxu0
        %v4911 = vadd.f32 0.0, %v4910
        %4912 = vmatprep.mubr.f32.mxu0 %v4294
        %4913 = vmatmul.mubr.f32.gmra.mrb[0].mxu0 %v3509
        %v4914 = vpop.f32.mrb[0].mxu0
        %v4915 = vadd.f32 0.0, %v4914
        %v4916 = vpop.f32.mrb[0].mxu0
        %v4917 = vadd.f32 0.0, %v4916
        %4918 = vmatprep.mubr.f32.mxu0 %v4297
        %4919 = vmatmul.mubr.f32.gmra.mrb[0].mxu0 %v3515
        %v4920 = vpop.f32.mrb[0].mxu0
        %v4921 = vadd.f32 0.0, %v4920
        %v4922 = vpop.f32.mrb[0].mxu0
        %v4923 = vadd.f32 0.0, %v4922
        %4924 = vmatprep.mubr.f32.mxu0 %v4300
        %4925 = vmatmul.mubr.f32.gmra.mrb[0].mxu0 %v3517
        %v4926 = vpop.f32.mrb[0].mxu0
        %v4927 = vadd.f32 0.0, %v4926
        %v4928 = vpop.f32.mrb[0].mxu0
        %v4929 = vadd.f32 0.0, %v4928
        %4930 = vmatprep.mubr.f32.mxu0 %v4303
        %4931 = vmatmul.mubr.f32.gmra.mrb[0].mxu0 %v3523
        %v4932 = vpop.f32.mrb[0].mxu0
        %v4933 = vadd.f32 0.0, %v4932
        %v4934 = vpop.f32.mrb[0].mxu0
        %v4935 = vadd.f32 0.0, %v4934
        %4936 = vmatprep.mubr.f32.mxu0 %v4306
        %4937 = vmatmul.mubr.f32.gmra.mrb[0].mxu0 %v3525
        %v4938 = vpop.f32.mrb[0].mxu0
        %v4939 = vadd.f32 0.0, %v4938
        %v4940 = vpop.f32.mrb[0].mxu0
        %v4941 = vadd.f32 0.0, %v4940
        %4942 = vmatprep.mubr.f32.mxu0 %v4309
        %4943 = vmatmul.mubr.f32.gmra.mrb[0].mxu0 %v3531
        %v4944 = vpop.f32.mrb[0].mxu0
        %v4945 = vadd.f32 0.0, %v4944
        %v4946 = vpop.f32.mrb[0].mxu0
        %v4947 = vadd.f32 0.0, %v4946
        %4948 = vmatprep.mubr.f32.mxu0 %v4312
        %4949 = vmatmul.mubr.f32.gmra.mrb[0].mxu0 %v3533
        %v4950 = vpop.f32.mrb[0].mxu0
        %v4951 = vadd.f32 0.0, %v4950
        %v4952 = vpop.f32.mrb[0].mxu0
        %v4953 = vadd.f32 0.0, %v4952
        %4954 = vmatprep.mubr.f32.mxu0 %v4315
        %4955 = vmatmul.mubr.f32.gmra.mrb[0].mxu0 %v3539
        %v4956 = vpop.f32.mrb[0].mxu0
        %v4957 = vadd.f32 0.0, %v4956
        %v4958 = vpop.f32.mrb[0].mxu0
        %v4959 = vadd.f32 0.0, %v4958
        %4960 = vmatprep.mubr.f32.mxu0 %v4318
        %4961 = vmatmul.mubr.f32.gmra.mrb[0].mxu0 %v3541
        %v4962 = vpop.f32.mrb[0].mxu0
        %v4963 = vadd.f32 0.0, %v4962
        %v4964 = vpop.f32.mrb[0].mxu0
        %v4965 = vadd.f32 0.0, %v4964
        %4966 = vmatprep.mubr.f32.mxu0 %v4321
        %4967 = vmatmul.mubr.f32.gmra.mrb[0].mxu0 %v3547
        %v4968 = vpop.f32.mrb[0].mxu0
        %v4969 = vadd.f32 0.0, %v4968
        %v4970 = vpop.f32.mrb[0].mxu0
        %v4971 = vadd.f32 0.0, %v4970
        %4972 = vmatprep.mubr.f32.mxu0 %v4324
        %4973 = vmatmul.mubr.f32.gmra.mrb[0].mxu0 %v3549
        %v4974 = vpop.f32.mrb[0].mxu0
        %v4975 = vadd.f32 0.0, %v4974
        %v4976 = vpop.f32.mrb[0].mxu0
        %v4977 = vadd.f32 0.0, %v4976
        %4978 = vmatprep.mubr.f32.mxu0 %v4327
        %4979 = vmatmul.mubr.f32.gmra.mrb[0].mxu0 %v3555
        %v4980 = vpop.f32.mrb[0].mxu0
        %v4981 = vadd.f32 0.0, %v4980
        %v4982 = vpop.f32.mrb[0].mxu0
        %v4983 = vadd.f32 0.0, %v4982
        %4984 = vmatprep.mubr.f32.mxu0 %v4330
        %4985 = vmatmul.mubr.f32.gmra.mrb[0].mxu0 %v3557
        %v4986 = vpop.f32.mrb[0].mxu0
        %v4987 = vadd.f32 0.0, %v4986
        %v4988 = vpop.f32.mrb[0].mxu0
        %v4989 = vadd.f32 0.0, %v4988
        %4990 = vmatprep.mubr.f32.mxu0 %v4333
        %4991 = vmatmul.mubr.f32.gmra.mrb[0].mxu0 %v3563
        %v4992 = vpop.f32.mrb[0].mxu0
        %v4993 = vadd.f32 0.0, %v4992
        %v4994 = vpop.f32.mrb[0].mxu0
        %v4995 = vadd.f32 0.0, %v4994
        %4996 = vmatprep.mubr.f32.mxu0 %v4336
        %4997 = vmatmul.mubr.f32.gmra.mrb[0].mxu0 %v3565
        %v4998 = vpop.f32.mrb[0].mxu0
        %v4999 = vadd.f32 0.0, %v4998
        %v5000 = vpop.f32.mrb[0].mxu0
        %v5001 = vadd.f32 0.0, %v5000
        %5002 = vmatprep.mubr.f32.mxu0 %v4339
        %5003 = vmatmul.mubr.f32.gmra.mrb[0].mxu0 %v3571
        %v5004 = vpop.f32.mrb[0].mxu0
        %v5005 = vadd.f32 0.0, %v5004
        %v5006 = vpop.f32.mrb[0].mxu0
        %v5007 = vadd.f32 0.0, %v5006
        %5008 = vmatprep.mubr.f32.mxu0 %v4342
        %5009 = vmatmul.mubr.f32.gmra.mrb[0].mxu0 %v3573
        %v5010 = vpop.f32.mrb[0].mxu0
        %v5011 = vadd.f32 0.0, %v5010
        %v5012 = vpop.f32.mrb[0].mxu0
        %v5013 = vadd.f32 0.0, %v5012
        %5014 = vmatprep.mubr.f32.mxu0 %v4345
        %5015 = vmatmul.mubr.f32.gmra.mrb[0].mxu0 %v3579
        %v5016 = vpop.f32.mrb[0].mxu0
        %v5017 = vadd.f32 0.0, %v5016
        %v5018 = vpop.f32.mrb[0].mxu0
        %v5019 = vadd.f32 0.0, %v5018
        %5020 = vmatprep.mubr.f32.mxu0 %v4348
        %5021 = vmatmul.mubr.f32.gmra.mrb[0].mxu0 %v3581
        %v5022 = vpop.f32.mrb[0].mxu0
        %v5023 = vadd.f32 0.0, %v5022
        %v5024 = vpop.f32.mrb[0].mxu0
        %v5025 = vadd.f32 0.0, %v5024
        %5026 = vmatprep.mubr.f32.mxu0 %v4351
        %5027 = vmatmul.mubr.f32.gmra.mrb[0].mxu0 %v3587
        %v5028 = vpop.f32.mrb[0].mxu0
        %v5029 = vadd.f32 0.0, %v5028
        %v5030 = vpop.f32.mrb[0].mxu0
        %v5031 = vadd.f32 0.0, %v5030
        %5032 = vmatprep.mubr.f32.mxu0 %v4354
        %5033 = vmatmul.mubr.f32.gmra.mrb[0].mxu0 %v3589
        %v5034 = vpop.f32.mrb[0].mxu0
        %v5035 = vadd.f32 0.0, %v5034
        %v5036 = vpop.f32.mrb[0].mxu0
        %v5037 = vadd.f32 0.0, %v5036
        %5038 = vmatprep.mubr.f32.mxu0 %v4357
        %5039 = vmatmul.mubr.f32.gmra.mrb[0].mxu0 %v3595
        %v5040 = vpop.f32.mrb[0].mxu0
        %v5041 = vadd.f32 0.0, %v5040
        %v5042 = vpop.f32.mrb[0].mxu0
        %v5043 = vadd.f32 0.0, %v5042
        %5044 = vmatprep.mubr.f32.mxu0 %v4360
        %5045 = vmatmul.mubr.f32.gmra.mrb[0].mxu0 %v3597
        %v5046 = vpop.f32.mrb[0].mxu0
        %v5047 = vadd.f32 0.0, %v5046
        %v5048 = vpop.f32.mrb[0].mxu0
        %v5049 = vadd.f32 0.0, %v5048
        %5050 = vmatprep.mubr.f32.mxu0 %v4363
        %5051 = vmatmul.mubr.f32.gmra.mrb[0].mxu0 %v3603
        %v5052 = vpop.f32.mrb[0].mxu0
        %v5053 = vadd.f32 0.0, %v5052
        %v5054 = vpop.f32.mrb[0].mxu0
        %v5055 = vadd.f32 0.0, %v5054
        %5056 = vmatprep.mubr.f32.mxu0 %v4366
        %5057 = vmatmul.mubr.f32.gmra.mrb[0].mxu0 %v3605
        %v5058 = vpop.f32.mrb[0].mxu0
        %v5059 = vadd.f32 0.0, %v5058
        %v5060 = vpop.f32.mrb[0].mxu0
        %v5061 = vadd.f32 0.0, %v5060
        %5062 = vmatprep.mubr.f32.mxu0 %v4369
        %5063 = vmatmul.mubr.f32.gmra.mrb[0].mxu0 %v3611
        %v5064 = vpop.f32.mrb[0].mxu0
        %v5065 = vadd.f32 0.0, %v5064
        %v5066 = vpop.f32.mrb[0].mxu0
        %v5067 = vadd.f32 0.0, %v5066
        %5068 = vmatprep.mubr.f32.mxu0 %v4372
        %5069 = vmatmul.mubr.f32.gmra.mrb[0].mxu0 %v3613
        %v5070 = vpop.f32.mrb[0].mxu0
        %v5071 = vadd.f32 0.0, %v5070
        %v5072 = vpop.f32.mrb[0].mxu0
        %v5073 = vadd.f32 0.0, %v5072
        %5074 = vmatprep.mubr.f32.mxu0 %v4375
        %5075 = vmatmul.mubr.f32.gmra.mrb[0].mxu0 %v3619
        %v5076 = vpop.f32.mrb[0].mxu0
        %v5077 = vadd.f32 0.0, %v5076
        %v5078 = vpop.f32.mrb[0].mxu0
        %v5079 = vadd.f32 0.0, %v5078
        %5080 = vmatprep.mubr.f32.mxu0 %v4378
        %5081 = vmatmul.mubr.f32.gmra.mrb[0].mxu0 %v3621
        %v5082 = vpop.f32.mrb[0].mxu0
        %v5083 = vadd.f32 0.0, %v5082
        %v5084 = vpop.f32.mrb[0].mxu0
        %v5085 = vadd.f32 0.0, %v5084
        %5086 = vmatprep.mubr.f32.mxu0 %v4381
        %5087 = vmatmul.mubr.f32.gmra.mrb[0].mxu0 %v3627
        %v5088 = vpop.f32.mrb[0].mxu0
        %v5089 = vadd.f32 0.0, %v5088
        %v5090 = vpop.f32.mrb[0].mxu0
        %v5091 = vadd.f32 0.0, %v5090
        %5092 = vmatprep.mubr.f32.mxu0 %v4384
        %5093 = vmatmul.mubr.f32.gmra.mrb[0].mxu0 %v3629
        %v5094 = vpop.f32.mrb[0].mxu0
        %v5095 = vadd.f32 0.0, %v5094
        %v5096 = vpop.f32.mrb[0].mxu0
        %v5097 = vadd.f32 0.0, %v5096
        %5098 = vmatprep.mubr.f32.mxu0 %v4387
        %5099 = vmatmul.mubr.f32.gmra.mrb[0].mxu0 %v3635
        %v5100 = vpop.f32.mrb[0].mxu0
        %v5101 = vadd.f32 0.0, %v5100
        %v5102 = vpop.f32.mrb[0].mxu0
        %v5103 = vadd.f32 0.0, %v5102
        %5104 = vmatprep.mubr.f32.mxu0 %v4390
        %5105 = vmatmul.mubr.f32.gmra.mrb[0].mxu0 %v3637
        %v5106 = vpop.f32.mrb[0].mxu0
        %v5107 = vadd.f32 0.0, %v5106
        %v5108 = vpop.f32.mrb[0].mxu0
        %v5109 = vadd.f32 0.0, %v5108
        %5110 = vmatprep.mubr.f32.mxu0 %v4393
        %5111 = vmatmul.mubr.f32.gmra.mrb[0].mxu0 %v3643
        %v5112 = vpop.f32.mrb[0].mxu0
        %v5113 = vadd.f32 0.0, %v5112
        %v5114 = vpop.f32.mrb[0].mxu0
        %v5115 = vadd.f32 0.0, %v5114
        %5116 = vmatprep.mubr.f32.mxu0 %v4396
        %5117 = vmatmul.mubr.f32.gmra.mrb[0].mxu0 %v3645
        %v5118 = vpop.f32.mrb[0].mxu0
        %v5119 = vadd.f32 0.0, %v5118
        %v5120 = vpop.f32.mrb[0].mxu0
        %v5121 = vadd.f32 0.0, %v5120
        %5122 = vmatprep.mubr.f32.mxu0 %v4399
        %5123 = vmatmul.mubr.f32.gmra.mrb[0].mxu0 %v3651
        %v5124 = vpop.f32.mrb[0].mxu0
        %v5125 = vadd.f32 0.0, %v5124
        %v5126 = vpop.f32.mrb[0].mxu0
        %v5127 = vadd.f32 0.0, %v5126
        %5128 = vmatprep.mubr.f32.mxu0 %v4402
        %5129 = vmatmul.mubr.f32.gmra.mrb[0].mxu0 %v3653
        %v5130 = vpop.f32.mrb[0].mxu0
        %v5131 = vadd.f32 0.0, %v5130
        %v5132 = vpop.f32.mrb[0].mxu0
        %v5133 = vadd.f32 0.0, %v5132
        %5134 = vmatprep.mubr.f32.mxu0 %v4405
        %5135 = vmatmul.mubr.f32.gmra.mrb[0].mxu0 %v3659
        %v5136 = vpop.f32.mrb[0].mxu0
        %v5137 = vadd.f32 0.0, %v5136
        %v5138 = vpop.f32.mrb[0].mxu0
        %v5139 = vadd.f32 0.0, %v5138
        %5140 = vmatprep.mubr.f32.mxu0 %v4408
        %5141 = vmatmul.mubr.f32.gmra.mrb[0].mxu0 %v3661
        %v5142 = vpop.f32.mrb[0].mxu0
        %v5143 = vadd.f32 0.0, %v5142
        %v5144 = vpop.f32.mrb[0].mxu0
        %v5145 = vadd.f32 0.0, %v5144
        %5146 = vmatprep.mubr.f32.mxu0 %v4411
        %5147 = vmatmul.mubr.f32.gmra.mrb[0].mxu0 %v3667
        %v5148 = vpop.f32.mrb[0].mxu0
        %v5149 = vadd.f32 0.0, %v5148
        %v5150 = vpop.f32.mrb[0].mxu0
        %v5151 = vadd.f32 0.0, %v5150
        %5152 = vmatprep.mubr.f32.mxu0 %v4414
        %5153 = vmatmul.mubr.f32.gmra.mrb[0].mxu0 %v3669
        %v5154 = vpop.f32.mrb[0].mxu0
        %v5155 = vadd.f32 0.0, %v5154
        %v5156 = vpop.f32.mrb[0].mxu0
        %v5157 = vadd.f32 0.0, %v5156
        %5158 = vmatprep.mubr.f32.mxu0 %v4417
        %5159 = vmatmul.mubr.f32.gmra.mrb[0].mxu0 %v3675
        %v5160 = vpop.f32.mrb[0].mxu0
        %v5161 = vadd.f32 0.0, %v5160
        %v5162 = vpop.f32.mrb[0].mxu0
        %v5163 = vadd.f32 0.0, %v5162
        %5164 = vmatprep.mubr.f32.mxu0 %v4420
        %5165 = vmatmul.mubr.f32.gmra.mrb[0].mxu0 %v3677
        %v5166 = vpop.f32.mrb[0].mxu0
        %v5167 = vadd.f32 0.0, %v5166
        %v5168 = vpop.f32.mrb[0].mxu0
        %v5169 = vadd.f32 0.0, %v5168
        %5170 = vmatprep.mubr.f32.mxu0 %v4825
        %5171 = vmatmul.mubr.f32.gmra.mrb[0].mxu0 %v3683
        %v5172 = vpop.f32.mrb[0].mxu0
        %v5173 = vadd.f32 0.0, %v5172
        %v5174 = vpop.f32.mrb[0].mxu0
        %v5175 = vadd.f32 0.0, %v5174
        %5176 = vmatprep.mubr.f32.mxu0 %v4828
        %5177 = vmatmul.mubr.f32.gmra.mrb[0].mxu0 %v3685
        %v5178 = vpop.f32.mrb[0].mxu0
        %v5179 = vadd.f32 0.0, %v5178
        %v5180 = vpop.f32.mrb[0].mxu0
        %v5181 = vadd.f32 0.0, %v5180
        %5182 = vdwg.mxu0
        %v5183 = vadd.f32 %v4489, %v4897
        %v5184 = vadd.f32 %v4491, %v4899
        %v5185 = vadd.f32 %v4495, %v4903
        %v5186 = vadd.f32 %v4497, %v4905
        %v5187 = vadd.f32 %v4501, %v4909
        %v5188 = vadd.f32 %v4503, %v4911
        %v5189 = vadd.f32 %v4507, %v4915
        %v5190 = vadd.f32 %v4509, %v4917
        %v5191 = vadd.f32 %v4513, %v4921
        %v5192 = vadd.f32 %v4515, %v4923
        %v5193 = vadd.f32 %v4519, %v4927
        %v5194 = vadd.f32 %v4521, %v4929
        %v5195 = vadd.f32 %v4525, %v4933
        %v5196 = vadd.f32 %v4527, %v4935
        %v5197 = vadd.f32 %v4531, %v4939
        %v5198 = vadd.f32 %v4533, %v4941
        %v5199 = vadd.f32 %v4537, %v4945
        %v5200 = vadd.f32 %v4539, %v4947
        %v5201 = vadd.f32 %v4543, %v4951
        %v5202 = vadd.f32 %v4545, %v4953
        %v5203 = vadd.f32 %v4549, %v4957
        %v5204 = vadd.f32 %v4551, %v4959
        %v5205 = vadd.f32 %v4555, %v4963
        %v5206 = vadd.f32 %v4557, %v4965
        %v5207 = vadd.f32 %v4561, %v4969
        %v5208 = vadd.f32 %v4563, %v4971
        %v5209 = vadd.f32 %v4567, %v4975
        %v5210 = vadd.f32 %v4569, %v4977
        %v5211 = vadd.f32 %v4573, %v4981
        %v5212 = vadd.f32 %v4575, %v4983
        %v5213 = vadd.f32 %v4579, %v4987
        %v5214 = vadd.f32 %v4581, %v4989
        %v5215 = vadd.f32 %v4585, %v4993
        %v5216 = vadd.f32 %v4587, %v4995
        %v5217 = vadd.f32 %v4591, %v4999
        %v5218 = vadd.f32 %v4593, %v5001
        %v5219 = vadd.f32 %v4597, %v5005
        %v5220 = vadd.f32 %v4599, %v5007
        %v5221 = vadd.f32 %v4603, %v5011
        %v5222 = vadd.f32 %v4605, %v5013
        %v5223 = vadd.f32 %v4609, %v5017
        %v5224 = vadd.f32 %v4611, %v5019
        %v5225 = vadd.f32 %v4615, %v5023
        %v5226 = vadd.f32 %v4617, %v5025
        %v5227 = vadd.f32 %v4621, %v5029
        %v5228 = vadd.f32 %v4623, %v5031
        %v5229 = vadd.f32 %v4627, %v5035
        %v5230 = vadd.f32 %v4629, %v5037
        %v5231 = vadd.f32 %v4633, %v5041
        %v5232 = vadd.f32 %v4635, %v5043
        %v5233 = vadd.f32 %v4639, %v5047
        %v5234 = vadd.f32 %v4641, %v5049
        %v5235 = vadd.f32 %v4645, %v5053
        %v5236 = vadd.f32 %v4647, %v5055
        %v5237 = vadd.f32 %v4651, %v5059
        %v5238 = vadd.f32 %v4653, %v5061
        %v5239 = vadd.f32 %v4657, %v5065
        %v5240 = vadd.f32 %v4659, %v5067
        %v5241 = vadd.f32 %v4663, %v5071
        %v5242 = vadd.f32 %v4665, %v5073
        %v5243 = vadd.f32 %v4669, %v5077
        %v5244 = vadd.f32 %v4671, %v5079
        %v5245 = vadd.f32 %v4675, %v5083
        %v5246 = vadd.f32 %v4677, %v5085
        %v5247 = vadd.f32 %v4681, %v5089
        %v5248 = vadd.f32 %v4683, %v5091
        %v5249 = vadd.f32 %v4687, %v5095
        %v5250 = vadd.f32 %v4689, %v5097
        %v5251 = vadd.f32 %v4693, %v5101
        %v5252 = vadd.f32 %v4695, %v5103
        %v5253 = vadd.f32 %v4699, %v5107
        %v5254 = vadd.f32 %v4701, %v5109
        %v5255 = vadd.f32 %v4705, %v5113
        %v5256 = vadd.f32 %v4707, %v5115
        %v5257 = vadd.f32 %v4711, %v5119
        %v5258 = vadd.f32 %v4713, %v5121
        %v5259 = vadd.f32 %v4717, %v5125
        %v5260 = vadd.f32 %v4719, %v5127
        %v5261 = vadd.f32 %v4723, %v5131
        %v5262 = vadd.f32 %v4725, %v5133
        %v5263 = vadd.f32 %v4729, %v5137
        %v5264 = vadd.f32 %v4731, %v5139
        %v5265 = vadd.f32 %v4735, %v5143
        %v5266 = vadd.f32 %v4737, %v5145
        %v5267 = vadd.f32 %v4741, %v5149
        %v5268 = vadd.f32 %v4743, %v5151
        %v5269 = vadd.f32 %v4747, %v5155
        %v5270 = vadd.f32 %v4749, %v5157
        %v5271 = vadd.f32 %v4753, %v5161
        %v5272 = vadd.f32 %v4755, %v5163
        %v5273 = vadd.f32 %v4759, %v5167
        %v5274 = vadd.f32 %v4761, %v5169
        %v5275 = vadd.f32 %v4765, %v5173
        %v5276 = vadd.f32 %v4767, %v5175
        %v5277 = vadd.f32 %v4771, %v5179
        %v5278 = vadd.f32 %v4773, %v5181
        %s5279 = scalar_lea.vmem %s8, 1
        %v5280 = vld [vmem:[%s5279] ss:$8 sm:$0x3]
        %v5282 = vlaneseq
        %v5283 = vshrl.u32 %v5282, 7
        %v5284 = vsub.s32 0, %v5283
        %v5285 = vrot.slane %v5280, %v5284
        %v5286 = vlaneseq
        %v5287 = vshrl.u32 %v5286, 7
        %v5288 = vsub.s32 1, %v5287
        %v5289 = vrot.slane %v5280, %v5288
        %v5292 = vadd.f32 %v5183, %v5285
        %v5293 = vadd.f32 %v5184, %v5289
        %v5294 = vadd.f32 %v5185, %v5285
        %v5295 = vadd.f32 %v5186, %v5289
        %v5296 = vadd.f32 %v5187, %v5285
        %v5297 = vadd.f32 %v5188, %v5289
        %v5298 = vadd.f32 %v5189, %v5285
        %v5299 = vadd.f32 %v5190, %v5289
        %v5300 = vadd.f32 %v5191, %v5285
        %v5301 = vadd.f32 %v5192, %v5289
        %v5302 = vadd.f32 %v5193, %v5285
        %v5303 = vadd.f32 %v5194, %v5289
        %v5304 = vadd.f32 %v5195, %v5285
        %v5305 = vadd.f32 %v5196, %v5289
        %v5306 = vadd.f32 %v5197, %v5285
        %v5307 = vadd.f32 %v5198, %v5289
        %v5308 = vadd.f32 %v5199, %v5285
        %v5309 = vadd.f32 %v5200, %v5289
        %v5310 = vadd.f32 %v5201, %v5285
        %v5311 = vadd.f32 %v5202, %v5289
        %v5312 = vadd.f32 %v5203, %v5285
        %v5313 = vadd.f32 %v5204, %v5289
        %v5314 = vadd.f32 %v5205, %v5285
        %v5315 = vadd.f32 %v5206, %v5289
        %v5316 = vadd.f32 %v5207, %v5285
        %v5317 = vadd.f32 %v5208, %v5289
        %v5318 = vadd.f32 %v5209, %v5285
        %v5319 = vadd.f32 %v5210, %v5289
        %v5320 = vadd.f32 %v5211, %v5285
        %v5321 = vadd.f32 %v5212, %v5289
        %v5322 = vadd.f32 %v5213, %v5285
        %v5323 = vadd.f32 %v5214, %v5289
        %v5324 = vadd.f32 %v5215, %v5285
        %v5325 = vadd.f32 %v5216, %v5289
        %v5326 = vadd.f32 %v5217, %v5285
        %v5327 = vadd.f32 %v5218, %v5289
        %v5328 = vadd.f32 %v5219, %v5285
        %v5329 = vadd.f32 %v5220, %v5289
        %v5330 = vadd.f32 %v5221, %v5285
        %v5331 = vadd.f32 %v5222, %v5289
        %v5332 = vadd.f32 %v5223, %v5285
        %v5333 = vadd.f32 %v5224, %v5289
        %v5334 = vadd.f32 %v5225, %v5285
        %v5335 = vadd.f32 %v5226, %v5289
        %v5336 = vadd.f32 %v5227, %v5285
        %v5337 = vadd.f32 %v5228, %v5289
        %v5338 = vadd.f32 %v5229, %v5285
        %v5339 = vadd.f32 %v5230, %v5289
        %v5340 = vadd.f32 %v5231, %v5285
        %v5341 = vadd.f32 %v5232, %v5289
        %v5342 = vadd.f32 %v5233, %v5285
        %v5343 = vadd.f32 %v5234, %v5289
        %v5344 = vadd.f32 %v5235, %v5285
        %v5345 = vadd.f32 %v5236, %v5289
        %v5346 = vadd.f32 %v5237, %v5285
        %v5347 = vadd.f32 %v5238, %v5289
        %v5348 = vadd.f32 %v5239, %v5285
        %v5349 = vadd.f32 %v5240, %v5289
        %v5350 = vadd.f32 %v5241, %v5285
        %v5351 = vadd.f32 %v5242, %v5289
        %v5352 = vadd.f32 %v5243, %v5285
        %v5353 = vadd.f32 %v5244, %v5289
        %v5354 = vadd.f32 %v5245, %v5285
        %v5355 = vadd.f32 %v5246, %v5289
        %v5356 = vadd.f32 %v5247, %v5285
        %v5357 = vadd.f32 %v5248, %v5289
        %v5358 = vadd.f32 %v5249, %v5285
        %v5359 = vadd.f32 %v5250, %v5289
        %v5360 = vadd.f32 %v5251, %v5285
        %v5361 = vadd.f32 %v5252, %v5289
        %v5362 = vadd.f32 %v5253, %v5285
        %v5363 = vadd.f32 %v5254, %v5289
        %v5364 = vadd.f32 %v5255, %v5285
        %v5365 = vadd.f32 %v5256, %v5289
        %v5366 = vadd.f32 %v5257, %v5285
        %v5367 = vadd.f32 %v5258, %v5289
        %v5368 = vadd.f32 %v5259, %v5285
        %v5369 = vadd.f32 %v5260, %v5289
        %v5370 = vadd.f32 %v5261, %v5285
        %v5371 = vadd.f32 %v5262, %v5289
        %v5372 = vadd.f32 %v5263, %v5285
        %v5373 = vadd.f32 %v5264, %v5289
        %v5374 = vadd.f32 %v5265, %v5285
        %v5375 = vadd.f32 %v5266, %v5289
        %v5376 = vadd.f32 %v5267, %v5285
        %v5377 = vadd.f32 %v5268, %v5289
        %v5378 = vadd.f32 %v5269, %v5285
        %v5379 = vadd.f32 %v5270, %v5289
        %v5380 = vadd.f32 %v5271, %v5285
        %v5381 = vadd.f32 %v5272, %v5289
        %v5382 = vadd.f32 %v5273, %v5285
        %v5383 = vadd.f32 %v5274, %v5289
        %v5384 = vadd.f32 %v5275, %v5285
        %v5385 = vadd.f32 %v5276, %v5289
        %v5386 = vadd.f32 %v5277, %v5285
        %v5387 = vadd.f32 %v5278, %v5289
        %v5388 = vld [vmem:[%s3] sm:$0xff]
        %v5389 = vld [vmem:[%s3 + $0x8] sm:$0xff]
        %v5390 = vld [vmem:[%s3 + $0x10] sm:$0xff]
        %v5391 = vld [vmem:[%s3 + $0x18] sm:$0xff]
        %v5392 = vld [vmem:[%s3 + $0x20] sm:$0xff]
        %v5393 = vld [vmem:[%s3 + $0x28] sm:$0xff]
        %v5394 = vld [vmem:[%s3 + $0x30] sm:$0xff]
        %v5395 = vld [vmem:[%s3 + $0x38] sm:$0xff]
        %v5396 = vld [vmem:[%s3 + $0x40] sm:$0xff]
        %v5397 = vld [vmem:[%s3 + $0x48] sm:$0xff]
        %v5398 = vld [vmem:[%s3 + $0x50] sm:$0xff]
        %v5399 = vld [vmem:[%s3 + $0x58] sm:$0xff]
        %v5400 = vld [vmem:[%s3 + $0x60] sm:$0xff]
        %v5401 = vld [vmem:[%s3 + $0x68] sm:$0xff]
        %v5402 = vld [vmem:[%s3 + $0x70] sm:$0xff]
        %v5403 = vld [vmem:[%s3 + $0x78] sm:$0xff]
        %v5404 = vld [vmem:[%s3 + $0x80] sm:$0xff]
        %v5405 = vld [vmem:[%s3 + $0x88] sm:$0xff]
        %v5406 = vld [vmem:[%s3 + $0x90] sm:$0xff]
        %v5407 = vld [vmem:[%s3 + $0x98] sm:$0xff]
        %v5408 = vld [vmem:[%s3 + $0xa0] sm:$0xff]
        %v5409 = vld [vmem:[%s3 + $0xa8] sm:$0xff]
        %v5410 = vld [vmem:[%s3 + $0xb0] sm:$0xff]
        %v5411 = vld [vmem:[%s3 + $0xb8] sm:$0xff]
        %v5412 = vld [vmem:[%s3 + $0xc0] sm:$0xff]
        %v5413 = vld [vmem:[%s3 + $0xc8] sm:$0xff]
        %v5414 = vld [vmem:[%s3 + $0xd0] sm:$0xff]
        %v5415 = vld [vmem:[%s3 + $0xd8] sm:$0xff]
        %v5416 = vld [vmem:[%s3 + $0xe0] sm:$0xff]
        %v5417 = vld [vmem:[%s3 + $0xe8] sm:$0xff]
        %v5418 = vld [vmem:[%s3 + $0xf0] sm:$0xff]
        %v5419 = vld [vmem:[%s3 + $0xf8] sm:$0xff]
        %v5420 = vld [vmem:[%s3 + $0x100] sm:$0xff]
        %v5421 = vld [vmem:[%s3 + $0x108] sm:$0xff]
        %v5422 = vld [vmem:[%s3 + $0x110] sm:$0xff]
        %v5423 = vld [vmem:[%s3 + $0x118] sm:$0xff]
        %v5424 = vld [vmem:[%s3 + $0x120] sm:$0xff]
        %v5425 = vld [vmem:[%s3 + $0x128] sm:$0xff]
        %v5426 = vld [vmem:[%s3 + $0x130] sm:$0xff]
        %v5427 = vld [vmem:[%s3 + $0x138] sm:$0xff]
        %v5428 = vld [vmem:[%s3 + $0x140] sm:$0xff]
        %v5429 = vld [vmem:[%s3 + $0x148] sm:$0xff]
        %v5430 = vld [vmem:[%s3 + $0x150] sm:$0xff]
        %v5431 = vld [vmem:[%s3 + $0x158] sm:$0xff]
        %v5432 = vld [vmem:[%s3 + $0x160] sm:$0xff]
        %v5433 = vld [vmem:[%s3 + $0x168] sm:$0xff]
        %v5434 = vld [vmem:[%s3 + $0x170] sm:$0xff]
        %v5435 = vld [vmem:[%s3 + $0x178] sm:$0xff]
        %s5436 = scalar_lea.vmem %s3, 384
        %v5437 = vld [vmem:[%s5436] sm:$0xff]
        %v5438 = vld [vmem:[%s5436 + $0x8] sm:$0xff]
        %v5439 = vld [vmem:[%s5436 + $0x10] sm:$0xff]
        %v5440 = vld [vmem:[%s5436 + $0x18] sm:$0xff]
        %v5441 = vld [vmem:[%s5436 + $0x20] sm:$0xff]
        %v5442 = vld [vmem:[%s5436 + $0x28] sm:$0xff]
        %v5443 = vld [vmem:[%s5436 + $0x30] sm:$0xff]
        %v5444 = vld [vmem:[%s5436 + $0x38] sm:$0xff]
        %v5445 = vld [vmem:[%s5436 + $0x40] sm:$0xff]
        %v5446 = vld [vmem:[%s5436 + $0x48] sm:$0xff]
        %v5447 = vld [vmem:[%s5436 + $0x50] sm:$0xff]
        %v5448 = vld [vmem:[%s5436 + $0x58] sm:$0xff]
        %v5449 = vld [vmem:[%s5436 + $0x60] sm:$0xff]
        %v5450 = vld [vmem:[%s5436 + $0x68] sm:$0xff]
        %v5451 = vld [vmem:[%s5436 + $0x70] sm:$0xff]
        %v5452 = vld [vmem:[%s5436 + $0x78] sm:$0xff]
        %v5453 = vld [vmem:[%s5436 + $0x80] sm:$0xff]
        %v5454 = vld [vmem:[%s5436 + $0x88] sm:$0xff]
        %v5455 = vld [vmem:[%s5436 + $0x90] sm:$0xff]
        %v5456 = vld [vmem:[%s5436 + $0x98] sm:$0xff]
        %v5457 = vld [vmem:[%s5436 + $0xa0] sm:$0xff]
        %v5458 = vld [vmem:[%s5436 + $0xa8] sm:$0xff]
        %v5459 = vld [vmem:[%s5436 + $0xb0] sm:$0xff]
        %v5460 = vld [vmem:[%s5436 + $0xb8] sm:$0xff]
        %v5461 = vld [vmem:[%s5436 + $0xc0] sm:$0xff]
        %v5462 = vld [vmem:[%s5436 + $0xc8] sm:$0xff]
        %v5463 = vld [vmem:[%s5436 + $0xd0] sm:$0xff]
        %v5464 = vld [vmem:[%s5436 + $0xd8] sm:$0xff]
        %v5465 = vld [vmem:[%s5436 + $0xe0] sm:$0xff]
        %v5466 = vld [vmem:[%s5436 + $0xe8] sm:$0xff]
        %v5467 = vld [vmem:[%s5436 + $0xf0] sm:$0xff]
        %v5468 = vld [vmem:[%s5436 + $0xf8] sm:$0xff]
        %v5469 = vld [vmem:[%s5436 + $0x100] sm:$0xff]
        %v5470 = vld [vmem:[%s5436 + $0x108] sm:$0xff]
        %v5471 = vld [vmem:[%s5436 + $0x110] sm:$0xff]
        %v5472 = vld [vmem:[%s5436 + $0x118] sm:$0xff]
        %v5473 = vld [vmem:[%s5436 + $0x120] sm:$0xff]
        %v5474 = vld [vmem:[%s5436 + $0x128] sm:$0xff]
        %v5475 = vld [vmem:[%s5436 + $0x130] sm:$0xff]
        %v5476 = vld [vmem:[%s5436 + $0x138] sm:$0xff]
        %v5477 = vld [vmem:[%s5436 + $0x140] sm:$0xff]
        %v5478 = vld [vmem:[%s5436 + $0x148] sm:$0xff]
        %v5479 = vld [vmem:[%s5436 + $0x150] sm:$0xff]
        %v5480 = vld [vmem:[%s5436 + $0x158] sm:$0xff]
        %v5481 = vld [vmem:[%s5436 + $0x160] sm:$0xff]
        %v5482 = vld [vmem:[%s5436 + $0x168] sm:$0xff]
        %v5483 = vld [vmem:[%s5436 + $0x170] sm:$0xff]
        %v5484 = vld [vmem:[%s5436 + $0x178] sm:$0xff]
        %v5486 = vsel %vm3784, %v5293, 0
        %v5489 = vsel %vm3784, %v5295, 0
        %v5492 = vsel %vm3784, %v5301, 0
        %v5495 = vsel %vm3784, %v5303, 0
        %v5498 = vsel %vm3784, %v5309, 0
        %v5501 = vsel %vm3784, %v5311, 0
        %v5504 = vsel %vm3784, %v5317, 0
        %v5507 = vsel %vm3784, %v5319, 0
        %v5510 = vsel %vm3784, %v5325, 0
        %v5513 = vsel %vm3784, %v5327, 0
        %v5516 = vsel %vm3784, %v5333, 0
        %v5519 = vsel %vm3784, %v5335, 0
        %v5522 = vsel %vm3784, %v5341, 0
        %v5525 = vsel %vm3784, %v5343, 0
        %v5528 = vsel %vm3784, %v5349, 0
        %v5531 = vsel %vm3784, %v5351, 0
        %v5534 = vsel %vm3784, %v5357, 0
        %v5537 = vsel %vm3784, %v5359, 0
        %v5540 = vsel %vm3784, %v5365, 0
        %v5543 = vsel %vm3784, %v5367, 0
        %v5546 = vsel %vm3784, %v5373, 0
        %v5549 = vsel %vm3784, %v5375, 0
        %v5552 = vsel %vm3784, %v5381, 0
        %v5555 = vsel %vm3784, %v5383, 0
        %5557 = vmatprep.subr.mxu0 %v5438
        %5558 = vmatpush1.msra.mxu0 %v5437
        %5559 = vmatprep.subr.mxu0 %v5440
        %5560 = vmatpush1.msra.mxu0 %v5439
        %5561 = vmatprep.subr.mxu0 %v5442
        %5562 = vmatpush1.msra.mxu0 %v5441
        %5563 = vmatprep.subr.mxu0 %v5444
        %5564 = vmatpush1.msra.mxu0 %v5443
        %5565 = vmatprep.subr.mxu0 %v5446
        %5566 = vmatpush1.msra.mxu0 %v5445
        %5567 = vmatprep.subr.mxu0 %v5448
        %5568 = vmatpush1.msra.mxu0 %v5447
        %5569 = vmatprep.subr.mxu0 %v5450
        %5570 = vmatpush1.msra.mxu0 %v5449
        %5571 = vmatprep.subr.mxu0 %v5452
        %5572 = vmatpush1.msra.mxu0 %v5451
        %5573 = vmatprep.subr.mxu0 %v5454
        %5574 = vmatpush1.msra.mxu0 %v5453
        %5575 = vmatprep.subr.mxu0 %v5456
        %5576 = vmatpush1.msra.mxu0 %v5455
        %5577 = vmatprep.subr.mxu0 %v5458
        %5578 = vmatpush1.msra.mxu0 %v5457
        %5579 = vmatprep.subr.mxu0 %v5460
        %5580 = vmatpush1.msra.mxu0 %v5459
        %5581 = vmatprep.subr.mxu0 %v5462
        %5582 = vmatpush1.msra.mxu0 %v5461
        %5583 = vmatprep.subr.mxu0 %v5464
        %5584 = vmatpush1.msra.mxu0 %v5463
        %5585 = vmatprep.subr.mxu0 %v5466
        %5586 = vmatpush1.msra.mxu0 %v5465
        %5587 = vmatprep.subr.mxu0 %v5468
        %5588 = vmatpush1.msra.mxu0 %v5467
        %5589 = vmatprep.subr.mxu0 %v5470
        %5590 = vmatpush1.msra.mxu0 %v5469
        %5591 = vmatprep.subr.mxu0 %v5472
        %5592 = vmatpush1.msra.mxu0 %v5471
        %5593 = vmatprep.subr.mxu0 %v5474
        %5594 = vmatpush1.msra.mxu0 %v5473
        %5595 = vmatprep.subr.mxu0 %v5476
        %5596 = vmatpush1.msra.mxu0 %v5475
        %5597 = vmatprep.subr.mxu0 %v5478
        %5598 = vmatpush1.msra.mxu0 %v5477
        %5599 = vmatprep.subr.mxu0 %v5480
        %5600 = vmatpush1.msra.mxu0 %v5479
        %5601 = vmatprep.subr.mxu0 %v5482
        %5602 = vmatpush1.msra.mxu0 %v5481
        %5603 = vmatprep.subr.mxu0 %v5484
        %5604 = vmatpush1.msra.mxu0 %v5483
        %5605 = vmatprep.subr.mxu0 0.0
        %5606 = vmatpush1.msra.mxu0 0.0
        %5607 = vmatprep.subr.mxu0 0.0
        %5608 = vmatpush1.msra.mxu0 0.0
        %5609 = vmatprep.subr.mxu0 0.0
        %5610 = vmatpush1.msra.mxu0 0.0
        %5611 = vmatprep.subr.mxu0 0.0
        %5612 = vmatpush1.msra.mxu0 0.0
        %5613 = vmatprep.subr.mxu0 0.0
        %5614 = vmatpush1.msra.mxu0 0.0
        %5615 = vmatprep.subr.mxu0 0.0
        %5616 = vmatpush1.msra.mxu0 0.0
        %5617 = vmatprep.subr.mxu0 0.0
        %5618 = vmatpush1.msra.mxu0 0.0
        %5619 = vmatprep.subr.mxu0 0.0
        %5620 = vmatpush1.msra.mxu0 0.0
        %5621 = vmatprep.mubr.f32.mxu0 %v5486
        %5622 = vmatmul.mubr.f32.gmra.mrb[0].mxu0 %v5292
        %v5623 = vpop.f32.mrb[0].mxu0
        %v5624 = vadd.f32 0.0, %v5623
        %v5625 = vpop.f32.mrb[0].mxu0
        %v5626 = vadd.f32 0.0, %v5625
        %5627 = vmatprep.mubr.f32.mxu0 %v5489
        %5628 = vmatmul.mubr.f32.gmra.mrb[0].mxu0 %v5294
        %v5629 = vpop.f32.mrb[0].mxu0
        %v5630 = vadd.f32 0.0, %v5629
        %v5631 = vpop.f32.mrb[0].mxu0
        %v5632 = vadd.f32 0.0, %v5631
        %5633 = vmatprep.mubr.f32.mxu0 %v5492
        %5634 = vmatmul.mubr.f32.gmra.mrb[0].mxu0 %v5300
        %v5635 = vpop.f32.mrb[0].mxu0
        %v5636 = vadd.f32 0.0, %v5635
        %v5637 = vpop.f32.mrb[0].mxu0
        %v5638 = vadd.f32 0.0, %v5637
        %5639 = vmatprep.mubr.f32.mxu0 %v5495
        %5640 = vmatmul.mubr.f32.gmra.mrb[0].mxu0 %v5302
        %v5641 = vpop.f32.mrb[0].mxu0
        %v5642 = vadd.f32 0.0, %v5641
        %v5643 = vpop.f32.mrb[0].mxu0
        %v5644 = vadd.f32 0.0, %v5643
        %5645 = vmatprep.mubr.f32.mxu0 %v5498
        %5646 = vmatmul.mubr.f32.gmra.mrb[0].mxu0 %v5308
        %v5647 = vpop.f32.mrb[0].mxu0
        %v5648 = vadd.f32 0.0, %v5647
        %v5649 = vpop.f32.mrb[0].mxu0
        %v5650 = vadd.f32 0.0, %v5649
        %5651 = vmatprep.mubr.f32.mxu0 %v5501
        %5652 = vmatmul.mubr.f32.gmra.mrb[0].mxu0 %v5310
        %v5653 = vpop.f32.mrb[0].mxu0
        %v5654 = vadd.f32 0.0, %v5653
        %v5655 = vpop.f32.mrb[0].mxu0
        %v5656 = vadd.f32 0.0, %v5655
        %5657 = vmatprep.mubr.f32.mxu0 %v5504
        %5658 = vmatmul.mubr.f32.gmra.mrb[0].mxu0 %v5316
        %v5659 = vpop.f32.mrb[0].mxu0
        %v5660 = vadd.f32 0.0, %v5659
        %v5661 = vpop.f32.mrb[0].mxu0
        %v5662 = vadd.f32 0.0, %v5661
        %5663 = vmatprep.mubr.f32.mxu0 %v5507
        %5664 = vmatmul.mubr.f32.gmra.mrb[0].mxu0 %v5318
        %v5665 = vpop.f32.mrb[0].mxu0
        %v5666 = vadd.f32 0.0, %v5665
        %v5667 = vpop.f32.mrb[0].mxu0
        %v5668 = vadd.f32 0.0, %v5667
        %5669 = vmatprep.mubr.f32.mxu0 %v5510
        %5670 = vmatmul.mubr.f32.gmra.mrb[0].mxu0 %v5324
        %v5671 = vpop.f32.mrb[0].mxu0
        %v5672 = vadd.f32 0.0, %v5671
        %v5673 = vpop.f32.mrb[0].mxu0
        %v5674 = vadd.f32 0.0, %v5673
        %5675 = vmatprep.mubr.f32.mxu0 %v5513
        %5676 = vmatmul.mubr.f32.gmra.mrb[0].mxu0 %v5326
        %v5677 = vpop.f32.mrb[0].mxu0
        %v5678 = vadd.f32 0.0, %v5677
        %v5679 = vpop.f32.mrb[0].mxu0
        %v5680 = vadd.f32 0.0, %v5679
        %5681 = vmatprep.mubr.f32.mxu0 %v5516
        %5682 = vmatmul.mubr.f32.gmra.mrb[0].mxu0 %v5332
        %v5683 = vpop.f32.mrb[0].mxu0
        %v5684 = vadd.f32 0.0, %v5683
        %v5685 = vpop.f32.mrb[0].mxu0
        %v5686 = vadd.f32 0.0, %v5685
        %5687 = vmatprep.mubr.f32.mxu0 %v5519
        %5688 = vmatmul.mubr.f32.gmra.mrb[0].mxu0 %v5334
        %v5689 = vpop.f32.mrb[0].mxu0
        %v5690 = vadd.f32 0.0, %v5689
        %v5691 = vpop.f32.mrb[0].mxu0
        %v5692 = vadd.f32 0.0, %v5691
        %5693 = vmatprep.mubr.f32.mxu0 %v5522
        %5694 = vmatmul.mubr.f32.gmra.mrb[0].mxu0 %v5340
        %v5695 = vpop.f32.mrb[0].mxu0
        %v5696 = vadd.f32 0.0, %v5695
        %v5697 = vpop.f32.mrb[0].mxu0
        %v5698 = vadd.f32 0.0, %v5697
        %5699 = vmatprep.mubr.f32.mxu0 %v5525
        %5700 = vmatmul.mubr.f32.gmra.mrb[0].mxu0 %v5342
        %v5701 = vpop.f32.mrb[0].mxu0
        %v5702 = vadd.f32 0.0, %v5701
        %v5703 = vpop.f32.mrb[0].mxu0
        %v5704 = vadd.f32 0.0, %v5703
        %5705 = vmatprep.mubr.f32.mxu0 %v5528
        %5706 = vmatmul.mubr.f32.gmra.mrb[0].mxu0 %v5348
        %v5707 = vpop.f32.mrb[0].mxu0
        %v5708 = vadd.f32 0.0, %v5707
        %v5709 = vpop.f32.mrb[0].mxu0
        %v5710 = vadd.f32 0.0, %v5709
        %5711 = vmatprep.mubr.f32.mxu0 %v5531
        %5712 = vmatmul.mubr.f32.gmra.mrb[0].mxu0 %v5350
        %v5713 = vpop.f32.mrb[0].mxu0
        %v5714 = vadd.f32 0.0, %v5713
        %v5715 = vpop.f32.mrb[0].mxu0
        %v5716 = vadd.f32 0.0, %v5715
        %5717 = vmatprep.mubr.f32.mxu0 %v5534
        %5718 = vmatmul.mubr.f32.gmra.mrb[0].mxu0 %v5356
        %v5719 = vpop.f32.mrb[0].mxu0
        %v5720 = vadd.f32 0.0, %v5719
        %v5721 = vpop.f32.mrb[0].mxu0
        %v5722 = vadd.f32 0.0, %v5721
        %5723 = vmatprep.mubr.f32.mxu0 %v5537
        %5724 = vmatmul.mubr.f32.gmra.mrb[0].mxu0 %v5358
        %v5725 = vpop.f32.mrb[0].mxu0
        %v5726 = vadd.f32 0.0, %v5725
        %v5727 = vpop.f32.mrb[0].mxu0
        %v5728 = vadd.f32 0.0, %v5727
        %5729 = vmatprep.mubr.f32.mxu0 %v5540
        %5730 = vmatmul.mubr.f32.gmra.mrb[0].mxu0 %v5364
        %v5731 = vpop.f32.mrb[0].mxu0
        %v5732 = vadd.f32 0.0, %v5731
        %v5733 = vpop.f32.mrb[0].mxu0
        %v5734 = vadd.f32 0.0, %v5733
        %5735 = vmatprep.mubr.f32.mxu0 %v5543
        %5736 = vmatmul.mubr.f32.gmra.mrb[0].mxu0 %v5366
        %v5737 = vpop.f32.mrb[0].mxu0
        %v5738 = vadd.f32 0.0, %v5737
        %v5739 = vpop.f32.mrb[0].mxu0
        %v5740 = vadd.f32 0.0, %v5739
        %5741 = vmatprep.mubr.f32.mxu0 %v5546
        %5742 = vmatmul.mubr.f32.gmra.mrb[0].mxu0 %v5372
        %v5743 = vpop.f32.mrb[0].mxu0
        %v5744 = vadd.f32 0.0, %v5743
        %v5745 = vpop.f32.mrb[0].mxu0
        %v5746 = vadd.f32 0.0, %v5745
        %5747 = vmatprep.mubr.f32.mxu0 %v5549
        %5748 = vmatmul.mubr.f32.gmra.mrb[0].mxu0 %v5374
        %v5749 = vpop.f32.mrb[0].mxu0
        %v5750 = vadd.f32 0.0, %v5749
        %v5751 = vpop.f32.mrb[0].mxu0
        %v5752 = vadd.f32 0.0, %v5751
        %5753 = vmatprep.mubr.f32.mxu0 %v5552
        %5754 = vmatmul.mubr.f32.gmra.mrb[0].mxu0 %v5380
        %v5755 = vpop.f32.mrb[0].mxu0
        %v5756 = vpop.f32.mrb[0].mxu0
        %5757 = vmatprep.mubr.f32.mxu0 %v5555
        %5758 = vmatmul.mubr.f32.gmra.mrb[0].mxu0 %v5382
        %v5759 = vpop.f32.mrb[0].mxu0
        %v5760 = vpop.f32.mrb[0].mxu0
        %5761 = vdwg.mxu0
        %v5763 = vsel %vm3784, %v5297, 0
        %v5766 = vsel %vm3784, %v5299, 0
        %v5769 = vsel %vm3784, %v5305, 0
        %v5772 = vsel %vm3784, %v5307, 0
        %v5775 = vsel %vm3784, %v5313, 0
        %v5778 = vsel %vm3784, %v5315, 0
        %v5781 = vsel %vm3784, %v5321, 0
        %v5784 = vsel %vm3784, %v5323, 0
        %v5787 = vsel %vm3784, %v5329, 0
        %v5790 = vsel %vm3784, %v5331, 0
        %v5793 = vsel %vm3784, %v5337, 0
        %v5796 = vsel %vm3784, %v5339, 0
        %v5799 = vsel %vm3784, %v5345, 0
        %v5802 = vsel %vm3784, %v5347, 0
        %v5805 = vsel %vm3784, %v5353, 0
        %v5808 = vsel %vm3784, %v5355, 0
        %v5811 = vsel %vm3784, %v5361, 0
        %v5814 = vsel %vm3784, %v5363, 0
        %v5817 = vsel %vm3784, %v5369, 0
        %v5820 = vsel %vm3784, %v5371, 0
        %v5823 = vsel %vm3784, %v5377, 0
        %v5826 = vsel %vm3784, %v5379, 0
        %5828 = vmatprep.subr.mxu0 %v5389
        %5829 = vmatpush1.msra.mxu0 %v5388
        %5830 = vmatprep.subr.mxu0 %v5391
        %5831 = vmatpush1.msra.mxu0 %v5390
        %5832 = vmatprep.subr.mxu0 %v5393
        %5833 = vmatpush1.msra.mxu0 %v5392
        %5834 = vmatprep.subr.mxu0 %v5395
        %5835 = vmatpush1.msra.mxu0 %v5394
        %5836 = vmatprep.subr.mxu0 %v5397
        %5837 = vmatpush1.msra.mxu0 %v5396
        %5838 = vmatprep.subr.mxu0 %v5399
        %5839 = vmatpush1.msra.mxu0 %v5398
        %5840 = vmatprep.subr.mxu0 %v5401
        %5841 = vmatpush1.msra.mxu0 %v5400
        %5842 = vmatprep.subr.mxu0 %v5403
        %5843 = vmatpush1.msra.mxu0 %v5402
        %5844 = vmatprep.subr.mxu0 %v5405
        %5845 = vmatpush1.msra.mxu0 %v5404
        %5846 = vmatprep.subr.mxu0 %v5407
        %5847 = vmatpush1.msra.mxu0 %v5406
        %5848 = vmatprep.subr.mxu0 %v5409
        %5849 = vmatpush1.msra.mxu0 %v5408
        %5850 = vmatprep.subr.mxu0 %v5411
        %5851 = vmatpush1.msra.mxu0 %v5410
        %5852 = vmatprep.subr.mxu0 %v5413
        %5853 = vmatpush1.msra.mxu0 %v5412
        %5854 = vmatprep.subr.mxu0 %v5415
        %5855 = vmatpush1.msra.mxu0 %v5414
        %5856 = vmatprep.subr.mxu0 %v5417
        %5857 = vmatpush1.msra.mxu0 %v5416
        %5858 = vmatprep.subr.mxu0 %v5419
        %5859 = vmatpush1.msra.mxu0 %v5418
        %5860 = vmatprep.subr.mxu0 %v5421
        %5861 = vmatpush1.msra.mxu0 %v5420
        %5862 = vmatprep.subr.mxu0 %v5423
        %5863 = vmatpush1.msra.mxu0 %v5422
        %5864 = vmatprep.subr.mxu0 %v5425
        %5865 = vmatpush1.msra.mxu0 %v5424
        %5866 = vmatprep.subr.mxu0 %v5427
        %5867 = vmatpush1.msra.mxu0 %v5426
        %5868 = vmatprep.subr.mxu0 %v5429
        %5869 = vmatpush1.msra.mxu0 %v5428
        %5870 = vmatprep.subr.mxu0 %v5431
        %5871 = vmatpush1.msra.mxu0 %v5430
        %5872 = vmatprep.subr.mxu0 %v5433
        %5873 = vmatpush1.msra.mxu0 %v5432
        %5874 = vmatprep.subr.mxu0 %v5435
        %5875 = vmatpush1.msra.mxu0 %v5434
        %5876 = vmatprep.subr.mxu0 0.0
        %5877 = vmatpush1.msra.mxu0 0.0
        %5878 = vmatprep.subr.mxu0 0.0
        %5879 = vmatpush1.msra.mxu0 0.0
        %5880 = vmatprep.subr.mxu0 0.0
        %5881 = vmatpush1.msra.mxu0 0.0
        %5882 = vmatprep.subr.mxu0 0.0
        %5883 = vmatpush1.msra.mxu0 0.0
        %5884 = vmatprep.subr.mxu0 0.0
        %5885 = vmatpush1.msra.mxu0 0.0
        %5886 = vmatprep.subr.mxu0 0.0
        %5887 = vmatpush1.msra.mxu0 0.0
        %5888 = vmatprep.subr.mxu0 0.0
        %5889 = vmatpush1.msra.mxu0 0.0
        %5890 = vmatprep.subr.mxu0 0.0
        %5891 = vmatpush1.msra.mxu0 0.0
        %5892 = vmatprep.mubr.f32.mxu0 %v4282
        %5893 = vmatmul.mubr.f32.gmra.mrb[0].mxu0 0.0
        %v5894 = vpop.f32.mrb[0].mxu0
        %v5895 = vadd.f32 %v5624, %v5894
        %v5896 = vpop.f32.mrb[0].mxu0
        %v5897 = vadd.f32 %v5626, %v5896
        %5898 = vmatprep.mubr.f32.mxu0 %v4282
        %5899 = vmatmul.mubr.f32.gmra.mrb[0].mxu0 0.0
        %v5900 = vpop.f32.mrb[0].mxu0
        %v5901 = vadd.f32 %v5630, %v5900
        %v5902 = vpop.f32.mrb[0].mxu0
        %v5903 = vadd.f32 %v5632, %v5902
        %5904 = vmatprep.mubr.f32.mxu0 %v5763
        %5905 = vmatmul.mubr.f32.gmra.mrb[0].mxu0 %v5296
        %v5906 = vpop.f32.mrb[0].mxu0
        %v5907 = vadd.f32 %v5636, %v5906
        %v5908 = vpop.f32.mrb[0].mxu0
        %v5909 = vadd.f32 %v5638, %v5908
        %5910 = vmatprep.mubr.f32.mxu0 %v5766
        %5911 = vmatmul.mubr.f32.gmra.mrb[0].mxu0 %v5298
        %v5912 = vpop.f32.mrb[0].mxu0
        %v5913 = vadd.f32 %v5642, %v5912
        %v5914 = vpop.f32.mrb[0].mxu0
        %v5915 = vadd.f32 %v5644, %v5914
        %5916 = vmatprep.mubr.f32.mxu0 %v5769
        %5917 = vmatmul.mubr.f32.gmra.mrb[0].mxu0 %v5304
        %v5918 = vpop.f32.mrb[0].mxu0
        %v5919 = vadd.f32 %v5648, %v5918
        %v5920 = vpop.f32.mrb[0].mxu0
        %v5921 = vadd.f32 %v5650, %v5920
        %5922 = vmatprep.mubr.f32.mxu0 %v5772
        %5923 = vmatmul.mubr.f32.gmra.mrb[0].mxu0 %v5306
        %v5924 = vpop.f32.mrb[0].mxu0
        %v5925 = vadd.f32 %v5654, %v5924
        %v5926 = vpop.f32.mrb[0].mxu0
        %v5927 = vadd.f32 %v5656, %v5926
        %5928 = vmatprep.mubr.f32.mxu0 %v5775
        %5929 = vmatmul.mubr.f32.gmra.mrb[0].mxu0 %v5312
        %v5930 = vpop.f32.mrb[0].mxu0
        %v5931 = vadd.f32 %v5660, %v5930
        %v5932 = vpop.f32.mrb[0].mxu0
        %v5933 = vadd.f32 %v5662, %v5932
        %5934 = vmatprep.mubr.f32.mxu0 %v5778
        %5935 = vmatmul.mubr.f32.gmra.mrb[0].mxu0 %v5314
        %v5936 = vpop.f32.mrb[0].mxu0
        %v5937 = vadd.f32 %v5666, %v5936
        %v5938 = vpop.f32.mrb[0].mxu0
        %v5939 = vadd.f32 %v5668, %v5938
        %5940 = vmatprep.mubr.f32.mxu0 %v5781
        %5941 = vmatmul.mubr.f32.gmra.mrb[0].mxu0 %v5320
        %v5942 = vpop.f32.mrb[0].mxu0
        %v5943 = vadd.f32 %v5672, %v5942
        %v5944 = vpop.f32.mrb[0].mxu0
        %v5945 = vadd.f32 %v5674, %v5944
        %5946 = vmatprep.mubr.f32.mxu0 %v5784
        %5947 = vmatmul.mubr.f32.gmra.mrb[0].mxu0 %v5322
        %v5948 = vpop.f32.mrb[0].mxu0
        %v5949 = vadd.f32 %v5678, %v5948
        %v5950 = vpop.f32.mrb[0].mxu0
        %v5951 = vadd.f32 %v5680, %v5950
        %5952 = vmatprep.mubr.f32.mxu0 %v5787
        %5953 = vmatmul.mubr.f32.gmra.mrb[0].mxu0 %v5328
        %v5954 = vpop.f32.mrb[0].mxu0
        %v5955 = vadd.f32 %v5684, %v5954
        %v5956 = vpop.f32.mrb[0].mxu0
        %v5957 = vadd.f32 %v5686, %v5956
        %5958 = vmatprep.mubr.f32.mxu0 %v5790
        %5959 = vmatmul.mubr.f32.gmra.mrb[0].mxu0 %v5330
        %v5960 = vpop.f32.mrb[0].mxu0
        %v5961 = vadd.f32 %v5690, %v5960
        %v5962 = vpop.f32.mrb[0].mxu0
        %v5963 = vadd.f32 %v5692, %v5962
        %5964 = vmatprep.mubr.f32.mxu0 %v5793
        %5965 = vmatmul.mubr.f32.gmra.mrb[0].mxu0 %v5336
        %v5966 = vpop.f32.mrb[0].mxu0
        %v5967 = vadd.f32 %v5696, %v5966
        %v5968 = vpop.f32.mrb[0].mxu0
        %v5969 = vadd.f32 %v5698, %v5968
        %5970 = vmatprep.mubr.f32.mxu0 %v5796
        %5971 = vmatmul.mubr.f32.gmra.mrb[0].mxu0 %v5338
        %v5972 = vpop.f32.mrb[0].mxu0
        %v5973 = vadd.f32 %v5702, %v5972
        %v5974 = vpop.f32.mrb[0].mxu0
        %v5975 = vadd.f32 %v5704, %v5974
        %5976 = vmatprep.mubr.f32.mxu0 %v5799
        %5977 = vmatmul.mubr.f32.gmra.mrb[0].mxu0 %v5344
        %v5978 = vpop.f32.mrb[0].mxu0
        %v5979 = vadd.f32 %v5708, %v5978
        %v5980 = vpop.f32.mrb[0].mxu0
        %v5981 = vadd.f32 %v5710, %v5980
        %5982 = vmatprep.mubr.f32.mxu0 %v5802
        %5983 = vmatmul.mubr.f32.gmra.mrb[0].mxu0 %v5346
        %v5984 = vpop.f32.mrb[0].mxu0
        %v5985 = vadd.f32 %v5714, %v5984
        %v5986 = vpop.f32.mrb[0].mxu0
        %v5987 = vadd.f32 %v5716, %v5986
        %5988 = vmatprep.mubr.f32.mxu0 %v5805
        %5989 = vmatmul.mubr.f32.gmra.mrb[0].mxu0 %v5352
        %v5990 = vpop.f32.mrb[0].mxu0
        %v5991 = vadd.f32 %v5720, %v5990
        %v5992 = vpop.f32.mrb[0].mxu0
        %v5993 = vadd.f32 %v5722, %v5992
        %5994 = vmatprep.mubr.f32.mxu0 %v5808
        %5995 = vmatmul.mubr.f32.gmra.mrb[0].mxu0 %v5354
        %v5996 = vpop.f32.mrb[0].mxu0
        %v5997 = vadd.f32 %v5726, %v5996
        %v5998 = vpop.f32.mrb[0].mxu0
        %v5999 = vadd.f32 %v5728, %v5998
        %6000 = vmatprep.mubr.f32.mxu0 %v5811
        %6001 = vmatmul.mubr.f32.gmra.mrb[0].mxu0 %v5360
        %v6002 = vpop.f32.mrb[0].mxu0
        %v6003 = vadd.f32 %v5732, %v6002
        %v6004 = vpop.f32.mrb[0].mxu0
        %v6005 = vadd.f32 %v5734, %v6004
        %6006 = vmatprep.mubr.f32.mxu0 %v5814
        %6007 = vmatmul.mubr.f32.gmra.mrb[0].mxu0 %v5362
        %v6008 = vpop.f32.mrb[0].mxu0
        %v6009 = vadd.f32 %v5738, %v6008
        %v6010 = vpop.f32.mrb[0].mxu0
        %v6011 = vadd.f32 %v5740, %v6010
        %6012 = vmatprep.mubr.f32.mxu0 %v5817
        %6013 = vmatmul.mubr.f32.gmra.mrb[0].mxu0 %v5368
        %v6014 = vpop.f32.mrb[0].mxu0
        %v6015 = vadd.f32 %v5744, %v6014
        %v6016 = vpop.f32.mrb[0].mxu0
        %v6017 = vadd.f32 %v5746, %v6016
        %6018 = vmatprep.mubr.f32.mxu0 %v5820
        %6019 = vmatmul.mubr.f32.gmra.mrb[0].mxu0 %v5370
        %v6020 = vpop.f32.mrb[0].mxu0
        %v6021 = vadd.f32 %v5750, %v6020
        %v6022 = vpop.f32.mrb[0].mxu0
        %v6023 = vadd.f32 %v5752, %v6022
        %6024 = vmatprep.mubr.f32.mxu0 %v5823
        %6025 = vmatmul.mubr.f32.gmra.mrb[0].mxu0 %v5376
        %v6026 = vpop.f32.mrb[0].mxu0
        %v6027 = vpop.f32.mrb[0].mxu0
        %6028 = vmatprep.mubr.f32.mxu0 %v5826
        %6029 = vmatmul.mubr.f32.gmra.mrb[0].mxu0 %v5378
        %v6030 = vpop.f32.mrb[0].mxu0
        %v6031 = vpop.f32.mrb[0].mxu0
        %6032 = vdwg.mxu0
        %s6033 = scalar_lea.vmem %s3, 768
        %v6034 = vld [vmem:[%s6033] sm:$0xff]
        %v6035 = vld [vmem:[%s6033 + $0x8] sm:$0xff]
        %v6036 = vld [vmem:[%s6033 + $0x10] sm:$0xff]
        %v6037 = vld [vmem:[%s6033 + $0x18] sm:$0xff]
        %v6038 = vld [vmem:[%s6033 + $0x20] sm:$0xff]
        %v6039 = vld [vmem:[%s6033 + $0x28] sm:$0xff]
        %v6040 = vld [vmem:[%s6033 + $0x30] sm:$0xff]
        %v6041 = vld [vmem:[%s6033 + $0x38] sm:$0xff]
        %v6042 = vld [vmem:[%s6033 + $0x40] sm:$0xff]
        %v6043 = vld [vmem:[%s6033 + $0x48] sm:$0xff]
        %v6044 = vld [vmem:[%s6033 + $0x50] sm:$0xff]
        %v6045 = vld [vmem:[%s6033 + $0x58] sm:$0xff]
        %v6046 = vld [vmem:[%s6033 + $0x60] sm:$0xff]
        %v6047 = vld [vmem:[%s6033 + $0x68] sm:$0xff]
        %v6048 = vld [vmem:[%s6033 + $0x70] sm:$0xff]
        %v6049 = vld [vmem:[%s6033 + $0x78] sm:$0xff]
        %v6050 = vld [vmem:[%s6033 + $0x80] sm:$0xff]
        %v6051 = vld [vmem:[%s6033 + $0x88] sm:$0xff]
        %v6052 = vld [vmem:[%s6033 + $0x90] sm:$0xff]
        %v6053 = vld [vmem:[%s6033 + $0x98] sm:$0xff]
        %v6054 = vld [vmem:[%s6033 + $0xa0] sm:$0xff]
        %v6055 = vld [vmem:[%s6033 + $0xa8] sm:$0xff]
        %v6056 = vld [vmem:[%s6033 + $0xb0] sm:$0xff]
        %v6057 = vld [vmem:[%s6033 + $0xb8] sm:$0xff]
        %v6058 = vld [vmem:[%s6033 + $0xc0] sm:$0xff]
        %v6059 = vld [vmem:[%s6033 + $0xc8] sm:$0xff]
        %v6060 = vld [vmem:[%s6033 + $0xd0] sm:$0xff]
        %v6061 = vld [vmem:[%s6033 + $0xd8] sm:$0xff]
        %v6062 = vld [vmem:[%s6033 + $0xe0] sm:$0xff]
        %v6063 = vld [vmem:[%s6033 + $0xe8] sm:$0xff]
        %v6064 = vld [vmem:[%s6033 + $0xf0] sm:$0xff]
        %v6065 = vld [vmem:[%s6033 + $0xf8] sm:$0xff]
        %v6066 = vld [vmem:[%s6033 + $0x100] sm:$0xff]
        %v6067 = vld [vmem:[%s6033 + $0x108] sm:$0xff]
        %v6068 = vld [vmem:[%s6033 + $0x110] sm:$0xff]
        %v6069 = vld [vmem:[%s6033 + $0x118] sm:$0xff]
        %v6070 = vld [vmem:[%s6033 + $0x120] sm:$0xff]
        %v6071 = vld [vmem:[%s6033 + $0x128] sm:$0xff]
        %v6072 = vld [vmem:[%s6033 + $0x130] sm:$0xff]
        %v6073 = vld [vmem:[%s6033 + $0x138] sm:$0xff]
        %v6074 = vld [vmem:[%s6033 + $0x140] sm:$0xff]
        %v6075 = vld [vmem:[%s6033 + $0x148] sm:$0xff]
        %v6076 = vld [vmem:[%s6033 + $0x150] sm:$0xff]
        %v6077 = vld [vmem:[%s6033 + $0x158] sm:$0xff]
        %v6078 = vld [vmem:[%s6033 + $0x160] sm:$0xff]
        %v6079 = vld [vmem:[%s6033 + $0x168] sm:$0xff]
        %v6080 = vld [vmem:[%s6033 + $0x170] sm:$0xff]
        %v6081 = vld [vmem:[%s6033 + $0x178] sm:$0xff]
        %v6083 = vsel %vm3784, %v5385, 0
        %v6086 = vsel %vm3784, %v5387, 0
        %6088 = vmatprep.subr.mxu0 %v6035
        %6089 = vmatpush1.msra.mxu0 %v6034
        %6090 = vmatprep.subr.mxu0 %v6037
        %6091 = vmatpush1.msra.mxu0 %v6036
        %6092 = vmatprep.subr.mxu0 %v6039
        %6093 = vmatpush1.msra.mxu0 %v6038
        %6094 = vmatprep.subr.mxu0 %v6041
        %6095 = vmatpush1.msra.mxu0 %v6040
        %6096 = vmatprep.subr.mxu0 %v6043
        %6097 = vmatpush1.msra.mxu0 %v6042
        %6098 = vmatprep.subr.mxu0 %v6045
        %6099 = vmatpush1.msra.mxu0 %v6044
        %6100 = vmatprep.subr.mxu0 %v6047
        %6101 = vmatpush1.msra.mxu0 %v6046
        %6102 = vmatprep.subr.mxu0 %v6049
        %6103 = vmatpush1.msra.mxu0 %v6048
        %6104 = vmatprep.subr.mxu0 %v6051
        %6105 = vmatpush1.msra.mxu0 %v6050
        %6106 = vmatprep.subr.mxu0 %v6053
        %6107 = vmatpush1.msra.mxu0 %v6052
        %6108 = vmatprep.subr.mxu0 %v6055
        %6109 = vmatpush1.msra.mxu0 %v6054
        %6110 = vmatprep.subr.mxu0 %v6057
        %6111 = vmatpush1.msra.mxu0 %v6056
        %6112 = vmatprep.subr.mxu0 %v6059
        %6113 = vmatpush1.msra.mxu0 %v6058
        %6114 = vmatprep.subr.mxu0 %v6061
        %6115 = vmatpush1.msra.mxu0 %v6060
        %6116 = vmatprep.subr.mxu0 %v6063
        %6117 = vmatpush1.msra.mxu0 %v6062
        %6118 = vmatprep.subr.mxu0 %v6065
        %6119 = vmatpush1.msra.mxu0 %v6064
        %6120 = vmatprep.subr.mxu0 %v6067
        %6121 = vmatpush1.msra.mxu0 %v6066
        %6122 = vmatprep.subr.mxu0 %v6069
        %6123 = vmatpush1.msra.mxu0 %v6068
        %6124 = vmatprep.subr.mxu0 %v6071
        %6125 = vmatpush1.msra.mxu0 %v6070
        %6126 = vmatprep.subr.mxu0 %v6073
        %6127 = vmatpush1.msra.mxu0 %v6072
        %6128 = vmatprep.subr.mxu0 %v6075
        %6129 = vmatpush1.msra.mxu0 %v6074
        %6130 = vmatprep.subr.mxu0 %v6077
        %6131 = vmatpush1.msra.mxu0 %v6076
        %6132 = vmatprep.subr.mxu0 %v6079
        %6133 = vmatpush1.msra.mxu0 %v6078
        %6134 = vmatprep.subr.mxu0 %v6081
        %6135 = vmatpush1.msra.mxu0 %v6080
        %6136 = vmatprep.subr.mxu0 0.0
        %6137 = vmatpush1.msra.mxu0 0.0
        %6138 = vmatprep.subr.mxu0 0.0
        %6139 = vmatpush1.msra.mxu0 0.0
        %6140 = vmatprep.subr.mxu0 0.0
        %6141 = vmatpush1.msra.mxu0 0.0
        %6142 = vmatprep.subr.mxu0 0.0
        %6143 = vmatpush1.msra.mxu0 0.0
        %6144 = vmatprep.subr.mxu0 0.0
        %6145 = vmatpush1.msra.mxu0 0.0
        %6146 = vmatprep.subr.mxu0 0.0
        %6147 = vmatpush1.msra.mxu0 0.0
        %6148 = vmatprep.subr.mxu0 0.0
        %6149 = vmatpush1.msra.mxu0 0.0
        %6150 = vmatprep.subr.mxu0 0.0
        %6151 = vmatpush1.msra.mxu0 0.0
        %6152 = vmatprep.mubr.f32.mxu0 %v5763
        %6153 = vmatmul.mubr.f32.gmra.mrb[0].mxu0 %v5296
        %v6154 = vpop.f32.mrb[0].mxu0
        %v6155 = vadd.f32 0.0, %v6154
        %v6156 = vpop.f32.mrb[0].mxu0
        %v6157 = vadd.f32 0.0, %v6156
        %6158 = vmatprep.mubr.f32.mxu0 %v5766
        %6159 = vmatmul.mubr.f32.gmra.mrb[0].mxu0 %v5298
        %v6160 = vpop.f32.mrb[0].mxu0
        %v6161 = vadd.f32 0.0, %v6160
        %v6162 = vpop.f32.mrb[0].mxu0
        %v6163 = vadd.f32 0.0, %v6162
        %6164 = vmatprep.mubr.f32.mxu0 %v5769
        %6165 = vmatmul.mubr.f32.gmra.mrb[0].mxu0 %v5304
        %v6166 = vpop.f32.mrb[0].mxu0
        %v6167 = vadd.f32 0.0, %v6166
        %v6168 = vpop.f32.mrb[0].mxu0
        %v6169 = vadd.f32 0.0, %v6168
        %6170 = vmatprep.mubr.f32.mxu0 %v5772
        %6171 = vmatmul.mubr.f32.gmra.mrb[0].mxu0 %v5306
        %v6172 = vpop.f32.mrb[0].mxu0
        %v6173 = vadd.f32 0.0, %v6172
        %v6174 = vpop.f32.mrb[0].mxu0
        %v6175 = vadd.f32 0.0, %v6174
        %6176 = vmatprep.mubr.f32.mxu0 %v5775
        %6177 = vmatmul.mubr.f32.gmra.mrb[0].mxu0 %v5312
        %v6178 = vpop.f32.mrb[0].mxu0
        %v6179 = vadd.f32 0.0, %v6178
        %v6180 = vpop.f32.mrb[0].mxu0
        %v6181 = vadd.f32 0.0, %v6180
        %6182 = vmatprep.mubr.f32.mxu0 %v5778
        %6183 = vmatmul.mubr.f32.gmra.mrb[0].mxu0 %v5314
        %v6184 = vpop.f32.mrb[0].mxu0
        %v6185 = vadd.f32 0.0, %v6184
        %v6186 = vpop.f32.mrb[0].mxu0
        %v6187 = vadd.f32 0.0, %v6186
        %6188 = vmatprep.mubr.f32.mxu0 %v5781
        %6189 = vmatmul.mubr.f32.gmra.mrb[0].mxu0 %v5320
        %v6190 = vpop.f32.mrb[0].mxu0
        %v6191 = vadd.f32 0.0, %v6190
        %v6192 = vpop.f32.mrb[0].mxu0
        %v6193 = vadd.f32 0.0, %v6192
        %6194 = vmatprep.mubr.f32.mxu0 %v5784
        %6195 = vmatmul.mubr.f32.gmra.mrb[0].mxu0 %v5322
        %v6196 = vpop.f32.mrb[0].mxu0
        %v6197 = vadd.f32 0.0, %v6196
        %v6198 = vpop.f32.mrb[0].mxu0
        %v6199 = vadd.f32 0.0, %v6198
        %6200 = vmatprep.mubr.f32.mxu0 %v5787
        %6201 = vmatmul.mubr.f32.gmra.mrb[0].mxu0 %v5328
        %v6202 = vpop.f32.mrb[0].mxu0
        %v6203 = vadd.f32 0.0, %v6202
        %v6204 = vpop.f32.mrb[0].mxu0
        %v6205 = vadd.f32 0.0, %v6204
        %6206 = vmatprep.mubr.f32.mxu0 %v5790
        %6207 = vmatmul.mubr.f32.gmra.mrb[0].mxu0 %v5330
        %v6208 = vpop.f32.mrb[0].mxu0
        %v6209 = vadd.f32 0.0, %v6208
        %v6210 = vpop.f32.mrb[0].mxu0
        %v6211 = vadd.f32 0.0, %v6210
        %6212 = vmatprep.mubr.f32.mxu0 %v5793
        %6213 = vmatmul.mubr.f32.gmra.mrb[0].mxu0 %v5336
        %v6214 = vpop.f32.mrb[0].mxu0
        %v6215 = vadd.f32 0.0, %v6214
        %v6216 = vpop.f32.mrb[0].mxu0
        %v6217 = vadd.f32 0.0, %v6216
        %6218 = vmatprep.mubr.f32.mxu0 %v5796
        %6219 = vmatmul.mubr.f32.gmra.mrb[0].mxu0 %v5338
        %v6220 = vpop.f32.mrb[0].mxu0
        %v6221 = vadd.f32 0.0, %v6220
        %v6222 = vpop.f32.mrb[0].mxu0
        %v6223 = vadd.f32 0.0, %v6222
        %6224 = vmatprep.mubr.f32.mxu0 %v5799
        %6225 = vmatmul.mubr.f32.gmra.mrb[0].mxu0 %v5344
        %v6226 = vpop.f32.mrb[0].mxu0
        %v6227 = vadd.f32 0.0, %v6226
        %v6228 = vpop.f32.mrb[0].mxu0
        %v6229 = vadd.f32 0.0, %v6228
        %6230 = vmatprep.mubr.f32.mxu0 %v5802
        %6231 = vmatmul.mubr.f32.gmra.mrb[0].mxu0 %v5346
        %v6232 = vpop.f32.mrb[0].mxu0
        %v6233 = vadd.f32 0.0, %v6232
        %v6234 = vpop.f32.mrb[0].mxu0
        %v6235 = vadd.f32 0.0, %v6234
        %6236 = vmatprep.mubr.f32.mxu0 %v5805
        %6237 = vmatmul.mubr.f32.gmra.mrb[0].mxu0 %v5352
        %v6238 = vpop.f32.mrb[0].mxu0
        %v6239 = vadd.f32 0.0, %v6238
        %v6240 = vpop.f32.mrb[0].mxu0
        %v6241 = vadd.f32 0.0, %v6240
        %6242 = vmatprep.mubr.f32.mxu0 %v5808
        %6243 = vmatmul.mubr.f32.gmra.mrb[0].mxu0 %v5354
        %v6244 = vpop.f32.mrb[0].mxu0
        %v6245 = vadd.f32 0.0, %v6244
        %v6246 = vpop.f32.mrb[0].mxu0
        %v6247 = vadd.f32 0.0, %v6246
        %6248 = vmatprep.mubr.f32.mxu0 %v5811
        %6249 = vmatmul.mubr.f32.gmra.mrb[0].mxu0 %v5360
        %v6250 = vpop.f32.mrb[0].mxu0
        %v6251 = vadd.f32 0.0, %v6250
        %v6252 = vpop.f32.mrb[0].mxu0
        %v6253 = vadd.f32 0.0, %v6252
        %6254 = vmatprep.mubr.f32.mxu0 %v5814
        %6255 = vmatmul.mubr.f32.gmra.mrb[0].mxu0 %v5362
        %v6256 = vpop.f32.mrb[0].mxu0
        %v6257 = vadd.f32 0.0, %v6256
        %v6258 = vpop.f32.mrb[0].mxu0
        %v6259 = vadd.f32 0.0, %v6258
        %6260 = vmatprep.mubr.f32.mxu0 %v5817
        %6261 = vmatmul.mubr.f32.gmra.mrb[0].mxu0 %v5368
        %v6262 = vpop.f32.mrb[0].mxu0
        %v6263 = vadd.f32 0.0, %v6262
        %v6264 = vpop.f32.mrb[0].mxu0
        %v6265 = vadd.f32 0.0, %v6264
        %6266 = vmatprep.mubr.f32.mxu0 %v5820
        %6267 = vmatmul.mubr.f32.gmra.mrb[0].mxu0 %v5370
        %v6268 = vpop.f32.mrb[0].mxu0
        %v6269 = vadd.f32 0.0, %v6268
        %v6270 = vpop.f32.mrb[0].mxu0
        %v6271 = vadd.f32 0.0, %v6270
        %6272 = vmatprep.mubr.f32.mxu0 %v5823
        %6273 = vmatmul.mubr.f32.gmra.mrb[0].mxu0 %v5376
        %v6274 = vpop.f32.mrb[0].mxu0
        %v6275 = vadd.f32 0.0, %v6274
        %v6276 = vpop.f32.mrb[0].mxu0
        %v6277 = vadd.f32 0.0, %v6276
        %6278 = vmatprep.mubr.f32.mxu0 %v5826
        %6279 = vmatmul.mubr.f32.gmra.mrb[0].mxu0 %v5378
        %v6280 = vpop.f32.mrb[0].mxu0
        %v6281 = vadd.f32 0.0, %v6280
        %v6282 = vpop.f32.mrb[0].mxu0
        %v6283 = vadd.f32 0.0, %v6282
        %6284 = vmatprep.mubr.f32.mxu0 %v6083
        %6285 = vmatmul.mubr.f32.gmra.mrb[0].mxu0 %v5384
        %v6286 = vpop.f32.mrb[0].mxu0
        %v6287 = vpop.f32.mrb[0].mxu0
        %6288 = vmatprep.mubr.f32.mxu0 %v6086
        %6289 = vmatmul.mubr.f32.gmra.mrb[0].mxu0 %v5386
        %v6290 = vpop.f32.mrb[0].mxu0
        %v6291 = vpop.f32.mrb[0].mxu0
        %6292 = vdwg.mxu0
        %v6293 = vadd.f32 %v5895, %v6155
        %v6294 = vadd.f32 %v5897, %v6157
        %v6295 = vadd.f32 %v5901, %v6161
        %v6296 = vadd.f32 %v5903, %v6163
        %v6297 = vadd.f32 %v5907, %v6167
        %v6298 = vadd.f32 %v5909, %v6169
        %v6299 = vadd.f32 %v5913, %v6173
        %v6300 = vadd.f32 %v5915, %v6175
        %v6301 = vadd.f32 %v5919, %v6179
        %v6302 = vadd.f32 %v5921, %v6181
        %v6303 = vadd.f32 %v5925, %v6185
        %v6304 = vadd.f32 %v5927, %v6187
        %v6305 = vadd.f32 %v5931, %v6191
        %v6306 = vadd.f32 %v5933, %v6193
        %v6307 = vadd.f32 %v5937, %v6197
        %v6308 = vadd.f32 %v5939, %v6199
        %v6309 = vadd.f32 %v5943, %v6203
        %v6310 = vadd.f32 %v5945, %v6205
        %v6311 = vadd.f32 %v5949, %v6209
        %v6312 = vadd.f32 %v5951, %v6211
        %v6313 = vadd.f32 %v5955, %v6215
        %v6314 = vadd.f32 %v5957, %v6217
        %v6315 = vadd.f32 %v5961, %v6221
        %v6316 = vadd.f32 %v5963, %v6223
        %v6317 = vadd.f32 %v5967, %v6227
        %v6318 = vadd.f32 %v5969, %v6229
        %v6319 = vadd.f32 %v5973, %v6233
        %v6320 = vadd.f32 %v5975, %v6235
        %v6321 = vadd.f32 %v5979, %v6239
        %v6322 = vadd.f32 %v5981, %v6241
        %v6323 = vadd.f32 %v5985, %v6245
        %v6324 = vadd.f32 %v5987, %v6247
        %v6325 = vadd.f32 %v5991, %v6251
        %v6326 = vadd.f32 %v5993, %v6253
        %v6327 = vadd.f32 %v5997, %v6257
        %v6328 = vadd.f32 %v5999, %v6259
        %v6329 = vadd.f32 %v6003, %v6263
        %v6330 = vadd.f32 %v6005, %v6265
        %v6331 = vadd.f32 %v6009, %v6269
        %v6332 = vadd.f32 %v6011, %v6271
        %v6333 = vadd.f32 %v6015, %v6275
        %v6334 = vadd.f32 %v6017, %v6277
        %v6335 = vadd.f32 %v6021, %v6281
        %v6336 = vadd.f32 %v6023, %v6283
        %s6337 = scalar_lea.vmem %s8, 2
        %v6338 = vld [vmem:[%s6337] ss:$8 sm:$0x3]
        %v6340 = vlaneseq
        %v6341 = vshrl.u32 %v6340, 7
        %v6342 = vsub.s32 0, %v6341
        %v6343 = vrot.slane %v6338, %v6342
        %v6344 = vlaneseq
        %v6345 = vshrl.u32 %v6344, 7
        %v6346 = vsub.s32 1, %v6345
        %v6347 = vrot.slane %v6338, %v6346
        %v6350 = vadd.f32 %v6293, %v6343
        %v6351 = vadd.f32 %v6294, %v6347
        %v6352 = vadd.f32 %v6295, %v6343
        %v6353 = vadd.f32 %v6296, %v6347
        %v6354 = vadd.f32 %v6297, %v6343
        %v6355 = vadd.f32 %v6298, %v6347
        %v6356 = vadd.f32 %v6299, %v6343
        %v6357 = vadd.f32 %v6300, %v6347
        %v6358 = vadd.f32 %v6301, %v6343
        %v6359 = vadd.f32 %v6302, %v6347
        %v6360 = vadd.f32 %v6303, %v6343
        %v6361 = vadd.f32 %v6304, %v6347
        %v6362 = vadd.f32 %v6305, %v6343
        %v6363 = vadd.f32 %v6306, %v6347
        %v6364 = vadd.f32 %v6307, %v6343
        %v6365 = vadd.f32 %v6308, %v6347
        %v6366 = vadd.f32 %v6309, %v6343
        %v6367 = vadd.f32 %v6310, %v6347
        %v6368 = vadd.f32 %v6311, %v6343
        %v6369 = vadd.f32 %v6312, %v6347
        %v6370 = vadd.f32 %v6313, %v6343
        %v6371 = vadd.f32 %v6314, %v6347
        %v6372 = vadd.f32 %v6315, %v6343
        %v6373 = vadd.f32 %v6316, %v6347
        %v6374 = vadd.f32 %v6317, %v6343
        %v6375 = vadd.f32 %v6318, %v6347
        %v6376 = vadd.f32 %v6319, %v6343
        %v6377 = vadd.f32 %v6320, %v6347
        %v6378 = vadd.f32 %v6321, %v6343
        %v6379 = vadd.f32 %v6322, %v6347
        %v6380 = vadd.f32 %v6323, %v6343
        %v6381 = vadd.f32 %v6324, %v6347
        %v6382 = vadd.f32 %v6325, %v6343
        %v6383 = vadd.f32 %v6326, %v6347
        %v6384 = vadd.f32 %v6327, %v6343
        %v6385 = vadd.f32 %v6328, %v6347
        %v6386 = vadd.f32 %v6329, %v6343
        %v6387 = vadd.f32 %v6330, %v6347
        %v6388 = vadd.f32 %v6331, %v6343
        %v6389 = vadd.f32 %v6332, %v6347
        %v6390 = vadd.f32 %v6333, %v6343
        %v6391 = vadd.f32 %v6334, %v6347
        %v6392 = vadd.f32 %v6335, %v6343
        %v6393 = vadd.f32 %v6336, %v6347
        %v6394 = vtanh.pop %v6350
        %v6395 = vtanh.pop %v6351
        %v6396 = vtanh.pop %v6352
        %v6397 = vtanh.pop %v6353
        %v6398 = vtanh.pop %v6354
        %v6399 = vtanh.pop %v6355
        %v6400 = vtanh.pop %v6356
        %v6401 = vtanh.pop %v6357
        %v6402 = vtanh.pop %v6358
        %v6403 = vtanh.pop %v6359
        %v6404 = vtanh.pop %v6360
        %v6405 = vtanh.pop %v6361
        %v6406 = vtanh.pop %v6362
        %v6407 = vtanh.pop %v6363
        %v6408 = vtanh.pop %v6364
        %v6409 = vtanh.pop %v6365
        %v6410 = vtanh.pop %v6366
        %v6411 = vtanh.pop %v6367
        %v6412 = vtanh.pop %v6368
        %v6413 = vtanh.pop %v6369
        %v6414 = vtanh.pop %v6370
        %v6415 = vtanh.pop %v6371
        %v6416 = vtanh.pop %v6372
        %v6417 = vtanh.pop %v6373
        %v6418 = vtanh.pop %v6374
        %v6419 = vtanh.pop %v6375
        %v6420 = vtanh.pop %v6376
        %v6421 = vtanh.pop %v6377
        %v6422 = vtanh.pop %v6378
        %v6423 = vtanh.pop %v6379
        %v6424 = vtanh.pop %v6380
        %v6425 = vtanh.pop %v6381
        %v6426 = vtanh.pop %v6382
        %v6427 = vtanh.pop %v6383
        %v6428 = vtanh.pop %v6384
        %v6429 = vtanh.pop %v6385
        %v6430 = vtanh.pop %v6386
        %v6431 = vtanh.pop %v6387
        %v6432 = vtanh.pop %v6388
        %v6433 = vtanh.pop %v6389
        %v6434 = vtanh.pop %v6390
        %v6435 = vtanh.pop %v6391
        %v6436 = vtanh.pop %v6392
        %v6437 = vtanh.pop %v6393
        %s6438 = scalar_lea.vmem %s8, 3
        %v6439 = vld [vmem:[%s6438] ss:$8 sm:$0x3]
        %v6441 = vlaneseq
        %v6442 = vshrl.u32 %v6441, 7
        %v6443 = vsub.s32 0, %v6442
        %v6444 = vrot.slane %v6439, %v6443
        %v6445 = vlaneseq
        %v6446 = vshrl.u32 %v6445, 7
        %v6447 = vsub.s32 1, %v6446
        %v6448 = vrot.slane %v6439, %v6447
        %v6451 = vmul.f32 %v6394, %v6444
        %v6452 = vmul.f32 %v6395, %v6448
        %v6453 = vmul.f32 %v6396, %v6444
        %v6454 = vmul.f32 %v6397, %v6448
        %v6455 = vmul.f32 %v6398, %v6444
        %v6456 = vmul.f32 %v6399, %v6448
        %v6457 = vmul.f32 %v6400, %v6444
        %v6458 = vmul.f32 %v6401, %v6448
        %v6459 = vmul.f32 %v6402, %v6444
        %v6460 = vmul.f32 %v6403, %v6448
        %v6461 = vmul.f32 %v6404, %v6444
        %v6462 = vmul.f32 %v6405, %v6448
        %v6463 = vmul.f32 %v6406, %v6444
        %v6464 = vmul.f32 %v6407, %v6448
        %v6465 = vmul.f32 %v6408, %v6444
        %v6466 = vmul.f32 %v6409, %v6448
        %v6467 = vmul.f32 %v6410, %v6444
        %v6468 = vmul.f32 %v6411, %v6448
        %v6469 = vmul.f32 %v6412, %v6444
        %v6470 = vmul.f32 %v6413, %v6448
        %v6471 = vmul.f32 %v6414, %v6444
        %v6472 = vmul.f32 %v6415, %v6448
        %v6473 = vmul.f32 %v6416, %v6444
        %v6474 = vmul.f32 %v6417, %v6448
        %v6475 = vmul.f32 %v6418, %v6444
        %v6476 = vmul.f32 %v6419, %v6448
        %v6477 = vmul.f32 %v6420, %v6444
        %v6478 = vmul.f32 %v6421, %v6448
        %v6479 = vmul.f32 %v6422, %v6444
        %v6480 = vmul.f32 %v6423, %v6448
        %v6481 = vmul.f32 %v6424, %v6444
        %v6482 = vmul.f32 %v6425, %v6448
        %v6483 = vmul.f32 %v6426, %v6444
        %v6484 = vmul.f32 %v6427, %v6448
        %v6485 = vmul.f32 %v6428, %v6444
        %v6486 = vmul.f32 %v6429, %v6448
        %v6487 = vmul.f32 %v6430, %v6444
        %v6488 = vmul.f32 %v6431, %v6448
        %v6489 = vmul.f32 %v6432, %v6444
        %v6490 = vmul.f32 %v6433, %v6448
        %v6491 = vmul.f32 %v6434, %v6444
        %v6492 = vmul.f32 %v6435, %v6448
        %v6493 = vmul.f32 %v6436, %v6444
        %v6494 = vmul.f32 %v6437, %v6448
        %s6495 = scalar_lea.vmem %s8, 4
        %v6496 = vld [vmem:[%s6495] ss:$8 sm:$0x3]
        %v6498 = vlaneseq
        %v6499 = vshrl.u32 %v6498, 7
        %v6500 = vsub.s32 0, %v6499
        %v6501 = vrot.slane %v6496, %v6500
        %v6502 = vlaneseq
        %v6503 = vshrl.u32 %v6502, 7
        %v6504 = vsub.s32 1, %v6503
        %v6505 = vrot.slane %v6496, %v6504
        %v6508 = vadd.f32 %v6451, %v6501
        %v6509 = vadd.f32 %v6452, %v6505
        %v6510 = vadd.f32 %v6453, %v6501
        %v6511 = vadd.f32 %v6454, %v6505
        %v6512 = vadd.f32 %v6455, %v6501
        %v6513 = vadd.f32 %v6456, %v6505
        %v6514 = vadd.f32 %v6457, %v6501
        %v6515 = vadd.f32 %v6458, %v6505
        %v6516 = vadd.f32 %v6459, %v6501
        %v6517 = vadd.f32 %v6460, %v6505
        %v6518 = vadd.f32 %v6461, %v6501
        %v6519 = vadd.f32 %v6462, %v6505
        %v6520 = vadd.f32 %v6463, %v6501
        %v6521 = vadd.f32 %v6464, %v6505
        %v6522 = vadd.f32 %v6465, %v6501
        %v6523 = vadd.f32 %v6466, %v6505
        %v6524 = vadd.f32 %v6467, %v6501
        %v6525 = vadd.f32 %v6468, %v6505
        %v6526 = vadd.f32 %v6469, %v6501
        %v6527 = vadd.f32 %v6470, %v6505
        %v6528 = vadd.f32 %v6471, %v6501
        %v6529 = vadd.f32 %v6472, %v6505
        %v6530 = vadd.f32 %v6473, %v6501
        %v6531 = vadd.f32 %v6474, %v6505
        %v6532 = vadd.f32 %v6475, %v6501
        %v6533 = vadd.f32 %v6476, %v6505
        %v6534 = vadd.f32 %v6477, %v6501
        %v6535 = vadd.f32 %v6478, %v6505
        %v6536 = vadd.f32 %v6479, %v6501
        %v6537 = vadd.f32 %v6480, %v6505
        %v6538 = vadd.f32 %v6481, %v6501
        %v6539 = vadd.f32 %v6482, %v6505
        %v6540 = vadd.f32 %v6483, %v6501
        %v6541 = vadd.f32 %v6484, %v6505
        %v6542 = vadd.f32 %v6485, %v6501
        %v6543 = vadd.f32 %v6486, %v6505
        %v6544 = vadd.f32 %v6487, %v6501
        %v6545 = vadd.f32 %v6488, %v6505
        %v6546 = vadd.f32 %v6489, %v6501
        %v6547 = vadd.f32 %v6490, %v6505
        %v6548 = vadd.f32 %v6491, %v6501
        %v6549 = vadd.f32 %v6492, %v6505
        %v6550 = vadd.f32 %v6493, %v6501
        %v6551 = vadd.f32 %v6494, %v6505
        %v6552 = vld [vmem:[%s4] sm:$0xff]
        %v6553 = vld [vmem:[%s4 + $0x8] sm:$0xff]
        %v6554 = vld [vmem:[%s4 + $0x10] sm:$0xff]
        %v6555 = vld [vmem:[%s4 + $0x18] sm:$0xff]
        %v6556 = vld [vmem:[%s4 + $0x20] sm:$0xff]
        %v6557 = vld [vmem:[%s4 + $0x28] sm:$0xff]
        %v6558 = vld [vmem:[%s4 + $0x30] sm:$0xff]
        %v6559 = vld [vmem:[%s4 + $0x38] sm:$0xff]
        %v6560 = vld [vmem:[%s4 + $0x40] sm:$0xff]
        %v6561 = vld [vmem:[%s4 + $0x48] sm:$0xff]
        %v6562 = vld [vmem:[%s4 + $0x50] sm:$0xff]
        %v6563 = vld [vmem:[%s4 + $0x58] sm:$0xff]
        %v6564 = vld [vmem:[%s4 + $0x60] sm:$0xff]
        %v6565 = vld [vmem:[%s4 + $0x68] sm:$0xff]
        %v6566 = vld [vmem:[%s4 + $0x70] sm:$0xff]
        %v6567 = vld [vmem:[%s4 + $0x78] sm:$0xff]
        %v6568 = vld [vmem:[%s4 + $0x80] sm:$0xff]
        %v6569 = vld [vmem:[%s4 + $0x88] sm:$0xff]
        %v6570 = vld [vmem:[%s4 + $0x90] sm:$0xff]
        %v6571 = vld [vmem:[%s4 + $0x98] sm:$0xff]
        %v6572 = vld [vmem:[%s4 + $0xa0] sm:$0xff]
        %v6573 = vld [vmem:[%s4 + $0xa8] sm:$0xff]
        %v6574 = vld [vmem:[%s4 + $0xb0] sm:$0xff]
        %v6575 = vld [vmem:[%s4 + $0xb8] sm:$0xff]
        %v6576 = vld [vmem:[%s4 + $0xc0] sm:$0xff]
        %v6577 = vld [vmem:[%s4 + $0xc8] sm:$0xff]
        %v6578 = vld [vmem:[%s4 + $0xd0] sm:$0xff]
        %v6579 = vld [vmem:[%s4 + $0xd8] sm:$0xff]
        %v6580 = vld [vmem:[%s4 + $0xe0] sm:$0xff]
        %v6581 = vld [vmem:[%s4 + $0xe8] sm:$0xff]
        %v6582 = vld [vmem:[%s4 + $0xf0] sm:$0xff]
        %v6583 = vld [vmem:[%s4 + $0xf8] sm:$0xff]
        %v6584 = vld [vmem:[%s4 + $0x100] sm:$0xff]
        %v6585 = vld [vmem:[%s4 + $0x108] sm:$0xff]
        %v6586 = vld [vmem:[%s4 + $0x110] sm:$0xff]
        %v6587 = vld [vmem:[%s4 + $0x118] sm:$0xff]
        %v6588 = vld [vmem:[%s4 + $0x120] sm:$0xff]
        %v6589 = vld [vmem:[%s4 + $0x128] sm:$0xff]
        %v6590 = vld [vmem:[%s4 + $0x130] sm:$0xff]
        %v6591 = vld [vmem:[%s4 + $0x138] sm:$0xff]
        %v6592 = vld [vmem:[%s4 + $0x140] sm:$0xff]
        %v6593 = vld [vmem:[%s4 + $0x148] sm:$0xff]
        %v6594 = vld [vmem:[%s4 + $0x150] sm:$0xff]
        %v6595 = vld [vmem:[%s4 + $0x158] sm:$0xff]
        %v6596 = vld [vmem:[%s4 + $0x160] sm:$0xff]
        %v6597 = vld [vmem:[%s4 + $0x168] sm:$0xff]
        %v6598 = vld [vmem:[%s4 + $0x170] sm:$0xff]
        %v6599 = vld [vmem:[%s4 + $0x178] sm:$0xff]
        %s6600 = scalar_lea.vmem %s4, 384
        %v6601 = vld [vmem:[%s6600] sm:$0xff]
        %v6602 = vld [vmem:[%s6600 + $0x8] sm:$0xff]
        %v6603 = vld [vmem:[%s6600 + $0x10] sm:$0xff]
        %v6604 = vld [vmem:[%s6600 + $0x18] sm:$0xff]
        %v6605 = vld [vmem:[%s6600 + $0x20] sm:$0xff]
        %v6606 = vld [vmem:[%s6600 + $0x28] sm:$0xff]
        %v6607 = vld [vmem:[%s6600 + $0x30] sm:$0xff]
        %v6608 = vld [vmem:[%s6600 + $0x38] sm:$0xff]
        %v6609 = vld [vmem:[%s6600 + $0x40] sm:$0xff]
        %v6610 = vld [vmem:[%s6600 + $0x48] sm:$0xff]
        %v6611 = vld [vmem:[%s6600 + $0x50] sm:$0xff]
        %v6612 = vld [vmem:[%s6600 + $0x58] sm:$0xff]
        %v6613 = vld [vmem:[%s6600 + $0x60] sm:$0xff]
        %v6614 = vld [vmem:[%s6600 + $0x68] sm:$0xff]
        %v6615 = vld [vmem:[%s6600 + $0x70] sm:$0xff]
        %v6616 = vld [vmem:[%s6600 + $0x78] sm:$0xff]
        %v6617 = vld [vmem:[%s6600 + $0x80] sm:$0xff]
        %v6618 = vld [vmem:[%s6600 + $0x88] sm:$0xff]
        %v6619 = vld [vmem:[%s6600 + $0x90] sm:$0xff]
        %v6620 = vld [vmem:[%s6600 + $0x98] sm:$0xff]
        %v6621 = vld [vmem:[%s6600 + $0xa0] sm:$0xff]
        %v6622 = vld [vmem:[%s6600 + $0xa8] sm:$0xff]
        %v6623 = vld [vmem:[%s6600 + $0xb0] sm:$0xff]
        %v6624 = vld [vmem:[%s6600 + $0xb8] sm:$0xff]
        %v6625 = vld [vmem:[%s6600 + $0xc0] sm:$0xff]
        %v6626 = vld [vmem:[%s6600 + $0xc8] sm:$0xff]
        %v6627 = vld [vmem:[%s6600 + $0xd0] sm:$0xff]
        %v6628 = vld [vmem:[%s6600 + $0xd8] sm:$0xff]
        %v6629 = vld [vmem:[%s6600 + $0xe0] sm:$0xff]
        %v6630 = vld [vmem:[%s6600 + $0xe8] sm:$0xff]
        %v6631 = vld [vmem:[%s6600 + $0xf0] sm:$0xff]
        %v6632 = vld [vmem:[%s6600 + $0xf8] sm:$0xff]
        %v6633 = vld [vmem:[%s6600 + $0x100] sm:$0xff]
        %v6634 = vld [vmem:[%s6600 + $0x108] sm:$0xff]
        %v6635 = vld [vmem:[%s6600 + $0x110] sm:$0xff]
        %v6636 = vld [vmem:[%s6600 + $0x118] sm:$0xff]
        %v6637 = vld [vmem:[%s6600 + $0x120] sm:$0xff]
        %v6638 = vld [vmem:[%s6600 + $0x128] sm:$0xff]
        %v6639 = vld [vmem:[%s6600 + $0x130] sm:$0xff]
        %v6640 = vld [vmem:[%s6600 + $0x138] sm:$0xff]
        %v6641 = vld [vmem:[%s6600 + $0x140] sm:$0xff]
        %v6642 = vld [vmem:[%s6600 + $0x148] sm:$0xff]
        %v6643 = vld [vmem:[%s6600 + $0x150] sm:$0xff]
        %v6644 = vld [vmem:[%s6600 + $0x158] sm:$0xff]
        %v6645 = vld [vmem:[%s6600 + $0x160] sm:$0xff]
        %v6646 = vld [vmem:[%s6600 + $0x168] sm:$0xff]
        %v6647 = vld [vmem:[%s6600 + $0x170] sm:$0xff]
        %v6648 = vld [vmem:[%s6600 + $0x178] sm:$0xff]
        %v6650 = vsel %vm3784, %v6513, 0
        %v6653 = vsel %vm3784, %v6515, 0
        %v6656 = vsel %vm3784, %v6521, 0
        %v6659 = vsel %vm3784, %v6523, 0
        %v6662 = vsel %vm3784, %v6529, 0
        %v6665 = vsel %vm3784, %v6531, 0
        %v6668 = vsel %vm3784, %v6537, 0
        %v6671 = vsel %vm3784, %v6539, 0
        %v6674 = vsel %vm3784, %v6545, 0
        %v6677 = vsel %vm3784, %v6547, 0
        %6679 = vmatprep.subr.mxu0 %v6602
        %6680 = vmatpush1.msra.mxu0 %v6601
        %6681 = vmatprep.subr.mxu0 %v6604
        %6682 = vmatpush1.msra.mxu0 %v6603
        %6683 = vmatprep.subr.mxu0 %v6606
        %6684 = vmatpush1.msra.mxu0 %v6605
        %6685 = vmatprep.subr.mxu0 %v6608
        %6686 = vmatpush1.msra.mxu0 %v6607
        %6687 = vmatprep.subr.mxu0 %v6610
        %6688 = vmatpush1.msra.mxu0 %v6609
        %6689 = vmatprep.subr.mxu0 %v6612
        %6690 = vmatpush1.msra.mxu0 %v6611
        %6691 = vmatprep.subr.mxu0 %v6614
        %6692 = vmatpush1.msra.mxu0 %v6613
        %6693 = vmatprep.subr.mxu0 %v6616
        %6694 = vmatpush1.msra.mxu0 %v6615
        %6695 = vmatprep.subr.mxu0 %v6618
        %6696 = vmatpush1.msra.mxu0 %v6617
        %6697 = vmatprep.subr.mxu0 %v6620
        %6698 = vmatpush1.msra.mxu0 %v6619
        %6699 = vmatprep.subr.mxu0 %v6622
        %6700 = vmatpush1.msra.mxu0 %v6621
        %6701 = vmatprep.subr.mxu0 %v6624
        %6702 = vmatpush1.msra.mxu0 %v6623
        %6703 = vmatprep.subr.mxu0 %v6626
        %6704 = vmatpush1.msra.mxu0 %v6625
        %6705 = vmatprep.subr.mxu0 %v6628
        %6706 = vmatpush1.msra.mxu0 %v6627
        %6707 = vmatprep.subr.mxu0 %v6630
        %6708 = vmatpush1.msra.mxu0 %v6629
        %6709 = vmatprep.subr.mxu0 %v6632
        %6710 = vmatpush1.msra.mxu0 %v6631
        %6711 = vmatprep.subr.mxu0 %v6634
        %6712 = vmatpush1.msra.mxu0 %v6633
        %6713 = vmatprep.subr.mxu0 %v6636
        %6714 = vmatpush1.msra.mxu0 %v6635
        %6715 = vmatprep.subr.mxu0 %v6638
        %6716 = vmatpush1.msra.mxu0 %v6637
        %6717 = vmatprep.subr.mxu0 %v6640
        %6718 = vmatpush1.msra.mxu0 %v6639
        %6719 = vmatprep.subr.mxu0 %v6642
        %6720 = vmatpush1.msra.mxu0 %v6641
        %6721 = vmatprep.subr.mxu0 %v6644
        %6722 = vmatpush1.msra.mxu0 %v6643
        %6723 = vmatprep.subr.mxu0 %v6646
        %6724 = vmatpush1.msra.mxu0 %v6645
        %6725 = vmatprep.subr.mxu0 %v6648
        %6726 = vmatpush1.msra.mxu0 %v6647
        %6727 = vmatprep.subr.mxu0 0.0
        %6728 = vmatpush1.msra.mxu0 0.0
        %6729 = vmatprep.subr.mxu0 0.0
        %6730 = vmatpush1.msra.mxu0 0.0
        %6731 = vmatprep.subr.mxu0 0.0
        %6732 = vmatpush1.msra.mxu0 0.0
        %6733 = vmatprep.subr.mxu0 0.0
        %6734 = vmatpush1.msra.mxu0 0.0
        %6735 = vmatprep.subr.mxu0 0.0
        %6736 = vmatpush1.msra.mxu0 0.0
        %6737 = vmatprep.subr.mxu0 0.0
        %6738 = vmatpush1.msra.mxu0 0.0
        %6739 = vmatprep.subr.mxu0 0.0
        %6740 = vmatpush1.msra.mxu0 0.0
        %6741 = vmatprep.subr.mxu0 0.0
        %6742 = vmatpush1.msra.mxu0 0.0
        %6743 = vmatprep.mubr.f32.mxu0 %v6650
        %6744 = vmatmul.mubr.f32.gmra.mrb[0].mxu0 %v6512
        %v6745 = vpop.f32.mrb[0].mxu0
        %v6746 = vadd.f32 0.0, %v6745
        %v6747 = vpop.f32.mrb[0].mxu0
        %v6748 = vadd.f32 0.0, %v6747
        %6749 = vmatprep.mubr.f32.mxu0 %v6653
        %6750 = vmatmul.mubr.f32.gmra.mrb[0].mxu0 %v6514
        %v6751 = vpop.f32.mrb[0].mxu0
        %v6752 = vadd.f32 0.0, %v6751
        %v6753 = vpop.f32.mrb[0].mxu0
        %v6754 = vadd.f32 0.0, %v6753
        %6755 = vmatprep.mubr.f32.mxu0 %v6656
        %6756 = vmatmul.mubr.f32.gmra.mrb[0].mxu0 %v6520
        %v6757 = vpop.f32.mrb[0].mxu0
        %v6758 = vadd.f32 0.0, %v6757
        %v6759 = vpop.f32.mrb[0].mxu0
        %v6760 = vadd.f32 0.0, %v6759
        %6761 = vmatprep.mubr.f32.mxu0 %v6659
        %6762 = vmatmul.mubr.f32.gmra.mrb[0].mxu0 %v6522
        %v6763 = vpop.f32.mrb[0].mxu0
        %v6764 = vadd.f32 0.0, %v6763
        %v6765 = vpop.f32.mrb[0].mxu0
        %v6766 = vadd.f32 0.0, %v6765
        %6767 = vmatprep.mubr.f32.mxu0 %v6662
        %6768 = vmatmul.mubr.f32.gmra.mrb[0].mxu0 %v6528
        %v6769 = vpop.f32.mrb[0].mxu0
        %v6770 = vadd.f32 0.0, %v6769
        %v6771 = vpop.f32.mrb[0].mxu0
        %v6772 = vadd.f32 0.0, %v6771
        %6773 = vmatprep.mubr.f32.mxu0 %v6665
        %6774 = vmatmul.mubr.f32.gmra.mrb[0].mxu0 %v6530
        %v6775 = vpop.f32.mrb[0].mxu0
        %v6776 = vadd.f32 0.0, %v6775
        %v6777 = vpop.f32.mrb[0].mxu0
        %v6778 = vadd.f32 0.0, %v6777
        %6779 = vmatprep.mubr.f32.mxu0 %v6668
        %6780 = vmatmul.mubr.f32.gmra.mrb[0].mxu0 %v6536
        %v6781 = vpop.f32.mrb[0].mxu0
        %v6782 = vadd.f32 0.0, %v6781
        %v6783 = vpop.f32.mrb[0].mxu0
        %v6784 = vadd.f32 0.0, %v6783
        %6785 = vmatprep.mubr.f32.mxu0 %v6671
        %6786 = vmatmul.mubr.f32.gmra.mrb[0].mxu0 %v6538
        %v6787 = vpop.f32.mrb[0].mxu0
        %v6788 = vadd.f32 0.0, %v6787
        %v6789 = vpop.f32.mrb[0].mxu0
        %v6790 = vadd.f32 0.0, %v6789
        %6791 = vmatprep.mubr.f32.mxu0 %v6674
        %6792 = vmatmul.mubr.f32.gmra.mrb[0].mxu0 %v6544
        %v6793 = vpop.f32.mrb[0].mxu0
        %v6794 = vadd.f32 0.0, %v6793
        %v6795 = vpop.f32.mrb[0].mxu0
        %v6796 = vadd.f32 0.0, %v6795
        %6797 = vmatprep.mubr.f32.mxu0 %v6677
        %6798 = vmatmul.mubr.f32.gmra.mrb[0].mxu0 %v6546
        %v6799 = vpop.f32.mrb[0].mxu0
        %v6800 = vadd.f32 0.0, %v6799
        %v6801 = vpop.f32.mrb[0].mxu0
        %v6802 = vadd.f32 0.0, %v6801
        %6803 = vdwg.mxu0
        %v6805 = vsel %vm3784, %v6509, 0
        %v6808 = vsel %vm3784, %v6511, 0
        %v6811 = vsel %vm3784, %v6517, 0
        %v6814 = vsel %vm3784, %v6519, 0
        %v6817 = vsel %vm3784, %v6525, 0
        %v6820 = vsel %vm3784, %v6527, 0
        %v6823 = vsel %vm3784, %v6533, 0
        %v6826 = vsel %vm3784, %v6535, 0
        %v6829 = vsel %vm3784, %v6541, 0
        %v6832 = vsel %vm3784, %v6543, 0
        %6834 = vmatprep.subr.mxu0 %v6553
        %6835 = vmatpush1.msra.mxu0 %v6552
        %6836 = vmatprep.subr.mxu0 %v6555
        %6837 = vmatpush1.msra.mxu0 %v6554
        %6838 = vmatprep.subr.mxu0 %v6557
        %6839 = vmatpush1.msra.mxu0 %v6556
        %6840 = vmatprep.subr.mxu0 %v6559
        %6841 = vmatpush1.msra.mxu0 %v6558
        %6842 = vmatprep.subr.mxu0 %v6561
        %6843 = vmatpush1.msra.mxu0 %v6560
        %6844 = vmatprep.subr.mxu0 %v6563
        %6845 = vmatpush1.msra.mxu0 %v6562
        %6846 = vmatprep.subr.mxu0 %v6565
        %6847 = vmatpush1.msra.mxu0 %v6564
        %6848 = vmatprep.subr.mxu0 %v6567
        %6849 = vmatpush1.msra.mxu0 %v6566
        %6850 = vmatprep.subr.mxu0 %v6569
        %6851 = vmatpush1.msra.mxu0 %v6568
        %6852 = vmatprep.subr.mxu0 %v6571
        %6853 = vmatpush1.msra.mxu0 %v6570
        %6854 = vmatprep.subr.mxu0 %v6573
        %6855 = vmatpush1.msra.mxu0 %v6572
        %6856 = vmatprep.subr.mxu0 %v6575
        %6857 = vmatpush1.msra.mxu0 %v6574
        %6858 = vmatprep.subr.mxu0 %v6577
        %6859 = vmatpush1.msra.mxu0 %v6576
        %6860 = vmatprep.subr.mxu0 %v6579
        %6861 = vmatpush1.msra.mxu0 %v6578
        %6862 = vmatprep.subr.mxu0 %v6581
        %6863 = vmatpush1.msra.mxu0 %v6580
        %6864 = vmatprep.subr.mxu0 %v6583
        %6865 = vmatpush1.msra.mxu0 %v6582
        %6866 = vmatprep.subr.mxu0 %v6585
        %6867 = vmatpush1.msra.mxu0 %v6584
        %6868 = vmatprep.subr.mxu0 %v6587
        %6869 = vmatpush1.msra.mxu0 %v6586
        %6870 = vmatprep.subr.mxu0 %v6589
        %6871 = vmatpush1.msra.mxu0 %v6588
        %6872 = vmatprep.subr.mxu0 %v6591
        %6873 = vmatpush1.msra.mxu0 %v6590
        %6874 = vmatprep.subr.mxu0 %v6593
        %6875 = vmatpush1.msra.mxu0 %v6592
        %6876 = vmatprep.subr.mxu0 %v6595
        %6877 = vmatpush1.msra.mxu0 %v6594
        %6878 = vmatprep.subr.mxu0 %v6597
        %6879 = vmatpush1.msra.mxu0 %v6596
        %6880 = vmatprep.subr.mxu0 %v6599
        %6881 = vmatpush1.msra.mxu0 %v6598
        %6882 = vmatprep.subr.mxu0 0.0
        %6883 = vmatpush1.msra.mxu0 0.0
        %6884 = vmatprep.subr.mxu0 0.0
        %6885 = vmatpush1.msra.mxu0 0.0
        %6886 = vmatprep.subr.mxu0 0.0
        %6887 = vmatpush1.msra.mxu0 0.0
        %6888 = vmatprep.subr.mxu0 0.0
        %6889 = vmatpush1.msra.mxu0 0.0
        %6890 = vmatprep.subr.mxu0 0.0
        %6891 = vmatpush1.msra.mxu0 0.0
        %6892 = vmatprep.subr.mxu0 0.0
        %6893 = vmatpush1.msra.mxu0 0.0
        %6894 = vmatprep.subr.mxu0 0.0
        %6895 = vmatpush1.msra.mxu0 0.0
        %6896 = vmatprep.subr.mxu0 0.0
        %6897 = vmatpush1.msra.mxu0 0.0
        %6898 = vmatprep.mubr.f32.mxu0 %v6805
        %6899 = vmatmul.mubr.f32.gmra.mrb[0].mxu0 %v6508
        %v6900 = vpop.f32.mrb[0].mxu0
        %v6901 = vadd.f32 %v6746, %v6900
        %v6902 = vpop.f32.mrb[0].mxu0
        %v6903 = vadd.f32 %v6748, %v6902
        %6904 = vmatprep.mubr.f32.mxu0 %v6808
        %6905 = vmatmul.mubr.f32.gmra.mrb[0].mxu0 %v6510
        %v6906 = vpop.f32.mrb[0].mxu0
        %v6907 = vadd.f32 %v6752, %v6906
        %v6908 = vpop.f32.mrb[0].mxu0
        %v6909 = vadd.f32 %v6754, %v6908
        %6910 = vmatprep.mubr.f32.mxu0 %v6811
        %6911 = vmatmul.mubr.f32.gmra.mrb[0].mxu0 %v6516
        %v6912 = vpop.f32.mrb[0].mxu0
        %v6913 = vadd.f32 %v6758, %v6912
        %v6914 = vpop.f32.mrb[0].mxu0
        %v6915 = vadd.f32 %v6760, %v6914
        %6916 = vmatprep.mubr.f32.mxu0 %v6814
        %6917 = vmatmul.mubr.f32.gmra.mrb[0].mxu0 %v6518
        %v6918 = vpop.f32.mrb[0].mxu0
        %v6919 = vadd.f32 %v6764, %v6918
        %v6920 = vpop.f32.mrb[0].mxu0
        %v6921 = vadd.f32 %v6766, %v6920
        %6922 = vmatprep.mubr.f32.mxu0 %v6817
        %6923 = vmatmul.mubr.f32.gmra.mrb[0].mxu0 %v6524
        %v6924 = vpop.f32.mrb[0].mxu0
        %v6925 = vadd.f32 %v6770, %v6924
        %v6926 = vpop.f32.mrb[0].mxu0
        %v6927 = vadd.f32 %v6772, %v6926
        %6928 = vmatprep.mubr.f32.mxu0 %v6820
        %6929 = vmatmul.mubr.f32.gmra.mrb[0].mxu0 %v6526
        %v6930 = vpop.f32.mrb[0].mxu0
        %v6931 = vadd.f32 %v6776, %v6930
        %v6932 = vpop.f32.mrb[0].mxu0
        %v6933 = vadd.f32 %v6778, %v6932
        %6934 = vmatprep.mubr.f32.mxu0 %v6823
        %6935 = vmatmul.mubr.f32.gmra.mrb[0].mxu0 %v6532
        %v6936 = vpop.f32.mrb[0].mxu0
        %v6937 = vadd.f32 %v6782, %v6936
        %v6938 = vpop.f32.mrb[0].mxu0
        %v6939 = vadd.f32 %v6784, %v6938
        %6940 = vmatprep.mubr.f32.mxu0 %v6826
        %6941 = vmatmul.mubr.f32.gmra.mrb[0].mxu0 %v6534
        %v6942 = vpop.f32.mrb[0].mxu0
        %v6943 = vadd.f32 %v6788, %v6942
        %v6944 = vpop.f32.mrb[0].mxu0
        %v6945 = vadd.f32 %v6790, %v6944
        %6946 = vmatprep.mubr.f32.mxu0 %v6829
        %6947 = vmatmul.mubr.f32.gmra.mrb[0].mxu0 %v6540
        %v6948 = vpop.f32.mrb[0].mxu0
        %v6949 = vadd.f32 %v6794, %v6948
        %v6950 = vpop.f32.mrb[0].mxu0
        %v6951 = vadd.f32 %v6796, %v6950
        %6952 = vmatprep.mubr.f32.mxu0 %v6832
        %6953 = vmatmul.mubr.f32.gmra.mrb[0].mxu0 %v6542
        %v6954 = vpop.f32.mrb[0].mxu0
        %v6955 = vadd.f32 %v6800, %v6954
        %v6956 = vpop.f32.mrb[0].mxu0
        %v6957 = vadd.f32 %v6802, %v6956
        %6958 = vdwg.mxu0
        %s6959 = scalar_lea.vmem %s4, 768
        %v6960 = vld [vmem:[%s6959] sm:$0xff]
        %v6961 = vld [vmem:[%s6959 + $0x8] sm:$0xff]
        %v6962 = vld [vmem:[%s6959 + $0x10] sm:$0xff]
        %v6963 = vld [vmem:[%s6959 + $0x18] sm:$0xff]
        %v6964 = vld [vmem:[%s6959 + $0x20] sm:$0xff]
        %v6965 = vld [vmem:[%s6959 + $0x28] sm:$0xff]
        %v6966 = vld [vmem:[%s6959 + $0x30] sm:$0xff]
        %v6967 = vld [vmem:[%s6959 + $0x38] sm:$0xff]
        %v6968 = vld [vmem:[%s6959 + $0x40] sm:$0xff]
        %v6969 = vld [vmem:[%s6959 + $0x48] sm:$0xff]
        %v6970 = vld [vmem:[%s6959 + $0x50] sm:$0xff]
        %v6971 = vld [vmem:[%s6959 + $0x58] sm:$0xff]
        %v6972 = vld [vmem:[%s6959 + $0x60] sm:$0xff]
        %v6973 = vld [vmem:[%s6959 + $0x68] sm:$0xff]
        %v6974 = vld [vmem:[%s6959 + $0x70] sm:$0xff]
        %v6975 = vld [vmem:[%s6959 + $0x78] sm:$0xff]
        %v6976 = vld [vmem:[%s6959 + $0x80] sm:$0xff]
        %v6977 = vld [vmem:[%s6959 + $0x88] sm:$0xff]
        %v6978 = vld [vmem:[%s6959 + $0x90] sm:$0xff]
        %v6979 = vld [vmem:[%s6959 + $0x98] sm:$0xff]
        %v6980 = vld [vmem:[%s6959 + $0xa0] sm:$0xff]
        %v6981 = vld [vmem:[%s6959 + $0xa8] sm:$0xff]
        %v6982 = vld [vmem:[%s6959 + $0xb0] sm:$0xff]
        %v6983 = vld [vmem:[%s6959 + $0xb8] sm:$0xff]
        %v6984 = vld [vmem:[%s6959 + $0xc0] sm:$0xff]
        %v6985 = vld [vmem:[%s6959 + $0xc8] sm:$0xff]
        %v6986 = vld [vmem:[%s6959 + $0xd0] sm:$0xff]
        %v6987 = vld [vmem:[%s6959 + $0xd8] sm:$0xff]
        %v6988 = vld [vmem:[%s6959 + $0xe0] sm:$0xff]
        %v6989 = vld [vmem:[%s6959 + $0xe8] sm:$0xff]
        %v6990 = vld [vmem:[%s6959 + $0xf0] sm:$0xff]
        %v6991 = vld [vmem:[%s6959 + $0xf8] sm:$0xff]
        %v6992 = vld [vmem:[%s6959 + $0x100] sm:$0xff]
        %v6993 = vld [vmem:[%s6959 + $0x108] sm:$0xff]
        %v6994 = vld [vmem:[%s6959 + $0x110] sm:$0xff]
        %v6995 = vld [vmem:[%s6959 + $0x118] sm:$0xff]
        %v6996 = vld [vmem:[%s6959 + $0x120] sm:$0xff]
        %v6997 = vld [vmem:[%s6959 + $0x128] sm:$0xff]
        %v6998 = vld [vmem:[%s6959 + $0x130] sm:$0xff]
        %v6999 = vld [vmem:[%s6959 + $0x138] sm:$0xff]
        %v7000 = vld [vmem:[%s6959 + $0x140] sm:$0xff]
        %v7001 = vld [vmem:[%s6959 + $0x148] sm:$0xff]
        %v7002 = vld [vmem:[%s6959 + $0x150] sm:$0xff]
        %v7003 = vld [vmem:[%s6959 + $0x158] sm:$0xff]
        %v7004 = vld [vmem:[%s6959 + $0x160] sm:$0xff]
        %v7005 = vld [vmem:[%s6959 + $0x168] sm:$0xff]
        %v7006 = vld [vmem:[%s6959 + $0x170] sm:$0xff]
        %v7007 = vld [vmem:[%s6959 + $0x178] sm:$0xff]
        %v7009 = vsel %vm3784, %v6549, 0
        %v7012 = vsel %vm3784, %v6551, 0
        %7014 = vmatprep.subr.mxu0 %v6961
        %7015 = vmatpush1.msra.mxu0 %v6960
        %7016 = vmatprep.subr.mxu0 %v6963
        %7017 = vmatpush1.msra.mxu0 %v6962
        %7018 = vmatprep.subr.mxu0 %v6965
        %7019 = vmatpush1.msra.mxu0 %v6964
        %7020 = vmatprep.subr.mxu0 %v6967
        %7021 = vmatpush1.msra.mxu0 %v6966
        %7022 = vmatprep.subr.mxu0 %v6969
        %7023 = vmatpush1.msra.mxu0 %v6968
        %7024 = vmatprep.subr.mxu0 %v6971
        %7025 = vmatpush1.msra.mxu0 %v6970
        %7026 = vmatprep.subr.mxu0 %v6973
        %7027 = vmatpush1.msra.mxu0 %v6972
        %7028 = vmatprep.subr.mxu0 %v6975
        %7029 = vmatpush1.msra.mxu0 %v6974
        %7030 = vmatprep.subr.mxu0 %v6977
        %7031 = vmatpush1.msra.mxu0 %v6976
        %7032 = vmatprep.subr.mxu0 %v6979
        %7033 = vmatpush1.msra.mxu0 %v6978
        %7034 = vmatprep.subr.mxu0 %v6981
        %7035 = vmatpush1.msra.mxu0 %v6980
        %7036 = vmatprep.subr.mxu0 %v6983
        %7037 = vmatpush1.msra.mxu0 %v6982
        %7038 = vmatprep.subr.mxu0 %v6985
        %7039 = vmatpush1.msra.mxu0 %v6984
        %7040 = vmatprep.subr.mxu0 %v6987
        %7041 = vmatpush1.msra.mxu0 %v6986
        %7042 = vmatprep.subr.mxu0 %v6989
        %7043 = vmatpush1.msra.mxu0 %v6988
        %7044 = vmatprep.subr.mxu0 %v6991
        %7045 = vmatpush1.msra.mxu0 %v6990
        %7046 = vmatprep.subr.mxu0 %v6993
        %7047 = vmatpush1.msra.mxu0 %v6992
        %7048 = vmatprep.subr.mxu0 %v6995
        %7049 = vmatpush1.msra.mxu0 %v6994
        %7050 = vmatprep.subr.mxu0 %v6997
        %7051 = vmatpush1.msra.mxu0 %v6996
        %7052 = vmatprep.subr.mxu0 %v6999
        %7053 = vmatpush1.msra.mxu0 %v6998
        %7054 = vmatprep.subr.mxu0 %v7001
        %7055 = vmatpush1.msra.mxu0 %v7000
        %7056 = vmatprep.subr.mxu0 %v7003
        %7057 = vmatpush1.msra.mxu0 %v7002
        %7058 = vmatprep.subr.mxu0 %v7005
        %7059 = vmatpush1.msra.mxu0 %v7004
        %7060 = vmatprep.subr.mxu0 %v7007
        %7061 = vmatpush1.msra.mxu0 %v7006
        %7062 = vmatprep.subr.mxu0 0.0
        %7063 = vmatpush1.msra.mxu0 0.0
        %7064 = vmatprep.subr.mxu0 0.0
        %7065 = vmatpush1.msra.mxu0 0.0
        %7066 = vmatprep.subr.mxu0 0.0
        %7067 = vmatpush1.msra.mxu0 0.0
        %7068 = vmatprep.subr.mxu0 0.0
        %7069 = vmatpush1.msra.mxu0 0.0
        %7070 = vmatprep.subr.mxu0 0.0
        %7071 = vmatpush1.msra.mxu0 0.0
        %7072 = vmatprep.subr.mxu0 0.0
        %7073 = vmatpush1.msra.mxu0 0.0
        %7074 = vmatprep.subr.mxu0 0.0
        %7075 = vmatpush1.msra.mxu0 0.0
        %7076 = vmatprep.subr.mxu0 0.0
        %7077 = vmatpush1.msra.mxu0 0.0
        %7078 = vmatprep.mubr.f32.mxu0 %v6811
        %7079 = vmatmul.mubr.f32.gmra.mrb[0].mxu0 %v6516
        %v7080 = vpop.f32.mrb[0].mxu0
        %v7081 = vadd.f32 0.0, %v7080
        %v7082 = vpop.f32.mrb[0].mxu0
        %v7083 = vadd.f32 0.0, %v7082
        %7084 = vmatprep.mubr.f32.mxu0 %v6814
        %7085 = vmatmul.mubr.f32.gmra.mrb[0].mxu0 %v6518
        %v7086 = vpop.f32.mrb[0].mxu0
        %v7087 = vadd.f32 0.0, %v7086
        %v7088 = vpop.f32.mrb[0].mxu0
        %v7089 = vadd.f32 0.0, %v7088
        %7090 = vmatprep.mubr.f32.mxu0 %v6817
        %7091 = vmatmul.mubr.f32.gmra.mrb[0].mxu0 %v6524
        %v7092 = vpop.f32.mrb[0].mxu0
        %v7093 = vadd.f32 0.0, %v7092
        %v7094 = vpop.f32.mrb[0].mxu0
        %v7095 = vadd.f32 0.0, %v7094
        %7096 = vmatprep.mubr.f32.mxu0 %v6820
        %7097 = vmatmul.mubr.f32.gmra.mrb[0].mxu0 %v6526
        %v7098 = vpop.f32.mrb[0].mxu0
        %v7099 = vadd.f32 0.0, %v7098
        %v7100 = vpop.f32.mrb[0].mxu0
        %v7101 = vadd.f32 0.0, %v7100
        %7102 = vmatprep.mubr.f32.mxu0 %v6823
        %7103 = vmatmul.mubr.f32.gmra.mrb[0].mxu0 %v6532
        %v7104 = vpop.f32.mrb[0].mxu0
        %v7105 = vadd.f32 0.0, %v7104
        %v7106 = vpop.f32.mrb[0].mxu0
        %v7107 = vadd.f32 0.0, %v7106
        %7108 = vmatprep.mubr.f32.mxu0 %v6826
        %7109 = vmatmul.mubr.f32.gmra.mrb[0].mxu0 %v6534
        %v7110 = vpop.f32.mrb[0].mxu0
        %v7111 = vadd.f32 0.0, %v7110
        %v7112 = vpop.f32.mrb[0].mxu0
        %v7113 = vadd.f32 0.0, %v7112
        %7114 = vmatprep.mubr.f32.mxu0 %v6829
        %7115 = vmatmul.mubr.f32.gmra.mrb[0].mxu0 %v6540
        %v7116 = vpop.f32.mrb[0].mxu0
        %v7117 = vadd.f32 0.0, %v7116
        %v7118 = vpop.f32.mrb[0].mxu0
        %v7119 = vadd.f32 0.0, %v7118
        %7120 = vmatprep.mubr.f32.mxu0 %v6832
        %7121 = vmatmul.mubr.f32.gmra.mrb[0].mxu0 %v6542
        %v7122 = vpop.f32.mrb[0].mxu0
        %v7123 = vadd.f32 0.0, %v7122
        %v7124 = vpop.f32.mrb[0].mxu0
        %v7125 = vadd.f32 0.0, %v7124
        %7126 = vmatprep.mubr.f32.mxu0 %v7009
        %7127 = vmatmul.mubr.f32.gmra.mrb[0].mxu0 %v6548
        %v7128 = vpop.f32.mrb[0].mxu0
        %v7129 = vadd.f32 0.0, %v7128
        %v7130 = vpop.f32.mrb[0].mxu0
        %v7131 = vadd.f32 0.0, %v7130
        %7132 = vmatprep.mubr.f32.mxu0 %v7012
        %7133 = vmatmul.mubr.f32.gmra.mrb[0].mxu0 %v6550
        %v7134 = vpop.f32.mrb[0].mxu0
        %v7135 = vadd.f32 0.0, %v7134
        %v7136 = vpop.f32.mrb[0].mxu0
        %v7137 = vadd.f32 0.0, %v7136
        %7138 = vdwg.mxu0
        %v7139 = vadd.f32 %v6901, %v7081
        %v7140 = vadd.f32 %v6903, %v7083
        %v7141 = vadd.f32 %v6907, %v7087
        %v7142 = vadd.f32 %v6909, %v7089
        %v7143 = vadd.f32 %v6913, %v7093
        %v7144 = vadd.f32 %v6915, %v7095
        %v7145 = vadd.f32 %v6919, %v7099
        %v7146 = vadd.f32 %v6921, %v7101
        %v7147 = vadd.f32 %v6925, %v7105
        %v7148 = vadd.f32 %v6927, %v7107
        %v7149 = vadd.f32 %v6931, %v7111
        %v7150 = vadd.f32 %v6933, %v7113
        %v7151 = vadd.f32 %v6937, %v7117
        %v7152 = vadd.f32 %v6939, %v7119
        %v7153 = vadd.f32 %v6943, %v7123
        %v7154 = vadd.f32 %v6945, %v7125
        %v7155 = vadd.f32 %v6949, %v7129
        %v7156 = vadd.f32 %v6951, %v7131
        %v7157 = vadd.f32 %v6955, %v7135
        %v7158 = vadd.f32 %v6957, %v7137
        %s7159 = scalar_lea.vmem %s8, 5
        %v7160 = vld [vmem:[%s7159] ss:$8 sm:$0x3]
        %v7162 = vlaneseq
        %v7163 = vshrl.u32 %v7162, 7
        %v7164 = vsub.s32 0, %v7163
        %v7165 = vrot.slane %v7160, %v7164
        %v7166 = vlaneseq
        %v7167 = vshrl.u32 %v7166, 7
        %v7168 = vsub.s32 1, %v7167
        %v7169 = vrot.slane %v7160, %v7168
        %v7172 = vadd.f32 %v7139, %v7165
        %v7173 = vadd.f32 %v7140, %v7169
        %v7174 = vadd.f32 %v7141, %v7165
        %v7175 = vadd.f32 %v7142, %v7169
        %v7176 = vadd.f32 %v7143, %v7165
        %v7177 = vadd.f32 %v7144, %v7169
        %v7178 = vadd.f32 %v7145, %v7165
        %v7179 = vadd.f32 %v7146, %v7169
        %v7180 = vadd.f32 %v7147, %v7165
        %v7181 = vadd.f32 %v7148, %v7169
        %v7182 = vadd.f32 %v7149, %v7165
        %v7183 = vadd.f32 %v7150, %v7169
        %v7184 = vadd.f32 %v7151, %v7165
        %v7185 = vadd.f32 %v7152, %v7169
        %v7186 = vadd.f32 %v7153, %v7165
        %v7187 = vadd.f32 %v7154, %v7169
        %v7188 = vadd.f32 %v7155, %v7165
        %v7189 = vadd.f32 %v7156, %v7169
        %v7190 = vadd.f32 %v7157, %v7165
        %v7191 = vadd.f32 %v7158, %v7169
        %v7192 = vtanh.pop %v7172
        %v7193 = vtanh.pop %v7173
        %v7194 = vtanh.pop %v7174
        %v7195 = vtanh.pop %v7175
        %v7196 = vtanh.pop %v7176
        %v7197 = vtanh.pop %v7177
        %v7198 = vtanh.pop %v7178
        %v7199 = vtanh.pop %v7179
        %v7200 = vtanh.pop %v7180
        %v7201 = vtanh.pop %v7181
        %v7202 = vtanh.pop %v7182
        %v7203 = vtanh.pop %v7183
        %v7204 = vtanh.pop %v7184
        %v7205 = vtanh.pop %v7185
        %v7206 = vtanh.pop %v7186
        %v7207 = vtanh.pop %v7187
        %v7208 = vtanh.pop %v7188
        %v7209 = vtanh.pop %v7189
        %v7210 = vtanh.pop %v7190
        %v7211 = vtanh.pop %v7191
        %v7212 = vld [vmem:[%s5] sm:$0xff]
        %v7213 = vld [vmem:[%s5 + $0x8] sm:$0xff]
        %v7214 = vld [vmem:[%s5 + $0x10] sm:$0xff]
        %v7215 = vld [vmem:[%s5 + $0x18] sm:$0xff]
        %v7216 = vld [vmem:[%s5 + $0x20] sm:$0xff]
        %v7217 = vld [vmem:[%s5 + $0x28] sm:$0xff]
        %v7218 = vld [vmem:[%s5 + $0x30] sm:$0xff]
        %v7219 = vld [vmem:[%s5 + $0x38] sm:$0xff]
        %v7220 = vld [vmem:[%s5 + $0x40] sm:$0xff]
        %v7221 = vld [vmem:[%s5 + $0x48] sm:$0xff]
        %v7222 = vld [vmem:[%s5 + $0x50] sm:$0xff]
        %v7223 = vld [vmem:[%s5 + $0x58] sm:$0xff]
        %v7224 = vld [vmem:[%s5 + $0x60] sm:$0xff]
        %v7225 = vld [vmem:[%s5 + $0x68] sm:$0xff]
        %v7226 = vld [vmem:[%s5 + $0x70] sm:$0xff]
        %v7227 = vld [vmem:[%s5 + $0x78] sm:$0xff]
        %v7228 = vld [vmem:[%s5 + $0x80] sm:$0xff]
        %v7229 = vld [vmem:[%s5 + $0x88] sm:$0xff]
        %v7230 = vld [vmem:[%s5 + $0x90] sm:$0xff]
        %v7231 = vld [vmem:[%s5 + $0x98] sm:$0xff]
        %v7232 = vld [vmem:[%s5 + $0xa0] sm:$0xff]
        %v7233 = vld [vmem:[%s5 + $0xa8] sm:$0xff]
        %v7234 = vld [vmem:[%s5 + $0xb0] sm:$0xff]
        %v7235 = vld [vmem:[%s5 + $0xb8] sm:$0xff]
        %v7236 = vld [vmem:[%s5 + $0xc0] sm:$0xff]
        %v7237 = vld [vmem:[%s5 + $0xc8] sm:$0xff]
        %v7238 = vld [vmem:[%s5 + $0xd0] sm:$0xff]
        %v7239 = vld [vmem:[%s5 + $0xd8] sm:$0xff]
        %v7240 = vld [vmem:[%s5 + $0xe0] sm:$0xff]
        %v7241 = vld [vmem:[%s5 + $0xe8] sm:$0xff]
        %v7242 = vld [vmem:[%s5 + $0xf0] sm:$0xff]
        %v7243 = vld [vmem:[%s5 + $0xf8] sm:$0xff]
        %v7244 = vld [vmem:[%s5 + $0x100] sm:$0xff]
        %v7245 = vld [vmem:[%s5 + $0x108] sm:$0xff]
        %v7246 = vld [vmem:[%s5 + $0x110] sm:$0xff]
        %v7247 = vld [vmem:[%s5 + $0x118] sm:$0xff]
        %v7248 = vld [vmem:[%s5 + $0x120] sm:$0xff]
        %v7249 = vld [vmem:[%s5 + $0x128] sm:$0xff]
        %v7250 = vld [vmem:[%s5 + $0x130] sm:$0xff]
        %v7251 = vld [vmem:[%s5 + $0x138] sm:$0xff]
        %s7252 = scalar_lea.vmem %s5, 320
        %v7253 = vld [vmem:[%s7252] sm:$0xff]
        %v7254 = vld [vmem:[%s7252 + $0x8] sm:$0xff]
        %v7255 = vld [vmem:[%s7252 + $0x10] sm:$0xff]
        %v7256 = vld [vmem:[%s7252 + $0x18] sm:$0xff]
        %v7257 = vld [vmem:[%s7252 + $0x20] sm:$0xff]
        %v7258 = vld [vmem:[%s7252 + $0x28] sm:$0xff]
        %v7259 = vld [vmem:[%s7252 + $0x30] sm:$0xff]
        %v7260 = vld [vmem:[%s7252 + $0x38] sm:$0xff]
        %v7261 = vld [vmem:[%s7252 + $0x40] sm:$0xff]
        %v7262 = vld [vmem:[%s7252 + $0x48] sm:$0xff]
        %v7263 = vld [vmem:[%s7252 + $0x50] sm:$0xff]
        %v7264 = vld [vmem:[%s7252 + $0x58] sm:$0xff]
        %v7265 = vld [vmem:[%s7252 + $0x60] sm:$0xff]
        %v7266 = vld [vmem:[%s7252 + $0x68] sm:$0xff]
        %v7267 = vld [vmem:[%s7252 + $0x70] sm:$0xff]
        %v7268 = vld [vmem:[%s7252 + $0x78] sm:$0xff]
        %v7269 = vld [vmem:[%s7252 + $0x80] sm:$0xff]
        %v7270 = vld [vmem:[%s7252 + $0x88] sm:$0xff]
        %v7271 = vld [vmem:[%s7252 + $0x90] sm:$0xff]
        %v7272 = vld [vmem:[%s7252 + $0x98] sm:$0xff]
        %v7273 = vld [vmem:[%s7252 + $0xa0] sm:$0xff]
        %v7274 = vld [vmem:[%s7252 + $0xa8] sm:$0xff]
        %v7275 = vld [vmem:[%s7252 + $0xb0] sm:$0xff]
        %v7276 = vld [vmem:[%s7252 + $0xb8] sm:$0xff]
        %v7277 = vld [vmem:[%s7252 + $0xc0] sm:$0xff]
        %v7278 = vld [vmem:[%s7252 + $0xc8] sm:$0xff]
        %v7279 = vld [vmem:[%s7252 + $0xd0] sm:$0xff]
        %v7280 = vld [vmem:[%s7252 + $0xd8] sm:$0xff]
        %v7281 = vld [vmem:[%s7252 + $0xe0] sm:$0xff]
        %v7282 = vld [vmem:[%s7252 + $0xe8] sm:$0xff]
        %v7283 = vld [vmem:[%s7252 + $0xf0] sm:$0xff]
        %v7284 = vld [vmem:[%s7252 + $0xf8] sm:$0xff]
        %v7285 = vld [vmem:[%s7252 + $0x100] sm:$0xff]
        %v7286 = vld [vmem:[%s7252 + $0x108] sm:$0xff]
        %v7287 = vld [vmem:[%s7252 + $0x110] sm:$0xff]
        %v7288 = vld [vmem:[%s7252 + $0x118] sm:$0xff]
        %v7289 = vld [vmem:[%s7252 + $0x120] sm:$0xff]
        %v7290 = vld [vmem:[%s7252 + $0x128] sm:$0xff]
        %v7291 = vld [vmem:[%s7252 + $0x130] sm:$0xff]
        %v7292 = vld [vmem:[%s7252 + $0x138] sm:$0xff]
        %vm7293 = vcmask 261120
        %v7295 = vsel %vm7293, %v7197, 0
        %v7298 = vsel %vm7293, %v7199, 0
        %v7301 = vsel %vm7293, %v7201, 0
        %v7304 = vsel %vm7293, %v7203, 0
        %v7307 = vsel %vm7293, %v7205, 0
        %v7310 = vsel %vm7293, %v7207, 0
        %7312 = vmatprep.subr.mxu0 %v7254
        %7313 = vmatpush1.msra.mxu0 %v7253
        %7314 = vmatprep.subr.mxu0 %v7256
        %7315 = vmatpush1.msra.mxu0 %v7255
        %7316 = vmatprep.subr.mxu0 %v7258
        %7317 = vmatpush1.msra.mxu0 %v7257
        %7318 = vmatprep.subr.mxu0 %v7260
        %7319 = vmatpush1.msra.mxu0 %v7259
        %7320 = vmatprep.subr.mxu0 %v7262
        %7321 = vmatpush1.msra.mxu0 %v7261
        %7322 = vmatprep.subr.mxu0 %v7264
        %7323 = vmatpush1.msra.mxu0 %v7263
        %7324 = vmatprep.subr.mxu0 %v7266
        %7325 = vmatpush1.msra.mxu0 %v7265
        %7326 = vmatprep.subr.mxu0 %v7268
        %7327 = vmatpush1.msra.mxu0 %v7267
        %7328 = vmatprep.subr.mxu0 %v7270
        %7329 = vmatpush1.msra.mxu0 %v7269
        %7330 = vmatprep.subr.mxu0 %v7272
        %7331 = vmatpush1.msra.mxu0 %v7271
        %7332 = vmatprep.subr.mxu0 %v7274
        %7333 = vmatpush1.msra.mxu0 %v7273
        %7334 = vmatprep.subr.mxu0 %v7276
        %7335 = vmatpush1.msra.mxu0 %v7275
        %7336 = vmatprep.subr.mxu0 %v7278
        %7337 = vmatpush1.msra.mxu0 %v7277
        %7338 = vmatprep.subr.mxu0 %v7280
        %7339 = vmatpush1.msra.mxu0 %v7279
        %7340 = vmatprep.subr.mxu0 %v7282
        %7341 = vmatpush1.msra.mxu0 %v7281
        %7342 = vmatprep.subr.mxu0 %v7284
        %7343 = vmatpush1.msra.mxu0 %v7283
        %7344 = vmatprep.subr.mxu0 %v7286
        %7345 = vmatpush1.msra.mxu0 %v7285
        %7346 = vmatprep.subr.mxu0 %v7288
        %7347 = vmatpush1.msra.mxu0 %v7287
        %7348 = vmatprep.subr.mxu0 %v7290
        %7349 = vmatpush1.msra.mxu0 %v7289
        %7350 = vmatprep.subr.mxu0 %v7292
        %7351 = vmatpush1.msra.mxu0 %v7291
        %7352 = vmatprep.subr.mxu0 0.0
        %7353 = vmatpush1.msra.mxu0 0.0
        %7354 = vmatprep.subr.mxu0 0.0
        %7355 = vmatpush1.msra.mxu0 0.0
        %7356 = vmatprep.subr.mxu0 0.0
        %7357 = vmatpush1.msra.mxu0 0.0
        %7358 = vmatprep.subr.mxu0 0.0
        %7359 = vmatpush1.msra.mxu0 0.0
        %7360 = vmatprep.subr.mxu0 0.0
        %7361 = vmatpush1.msra.mxu0 0.0
        %7362 = vmatprep.subr.mxu0 0.0
        %7363 = vmatpush1.msra.mxu0 0.0
        %7364 = vmatprep.subr.mxu0 0.0
        %7365 = vmatpush1.msra.mxu0 0.0
        %7366 = vmatprep.subr.mxu0 0.0
        %7367 = vmatpush1.msra.mxu0 0.0
        %7368 = vmatprep.subr.mxu0 0.0
        %7369 = vmatpush1.msra.mxu0 0.0
        %7370 = vmatprep.subr.mxu0 0.0
        %7371 = vmatpush1.msra.mxu0 0.0
        %7372 = vmatprep.subr.mxu0 0.0
        %7373 = vmatpush1.msra.mxu0 0.0
        %7374 = vmatprep.subr.mxu0 0.0
        %7375 = vmatpush1.msra.mxu0 0.0
        %7376 = vmatprep.mubr.f32.mxu0 %v7295
        %7377 = vmatmul.mubr.f32.gmra.mrb[0].mxu0 %v7196
        %v7378 = vpop.f32.mrb[0].mxu0
        %v7379 = vadd.f32 0.0, %v7378
        %v7380 = vpop.f32.mrb[0].mxu0
        %v7381 = vadd.f32 0.0, %v7380
        %7382 = vmatprep.mubr.f32.mxu0 %v7298
        %7383 = vmatmul.mubr.f32.gmra.mrb[0].mxu0 %v7198
        %v7384 = vpop.f32.mrb[0].mxu0
        %v7385 = vadd.f32 0.0, %v7384
        %v7386 = vpop.f32.mrb[0].mxu0
        %v7387 = vadd.f32 0.0, %v7386
        %7388 = vmatprep.mubr.f32.mxu0 %v7301
        %7389 = vmatmul.mubr.f32.gmra.mrb[0].mxu0 %v7200
        %v7390 = vpop.f32.mrb[0].mxu0
        %v7391 = vadd.f32 0.0, %v7390
        %v7392 = vpop.f32.mrb[0].mxu0
        %v7393 = vadd.f32 0.0, %v7392
        %7394 = vmatprep.mubr.f32.mxu0 %v7304
        %7395 = vmatmul.mubr.f32.gmra.mrb[0].mxu0 %v7202
        %v7396 = vpop.f32.mrb[0].mxu0
        %v7397 = vadd.f32 0.0, %v7396
        %v7398 = vpop.f32.mrb[0].mxu0
        %v7399 = vadd.f32 0.0, %v7398
        %7400 = vmatprep.mubr.f32.mxu0 %v7307
        %7401 = vmatmul.mubr.f32.gmra.mrb[0].mxu0 %v7204
        %v7402 = vpop.f32.mrb[0].mxu0
        %v7403 = vadd.f32 0.0, %v7402
        %v7404 = vpop.f32.mrb[0].mxu0
        %v7405 = vadd.f32 0.0, %v7404
        %7406 = vmatprep.mubr.f32.mxu0 %v7310
        %7407 = vmatmul.mubr.f32.gmra.mrb[0].mxu0 %v7206
        %v7408 = vpop.f32.mrb[0].mxu0
        %v7409 = vadd.f32 0.0, %v7408
        %v7410 = vpop.f32.mrb[0].mxu0
        %v7411 = vadd.f32 0.0, %v7410
        %7412 = vdwg.mxu0
        %v7414 = vsel %vm7293, %v7193, 0
        %v7417 = vsel %vm7293, %v7195, 0
        %7419 = vmatprep.subr.mxu0 %v7213
        %7420 = vmatpush1.msra.mxu0 %v7212
        %7421 = vmatprep.subr.mxu0 %v7215
        %7422 = vmatpush1.msra.mxu0 %v7214
        %7423 = vmatprep.subr.mxu0 %v7217
        %7424 = vmatpush1.msra.mxu0 %v7216
        %7425 = vmatprep.subr.mxu0 %v7219
        %7426 = vmatpush1.msra.mxu0 %v7218
        %7427 = vmatprep.subr.mxu0 %v7221
        %7428 = vmatpush1.msra.mxu0 %v7220
        %7429 = vmatprep.subr.mxu0 %v7223
        %7430 = vmatpush1.msra.mxu0 %v7222
        %7431 = vmatprep.subr.mxu0 %v7225
        %7432 = vmatpush1.msra.mxu0 %v7224
        %7433 = vmatprep.subr.mxu0 %v7227
        %7434 = vmatpush1.msra.mxu0 %v7226
        %7435 = vmatprep.subr.mxu0 %v7229
        %7436 = vmatpush1.msra.mxu0 %v7228
        %7437 = vmatprep.subr.mxu0 %v7231
        %7438 = vmatpush1.msra.mxu0 %v7230
        %7439 = vmatprep.subr.mxu0 %v7233
        %7440 = vmatpush1.msra.mxu0 %v7232
        %7441 = vmatprep.subr.mxu0 %v7235
        %7442 = vmatpush1.msra.mxu0 %v7234
        %7443 = vmatprep.subr.mxu0 %v7237
        %7444 = vmatpush1.msra.mxu0 %v7236
        %7445 = vmatprep.subr.mxu0 %v7239
        %7446 = vmatpush1.msra.mxu0 %v7238
        %7447 = vmatprep.subr.mxu0 %v7241
        %7448 = vmatpush1.msra.mxu0 %v7240
        %7449 = vmatprep.subr.mxu0 %v7243
        %7450 = vmatpush1.msra.mxu0 %v7242
        %7451 = vmatprep.subr.mxu0 %v7245
        %7452 = vmatpush1.msra.mxu0 %v7244
        %7453 = vmatprep.subr.mxu0 %v7247
        %7454 = vmatpush1.msra.mxu0 %v7246
        %7455 = vmatprep.subr.mxu0 %v7249
        %7456 = vmatpush1.msra.mxu0 %v7248
        %7457 = vmatprep.subr.mxu0 %v7251
        %7458 = vmatpush1.msra.mxu0 %v7250
        %7459 = vmatprep.subr.mxu0 0.0
        %7460 = vmatpush1.msra.mxu0 0.0
        %7461 = vmatprep.subr.mxu0 0.0
        %7462 = vmatpush1.msra.mxu0 0.0
        %7463 = vmatprep.subr.mxu0 0.0
        %7464 = vmatpush1.msra.mxu0 0.0
        %7465 = vmatprep.subr.mxu0 0.0
        %7466 = vmatpush1.msra.mxu0 0.0
        %7467 = vmatprep.subr.mxu0 0.0
        %7468 = vmatpush1.msra.mxu0 0.0
        %7469 = vmatprep.subr.mxu0 0.0
        %7470 = vmatpush1.msra.mxu0 0.0
        %7471 = vmatprep.subr.mxu0 0.0
        %7472 = vmatpush1.msra.mxu0 0.0
        %7473 = vmatprep.subr.mxu0 0.0
        %7474 = vmatpush1.msra.mxu0 0.0
        %7475 = vmatprep.subr.mxu0 0.0
        %7476 = vmatpush1.msra.mxu0 0.0
        %7477 = vmatprep.subr.mxu0 0.0
        %7478 = vmatpush1.msra.mxu0 0.0
        %7479 = vmatprep.subr.mxu0 0.0
        %7480 = vmatpush1.msra.mxu0 0.0
        %7481 = vmatprep.subr.mxu0 0.0
        %7482 = vmatpush1.msra.mxu0 0.0
        %7483 = vmatprep.mubr.f32.mxu0 %v7414
        %7484 = vmatmul.mubr.f32.gmra.mrb[0].mxu0 %v7192
        %v7485 = vpop.f32.mrb[0].mxu0
        %v7486 = vadd.f32 %v7379, %v7485
        %v7487 = vpop.f32.mrb[0].mxu0
        %v7488 = vadd.f32 %v7381, %v7487
        %7489 = vmatprep.mubr.f32.mxu0 %v7417
        %7490 = vmatmul.mubr.f32.gmra.mrb[0].mxu0 %v7194
        %v7491 = vpop.f32.mrb[0].mxu0
        %v7492 = vadd.f32 %v7385, %v7491
        %v7493 = vpop.f32.mrb[0].mxu0
        %v7494 = vadd.f32 %v7387, %v7493
        %7495 = vmatprep.mubr.f32.mxu0 %v7295
        %7496 = vmatmul.mubr.f32.gmra.mrb[0].mxu0 %v7196
        %v7497 = vpop.f32.mrb[0].mxu0
        %v7498 = vadd.f32 %v7391, %v7497
        %v7499 = vpop.f32.mrb[0].mxu0
        %v7500 = vadd.f32 %v7393, %v7499
        %7501 = vmatprep.mubr.f32.mxu0 %v7298
        %7502 = vmatmul.mubr.f32.gmra.mrb[0].mxu0 %v7198
        %v7503 = vpop.f32.mrb[0].mxu0
        %v7504 = vadd.f32 %v7397, %v7503
        %v7505 = vpop.f32.mrb[0].mxu0
        %v7506 = vadd.f32 %v7399, %v7505
        %7507 = vmatprep.mubr.f32.mxu0 %v7301
        %7508 = vmatmul.mubr.f32.gmra.mrb[0].mxu0 %v7200
        %v7509 = vpop.f32.mrb[0].mxu0
        %v7510 = vadd.f32 %v7403, %v7509
        %v7511 = vpop.f32.mrb[0].mxu0
        %v7512 = vadd.f32 %v7405, %v7511
        %7513 = vmatprep.mubr.f32.mxu0 %v7304
        %7514 = vmatmul.mubr.f32.gmra.mrb[0].mxu0 %v7202
        %v7515 = vpop.f32.mrb[0].mxu0
        %v7516 = vadd.f32 %v7409, %v7515
        %v7517 = vpop.f32.mrb[0].mxu0
        %v7518 = vadd.f32 %v7411, %v7517
        %7519 = vdwg.mxu0
        %s7520 = scalar_lea.vmem %s5, 640
        %v7521 = vld [vmem:[%s7520] sm:$0xff]
        %v7522 = vld [vmem:[%s7520 + $0x8] sm:$0xff]
        %v7523 = vld [vmem:[%s7520 + $0x10] sm:$0xff]
        %v7524 = vld [vmem:[%s7520 + $0x18] sm:$0xff]
        %v7525 = vld [vmem:[%s7520 + $0x20] sm:$0xff]
        %v7526 = vld [vmem:[%s7520 + $0x28] sm:$0xff]
        %v7527 = vld [vmem:[%s7520 + $0x30] sm:$0xff]
        %v7528 = vld [vmem:[%s7520 + $0x38] sm:$0xff]
        %v7529 = vld [vmem:[%s7520 + $0x40] sm:$0xff]
        %v7530 = vld [vmem:[%s7520 + $0x48] sm:$0xff]
        %v7531 = vld [vmem:[%s7520 + $0x50] sm:$0xff]
        %v7532 = vld [vmem:[%s7520 + $0x58] sm:$0xff]
        %v7533 = vld [vmem:[%s7520 + $0x60] sm:$0xff]
        %v7534 = vld [vmem:[%s7520 + $0x68] sm:$0xff]
        %v7535 = vld [vmem:[%s7520 + $0x70] sm:$0xff]
        %v7536 = vld [vmem:[%s7520 + $0x78] sm:$0xff]
        %v7537 = vld [vmem:[%s7520 + $0x80] sm:$0xff]
        %v7538 = vld [vmem:[%s7520 + $0x88] sm:$0xff]
        %v7539 = vld [vmem:[%s7520 + $0x90] sm:$0xff]
        %v7540 = vld [vmem:[%s7520 + $0x98] sm:$0xff]
        %v7541 = vld [vmem:[%s7520 + $0xa0] sm:$0xff]
        %v7542 = vld [vmem:[%s7520 + $0xa8] sm:$0xff]
        %v7543 = vld [vmem:[%s7520 + $0xb0] sm:$0xff]
        %v7544 = vld [vmem:[%s7520 + $0xb8] sm:$0xff]
        %v7545 = vld [vmem:[%s7520 + $0xc0] sm:$0xff]
        %v7546 = vld [vmem:[%s7520 + $0xc8] sm:$0xff]
        %v7547 = vld [vmem:[%s7520 + $0xd0] sm:$0xff]
        %v7548 = vld [vmem:[%s7520 + $0xd8] sm:$0xff]
        %v7549 = vld [vmem:[%s7520 + $0xe0] sm:$0xff]
        %v7550 = vld [vmem:[%s7520 + $0xe8] sm:$0xff]
        %v7551 = vld [vmem:[%s7520 + $0xf0] sm:$0xff]
        %v7552 = vld [vmem:[%s7520 + $0xf8] sm:$0xff]
        %v7553 = vld [vmem:[%s7520 + $0x100] sm:$0xff]
        %v7554 = vld [vmem:[%s7520 + $0x108] sm:$0xff]
        %v7555 = vld [vmem:[%s7520 + $0x110] sm:$0xff]
        %v7556 = vld [vmem:[%s7520 + $0x118] sm:$0xff]
        %v7557 = vld [vmem:[%s7520 + $0x120] sm:$0xff]
        %v7558 = vld [vmem:[%s7520 + $0x128] sm:$0xff]
        %v7559 = vld [vmem:[%s7520 + $0x130] sm:$0xff]
        %v7560 = vld [vmem:[%s7520 + $0x138] sm:$0xff]
        %v7562 = vsel %vm7293, %v7209, 0
        %v7565 = vsel %vm7293, %v7211, 0
        %7567 = vmatprep.subr.mxu0 %v7522
        %7568 = vmatpush1.msra.mxu0 %v7521
        %7569 = vmatprep.subr.mxu0 %v7524
        %7570 = vmatpush1.msra.mxu0 %v7523
        %7571 = vmatprep.subr.mxu0 %v7526
        %7572 = vmatpush1.msra.mxu0 %v7525
        %7573 = vmatprep.subr.mxu0 %v7528
        %7574 = vmatpush1.msra.mxu0 %v7527
        %7575 = vmatprep.subr.mxu0 %v7530
        %7576 = vmatpush1.msra.mxu0 %v7529
        %7577 = vmatprep.subr.mxu0 %v7532
        %7578 = vmatpush1.msra.mxu0 %v7531
        %7579 = vmatprep.subr.mxu0 %v7534
        %7580 = vmatpush1.msra.mxu0 %v7533
        %7581 = vmatprep.subr.mxu0 %v7536
        %7582 = vmatpush1.msra.mxu0 %v7535
        %7583 = vmatprep.subr.mxu0 %v7538
        %7584 = vmatpush1.msra.mxu0 %v7537
        %7585 = vmatprep.subr.mxu0 %v7540
        %7586 = vmatpush1.msra.mxu0 %v7539
        %7587 = vmatprep.subr.mxu0 %v7542
        %7588 = vmatpush1.msra.mxu0 %v7541
        %7589 = vmatprep.subr.mxu0 %v7544
        %7590 = vmatpush1.msra.mxu0 %v7543
        %7591 = vmatprep.subr.mxu0 %v7546
        %7592 = vmatpush1.msra.mxu0 %v7545
        %7593 = vmatprep.subr.mxu0 %v7548
        %7594 = vmatpush1.msra.mxu0 %v7547
        %7595 = vmatprep.subr.mxu0 %v7550
        %7596 = vmatpush1.msra.mxu0 %v7549
        %7597 = vmatprep.subr.mxu0 %v7552
        %7598 = vmatpush1.msra.mxu0 %v7551
        %7599 = vmatprep.subr.mxu0 %v7554
        %7600 = vmatpush1.msra.mxu0 %v7553
        %7601 = vmatprep.subr.mxu0 %v7556
        %7602 = vmatpush1.msra.mxu0 %v7555
        %7603 = vmatprep.subr.mxu0 %v7558
        %7604 = vmatpush1.msra.mxu0 %v7557
        %7605 = vmatprep.subr.mxu0 %v7560
        %7606 = vmatpush1.msra.mxu0 %v7559
        %7607 = vmatprep.subr.mxu0 0.0
        %7608 = vmatpush1.msra.mxu0 0.0
        %7609 = vmatprep.subr.mxu0 0.0
        %7610 = vmatpush1.msra.mxu0 0.0
        %7611 = vmatprep.subr.mxu0 0.0
        %7612 = vmatpush1.msra.mxu0 0.0
        %7613 = vmatprep.subr.mxu0 0.0
        %7614 = vmatpush1.msra.mxu0 0.0
        %7615 = vmatprep.subr.mxu0 0.0
        %7616 = vmatpush1.msra.mxu0 0.0
        %7617 = vmatprep.subr.mxu0 0.0
        %7618 = vmatpush1.msra.mxu0 0.0
        %7619 = vmatprep.subr.mxu0 0.0
        %7620 = vmatpush1.msra.mxu0 0.0
        %7621 = vmatprep.subr.mxu0 0.0
        %7622 = vmatpush1.msra.mxu0 0.0
        %7623 = vmatprep.subr.mxu0 0.0
        %7624 = vmatpush1.msra.mxu0 0.0
        %7625 = vmatprep.subr.mxu0 0.0
        %7626 = vmatpush1.msra.mxu0 0.0
        %7627 = vmatprep.subr.mxu0 0.0
        %7628 = vmatpush1.msra.mxu0 0.0
        %7629 = vmatprep.subr.mxu0 0.0
        %7630 = vmatpush1.msra.mxu0 0.0
        %7631 = vmatprep.mubr.f32.mxu0 %v7301
        %7632 = vmatmul.mubr.f32.gmra.mrb[0].mxu0 %v7200
        %v7633 = vpop.f32.mrb[0].mxu0
        %v7634 = vadd.f32 0.0, %v7633
        %v7635 = vpop.f32.mrb[0].mxu0
        %v7636 = vadd.f32 0.0, %v7635
        %7637 = vmatprep.mubr.f32.mxu0 %v7304
        %7638 = vmatmul.mubr.f32.gmra.mrb[0].mxu0 %v7202
        %v7639 = vpop.f32.mrb[0].mxu0
        %v7640 = vadd.f32 0.0, %v7639
        %v7641 = vpop.f32.mrb[0].mxu0
        %v7642 = vadd.f32 0.0, %v7641
        %7643 = vmatprep.mubr.f32.mxu0 %v7307
        %7644 = vmatmul.mubr.f32.gmra.mrb[0].mxu0 %v7204
        %v7645 = vpop.f32.mrb[0].mxu0
        %v7646 = vadd.f32 0.0, %v7645
        %v7647 = vpop.f32.mrb[0].mxu0
        %v7648 = vadd.f32 0.0, %v7647
        %7649 = vmatprep.mubr.f32.mxu0 %v7310
        %7650 = vmatmul.mubr.f32.gmra.mrb[0].mxu0 %v7206
        %v7651 = vpop.f32.mrb[0].mxu0
        %v7652 = vadd.f32 0.0, %v7651
        %v7653 = vpop.f32.mrb[0].mxu0
        %v7654 = vadd.f32 0.0, %v7653
        %7655 = vmatprep.mubr.f32.mxu0 %v7562
        %7656 = vmatmul.mubr.f32.gmra.mrb[0].mxu0 %v7208
        %v7657 = vpop.f32.mrb[0].mxu0
        %v7658 = vadd.f32 0.0, %v7657
        %v7659 = vpop.f32.mrb[0].mxu0
        %v7660 = vadd.f32 0.0, %v7659
        %7661 = vmatprep.mubr.f32.mxu0 %v7565
        %7662 = vmatmul.mubr.f32.gmra.mrb[0].mxu0 %v7210
        %v7663 = vpop.f32.mrb[0].mxu0
        %v7664 = vadd.f32 0.0, %v7663
        %v7665 = vpop.f32.mrb[0].mxu0
        %v7666 = vadd.f32 0.0, %v7665
        %7667 = vdwg.mxu0
        %v7668 = vadd.f32 %v7486, %v7634
        %v7669 = vadd.f32 %v7488, %v7636
        %v7670 = vadd.f32 %v7492, %v7640
        %v7671 = vadd.f32 %v7494, %v7642
        %v7672 = vadd.f32 %v7498, %v7646
        %v7673 = vadd.f32 %v7500, %v7648
        %v7674 = vadd.f32 %v7504, %v7652
        %v7675 = vadd.f32 %v7506, %v7654
        %v7676 = vadd.f32 %v7510, %v7658
        %v7677 = vadd.f32 %v7512, %v7660
        %v7678 = vadd.f32 %v7516, %v7664
        %v7679 = vadd.f32 %v7518, %v7666
        %s7680 = scalar_lea.vmem %s8, 6
        %v7681 = vld [vmem:[%s7680] ss:$8 sm:$0x3]
        %v7683 = vlaneseq
        %v7684 = vshrl.u32 %v7683, 7
        %v7685 = vsub.s32 0, %v7684
        %v7686 = vrot.slane %v7681, %v7685
        %v7687 = vlaneseq
        %v7688 = vshrl.u32 %v7687, 7
        %v7689 = vsub.s32 1, %v7688
        %v7690 = vrot.slane %v7681, %v7689
        %v7693 = vadd.f32 %v7668, %v7686
        %v7694 = vadd.f32 %v7669, %v7690
        %v7695 = vadd.f32 %v7670, %v7686
        %v7696 = vadd.f32 %v7671, %v7690
        %v7697 = vadd.f32 %v7672, %v7686
        %v7698 = vadd.f32 %v7673, %v7690
        %v7699 = vadd.f32 %v7674, %v7686
        %v7700 = vadd.f32 %v7675, %v7690
        %v7701 = vadd.f32 %v7676, %v7686
        %v7702 = vadd.f32 %v7677, %v7690
        %v7703 = vadd.f32 %v7678, %v7686
        %v7704 = vadd.f32 %v7679, %v7690
        %v7705 = vtanh.pop %v7693
        %v7706 = vtanh.pop %v7694
        %v7707 = vtanh.pop %v7695
        %v7708 = vtanh.pop %v7696
        %v7709 = vtanh.pop %v7697
        %v7710 = vtanh.pop %v7698
        %v7711 = vtanh.pop %v7699
        %v7712 = vtanh.pop %v7700
        %v7713 = vtanh.pop %v7701
        %v7714 = vtanh.pop %v7702
        %v7715 = vtanh.pop %v7703
        %v7716 = vtanh.pop %v7704
        %s7717 = scalar_lea.vmem %s8, 7
        %v7718 = vld [vmem:[%s7717] ss:$8 sm:$0x3]
        %v7720 = vlaneseq
        %v7721 = vshrl.u32 %v7720, 7
        %v7722 = vsub.s32 0, %v7721
        %v7723 = vrot.slane %v7718, %v7722
        %v7724 = vlaneseq
        %v7725 = vshrl.u32 %v7724, 7
        %v7726 = vsub.s32 1, %v7725
        %v7727 = vrot.slane %v7718, %v7726
        %v7730 = vmul.f32 %v7705, %v7723
        %v7731 = vmul.f32 %v7706, %v7727
        %v7732 = vmul.f32 %v7707, %v7723
        %v7733 = vmul.f32 %v7708, %v7727
        %v7734 = vmul.f32 %v7709, %v7723
        %v7735 = vmul.f32 %v7710, %v7727
        %v7736 = vmul.f32 %v7711, %v7723
        %v7737 = vmul.f32 %v7712, %v7727
        %v7738 = vmul.f32 %v7713, %v7723
        %v7739 = vmul.f32 %v7714, %v7727
        %v7740 = vmul.f32 %v7715, %v7723
        %v7741 = vmul.f32 %v7716, %v7727
        %s7742 = scalar_lea.vmem %s8, 16
        %v7743 = vld [vmem:[%s7742] ss:$8 sm:$0x3]
        %v7745 = vlaneseq
        %v7746 = vshrl.u32 %v7745, 7
        %v7747 = vsub.s32 0, %v7746
        %v7748 = vrot.slane %v7743, %v7747
        %v7749 = vlaneseq
        %v7750 = vshrl.u32 %v7749, 7
        %v7751 = vsub.s32 1, %v7750
        %v7752 = vrot.slane %v7743, %v7751
        %v7755 = vadd.f32 %v7730, %v7748
        %v7756 = vadd.f32 %v7731, %v7752
        %v7757 = vadd.f32 %v7732, %v7748
        %v7758 = vadd.f32 %v7733, %v7752
        %v7759 = vadd.f32 %v7734, %v7748
        %v7760 = vadd.f32 %v7735, %v7752
        %v7761 = vadd.f32 %v7736, %v7748
        %v7762 = vadd.f32 %v7737, %v7752
        %v7763 = vadd.f32 %v7738, %v7748
        %v7764 = vadd.f32 %v7739, %v7752
        %v7765 = vadd.f32 %v7740, %v7748
        %v7766 = vadd.f32 %v7741, %v7752
        %v7767 = vld [vmem:[%s6] sm:$0xff]
        %v7768 = vld [vmem:[%s6 + $0x8] sm:$0xff]
        %v7769 = vld [vmem:[%s6 + $0x10] sm:$0xff]
        %v7770 = vld [vmem:[%s6 + $0x18] sm:$0xff]
        %v7771 = vld [vmem:[%s6 + $0x20] sm:$0xff]
        %v7772 = vld [vmem:[%s6 + $0x28] sm:$0xff]
        %v7773 = vld [vmem:[%s6 + $0x30] sm:$0xff]
        %v7774 = vld [vmem:[%s6 + $0x38] sm:$0xff]
        %v7775 = vld [vmem:[%s6 + $0x40] sm:$0xff]
        %v7776 = vld [vmem:[%s6 + $0x48] sm:$0xff]
        %v7777 = vld [vmem:[%s6 + $0x50] sm:$0xff]
        %v7778 = vld [vmem:[%s6 + $0x58] sm:$0xff]
        %v7779 = vld [vmem:[%s6 + $0x60] sm:$0xff]
        %v7780 = vld [vmem:[%s6 + $0x68] sm:$0xff]
        %v7781 = vld [vmem:[%s6 + $0x70] sm:$0xff]
        %v7782 = vld [vmem:[%s6 + $0x78] sm:$0xff]
        %v7783 = vld [vmem:[%s6 + $0x80] sm:$0xff]
        %v7784 = vld [vmem:[%s6 + $0x88] sm:$0xff]
        %s7785 = scalar_lea.vmem %s6, 144
        %v7786 = vld [vmem:[%s7785] sm:$0xff]
        %v7787 = vld [vmem:[%s7785 + $0x8] sm:$0xff]
        %v7788 = vld [vmem:[%s7785 + $0x10] sm:$0xff]
        %v7789 = vld [vmem:[%s7785 + $0x18] sm:$0xff]
        %v7790 = vld [vmem:[%s7785 + $0x20] sm:$0xff]
        %v7791 = vld [vmem:[%s7785 + $0x28] sm:$0xff]
        %v7792 = vld [vmem:[%s7785 + $0x30] sm:$0xff]
        %v7793 = vld [vmem:[%s7785 + $0x38] sm:$0xff]
        %v7794 = vld [vmem:[%s7785 + $0x40] sm:$0xff]
        %v7795 = vld [vmem:[%s7785 + $0x48] sm:$0xff]
        %v7796 = vld [vmem:[%s7785 + $0x50] sm:$0xff]
        %v7797 = vld [vmem:[%s7785 + $0x58] sm:$0xff]
        %v7798 = vld [vmem:[%s7785 + $0x60] sm:$0xff]
        %v7799 = vld [vmem:[%s7785 + $0x68] sm:$0xff]
        %v7800 = vld [vmem:[%s7785 + $0x70] sm:$0xff]
        %v7801 = vld [vmem:[%s7785 + $0x78] sm:$0xff]
        %v7802 = vld [vmem:[%s7785 + $0x80] sm:$0xff]
        %v7803 = vld [vmem:[%s7785 + $0x88] sm:$0xff]
        %vm7804 = vcmask 130048
        %v7806 = vsel %vm7804, %v7760, 0
        %v7809 = vsel %vm7804, %v7762, 0
        %7811 = vmatprep.subr.mxu0 0.0
        %7812 = vmatpush1.msra.mxu0 %v7786
        %7813 = vmatprep.subr.mxu0 0.0
        %7814 = vmatpush1.msra.mxu0 %v7787
        %7815 = vmatprep.subr.mxu0 0.0
        %7816 = vmatpush1.msra.mxu0 %v7788
        %7817 = vmatprep.subr.mxu0 0.0
        %7818 = vmatpush1.msra.mxu0 %v7789
        %7819 = vmatprep.subr.mxu0 0.0
        %7820 = vmatpush1.msra.mxu0 %v7790
        %7821 = vmatprep.subr.mxu0 0.0
        %7822 = vmatpush1.msra.mxu0 %v7791
        %7823 = vmatprep.subr.mxu0 0.0
        %7824 = vmatpush1.msra.mxu0 %v7792
        %7825 = vmatprep.subr.mxu0 0.0
        %7826 = vmatpush1.msra.mxu0 %v7793
        %7827 = vmatprep.subr.mxu0 0.0
        %7828 = vmatpush1.msra.mxu0 %v7794
        %7829 = vmatprep.subr.mxu0 0.0
        %7830 = vmatpush1.msra.mxu0 %v7795
        %7831 = vmatprep.subr.mxu0 0.0
        %7832 = vmatpush1.msra.mxu0 %v7796
        %7833 = vmatprep.subr.mxu0 0.0
        %7834 = vmatpush1.msra.mxu0 %v7797
        %7835 = vmatprep.subr.mxu0 0.0
        %7836 = vmatpush1.msra.mxu0 %v7798
        %7837 = vmatprep.subr.mxu0 0.0
        %7838 = vmatpush1.msra.mxu0 %v7799
        %7839 = vmatprep.subr.mxu0 0.0
        %7840 = vmatpush1.msra.mxu0 %v7800
        %7841 = vmatprep.subr.mxu0 0.0
        %7842 = vmatpush1.msra.mxu0 %v7801
        %7843 = vmatprep.subr.mxu0 0.0
        %7844 = vmatpush1.msra.mxu0 %v7802
        %7845 = vmatprep.subr.mxu0 0.0
        %7846 = vmatpush1.msra.mxu0 %v7803
        %7847 = vmatprep.subr.mxu0 0.0
        %7848 = vmatpush1.msra.mxu0 0.0
        %7849 = vmatprep.subr.mxu0 0.0
        %7850 = vmatpush1.msra.mxu0 0.0
        %7851 = vmatprep.subr.mxu0 0.0
        %7852 = vmatpush1.msra.mxu0 0.0
        %7853 = vmatprep.subr.mxu0 0.0
        %7854 = vmatpush1.msra.mxu0 0.0
        %7855 = vmatprep.subr.mxu0 0.0
        %7856 = vmatpush1.msra.mxu0 0.0
        %7857 = vmatprep.subr.mxu0 0.0
        %7858 = vmatpush1.msra.mxu0 0.0
        %7859 = vmatprep.subr.mxu0 0.0
        %7860 = vmatpush1.msra.mxu0 0.0
        %7861 = vmatprep.subr.mxu0 0.0
        %7862 = vmatpush1.msra.mxu0 0.0
        %7863 = vmatprep.subr.mxu0 0.0
        %7864 = vmatpush1.msra.mxu0 0.0
        %7865 = vmatprep.subr.mxu0 0.0
        %7866 = vmatpush1.msra.mxu0 0.0
        %7867 = vmatprep.subr.mxu0 0.0
        %7868 = vmatpush1.msra.mxu0 0.0
        %7869 = vmatprep.subr.mxu0 0.0
        %7870 = vmatpush1.msra.mxu0 0.0
        %7871 = vmatprep.subr.mxu0 0.0
        %7872 = vmatpush1.msra.mxu0 0.0
        %7873 = vmatprep.subr.mxu0 0.0
        %7874 = vmatpush1.msra.mxu0 0.0
        %7875 = vmatprep.mubr.f32.mxu0 %v7806
        %7876 = vmatmul.mubr.f32.gmra.mrb[0].mxu0 %v7759
        %v7877 = vpop.f32.mrb[0].mxu0
        %v7878 = vadd.f32 0.0, %v7877
        %v7879 = vpop.f32.mrb[0].mxu0
        %7880 = vmatprep.mubr.f32.mxu0 %v7809
        %7881 = vmatmul.mubr.f32.gmra.mrb[0].mxu0 %v7761
        %v7882 = vpop.f32.mrb[0].mxu0
        %v7883 = vadd.f32 0.0, %v7882
        %v7884 = vpop.f32.mrb[0].mxu0
        %7885 = vdwg.mxu0
        %v7887 = vsel %vm7804, %v7756, 0
        %v7890 = vsel %vm7804, %v7758, 0
        %7892 = vmatprep.subr.mxu0 0.0
        %7893 = vmatpush1.msra.mxu0 %v7767
        %7894 = vmatprep.subr.mxu0 0.0
        %7895 = vmatpush1.msra.mxu0 %v7768
        %7896 = vmatprep.subr.mxu0 0.0
        %7897 = vmatpush1.msra.mxu0 %v7769
        %7898 = vmatprep.subr.mxu0 0.0
        %7899 = vmatpush1.msra.mxu0 %v7770
        %7900 = vmatprep.subr.mxu0 0.0
        %7901 = vmatpush1.msra.mxu0 %v7771
        %7902 = vmatprep.subr.mxu0 0.0
        %7903 = vmatpush1.msra.mxu0 %v7772
        %7904 = vmatprep.subr.mxu0 0.0
        %7905 = vmatpush1.msra.mxu0 %v7773
        %7906 = vmatprep.subr.mxu0 0.0
        %7907 = vmatpush1.msra.mxu0 %v7774
        %7908 = vmatprep.subr.mxu0 0.0
        %7909 = vmatpush1.msra.mxu0 %v7775
        %7910 = vmatprep.subr.mxu0 0.0
        %7911 = vmatpush1.msra.mxu0 %v7776
        %7912 = vmatprep.subr.mxu0 0.0
        %7913 = vmatpush1.msra.mxu0 %v7777
        %7914 = vmatprep.subr.mxu0 0.0
        %7915 = vmatpush1.msra.mxu0 %v7778
        %7916 = vmatprep.subr.mxu0 0.0
        %7917 = vmatpush1.msra.mxu0 %v7779
        %7918 = vmatprep.subr.mxu0 0.0
        %7919 = vmatpush1.msra.mxu0 %v7780
        %7920 = vmatprep.subr.mxu0 0.0
        %7921 = vmatpush1.msra.mxu0 %v7781
        %7922 = vmatprep.subr.mxu0 0.0
        %7923 = vmatpush1.msra.mxu0 %v7782
        %7924 = vmatprep.subr.mxu0 0.0
        %7925 = vmatpush1.msra.mxu0 %v7783
        %7926 = vmatprep.subr.mxu0 0.0
        %7927 = vmatpush1.msra.mxu0 %v7784
        %7928 = vmatprep.subr.mxu0 0.0
        %7929 = vmatpush1.msra.mxu0 0.0
        %7930 = vmatprep.subr.mxu0 0.0
        %7931 = vmatpush1.msra.mxu0 0.0
        %7932 = vmatprep.subr.mxu0 0.0
        %7933 = vmatpush1.msra.mxu0 0.0
        %7934 = vmatprep.subr.mxu0 0.0
        %7935 = vmatpush1.msra.mxu0 0.0
        %7936 = vmatprep.subr.mxu0 0.0
        %7937 = vmatpush1.msra.mxu0 0.0
        %7938 = vmatprep.subr.mxu0 0.0
        %7939 = vmatpush1.msra.mxu0 0.0
        %7940 = vmatprep.subr.mxu0 0.0
        %7941 = vmatpush1.msra.mxu0 0.0
        %7942 = vmatprep.subr.mxu0 0.0
        %7943 = vmatpush1.msra.mxu0 0.0
        %7944 = vmatprep.subr.mxu0 0.0
        %7945 = vmatpush1.msra.mxu0 0.0
        %7946 = vmatprep.subr.mxu0 0.0
        %7947 = vmatpush1.msra.mxu0 0.0
        %7948 = vmatprep.subr.mxu0 0.0
        %7949 = vmatpush1.msra.mxu0 0.0
        %7950 = vmatprep.subr.mxu0 0.0
        %7951 = vmatpush1.msra.mxu0 0.0
        %7952 = vmatprep.subr.mxu0 0.0
        %7953 = vmatpush1.msra.mxu0 0.0
        %7954 = vmatprep.subr.mxu0 0.0
        %7955 = vmatpush1.msra.mxu0 0.0
        %7956 = vmatprep.mubr.f32.mxu0 %v7887
        %7957 = vmatmul.mubr.f32.gmra.mrb[0].mxu0 %v7755
        %v7958 = vpop.f32.mrb[0].mxu0
        %v7959 = vadd.f32 %v7878, %v7958
        %v7960 = vpop.f32.mrb[0].mxu0
        %7961 = vmatprep.mubr.f32.mxu0 %v7890
        %7962 = vmatmul.mubr.f32.gmra.mrb[0].mxu0 %v7757
        %v7963 = vpop.f32.mrb[0].mxu0
        %v7964 = vadd.f32 %v7883, %v7963
        %v7965 = vpop.f32.mrb[0].mxu0
        %7966 = vdwg.mxu0
        %s7967 = scalar_lea.vmem %s6, 288
        %v7968 = vld [vmem:[%s7967] sm:$0xff]
        %v7969 = vld [vmem:[%s7967 + $0x8] sm:$0xff]
        %v7970 = vld [vmem:[%s7967 + $0x10] sm:$0xff]
        %v7971 = vld [vmem:[%s7967 + $0x18] sm:$0xff]
        %v7972 = vld [vmem:[%s7967 + $0x20] sm:$0xff]
        %v7973 = vld [vmem:[%s7967 + $0x28] sm:$0xff]
        %v7974 = vld [vmem:[%s7967 + $0x30] sm:$0xff]
        %v7975 = vld [vmem:[%s7967 + $0x38] sm:$0xff]
        %v7976 = vld [vmem:[%s7967 + $0x40] sm:$0xff]
        %v7977 = vld [vmem:[%s7967 + $0x48] sm:$0xff]
        %v7978 = vld [vmem:[%s7967 + $0x50] sm:$0xff]
        %v7979 = vld [vmem:[%s7967 + $0x58] sm:$0xff]
        %v7980 = vld [vmem:[%s7967 + $0x60] sm:$0xff]
        %v7981 = vld [vmem:[%s7967 + $0x68] sm:$0xff]
        %v7982 = vld [vmem:[%s7967 + $0x70] sm:$0xff]
        %v7983 = vld [vmem:[%s7967 + $0x78] sm:$0xff]
        %v7984 = vld [vmem:[%s7967 + $0x80] sm:$0xff]
        %v7985 = vld [vmem:[%s7967 + $0x88] sm:$0xff]
        %v7987 = vsel %vm7804, %v7764, 0
        %v7990 = vsel %vm7804, %v7766, 0
        %7992 = vmatprep.subr.mxu0 0.0
        %7993 = vmatpush1.msra.mxu0 %v7968
        %7994 = vmatprep.subr.mxu0 0.0
        %7995 = vmatpush1.msra.mxu0 %v7969
        %7996 = vmatprep.subr.mxu0 0.0
        %7997 = vmatpush1.msra.mxu0 %v7970
        %7998 = vmatprep.subr.mxu0 0.0
        %7999 = vmatpush1.msra.mxu0 %v7971
        %8000 = vmatprep.subr.mxu0 0.0
        %8001 = vmatpush1.msra.mxu0 %v7972
        %8002 = vmatprep.subr.mxu0 0.0
        %8003 = vmatpush1.msra.mxu0 %v7973
        %8004 = vmatprep.subr.mxu0 0.0
        %8005 = vmatpush1.msra.mxu0 %v7974
        %8006 = vmatprep.subr.mxu0 0.0
        %8007 = vmatpush1.msra.mxu0 %v7975
        %8008 = vmatprep.subr.mxu0 0.0
        %8009 = vmatpush1.msra.mxu0 %v7976
        %8010 = vmatprep.subr.mxu0 0.0
        %8011 = vmatpush1.msra.mxu0 %v7977
        %8012 = vmatprep.subr.mxu0 0.0
        %8013 = vmatpush1.msra.mxu0 %v7978
        %8014 = vmatprep.subr.mxu0 0.0
        %8015 = vmatpush1.msra.mxu0 %v7979
        %8016 = vmatprep.subr.mxu0 0.0
        %8017 = vmatpush1.msra.mxu0 %v7980
        %8018 = vmatprep.subr.mxu0 0.0
        %8019 = vmatpush1.msra.mxu0 %v7981
        %8020 = vmatprep.subr.mxu0 0.0
        %8021 = vmatpush1.msra.mxu0 %v7982
        %8022 = vmatprep.subr.mxu0 0.0
        %8023 = vmatpush1.msra.mxu0 %v7983
        %8024 = vmatprep.subr.mxu0 0.0
        %8025 = vmatpush1.msra.mxu0 %v7984
        %8026 = vmatprep.subr.mxu0 0.0
        %8027 = vmatpush1.msra.mxu0 %v7985
        %8028 = vmatprep.subr.mxu0 0.0
        %8029 = vmatpush1.msra.mxu0 0.0
        %8030 = vmatprep.subr.mxu0 0.0
        %8031 = vmatpush1.msra.mxu0 0.0
        %8032 = vmatprep.subr.mxu0 0.0
        %8033 = vmatpush1.msra.mxu0 0.0
        %8034 = vmatprep.subr.mxu0 0.0
        %8035 = vmatpush1.msra.mxu0 0.0
        %8036 = vmatprep.subr.mxu0 0.0
        %8037 = vmatpush1.msra.mxu0 0.0
        %8038 = vmatprep.subr.mxu0 0.0
        %8039 = vmatpush1.msra.mxu0 0.0
        %8040 = vmatprep.subr.mxu0 0.0
        %8041 = vmatpush1.msra.mxu0 0.0
        %8042 = vmatprep.subr.mxu0 0.0
        %8043 = vmatpush1.msra.mxu0 0.0
        %8044 = vmatprep.subr.mxu0 0.0
        %8045 = vmatpush1.msra.mxu0 0.0
        %8046 = vmatprep.subr.mxu0 0.0
        %8047 = vmatpush1.msra.mxu0 0.0
        %8048 = vmatprep.subr.mxu0 0.0
        %8049 = vmatpush1.msra.mxu0 0.0
        %8050 = vmatprep.subr.mxu0 0.0
        %8051 = vmatpush1.msra.mxu0 0.0
        %8052 = vmatprep.subr.mxu0 0.0
        %8053 = vmatpush1.msra.mxu0 0.0
        %8054 = vmatprep.subr.mxu0 0.0
        %8055 = vmatpush1.msra.mxu0 0.0
        %8056 = vmatprep.mubr.f32.mxu0 %v7987
        %8057 = vmatmul.mubr.f32.gmra.mrb[0].mxu0 %v7763
        %v8058 = vpop.f32.mrb[0].mxu0
        %v8059 = vadd.f32 0.0, %v8058
        %v8060 = vpop.f32.mrb[0].mxu0
        %8061 = vmatprep.mubr.f32.mxu0 %v7990
        %8062 = vmatmul.mubr.f32.gmra.mrb[0].mxu0 %v7765
        %v8063 = vpop.f32.mrb[0].mxu0
        %v8064 = vadd.f32 0.0, %v8063
        %v8065 = vpop.f32.mrb[0].mxu0
        %8066 = vdwg.mxu0
        %v8067 = vadd.f32 %v7959, %v8059
        %v8068 = vadd.f32 %v7964, %v8064
        %v8069 = vld [vmem:[%s8 + $0x11] ss:$0 sm:$0xff]
        %v8070 = vadd.f32 %v8067, %v8069
        %v8071 = vadd.f32 %v8068, %v8069
        %v8072 = vmax.f32 %v8070, -1.0
        %v8073 = vmax.f32 %v8071, -1.0
        %v8074 = vmin.f32 %v8072, 1.0
        %v8075 = vmin.f32 %v8073, 1.0
        %v8076 = vld [vmem:[%s7] sm:$0xff]
        %v8077 = vld [vmem:[%s7 + $0x8] sm:$0xff]
        %v8078 = vld [vmem:[%s7 + $0x10] sm:$0xff]
        %v8079 = vld [vmem:[%s7 + $0x18] sm:$0xff]
        %v8080 = vld [vmem:[%s7 + $0x20] sm:$0xff]
        %v8081 = vld [vmem:[%s7 + $0x28] sm:$0xff]
        %v8082 = vld [vmem:[%s7 + $0x30] sm:$0xff]
        %v8083 = vld [vmem:[%s7 + $0x38] sm:$0xff]
        %v8084 = vld [vmem:[%s7 + $0x40] sm:$0xff]
        %v8085 = vld [vmem:[%s7 + $0x48] sm:$0xff]
        %v8086 = vld [vmem:[%s7 + $0x50] sm:$0xff]
        %v8087 = vld [vmem:[%s7 + $0x58] sm:$0xff]
        %v8088 = vld [vmem:[%s7 + $0x60] sm:$0xff]
        %v8089 = vld [vmem:[%s7 + $0x68] sm:$0xff]
        %v8090 = vld [vmem:[%s7 + $0x70] sm:$0xff]
        %v8091 = vld [vmem:[%s7 + $0x78] sm:$0xff]
        %v8092 = vld [vmem:[%s8 + $0x12] ss:$0 sm:$0xff]
        %8093 = vmatprep.subr.mxu0 0.0
        %8094 = vmatpush1.msra.mxu0 %v8076
        %8095 = vmatprep.subr.mxu0 0.0
        %8096 = vmatpush1.msra.mxu0 %v8077
        %8097 = vmatprep.subr.mxu0 0.0
        %8098 = vmatpush1.msra.mxu0 %v8078
        %8099 = vmatprep.subr.mxu0 0.0
        %8100 = vmatpush1.msra.mxu0 %v8079
        %8101 = vmatprep.subr.mxu0 0.0
        %8102 = vmatpush1.msra.mxu0 %v8080
        %8103 = vmatprep.subr.mxu0 0.0
        %8104 = vmatpush1.msra.mxu0 %v8081
        %8105 = vmatprep.subr.mxu0 0.0
        %8106 = vmatpush1.msra.mxu0 %v8082
        %8107 = vmatprep.subr.mxu0 0.0
        %8108 = vmatpush1.msra.mxu0 %v8083
        %8109 = vmatprep.subr.mxu0 0.0
        %8110 = vmatpush1.msra.mxu0 %v8084
        %8111 = vmatprep.subr.mxu0 0.0
        %8112 = vmatpush1.msra.mxu0 %v8085
        %8113 = vmatprep.subr.mxu0 0.0
        %8114 = vmatpush1.msra.mxu0 %v8086
        %8115 = vmatprep.subr.mxu0 0.0
        %8116 = vmatpush1.msra.mxu0 %v8087
        %8117 = vmatprep.subr.mxu0 0.0
        %8118 = vmatpush1.msra.mxu0 %v8088
        %8119 = vmatprep.subr.mxu0 0.0
        %8120 = vmatpush1.msra.mxu0 %v8089
        %8121 = vmatprep.subr.mxu0 0.0
        %8122 = vmatpush1.msra.mxu0 %v8090
        %8123 = vmatprep.subr.mxu0 0.0
        %8124 = vmatpush1.msra.mxu0 %v8091
        %8125 = vmatprep.subr.mxu0 0.0
        %8126 = vmatpush1.msra.mxu0 0.0
        %8127 = vmatprep.subr.mxu0 0.0
        %8128 = vmatpush1.msra.mxu0 0.0
        %8129 = vmatprep.subr.mxu0 0.0
        %8130 = vmatpush1.msra.mxu0 0.0
        %8131 = vmatprep.subr.mxu0 0.0
        %8132 = vmatpush1.msra.mxu0 0.0
        %8133 = vmatprep.subr.mxu0 0.0
        %8134 = vmatpush1.msra.mxu0 0.0
        %8135 = vmatprep.subr.mxu0 0.0
        %8136 = vmatpush1.msra.mxu0 0.0
        %8137 = vmatprep.subr.mxu0 0.0
        %8138 = vmatpush1.msra.mxu0 0.0
        %8139 = vmatprep.subr.mxu0 0.0
        %8140 = vmatpush1.msra.mxu0 0.0
        %8141 = vmatprep.subr.mxu0 0.0
        %8142 = vmatpush1.msra.mxu0 0.0
        %8143 = vmatprep.subr.mxu0 0.0
        %8144 = vmatpush1.msra.mxu0 0.0
        %8145 = vmatprep.subr.mxu0 0.0
        %8146 = vmatpush1.msra.mxu0 0.0
        %8147 = vmatprep.subr.mxu0 0.0
        %8148 = vmatpush1.msra.mxu0 0.0
        %8149 = vmatprep.subr.mxu0 0.0
        %8150 = vmatpush1.msra.mxu0 0.0
        %8151 = vmatprep.subr.mxu0 0.0
        %8152 = vmatpush1.msra.mxu0 0.0
        %8153 = vmatprep.subr.mxu0 0.0
        %8154 = vmatpush1.msra.mxu0 0.0
        %8155 = vmatprep.subr.mxu0 0.0
        %8156 = vmatpush1.msra.mxu0 0.0
        %8157 = vmatprep.mubr.f32.mxu0 0.0
        %8158 = vmatmul.mubr.f32.gmra.mrb[0].mxu0 %v8074
        %v8159 = vpop.f32.mrb[0].mxu0
        %v8160 = vadd.f32 %v8092, %v8159
        %v8161 = vpop.f32.mrb[0].mxu0
        %8162 = vmatprep.mubr.f32.mxu0 0.0
        %8163 = vmatmul.mubr.f32.gmra.mrb[0].mxu0 %v8075
        %v8164 = vpop.f32.mrb[0].mxu0
        %v8165 = vadd.f32 %v8092, %v8164
        %v8166 = vpop.f32.mrb[0].mxu0
        %8167 = vdwg.mxu0
        %8168 = vst.msk [vmem:[%s748] sm:$0xff] %vm871, %v8160
        %8169 = vst.msk [vmem:[%s748 + $0x8] sm:$0xff] %vm871, %v8165
        %s8170 = smul.u32 2, %s20
        %p8171 = scmp.lt.s32.totalorder %s8170, 3
        %s8172 = scalar_select %p8171, %s8170, 3
        %s8173 = smul.addr %s8172, 8
        %s8174 = scalar_lea.vmem %s9, %s8173
        // Predicated region
        $region95: #{_encoder_forward_impl.1} parent=89 // pred_check
          %p8175 = pneg %p232
        $region96: #{_encoder_forward_impl.1} parent=89 // pred_check_branch
          %8177 = sbr.rel (%p8175) target = $region98
        $region97: #{_encoder_forward_impl.1} parent=89 // pred_region
          %s8178 = smul.u32 2, %s20
        $region98: #{_encoder_forward_impl.1} parent=89 // pred_fallthru
          _
      $region90: #{_encoder_forward_impl.1} parent=5 // pred_fallthru
        _
      %p8179 = scmp.le.s32.totalorder 2, %s15
      // Predicated region
      $region99: #{_encoder_forward_impl.1} parent=5 // pred_check
        %p8180 = pneg %p8179
      $region100: #{_encoder_forward_impl.1} parent=5 // pred_check_branch
        %8182 = sbr.rel (%p8180) target = $region102
      $region101: #{_encoder_forward_impl.1} parent=5 // pred_region
        %s8183 = ssub.s32 %s15, 2
        // Predicated region
        $region103: #{_encoder_forward_impl.1} parent=101 // pred_check
          %p8184 = pneg %p238
        $region104: #{_encoder_forward_impl.1} parent=101 // pred_check_branch
          %8186 = sbr.rel (%p8184) target = $region106
        $region105: #{_encoder_forward_impl.1} parent=101 // pred_region
          %s8187 = smul.u32 2, %s21
          %p8188 = scmp.lt.s32.totalorder %s8187, 3
          %s8189 = scalar_select %p8188, %s8187, 3
          %s8190 = smul.addr %s8189, 8
          %s8191 = scalar_lea.vmem %s9, %s8190
        $region106: #{_encoder_forward_impl.1} parent=101 // pred_fallthru
          _
      $region102: #{_encoder_forward_impl.1} parent=5 // pred_fallthru
        _
    $region6: #{_encoder_forward_impl.1} parent=1 // loop_footer
      %s19 = sadd.s32 1, %s15
    $region7: #{_encoder_forward_impl.1} parent=1 // loop_footer_branch
      %14 = sbr.rel target = $region3
    $region8: #{_encoder_forward_impl.1} parent=1 // loop_exit
      _

</llo_original>
